<compile_context>
chip_gen: v6e
topology: v6e:2x2x1
jax: 0.10.0
libtpu: 0.0.40
codegen_flags: <defaults>
</compile_context>

<pallas_src>
import functools

import numpy as np

import jax
import jax.numpy as jnp
from jax.experimental import pallas as pl
from jax.experimental.pallas import tpu as pltpu


# =============================================================================
# The single fused Pallas kernel
# =============================================================================
def _fused_kernel(*refs, relu_flags, sandwich):
    """Whole autoencoder forward; every intermediate stays in VMEM/vregs.

    sandwich=True : refs = (x3d, A1, R1, b1, T_0, b_0, ..., Ad, Rd, bd, out)
                    x3d is (N, Cin*H, W); first conv / last deconv are per-tap
                    factorised matmuls; the middle is a flat matmul chain.
    sandwich=False: refs = (x2d, T_0, b_0, ..., T_L, b_L, out); pure flat chain.
    """
    f32 = jnp.float32

    if sandwich:
        x_ref, a1_ref, r1_ref, b1_ref = refs[:4]
        ad_ref, rd_ref, bd_ref, out_ref = refs[-4:]
        flat_refs = refs[4:-4]
        wdt = a1_ref.dtype
        n = x_ref.shape[0]

        # --- encoder conv 0 (k=3, s=2, bottom ZeroPad folded):
        #     out = sum_dj  A1[dj] @ (X @ R1[dj])  per sample ---
        x = x_ref[...]                                      # (N, Cin*H, W) f32
        c1_rows, c1_wo = a1_ref.shape[1], r1_ref.shape[2]
        acc = jnp.zeros((n, c1_rows, c1_wo), f32)
        for dj in range(a1_ref.shape[0]):
            r = jnp.broadcast_to(r1_ref[dj], (n,) + r1_ref.shape[1:])
            xr = jnp.einsum("nkw,nwc->nkc", x, r, preferred_element_type=f32)
            a = jnp.broadcast_to(a1_ref[dj], (n,) + a1_ref.shape[1:])
            acc = acc + jnp.einsum("nrk,nkc->nrc", a, xr.astype(wdt),
                                   preferred_element_type=f32)
        h = jnp.maximum(acc + b1_ref[...], 0.0)
        h = h.reshape(n, c1_rows * c1_wo)                   # NCHW flatten order
    else:
        x_ref, out_ref = refs[0], refs[-1]
        flat_refs = refs[1:-1]
        wdt = flat_refs[0].dtype
        n = x_ref.shape[0]
        h = x_ref[...]                                      # (N, features) f32

    # --- flat middle chain: h <- relu?(h @ T_i + b_i) ---
    for i, relu in enumerate(relu_flags):
        t_ref, b_ref = flat_refs[2 * i], flat_refs[2 * i + 1]
        h = jnp.dot(h.astype(wdt), t_ref[...],
                    preferred_element_type=f32) + b_ref[...]
        if relu:
            h = jnp.maximum(h, 0.0)

    if sandwich:
        # --- last ConvTranspose (k=3, s=2, trailing row-slice folded):
        #     out = bias + sum_dj (Ad[dj] @ H) @ Rd[dj]  per sample ---
        rows = ad_ref.shape[2]
        cols = h.shape[1] // rows
        hd = h.reshape(n, rows, cols).astype(wdt)           # (N, Cin*H, W)
        out = jnp.broadcast_to(bd_ref[...], out_ref.shape)
        for dj in range(ad_ref.shape[0]):
            a = jnp.broadcast_to(ad_ref[dj], (n,) + ad_ref.shape[1:])
            t = jnp.einsum("nrk,nkw->nrw", a, hd, preferred_element_type=f32)
            r = jnp.broadcast_to(rd_ref[dj], (n,) + rd_ref.shape[1:])
            out = out + jnp.einsum("nrw,nwc->nrc", t, r, preferred_element_type=f32)
        out_ref[...] = out
    else:
        out_ref[...] = h


@functools.partial(jax.jit,
                   static_argnames=("relu_flags", "sandwich", "out_chw", "flat_width"))
def forward(x, arrays, relu_flags, sandwich, out_chw, flat_width):
    """x: (N, 3, H, W) float32 NCHW.  Returns the reconstructed NCHW image."""
    n = x.shape[0]
    c, oh, ow = out_chw
    if sandwich:
        xk = x.reshape(n, x.shape[1] * x.shape[2], x.shape[3]).astype(jnp.float32)
        out_shape = jax.ShapeDtypeStruct((n, c * oh, ow), jnp.float32)
    else:
        xk = x.reshape(n, -1).astype(jnp.float32)
        out_shape = jax.ShapeDtypeStruct((n, flat_width), jnp.float32)
    args = (xk,) + tuple(arrays)
    out = pl.pallas_call(
        functools.partial(_fused_kernel, relu_flags=relu_flags, sandwich=sandwich),
        out_shape=out_shape,
        in_specs=[pl.BlockSpec(memory_space=pltpu.MemorySpace.VMEM)] * len(args),
        out_specs=pl.BlockSpec(memory_space=pltpu.MemorySpace.VMEM),
    )(*args)
    if sandwich:
        return out.reshape(n, c, oh, ow)
    return out[:, : c * oh * ow].reshape(n, c, oh, ow)


# =============================================================================
# Weight preparation (host-side NumPy)
# =============================================================================
def _conv_toeplitz(w, h_in, w_in, ho, wo, stride):
    """Conv2d weight (Cout,Cin,kh,kw) -> dense (Cin*h_in*w_in, Cout*ho*wo) acting on
    channel-major flattened activations.  Taps in the folded ZeroPad2d rows drop."""
    cout, cin, kh, kw = w.shape
    T = np.zeros((cin * h_in * w_in, cout * ho * wo), np.float32)
    for co in range(cout):
        for ci in range(cin):
            for y in range(ho):
                for x in range(wo):
                    col = (co * ho + y) * wo + x
                    for di in range(kh):
                        r = stride * y + di
                        if r >= h_in:
                            continue
                        for dj in range(kw):
                            c = stride * x + dj
                            if c >= w_in:
                                continue
                            T[(ci * h_in + r) * w_in + c, col] += w[co, ci, di, dj]
    return T


def _deconv_toeplitz(w, h_in, w_in, ho_keep, wo, stride):
    """ConvTranspose2d weight (Cin,Cout,kh,kw) -> dense (Cin*h_in*w_in, Cout*ho_keep*wo).
    Output rows oy >= ho_keep are dropped (folds the trailing x[:, :, :-1, :])."""
    cin, cout, kh, kw = w.shape
    T = np.zeros((cin * h_in * w_in, cout * ho_keep * wo), np.float32)
    for ci in range(cin):
        for co in range(cout):
            for y in range(h_in):
                for x in range(w_in):
                    row = (ci * h_in + y) * w_in + x
                    for di in range(kh):
                        oy = stride * y + di
                        if oy >= ho_keep:
                            continue
                        for dj in range(kw):
                            ox = stride * x + dj
                            if ox >= wo:
                                continue
                            T[row, (co * ho_keep + oy) * wo + ox] += w[ci, co, di, dj]
    return T


def _conv_sandwich(w, b, h_stored, w_in, ho, wo, stride):
    """First Conv2d as per-tap factorised matrices: out = sum_dj A[dj] @ X @ R[dj]."""
    cout, cin, kh, kw = w.shape
    A = np.zeros((kw, cout * ho, cin * h_stored), np.float32)
    R = np.zeros((kw, w_in, wo), np.float32)
    for dj in range(kw):
        for x in range(wo):
            c = stride * x + dj
            if c < w_in:
                R[dj, c, x] = 1.0
        for co in range(cout):
            for y in range(ho):
                for di in range(kh):
                    r = stride * y + di
                    if r >= h_stored:        # tap reads the folded zero padding
                        continue
                    for ci in range(cin):
                        A[dj, co * ho + y, ci * h_stored + r] += w[co, ci, di, dj]
    bmat = np.zeros((1, cout * ho, wo), np.float32)
    for co in range(cout):
        bmat[0, co * ho:(co + 1) * ho, :] = b[co]
    return A, R, bmat


def _deconv_sandwich(w, b, h_in, w_in, ho_keep, wo, stride):
    """Last ConvTranspose2d as per-tap factorised matrices: out = sum_dj (A[dj] @ H) @ R[dj]."""
    cin, cout, kh, kw = w.shape
    A = np.zeros((kw, cout * ho_keep, cin * h_in), np.float32)
    R = np.zeros((kw, w_in, wo), np.float32)
    for dj in range(kw):
        for x in range(w_in):
            ox = stride * x + dj
            if ox < wo:
                R[dj, x, ox] = 1.0
        for co in range(cout):
            for y in range(h_in):
                for di in range(kh):
                    oy = stride * y + di
                    if oy >= ho_keep:        # folds the trailing [:, :, :-1, :]
                        continue
                    for ci in range(cin):
                        A[dj, co * ho_keep + oy, ci * h_in + y] += w[ci, co, di, dj]
    bmat = np.zeros((1, cout * ho_keep, wo), np.float32)
    for co in range(cout):
        bmat[0, co * ho_keep:(co + 1) * ho_keep, :] = b[co]
    return A, R, bmat


def prepare(params, height, width, kernel_sizes, use_sandwich):
    """Fold the whole autoencoder into kernel operands (NumPy float32)."""
    assert len(kernel_sizes) >= 2
    np32 = np.float32
    enc = [(np.asarray(w, np32), np.asarray(b, np32)) for (w, b) in params["encoder"]]
    dec = [(np.asarray(w, np32), np.asarray(b, np32)) for (w, b) in params["decoder"]]
    Wb, bb = (np.asarray(a, np32) for a in params["bottleneck"])
    Wu, bu = (np.asarray(a, np32) for a in params["unbottleneck"])

    flat = []                           # list of [T, bias_row, relu]
    pad_bottom = 3                      # nn.ZeroPad2d((0, 0, 0, 3))

    # ----- encoder -----
    h, w = height, width
    w0, b0 = enc[0]
    ho = (h + pad_bottom - 3) // 2 + 1
    wo = (w - 3) // 2 + 1
    if use_sandwich:
        head = _conv_sandwich(w0, b0, h, w, ho, wo, stride=2)
    else:
        head = None
        flat.append([_conv_toeplitz(w0, h, w, ho, wo, stride=2),
                     np.repeat(b0, ho * wo)[None, :].astype(np32), True])
    h, w = ho, wo
    for (wt, bt) in enc[1:]:
        ho, wo = (h - 3) // 2 + 1, (w - 3) // 2 + 1
        flat.append([_conv_toeplitz(wt, h, w, ho, wo, stride=2),
                     np.repeat(bt, ho * wo)[None, :].astype(np32), True])
        h, w = ho, wo

    # ----- bottleneck o unbottleneck o decoder[0] folded (no ReLU in between) -----
    wd0, bd0 = dec[0]
    ho, wo = (h - 1) * 2 + 3, (w - 1) * 2 + 3
    Td0 = _deconv_toeplitz(wd0, h, w, ho, wo, stride=2)
    bd0_row = np.repeat(bd0, ho * wo)[None, :].astype(np32)
    WuTd0 = Wu.T @ Td0
    M = Wb.T @ WuTd0
    brow = bb[None, :] @ WuTd0 + bu[None, :] @ Td0 + bd0_row
    flat.append([M, brow, True])        # ReLU follows decoder[0] (len(dec) >= 2)
    h, w = ho, wo

    # ----- middle decoder layers (each followed by ReLU) -----
    for (wt, bt) in dec[1:-1]:
        ho, wo = (h - 1) * 2 + 3, (w - 1) * 2 + 3
        flat.append([_deconv_toeplitz(wt, h, w, ho, wo, stride=2),
                     np.repeat(bt, ho * wo)[None, :].astype(np32), True])
        h, w = ho, wo

    # ----- last decoder layer (no ReLU, [:, :, :-1, :] folded) -----
    wdl, bdl = dec[-1]
    cout_l = wdl.shape[1]
    ho, wo = (h - 1) * 2 + 3, (w - 1) * 2 + 3
    ho_keep = ho - 1
    if use_sandwich:
        tail = _deconv_sandwich(wdl, bdl, h, w, ho_keep, wo, stride=2)
    else:
        tail = None
        flat.append([_deconv_toeplitz(wdl, h, w, ho_keep, wo, stride=2),
                     np.repeat(bdl, ho_keep * wo)[None, :].astype(np32), False])

    # ----- lane-pad flat widths to multiples of 128 (zero cols/rows; exact) -----
    pad_last = tail is None
    for i in range(len(flat)):
        last = i == len(flat) - 1
        if last and not pad_last:
            break
        T, brow_i, rl = flat[i]
        wp = (-T.shape[1]) % 128
        if wp:
            flat[i] = [np.pad(T, ((0, 0), (0, wp))),
                       np.pad(brow_i, ((0, 0), (0, wp))), rl]
            if not last:
                flat[i + 1][0] = np.pad(flat[i + 1][0], ((0, wp), (0, 0)))

    return {"head": head, "flat": flat, "tail": tail,
            "out_chw": (int(cout_l), int(ho_keep), int(wo))}


def pack_arrays(prep, weights_dtype):
    """NumPy prep -> (device arrays, static kwargs) for `forward`."""
    f32 = jnp.float32
    arrays, relu_flags = [], []
    if prep["head"] is not None:
        A1, R1, b1 = prep["head"]
        arrays += [jnp.asarray(A1, weights_dtype), jnp.asarray(R1, f32),
                   jnp.asarray(b1, f32)]
    for T, brow, relu in prep["flat"]:
        arrays += [jnp.asarray(T, weights_dtype), jnp.asarray(brow, f32)]
        relu_flags.append(bool(relu))
    if prep["tail"] is not None:
        Ad, Rd, bd = prep["tail"]
        arrays += [jnp.asarray(Ad, weights_dtype), jnp.asarray(Rd, f32),
                   jnp.asarray(bd, f32)]
    c, oh, ow = prep["out_chw"]
    flat_width = (int(prep["flat"][-1][0].shape[1]) if prep["tail"] is None
                  else int(c * oh * ow))
    static = dict(relu_flags=tuple(relu_flags), sandwich=prep["head"] is not None,
                  out_chw=(c, oh, ow), flat_width=flat_width)
    return tuple(arrays), static


# =============================================================================
# Host-side float64 checks (exact-fold validation, per review feedback)
# =============================================================================
def host_apply(prep, x):
    """Apply the folded operators in float64 NumPy (mirrors the kernel math)."""
    n = x.shape[0]
    x = np.asarray(x, np.float64)
    if prep["head"] is not None:
        A1, R1, b1 = (a.astype(np.float64) for a in prep["head"])
        h3 = x.reshape(n, -1, x.shape[-1])
        acc = np.zeros((n, A1.shape[1], R1.shape[2]))
        for dj in range(A1.shape[0]):
            acc += np.einsum("rk,nkw,wc->nrc", A1[dj], h3, R1[dj])
        h = np.maximum(acc + b1, 0.0).reshape(n, -1)
    else:
        h = x.reshape(n, -1)
    for T, brow, relu in prep["flat"]:
        h = h @ T.astype(np.float64) + brow.astype(np.float64)
        if relu:
            h = np.maximum(h, 0.0)
    c, oh, ow = prep["out_chw"]
    if prep["tail"] is not None:
        Ad, Rd, bd = (a.astype(np.float64) for a in prep["tail"])
        rows = Ad.shape[2]
        hd = h.reshape(n, rows, -1)
        out = np.broadcast_to(bd, (n,) + bd.shape[1:])
        for dj in range(Ad.shape[0]):
            out = out + np.einsum("rk,nkw,wc->nrc", Ad[dj], hd, Rd[dj])
        return out.reshape(n, c, oh, ow)
    return h[:, : c * oh * ow].reshape(n, c, oh, ow)


def _np_conv2d(x, w, b, stride):
    n, cin, h, wd = x.shape
    cout, _, kh, kw = w.shape
    ho, wo = (h - kh) // stride + 1, (wd - kw) // stride + 1
    out = np.zeros((n, cout, ho, wo)) + b[None, :, None, None]
    for di in range(kh):
        for dj in range(kw):
            xs = x[:, :, di:di + stride * (ho - 1) + 1:stride,
                         dj:dj + stride * (wo - 1) + 1:stride]
            out += np.einsum("ncyx,oc->noyx", xs, w[:, :, di, dj])
    return out


def _np_deconv2d(x, w, b, stride):
    n, cin, h, wd = x.shape
    _, cout, kh, kw = w.shape
    ho, wo = (h - 1) * stride + kh, (wd - 1) * stride + kw
    out = np.zeros((n, cout, ho, wo))
    for di in range(kh):
        for dj in range(kw):
            out[:, :, di:di + stride * (h - 1) + 1:stride,
                      dj:dj + stride * (wd - 1) + 1:stride] += \
                np.einsum("ncyx,co->noyx", x, w[:, :, di, dj])
    return out + b[None, :, None, None]


def reference_np(params, x, kernel_sizes):
    """float64 NumPy transcription of the torch module's forward."""
    x = np.asarray(x, np.float64)
    n = x.shape[0]
    x = np.pad(x, ((0, 0), (0, 0), (0, 3), (0, 0)))          # ZeroPad2d((0,0,0,3))
    for (w, b) in params["encoder"]:
        x = np.maximum(_np_conv2d(x, np.asarray(w, np.float64),
                                  np.asarray(b, np.float64), 2), 0.0)
    x = x.reshape(n, -1)
    Wb, bb = (np.asarray(a, np.float64) for a in params["bottleneck"])
    x = x @ Wb.T + bb
    Wu, bu = (np.asarray(a, np.float64) for a in params["unbottleneck"])
    x = x @ Wu.T + bu
    c, hs, ws = params["shape"]
    x = x.reshape(n, c, hs, ws)
    ndec = len(params["decoder"])
    for i, (w, b) in enumerate(params["decoder"]):
        x = _np_deconv2d(x, np.asarray(w, np.float64), np.asarray(b, np.float64), 2)
        if i < ndec - 1:
            x = np.maximum(x, 0.0)
    return x[:, :, :-1, :]


# =============================================================================
# Deterministic synthetic parameters (torch layouts)
# =============================================================================
def init_params(key, height, width, latent_dim, kernel_sizes):
    keys = iter(jax.random.split(key, 4 * len(kernel_sizes) + 8))
    params = {}
    enc = []
    for cin, cout in zip([3] + kernel_sizes[:-1], kernel_sizes):
        w = jax.random.normal(next(keys), (cout, cin, 3, 3), jnp.float32) / jnp.sqrt(cin * 9.0)
        b = 0.01 * jax.random.normal(next(keys), (cout,), jnp.float32)
        enc.append((w, b))
    params["encoder"] = enc

    h, w_ = height + 3, width            # encoder output spatial probe
    for _ in kernel_sizes:
        h, w_ = (h - 3) // 2 + 1, (w_ - 3) // 2 + 1
    params["shape"] = (kernel_sizes[-1], h, w_)
    feat = kernel_sizes[-1] * h * w_

    wb = jax.random.normal(next(keys), (latent_dim, feat), jnp.float32) / jnp.sqrt(float(feat))
    bb = 0.01 * jax.random.normal(next(keys), (latent_dim,), jnp.float32)
    params["bottleneck"] = (wb, bb)
    wu = jax.random.normal(next(keys), (feat, latent_dim), jnp.float32) / jnp.sqrt(float(latent_dim))
    bu = 0.01 * jax.random.normal(next(keys), (feat,), jnp.float32)
    params["unbottleneck"] = (wu, bu)

    dec = []
    for cin, cout in zip(kernel_sizes[::-1], kernel_sizes[:-1][::-1] + [3]):
        w = jax.random.normal(next(keys), (cin, cout, 3, 3), jnp.float32) / jnp.sqrt(cin * 9.0)
        b = 0.01 * jax.random.normal(next(keys), (cout,), jnp.float32)
        dec.append((w, b))
    params["decoder"] = dec
    return params


if __name__ == "__main__":
    height, width, latent_dim = 16, 16, 32
    kernel_sizes = [4, 8]
    batch = 8                                  # >= 1 sublane group of MXU rows

    key = jax.random.PRNGKey(0)
    kparams, kx = jax.random.split(key)
    params = init_params(kparams, height, width, latent_dim, kernel_sizes)
    x = jax.random.normal(kx, (batch, 3, height, width), jnp.float32)
    x_np = np.asarray(x)

    ref = reference_np(params, x_np, kernel_sizes)          # float64 reference

    out = None
    modes = (True, False)                     # per-tap factorised first, dense fallback
    for idx, use_sandwich in enumerate(modes):
        try:
            prep = prepare(params, height, width, kernel_sizes, use_sandwich)

            # Exact-fold check: folded operators applied in float64 on the host.
            host_out = host_apply(prep, x_np)
            host_err = float(np.max(np.abs(host_out - ref)))
            assert host_err < 1e-6, f"fold mismatch (host f64): {host_err}"

            # Production path: bf16 weights, f32 accumulation, on TPU.
            arrays, static = pack_arrays(prep, jnp.bfloat16)
            out = jax.block_until_ready(forward(x, arrays, **static))
            dev_err = float(jnp.max(jnp.abs(out - ref.astype(np.float32))))
            assert dev_err < 6e-2, f"bf16 kernel mismatch: {dev_err}"
            break
        except Exception:                     # fall back to the dense-fold kernel
            if idx == len(modes) - 1:
                raise
            out = None

    # Torch shape trace: pad->(N,3,19,16); enc->(N,4,9,7)->(N,8,4,3);
    # dec->(N,4,9,7)->(N,3,19,15); slice->(N,3,18,15)
    assert out is not None
    assert out.shape == (batch, 3, 18, 15), out.shape
    assert out.dtype == jnp.float32
    print("KERNEL_OK")
</pallas_src>

<mosaic_0001>
module attributes {stable_mosaic.version = 11 : i64} {
  func.func @_fused_kernel(%arg0: memref<8x48x16xf32, #tpu.memory_space<vmem>>, %arg1: memref<3x36x48xbf16, #tpu.memory_space<vmem>>, %arg2: memref<3x16x7xf32, #tpu.memory_space<vmem>>, %arg3: memref<1x36x7xf32, #tpu.memory_space<vmem>>, %arg4: memref<252x128xbf16, #tpu.memory_space<vmem>>, %arg5: memref<1x128xf32, #tpu.memory_space<vmem>>, %arg6: memref<128x252xbf16, #tpu.memory_space<vmem>>, %arg7: memref<1x252xf32, #tpu.memory_space<vmem>>, %arg8: memref<3x54x36xbf16, #tpu.memory_space<vmem>>, %arg9: memref<3x7x15xf32, #tpu.memory_space<vmem>>, %arg10: memref<1x54x15xf32, #tpu.memory_space<vmem>>, %arg11: memref<8x54x15xf32, #tpu.memory_space<vmem>>) attributes {dimension_semantics = [], scalar_prefetch = 0 : i64, scratch_operands = 0 : i64, tpu.core_type = #tpu.core_type<tc>} {
    %c0 = arith.constant 0 : index
    %c0_0 = arith.constant 0 : index
    %c0_1 = arith.constant 0 : index
    %0 = vector.load %arg0[%c0, %c0_0, %c0_1] : memref<8x48x16xf32, #tpu.memory_space<vmem>>, vector<8x48x16xf32>
    %cst = arith.constant 0.000000e+00 : f32
    %1 = vector.broadcast %cst : f32 to vector<8x36x7xf32>
    %c0_2 = arith.constant 0 : index
    %c0_3 = arith.constant 0 : index
    %c0_4 = arith.constant 0 : index
    %2 = vector.load %arg2[%c0_2, %c0_3, %c0_4] : memref<3x16x7xf32, #tpu.memory_space<vmem>>, vector<1x16x7xf32>
    %3 = vector.shape_cast %2 : vector<1x16x7xf32> to vector<16x7xf32>
    %4 = vector.shape_cast %3 : vector<16x7xf32> to vector<1x16x7xf32>
    %5 = vector.broadcast %4 : vector<1x16x7xf32> to vector<8x16x7xf32>
    "tpu.trace_start"() <{level = 10 : i32, message = "nkw,nwc->nkc"}> : () -> ()
    %cst_5 = arith.constant dense<0.000000e+00> : vector<8x48x7xf32>
    %6 = tpu.matmul %0, %5, %cst_5 {dimension_numbers = #tpu.dot_dimension_numbers<[2], [1], [1], [2], [0, 0, 0, 1, 1, 2], [0], [0]>} : vector<8x48x16xf32>, vector<8x16x7xf32>, vector<8x48x7xf32> -> vector<8x48x7xf32>
    "tpu.trace_stop"() : () -> ()
    %c0_6 = arith.constant 0 : index
    %c0_7 = arith.constant 0 : index
    %c0_8 = arith.constant 0 : index
    %7 = vector.load %arg1[%c0_6, %c0_7, %c0_8] : memref<3x36x48xbf16, #tpu.memory_space<vmem>>, vector<1x36x48xbf16>
    %8 = vector.shape_cast %7 : vector<1x36x48xbf16> to vector<36x48xbf16>
    %9 = vector.shape_cast %8 : vector<36x48xbf16> to vector<1x36x48xbf16>
    %10 = vector.broadcast %9 : vector<1x36x48xbf16> to vector<8x36x48xbf16>
    %11 = arith.truncf %6 : vector<8x48x7xf32> to vector<8x48x7xbf16>
    "tpu.trace_start"() <{level = 10 : i32, message = "nrk,nkc->nrc"}> : () -> ()
    %cst_9 = arith.constant dense<0.000000e+00> : vector<8x36x7xf32>
    %12 = tpu.matmul %10, %11, %cst_9 {dimension_numbers = #tpu.dot_dimension_numbers<[2], [1], [1], [2], [0, 0, 0, 1, 1, 2], [0], [0]>} : vector<8x36x48xbf16>, vector<8x48x7xbf16>, vector<8x36x7xf32> -> vector<8x36x7xf32>
    "tpu.trace_stop"() : () -> ()
    %13 = arith.addf %1, %12 : vector<8x36x7xf32>
    %c1 = arith.constant 1 : index
    %c0_10 = arith.constant 0 : index
    %c0_11 = arith.constant 0 : index
    %14 = vector.load %arg2[%c1, %c0_10, %c0_11] : memref<3x16x7xf32, #tpu.memory_space<vmem>>, vector<1x16x7xf32>
    %15 = vector.shape_cast %14 : vector<1x16x7xf32> to vector<16x7xf32>
    %16 = vector.shape_cast %15 : vector<16x7xf32> to vector<1x16x7xf32>
    %17 = vector.broadcast %16 : vector<1x16x7xf32> to vector<8x16x7xf32>
    "tpu.trace_start"() <{level = 10 : i32, message = "nkw,nwc->nkc"}> : () -> ()
    %cst_12 = arith.constant dense<0.000000e+00> : vector<8x48x7xf32>
    %18 = tpu.matmul %0, %17, %cst_12 {dimension_numbers = #tpu.dot_dimension_numbers<[2], [1], [1], [2], [0, 0, 0, 1, 1, 2], [0], [0]>} : vector<8x48x16xf32>, vector<8x16x7xf32>, vector<8x48x7xf32> -> vector<8x48x7xf32>
    "tpu.trace_stop"() : () -> ()
    %c1_13 = arith.constant 1 : index
    %c0_14 = arith.constant 0 : index
    %c0_15 = arith.constant 0 : index
    %19 = vector.load %arg1[%c1_13, %c0_14, %c0_15] : memref<3x36x48xbf16, #tpu.memory_space<vmem>>, vector<1x36x48xbf16>
    %20 = vector.shape_cast %19 : vector<1x36x48xbf16> to vector<36x48xbf16>
    %21 = vector.shape_cast %20 : vector<36x48xbf16> to vector<1x36x48xbf16>
    %22 = vector.broadcast %21 : vector<1x36x48xbf16> to vector<8x36x48xbf16>
    %23 = arith.truncf %18 : vector<8x48x7xf32> to vector<8x48x7xbf16>
    "tpu.trace_start"() <{level = 10 : i32, message = "nrk,nkc->nrc"}> : () -> ()
    %cst_16 = arith.constant dense<0.000000e+00> : vector<8x36x7xf32>
    %24 = tpu.matmul %22, %23, %cst_16 {dimension_numbers = #tpu.dot_dimension_numbers<[2], [1], [1], [2], [0, 0, 0, 1, 1, 2], [0], [0]>} : vector<8x36x48xbf16>, vector<8x48x7xbf16>, vector<8x36x7xf32> -> vector<8x36x7xf32>
    "tpu.trace_stop"() : () -> ()
    %25 = arith.addf %13, %24 : vector<8x36x7xf32>
    %c2 = arith.constant 2 : index
    %c0_17 = arith.constant 0 : index
    %c0_18 = arith.constant 0 : index
    %26 = vector.load %arg2[%c2, %c0_17, %c0_18] : memref<3x16x7xf32, #tpu.memory_space<vmem>>, vector<1x16x7xf32>
    %27 = vector.shape_cast %26 : vector<1x16x7xf32> to vector<16x7xf32>
    %28 = vector.shape_cast %27 : vector<16x7xf32> to vector<1x16x7xf32>
    %29 = vector.broadcast %28 : vector<1x16x7xf32> to vector<8x16x7xf32>
    "tpu.trace_start"() <{level = 10 : i32, message = "nkw,nwc->nkc"}> : () -> ()
    %cst_19 = arith.constant dense<0.000000e+00> : vector<8x48x7xf32>
    %30 = tpu.matmul %0, %29, %cst_19 {dimension_numbers = #tpu.dot_dimension_numbers<[2], [1], [1], [2], [0, 0, 0, 1, 1, 2], [0], [0]>} : vector<8x48x16xf32>, vector<8x16x7xf32>, vector<8x48x7xf32> -> vector<8x48x7xf32>
    "tpu.trace_stop"() : () -> ()
    %c2_20 = arith.constant 2 : index
    %c0_21 = arith.constant 0 : index
    %c0_22 = arith.constant 0 : index
    %31 = vector.load %arg1[%c2_20, %c0_21, %c0_22] : memref<3x36x48xbf16, #tpu.memory_space<vmem>>, vector<1x36x48xbf16>
    %32 = vector.shape_cast %31 : vector<1x36x48xbf16> to vector<36x48xbf16>
    %33 = vector.shape_cast %32 : vector<36x48xbf16> to vector<1x36x48xbf16>
    %34 = vector.broadcast %33 : vector<1x36x48xbf16> to vector<8x36x48xbf16>
    %35 = arith.truncf %30 : vector<8x48x7xf32> to vector<8x48x7xbf16>
    "tpu.trace_start"() <{level = 10 : i32, message = "nrk,nkc->nrc"}> : () -> ()
    %cst_23 = arith.constant dense<0.000000e+00> : vector<8x36x7xf32>
    %36 = tpu.matmul %34, %35, %cst_23 {dimension_numbers = #tpu.dot_dimension_numbers<[2], [1], [1], [2], [0, 0, 0, 1, 1, 2], [0], [0]>} : vector<8x36x48xbf16>, vector<8x48x7xbf16>, vector<8x36x7xf32> -> vector<8x36x7xf32>
    "tpu.trace_stop"() : () -> ()
    %37 = arith.addf %25, %36 : vector<8x36x7xf32>
    %c0_24 = arith.constant 0 : index
    %c0_25 = arith.constant 0 : index
    %c0_26 = arith.constant 0 : index
    %38 = vector.load %arg3[%c0_24, %c0_25, %c0_26] : memref<1x36x7xf32, #tpu.memory_space<vmem>>, vector<1x36x7xf32>
    %39 = vector.broadcast %38 : vector<1x36x7xf32> to vector<8x36x7xf32>
    %40 = arith.addf %37, %39 : vector<8x36x7xf32>
    %cst_27 = arith.constant 0.000000e+00 : f32
    %41 = vector.broadcast %cst_27 : f32 to vector<8x36x7xf32>
    %42 = arith.maximumf %40, %41 : vector<8x36x7xf32>
    %43 = vector.shape_cast %42 : vector<8x36x7xf32> to vector<8x252xf32>
    %44 = arith.truncf %43 : vector<8x252xf32> to vector<8x252xbf16>
    %c0_28 = arith.constant 0 : index
    %c0_29 = arith.constant 0 : index
    %45 = vector.load %arg4[%c0_28, %c0_29] : memref<252x128xbf16, #tpu.memory_space<vmem>>, vector<252x128xbf16>
    %cst_30 = arith.constant dense<0.000000e+00> : vector<8x128xf32>
    %46 = tpu.matmul %44, %45, %cst_30 {dimension_numbers = #tpu.dot_dimension_numbers<[1], [0], [0], [1], [0, 0, 1, 1], [], []>} : vector<8x252xbf16>, vector<252x128xbf16>, vector<8x128xf32> -> vector<8x128xf32>
    %c0_31 = arith.constant 0 : index
    %c0_32 = arith.constant 0 : index
    %47 = vector.load %arg5[%c0_31, %c0_32] : memref<1x128xf32, #tpu.memory_space<vmem>>, vector<1x128xf32>
    %48 = vector.broadcast %47 : vector<1x128xf32> to vector<8x128xf32>
    %49 = arith.addf %46, %48 : vector<8x128xf32>
    %cst_33 = arith.constant 0.000000e+00 : f32
    %50 = vector.broadcast %cst_33 : f32 to vector<8x128xf32>
    %51 = arith.maximumf %49, %50 : vector<8x128xf32>
    %52 = arith.truncf %51 : vector<8x128xf32> to vector<8x128xbf16>
    %c0_34 = arith.constant 0 : index
    %c0_35 = arith.constant 0 : index
    %53 = vector.load %arg6[%c0_34, %c0_35] : memref<128x252xbf16, #tpu.memory_space<vmem>>, vector<128x252xbf16>
    %cst_36 = arith.constant dense<0.000000e+00> : vector<8x252xf32>
    %54 = tpu.matmul %52, %53, %cst_36 {dimension_numbers = #tpu.dot_dimension_numbers<[1], [0], [0], [1], [0, 0, 1, 1], [], []>} : vector<8x128xbf16>, vector<128x252xbf16>, vector<8x252xf32> -> vector<8x252xf32>
    %c0_37 = arith.constant 0 : index
    %c0_38 = arith.constant 0 : index
    %55 = vector.load %arg7[%c0_37, %c0_38] : memref<1x252xf32, #tpu.memory_space<vmem>>, vector<1x252xf32>
    %56 = vector.broadcast %55 : vector<1x252xf32> to vector<8x252xf32>
    %57 = arith.addf %54, %56 : vector<8x252xf32>
    %cst_39 = arith.constant 0.000000e+00 : f32
    %58 = vector.broadcast %cst_39 : f32 to vector<8x252xf32>
    %59 = arith.maximumf %57, %58 : vector<8x252xf32>
    %60 = vector.shape_cast %59 : vector<8x252xf32> to vector<8x36x7xf32>
    %61 = arith.truncf %60 : vector<8x36x7xf32> to vector<8x36x7xbf16>
    %c0_40 = arith.constant 0 : index
    %c0_41 = arith.constant 0 : index
    %c0_42 = arith.constant 0 : index
    %62 = vector.load %arg10[%c0_40, %c0_41, %c0_42] : memref<1x54x15xf32, #tpu.memory_space<vmem>>, vector<1x54x15xf32>
    %63 = vector.shape_cast %62 : vector<1x54x15xf32> to vector<1x54x15xf32>
    %64 = vector.broadcast %63 : vector<1x54x15xf32> to vector<8x54x15xf32>
    %c0_43 = arith.constant 0 : index
    %c0_44 = arith.constant 0 : index
    %c0_45 = arith.constant 0 : index
    %65 = vector.load %arg8[%c0_43, %c0_44, %c0_45] : memref<3x54x36xbf16, #tpu.memory_space<vmem>>, vector<1x54x36xbf16>
    %66 = vector.shape_cast %65 : vector<1x54x36xbf16> to vector<54x36xbf16>
    %67 = vector.shape_cast %66 : vector<54x36xbf16> to vector<1x54x36xbf16>
    %68 = vector.broadcast %67 : vector<1x54x36xbf16> to vector<8x54x36xbf16>
    "tpu.trace_start"() <{level = 10 : i32, message = "nrk,nkw->nrw"}> : () -> ()
    %cst_46 = arith.constant dense<0.000000e+00> : vector<8x54x7xf32>
    %69 = tpu.matmul %68, %61, %cst_46 {dimension_numbers = #tpu.dot_dimension_numbers<[2], [1], [1], [2], [0, 0, 0, 1, 1, 2], [0], [0]>} : vector<8x54x36xbf16>, vector<8x36x7xbf16>, vector<8x54x7xf32> -> vector<8x54x7xf32>
    "tpu.trace_stop"() : () -> ()
    %c0_47 = arith.constant 0 : index
    %c0_48 = arith.constant 0 : index
    %c0_49 = arith.constant 0 : index
    %70 = vector.load %arg9[%c0_47, %c0_48, %c0_49] : memref<3x7x15xf32, #tpu.memory_space<vmem>>, vector<1x7x15xf32>
    %71 = vector.shape_cast %70 : vector<1x7x15xf32> to vector<7x15xf32>
    %72 = vector.shape_cast %71 : vector<7x15xf32> to vector<1x7x15xf32>
    %73 = vector.broadcast %72 : vector<1x7x15xf32> to vector<8x7x15xf32>
    "tpu.trace_start"() <{level = 10 : i32, message = "nrw,nwc->nrc"}> : () -> ()
    %cst_50 = arith.constant dense<0.000000e+00> : vector<8x54x15xf32>
    %74 = tpu.matmul %69, %73, %cst_50 {dimension_numbers = #tpu.dot_dimension_numbers<[2], [1], [1], [2], [0, 0, 0, 1, 1, 2], [0], [0]>} : vector<8x54x7xf32>, vector<8x7x15xf32>, vector<8x54x15xf32> -> vector<8x54x15xf32>
    "tpu.trace_stop"() : () -> ()
    %75 = arith.addf %64, %74 : vector<8x54x15xf32>
    %c1_51 = arith.constant 1 : index
    %c0_52 = arith.constant 0 : index
    %c0_53 = arith.constant 0 : index
    %76 = vector.load %arg8[%c1_51, %c0_52, %c0_53] : memref<3x54x36xbf16, #tpu.memory_space<vmem>>, vector<1x54x36xbf16>
    %77 = vector.shape_cast %76 : vector<1x54x36xbf16> to vector<54x36xbf16>
    %78 = vector.shape_cast %77 : vector<54x36xbf16> to vector<1x54x36xbf16>
    %79 = vector.broadcast %78 : vector<1x54x36xbf16> to vector<8x54x36xbf16>
    "tpu.trace_start"() <{level = 10 : i32, message = "nrk,nkw->nrw"}> : () -> ()
    %cst_54 = arith.constant dense<0.000000e+00> : vector<8x54x7xf32>
    %80 = tpu.matmul %79, %61, %cst_54 {dimension_numbers = #tpu.dot_dimension_numbers<[2], [1], [1], [2], [0, 0, 0, 1, 1, 2], [0], [0]>} : vector<8x54x36xbf16>, vector<8x36x7xbf16>, vector<8x54x7xf32> -> vector<8x54x7xf32>
    "tpu.trace_stop"() : () -> ()
    %c1_55 = arith.constant 1 : index
    %c0_56 = arith.constant 0 : index
    %c0_57 = arith.constant 0 : index
    %81 = vector.load %arg9[%c1_55, %c0_56, %c0_57] : memref<3x7x15xf32, #tpu.memory_space<vmem>>, vector<1x7x15xf32>
    %82 = vector.shape_cast %81 : vector<1x7x15xf32> to vector<7x15xf32>
    %83 = vector.shape_cast %82 : vector<7x15xf32> to vector<1x7x15xf32>
    %84 = vector.broadcast %83 : vector<1x7x15xf32> to vector<8x7x15xf32>
    "tpu.trace_start"() <{level = 10 : i32, message = "nrw,nwc->nrc"}> : () -> ()
    %cst_58 = arith.constant dense<0.000000e+00> : vector<8x54x15xf32>
    %85 = tpu.matmul %80, %84, %cst_58 {dimension_numbers = #tpu.dot_dimension_numbers<[2], [1], [1], [2], [0, 0, 0, 1, 1, 2], [0], [0]>} : vector<8x54x7xf32>, vector<8x7x15xf32>, vector<8x54x15xf32> -> vector<8x54x15xf32>
    "tpu.trace_stop"() : () -> ()
    %86 = arith.addf %75, %85 : vector<8x54x15xf32>
    %c2_59 = arith.constant 2 : index
    %c0_60 = arith.constant 0 : index
    %c0_61 = arith.constant 0 : index
    %87 = vector.load %arg8[%c2_59, %c0_60, %c0_61] : memref<3x54x36xbf16, #tpu.memory_space<vmem>>, vector<1x54x36xbf16>
    %88 = vector.shape_cast %87 : vector<1x54x36xbf16> to vector<54x36xbf16>
    %89 = vector.shape_cast %88 : vector<54x36xbf16> to vector<1x54x36xbf16>
    %90 = vector.broadcast %89 : vector<1x54x36xbf16> to vector<8x54x36xbf16>
    "tpu.trace_start"() <{level = 10 : i32, message = "nrk,nkw->nrw"}> : () -> ()
    %cst_62 = arith.constant dense<0.000000e+00> : vector<8x54x7xf32>
    %91 = tpu.matmul %90, %61, %cst_62 {dimension_numbers = #tpu.dot_dimension_numbers<[2], [1], [1], [2], [0, 0, 0, 1, 1, 2], [0], [0]>} : vector<8x54x36xbf16>, vector<8x36x7xbf16>, vector<8x54x7xf32> -> vector<8x54x7xf32>
    "tpu.trace_stop"() : () -> ()
    %c2_63 = arith.constant 2 : index
    %c0_64 = arith.constant 0 : index
    %c0_65 = arith.constant 0 : index
    %92 = vector.load %arg9[%c2_63, %c0_64, %c0_65] : memref<3x7x15xf32, #tpu.memory_space<vmem>>, vector<1x7x15xf32>
    %93 = vector.shape_cast %92 : vector<1x7x15xf32> to vector<7x15xf32>
    %94 = vector.shape_cast %93 : vector<7x15xf32> to vector<1x7x15xf32>
    %95 = vector.broadcast %94 : vector<1x7x15xf32> to vector<8x7x15xf32>
    "tpu.trace_start"() <{level = 10 : i32, message = "nrw,nwc->nrc"}> : () -> ()
    %cst_66 = arith.constant dense<0.000000e+00> : vector<8x54x15xf32>
    %96 = tpu.matmul %91, %95, %cst_66 {dimension_numbers = #tpu.dot_dimension_numbers<[2], [1], [1], [2], [0, 0, 0, 1, 1, 2], [0], [0]>} : vector<8x54x7xf32>, vector<8x7x15xf32>, vector<8x54x15xf32> -> vector<8x54x15xf32>
    "tpu.trace_stop"() : () -> ()
    %97 = arith.addf %86, %96 : vector<8x54x15xf32>
    %c0_67 = arith.constant 0 : index
    %c0_68 = arith.constant 0 : index
    %c0_69 = arith.constant 0 : index
    %98 = vector.load %arg11[%c0_67, %c0_68, %c0_69] : memref<8x54x15xf32, #tpu.memory_space<vmem>>, vector<8x54x15xf32>
    tpu.vector_store %arg11[%c0_67, %c0_68, %c0_69], %97 {strides = array<i32>} : memref<8x54x15xf32, #tpu.memory_space<vmem>>, vector<8x54x15xf32>,
    return
  }
}

module attributes {stable_mosaic.version = 11 : i64} {
  func.func @_fused_kernel(%arg0: memref<8x768xf32, #tpu.memory_space<vmem>>, %arg1: memref<768x256xbf16, #tpu.memory_space<vmem>>, %arg2: memref<1x256xf32, #tpu.memory_space<vmem>>, %arg3: memref<256x128xbf16, #tpu.memory_space<vmem>>, %arg4: memref<1x128xf32, #tpu.memory_space<vmem>>, %arg5: memref<128x256xbf16, #tpu.memory_space<vmem>>, %arg6: memref<1x256xf32, #tpu.memory_space<vmem>>, %arg7: memref<256x896xbf16, #tpu.memory_space<vmem>>, %arg8: memref<1x896xf32, #tpu.memory_space<vmem>>, %arg9: memref<8x896xf32, #tpu.memory_space<vmem>>) attributes {dimension_semantics = [], scalar_prefetch = 0 : i64, scratch_operands = 0 : i64, tpu.core_type = #tpu.core_type<tc>} {
    %c0 = arith.constant 0 : index
    %c0_0 = arith.constant 0 : index
    %0 = vector.load %arg0[%c0, %c0_0] : memref<8x768xf32, #tpu.memory_space<vmem>>, vector<8x768xf32>
    %1 = arith.truncf %0 : vector<8x768xf32> to vector<8x768xbf16>
    %c0_1 = arith.constant 0 : index
    %c0_2 = arith.constant 0 : index
    %2 = vector.load %arg1[%c0_1, %c0_2] : memref<768x256xbf16, #tpu.memory_space<vmem>>, vector<768x256xbf16>
    %cst = arith.constant dense<0.000000e+00> : vector<8x256xf32>
    %3 = tpu.matmul %1, %2, %cst {dimension_numbers = #tpu.dot_dimension_numbers<[1], [0], [0], [1], [0, 0, 1, 1], [], []>} : vector<8x768xbf16>, vector<768x256xbf16>, vector<8x256xf32> -> vector<8x256xf32>
    %c0_3 = arith.constant 0 : index
    %c0_4 = arith.constant 0 : index
    %4 = vector.load %arg2[%c0_3, %c0_4] : memref<1x256xf32, #tpu.memory_space<vmem>>, vector<1x256xf32>
    %5 = vector.broadcast %4 : vector<1x256xf32> to vector<8x256xf32>
    %6 = arith.addf %3, %5 : vector<8x256xf32>
    %cst_5 = arith.constant 0.000000e+00 : f32
    %7 = vector.broadcast %cst_5 : f32 to vector<8x256xf32>
    %8 = arith.maximumf %6, %7 : vector<8x256xf32>
    %9 = arith.truncf %8 : vector<8x256xf32> to vector<8x256xbf16>
    %c0_6 = arith.constant 0 : index
    %c0_7 = arith.constant 0 : index
    %10 = vector.load %arg3[%c0_6, %c0_7] : memref<256x128xbf16, #tpu.memory_space<vmem>>, vector<256x128xbf16>
    %cst_8 = arith.constant dense<0.000000e+00> : vector<8x128xf32>
    %11 = tpu.matmul %9, %10, %cst_8 {dimension_numbers = #tpu.dot_dimension_numbers<[1], [0], [0], [1], [0, 0, 1, 1], [], []>} : vector<8x256xbf16>, vector<256x128xbf16>, vector<8x128xf32> -> vector<8x128xf32>
    %c0_9 = arith.constant 0 : index
    %c0_10 = arith.constant 0 : index
    %12 = vector.load %arg4[%c0_9, %c0_10] : memref<1x128xf32, #tpu.memory_space<vmem>>, vector<1x128xf32>
    %13 = vector.broadcast %12 : vector<1x128xf32> to vector<8x128xf32>
    %14 = arith.addf %11, %13 : vector<8x128xf32>
    %cst_11 = arith.constant 0.000000e+00 : f32
    %15 = vector.broadcast %cst_11 : f32 to vector<8x128xf32>
    %16 = arith.maximumf %14, %15 : vector<8x128xf32>
    %17 = arith.truncf %16 : vector<8x128xf32> to vector<8x128xbf16>
    %c0_12 = arith.constant 0 : index
    %c0_13 = arith.constant 0 : index
    %18 = vector.load %arg5[%c0_12, %c0_13] : memref<128x256xbf16, #tpu.memory_space<vmem>>, vector<128x256xbf16>
    %cst_14 = arith.constant dense<0.000000e+00> : vector<8x256xf32>
    %19 = tpu.matmul %17, %18, %cst_14 {dimension_numbers = #tpu.dot_dimension_numbers<[1], [0], [0], [1], [0, 0, 1, 1], [], []>} : vector<8x128xbf16>, vector<128x256xbf16>, vector<8x256xf32> -> vector<8x256xf32>
    %c0_15 = arith.constant 0 : index
    %c0_16 = arith.constant 0 : index
    %20 = vector.load %arg6[%c0_15, %c0_16] : memref<1x256xf32, #tpu.memory_space<vmem>>, vector<1x256xf32>
    %21 = vector.broadcast %20 : vector<1x256xf32> to vector<8x256xf32>
    %22 = arith.addf %19, %21 : vector<8x256xf32>
    %cst_17 = arith.constant 0.000000e+00 : f32
    %23 = vector.broadcast %cst_17 : f32 to vector<8x256xf32>
    %24 = arith.maximumf %22, %23 : vector<8x256xf32>
    %25 = arith.truncf %24 : vector<8x256xf32> to vector<8x256xbf16>
    %c0_18 = arith.constant 0 : index
    %c0_19 = arith.constant 0 : index
    %26 = vector.load %arg7[%c0_18, %c0_19] : memref<256x896xbf16, #tpu.memory_space<vmem>>, vector<256x896xbf16>
    %cst_20 = arith.constant dense<0.000000e+00> : vector<8x896xf32>
    %27 = tpu.matmul %25, %26, %cst_20 {dimension_numbers = #tpu.dot_dimension_numbers<[1], [0], [0], [1], [0, 0, 1, 1], [], []>} : vector<8x256xbf16>, vector<256x896xbf16>, vector<8x896xf32> -> vector<8x896xf32>
    %c0_21 = arith.constant 0 : index
    %c0_22 = arith.constant 0 : index
    %28 = vector.load %arg8[%c0_21, %c0_22] : memref<1x896xf32, #tpu.memory_space<vmem>>, vector<1x896xf32>
    %29 = vector.broadcast %28 : vector<1x896xf32> to vector<8x896xf32>
    %30 = arith.addf %27, %29 : vector<8x896xf32>
    %c0_23 = arith.constant 0 : index
    %c0_24 = arith.constant 0 : index
    %31 = vector.load %arg9[%c0_23, %c0_24] : memref<8x896xf32, #tpu.memory_space<vmem>>, vector<8x896xf32>
    tpu.vector_store %arg9[%c0_23, %c0_24], %30 {strides = array<i32>} : memref<8x896xf32, #tpu.memory_space<vmem>>, vector<8x896xf32>,
    return
  }
}

</mosaic_0001>

<llo_original>
// kernel: forward.1
$region0: #{forward.1}
  #allocation0 [shape = 'u32[]', space=smem, size = 0x4, offset = 0x4, fixed_abs, tag = 'smem constant byte address 0x4 - core index']
  #allocation1 [shape = 'u32[144,128]{1,0:T(1,128)}', space=vmem, size = 0x12000, scoped, tag = 'internal scratch']
  %s0 = inlined_call_operand.hbm [shape: f32[8,48,16], index: 0, kind: input, shape index: {}]
  %s1 = inlined_call_operand.hbm [shape: bf16[3,36,48], index: 1, kind: input, shape index: {}]
  %s2 = inlined_call_operand.vmem [shape: f32[3,16,7], index: 2, kind: input, shape index: {}]
  %s3 = inlined_call_operand.vmem [shape: f32[1,36,7], index: 3, kind: input, shape index: {}]
  %s4 = inlined_call_operand.vmem [shape: bf16[252,128], index: 4, kind: input, shape index: {}]
  %s5 = inlined_call_operand.vmem [shape: f32[1,128], index: 5, kind: input, shape index: {}]
  %s6 = inlined_call_operand.vmem [shape: bf16[128,252], index: 6, kind: input, shape index: {}]
  %s7 = inlined_call_operand.vmem [shape: f32[1,252], index: 7, kind: input, shape index: {}]
  %s8 = inlined_call_operand.vmem [shape: bf16[3,54,36], index: 8, kind: input, shape index: {}]
  %s9 = inlined_call_operand.vmem [shape: f32[3,7,15], index: 9, kind: input, shape index: {}]
  %s10 = inlined_call_operand.vmem [shape: f32[1,54,15], index: 10, kind: input, shape index: {}]
  %s11 = inlined_call_operand.vmem [shape: f32[8,54,15], index: 11, kind: output, shape index: {}]
  %s12 = sld [smem:[#allocation0]]
  $region62: #{forward.1} parent=0
    _
  %s14 = ssub.s32 1, %s12
  %s15 = scalar_select 0, %s14, %s12
  $region1: #{forward.1} parent=0
    #allocation2 [shape = 'u8[196608]{0}', space=vmem, size = 0x30000, scoped, tag = 'input window, operand 0, single buffered']
    #allocation3 [shape = 's32[1]{0}', space=sflag, size = 0x4, scoped, tag = 'scoped memory for forward.1']
    #allocation4 [shape = 'u8[30720]{0}', space=vmem, size = 0x7800, scoped, tag = 'input window, operand 1, single buffered']
    #allocation5 [shape = 's32[1]{0}', space=sflag, size = 0x4, scoped, tag = 'scoped memory for forward.1']
    %16 = vsyncpa [#allocation3], 0
    %17 = vsyncpa [#allocation5], 0
    // Predicated region
    $region2: #{forward.1} parent=1 // pred_check
      _
    $region3: #{forward.1} parent=1 // pred_check_branch
      %19 = sbr.rel (0) target = $region5
    $region4: #{forward.1} parent=1 // pred_region
      %s21 = ssub.s32 6144, 6144
      %22 = vsyncadd [#allocation3], %s21
      %s23 = sshll.u32 [#allocation2], 4
      %s24 = int_to_ptr.vmem [resolvable:$true] %s23
      %29 = dma.hbm_to_vmem [thread:$0]  %s0, 6144, %s24, [#allocation3], 128, 128, 8
    $region5: #{forward.1} parent=1 // pred_fallthru
      _
    // Predicated region
    $region6: #{forward.1} parent=1 // pred_check
      _
    $region7: #{forward.1} parent=1 // pred_check_branch
      %31 = sbr.rel (0) target = $region9
    $region8: #{forward.1} parent=1 // pred_region
      %s33 = ssub.s32 960, 960
      %34 = vsyncadd [#allocation5], %s33
      %s35 = sshll.u32 [#allocation4], 4
      %s36 = int_to_ptr.vmem [resolvable:$true] %s35
      %41 = dma.hbm_to_vmem [thread:$0]  %s1, 960, %s36, [#allocation5], 64, 64, 4
    $region9: #{forward.1} parent=1 // pred_fallthru
      _
    // Predicated region
    $region10: #{forward.1} parent=1 // pred_check
      _
    $region11: #{forward.1} parent=1 // pred_check_branch
      %43 = sbr.rel (0) target = $region13
    $region12: #{forward.1} parent=1 // pred_region
      _
    $region13: #{forward.1} parent=1 // pred_fallthru
      _
    // Predicated region
    $region14: #{forward.1} parent=1 // pred_check
      _
    $region15: #{forward.1} parent=1 // pred_check_branch
      %45 = sbr.rel (0) target = $region17
    $region16: #{forward.1} parent=1 // pred_region
      _
    $region17: #{forward.1} parent=1 // pred_fallthru
      _
    // Predicated region
    $region18: #{forward.1} parent=1 // pred_check
      _
    $region19: #{forward.1} parent=1 // pred_check_branch
      %47 = sbr.rel (0) target = $region21
    $region20: #{forward.1} parent=1 // pred_region
      _
    $region21: #{forward.1} parent=1 // pred_fallthru
      _
    // Predicated region
    $region22: #{forward.1} parent=1 // pred_check
      _
    $region23: #{forward.1} parent=1 // pred_check_branch
      %49 = sbr.rel (0) target = $region25
    $region24: #{forward.1} parent=1 // pred_region
      _
    $region25: #{forward.1} parent=1 // pred_fallthru
      _
    // Predicated region
    $region26: #{forward.1} parent=1 // pred_check
      _
    $region27: #{forward.1} parent=1 // pred_check_branch
      %51 = sbr.rel (0) target = $region29
    $region28: #{forward.1} parent=1 // pred_region
      _
    $region29: #{forward.1} parent=1 // pred_fallthru
      _
    // Predicated region
    $region30: #{forward.1} parent=1 // pred_check
      _
    $region31: #{forward.1} parent=1 // pred_check_branch
      %53 = sbr.rel (0) target = $region33
    $region32: #{forward.1} parent=1 // pred_region
      _
    $region33: #{forward.1} parent=1 // pred_fallthru
      _
    // Predicated region
    $region34: #{forward.1} parent=1 // pred_check
      _
    $region35: #{forward.1} parent=1 // pred_check_branch
      %55 = sbr.rel (0) target = $region37
    $region36: #{forward.1} parent=1 // pred_region
      _
    $region37: #{forward.1} parent=1 // pred_fallthru
      _
    // Predicated region
    $region38: #{forward.1} parent=1 // pred_check
      _
    $region39: #{forward.1} parent=1 // pred_check_branch
      %57 = sbr.rel (0) target = $region41
    $region40: #{forward.1} parent=1 // pred_region
      _
    $region41: #{forward.1} parent=1 // pred_fallthru
      _
    // Predicated region
    $region42: #{forward.1} parent=1 // pred_check
      _
    $region43: #{forward.1} parent=1 // pred_check_branch
      %59 = sbr.rel (0) target = $region45
    $region44: #{forward.1} parent=1 // pred_region
      _
    $region45: #{forward.1} parent=1 // pred_fallthru
      _
    // Predicated region
    $region46: #{forward.1} parent=1 // pred_check
      _
    $region47: #{forward.1} parent=1 // pred_check_branch
      %61 = sbr.rel (0) target = $region49
    $region48: #{forward.1} parent=1 // pred_region
      %62 = dma.done [#allocation3], 6144
    $region49: #{forward.1} parent=1 // pred_fallthru
      _
    // Predicated region
    $region50: #{forward.1} parent=1 // pred_check
      _
    $region51: #{forward.1} parent=1 // pred_check_branch
      %64 = sbr.rel (0) target = $region53
    $region52: #{forward.1} parent=1 // pred_region
      %65 = dma.done [#allocation5], 960
    $region53: #{forward.1} parent=1 // pred_fallthru
      _
    %v67 = vld [vmem:[#allocation2] sm:$0xff]
    %v68 = vld [vmem:[#allocation2 + $0x8] sm:$0xff]
    %v69 = vld [vmem:[#allocation2 + $0x10] sm:$0xff]
    %v70 = vld [vmem:[#allocation2 + $0x18] sm:$0xff]
    %v71 = vld [vmem:[#allocation2 + $0x20] sm:$0xff]
    %v72 = vld [vmem:[#allocation2 + $0x28] sm:$0xff]
    %v73 = vld [vmem:[#allocation2 + $0x30] sm:$0xff]
    %v74 = vld [vmem:[#allocation2 + $0x38] sm:$0xff]
    %v75 = vld [vmem:[#allocation2 + $0x40] sm:$0xff]
    %v76 = vld [vmem:[#allocation2 + $0x48] sm:$0xff]
    %v77 = vld [vmem:[#allocation2 + $0x50] sm:$0xff]
    %v78 = vld [vmem:[#allocation2 + $0x58] sm:$0xff]
    %v79 = vld [vmem:[#allocation2 + $0x60] sm:$0xff]
    %v80 = vld [vmem:[#allocation2 + $0x68] sm:$0xff]
    %v81 = vld [vmem:[#allocation2 + $0x70] sm:$0xff]
    %v82 = vld [vmem:[#allocation2 + $0x78] sm:$0xff]
    %v83 = vld [vmem:[#allocation2 + $0x80] sm:$0xff]
    %v84 = vld [vmem:[#allocation2 + $0x88] sm:$0xff]
    %v85 = vld [vmem:[#allocation2 + $0x90] sm:$0xff]
    %v86 = vld [vmem:[#allocation2 + $0x98] sm:$0xff]
    %v87 = vld [vmem:[#allocation2 + $0xa0] sm:$0xff]
    %v88 = vld [vmem:[#allocation2 + $0xa8] sm:$0xff]
    %v89 = vld [vmem:[#allocation2 + $0xb0] sm:$0xff]
    %v90 = vld [vmem:[#allocation2 + $0xb8] sm:$0xff]
    %v91 = vld [vmem:[#allocation2 + $0xc0] sm:$0xff]
    %v92 = vld [vmem:[#allocation2 + $0xc8] sm:$0xff]
    %v93 = vld [vmem:[#allocation2 + $0xd0] sm:$0xff]
    %v94 = vld [vmem:[#allocation2 + $0xd8] sm:$0xff]
    %v95 = vld [vmem:[#allocation2 + $0xe0] sm:$0xff]
    %v96 = vld [vmem:[#allocation2 + $0xe8] sm:$0xff]
    %v97 = vld [vmem:[#allocation2 + $0xf0] sm:$0xff]
    %v98 = vld [vmem:[#allocation2 + $0xf8] sm:$0xff]
    %v99 = vld [vmem:[#allocation2 + $0x100] sm:$0xff]
    %v100 = vld [vmem:[#allocation2 + $0x108] sm:$0xff]
    %v101 = vld [vmem:[#allocation2 + $0x110] sm:$0xff]
    %v102 = vld [vmem:[#allocation2 + $0x118] sm:$0xff]
    %v103 = vld [vmem:[#allocation2 + $0x120] sm:$0xff]
    %v104 = vld [vmem:[#allocation2 + $0x128] sm:$0xff]
    %v105 = vld [vmem:[#allocation2 + $0x130] sm:$0xff]
    %v106 = vld [vmem:[#allocation2 + $0x138] sm:$0xff]
    %v107 = vld [vmem:[#allocation2 + $0x140] sm:$0xff]
    %v108 = vld [vmem:[#allocation2 + $0x148] sm:$0xff]
    %v109 = vld [vmem:[#allocation2 + $0x150] sm:$0xff]
    %v110 = vld [vmem:[#allocation2 + $0x158] sm:$0xff]
    %v111 = vld [vmem:[#allocation2 + $0x160] sm:$0xff]
    %v112 = vld [vmem:[#allocation2 + $0x168] sm:$0xff]
    %v113 = vld [vmem:[#allocation2 + $0x170] sm:$0xff]
    %v114 = vld [vmem:[#allocation2 + $0x178] sm:$0xff]
    %v115 = vld [vmem:[%s2] sm:$0xff]
    %v116 = vld [vmem:[%s2 + $0x8] sm:$0xff]
    %vm117 = vcmask 130048
    %v119 = vsel %vm117, %v67, 0
    %v122 = vsel %vm117, %v68, 0
    %v125 = vsel %vm117, %v69, 0
    %v128 = vsel %vm117, %v70, 0
    %v131 = vsel %vm117, %v71, 0
    %v134 = vsel %vm117, %v72, 0
    %136 = vmatprep.subr.mxu0 0.0
    %137 = vmatpush1.msra.mxu0 0.0
    %138 = vmatprep.subr.mxu0 0.0
    %139 = vmatpush1.msra.mxu0 0.0
    %140 = vmatprep.subr.mxu0 0.0
    %141 = vmatpush1.msra.mxu0 0.0
    %142 = vmatprep.subr.mxu0 0.0
    %143 = vmatpush1.msra.mxu0 0.0
    %144 = vmatprep.subr.mxu0 0.0
    %145 = vmatpush1.msra.mxu0 0.0
    %146 = vmatprep.subr.mxu0 0.0
    %147 = vmatpush1.msra.mxu0 0.0
    %148 = vmatprep.subr.mxu0 0.0
    %149 = vmatpush1.msra.mxu0 0.0
    %150 = vmatprep.subr.mxu0 0.0
    %151 = vmatpush1.msra.mxu0 0.0
    %152 = vmatprep.subr.mxu0 0.0
    %153 = vmatpush1.msra.mxu0 0.0
    %154 = vmatprep.subr.mxu0 0.0
    %155 = vmatpush1.msra.mxu0 0.0
    %156 = vmatprep.subr.mxu0 0.0
    %157 = vmatpush1.msra.mxu0 0.0
    %158 = vmatprep.subr.mxu0 0.0
    %159 = vmatpush1.msra.mxu0 0.0
    %160 = vmatprep.subr.mxu0 0.0
    %161 = vmatpush1.msra.mxu0 0.0
    %162 = vmatprep.subr.mxu0 0.0
    %163 = vmatpush1.msra.mxu0 0.0
    %164 = vmatprep.subr.mxu0 0.0
    %165 = vmatpush1.msra.mxu0 %v116
    %166 = vmatprep.subr.mxu0 0.0
    %167 = vmatpush1.msra.mxu0 %v115
    %168 = vmatprep.subr.mxu0 0.0
    %169 = vmatpush2.msra.mxu0 0.0
    %170 = vmatprep.subr.mxu0 0.0
    %171 = vmatpush2.msra.mxu0 0.0
    %172 = vmatprep.subr.mxu0 0.0
    %173 = vmatpush2.msra.mxu0 0.0
    %174 = vmatprep.subr.mxu0 0.0
    %175 = vmatpush2.msra.mxu0 0.0
    %176 = vmatprep.subr.mxu0 0.0
    %177 = vmatpush2.msra.mxu0 0.0
    %178 = vmatprep.subr.mxu0 0.0
    %179 = vmatpush2.msra.mxu0 0.0
    %180 = vmatprep.subr.mxu0 0.0
    %181 = vmatpush2.msra.mxu0 0.0
    %182 = vmatprep.subr.mxu0 0.0
    %183 = vmatpush2.msra.mxu0 0.0
    %184 = vmatprep.subr.mxu0 0.0
    %185 = vmatpush2.msra.mxu0 0.0
    %186 = vmatprep.subr.mxu0 0.0
    %187 = vmatpush2.msra.mxu0 0.0
    %188 = vmatprep.subr.mxu0 0.0
    %189 = vmatpush2.msra.mxu0 0.0
    %190 = vmatprep.subr.mxu0 0.0
    %191 = vmatpush2.msra.mxu0 0.0
    %192 = vmatprep.subr.mxu0 0.0
    %193 = vmatpush2.msra.mxu0 0.0
    %194 = vmatprep.subr.mxu0 0.0
    %195 = vmatpush2.msra.mxu0 0.0
    %196 = vmatprep.subr.mxu0 0.0
    %197 = vmatpush2.msra.mxu0 0.0
    %198 = vmatprep.subr.mxu0 0.0
    %199 = vmatpush2.msra.mxu0 0.0
    %200 = vmatprep.mubr.f32.mxu0 0.0
    %201 = vmatmul.mubr.f32.gmra.mxu0 %v119
    %v202 = vpop.f32.mrf.mxu0
    %v203 = vadd.f32 0.0, %v202
    %v204 = vpop.f32.mrf.mxu0
    %205 = vmatprep.mubr.f32.mxu0 0.0
    %206 = vmatmul.mubr.f32.gmra.mxu0 %v122
    %v207 = vpop.f32.mrf.mxu0
    %v208 = vadd.f32 0.0, %v207
    %v209 = vpop.f32.mrf.mxu0
    %210 = vmatprep.mubr.f32.mxu0 0.0
    %211 = vmatmul.mubr.f32.gmra.mxu0 %v125
    %v212 = vpop.f32.mrf.mxu0
    %v213 = vadd.f32 0.0, %v212
    %v214 = vpop.f32.mrf.mxu0
    %215 = vmatprep.mubr.f32.mxu0 0.0
    %216 = vmatmul.mubr.f32.gmra.mxu0 %v128
    %v217 = vpop.f32.mrf.mxu0
    %v218 = vadd.f32 0.0, %v217
    %v219 = vpop.f32.mrf.mxu0
    %220 = vmatprep.mubr.f32.mxu0 0.0
    %221 = vmatmul.mubr.f32.gmra.mxu0 %v131
    %v222 = vpop.f32.mrf.mxu0
    %v223 = vadd.f32 0.0, %v222
    %v224 = vpop.f32.mrf.mxu0
    %225 = vmatprep.mubr.f32.mxu0 0.0
    %226 = vmatmul.mubr.f32.gmra.mxu0 %v134
    %v227 = vpop.f32.mrf.mxu0
    %v228 = vadd.f32 0.0, %v227
    %v229 = vpop.f32.mrf.mxu0
    %230 = vdwg.mxu0
    %v232 = vsel %vm117, %v73, 0
    %v235 = vsel %vm117, %v74, 0
    %v238 = vsel %vm117, %v75, 0
    %v241 = vsel %vm117, %v76, 0
    %v244 = vsel %vm117, %v77, 0
    %v247 = vsel %vm117, %v78, 0
    %249 = vmatprep.subr.mxu0 0.0
    %250 = vmatpush1.msra.mxu0 0.0
    %251 = vmatprep.subr.mxu0 0.0
    %252 = vmatpush1.msra.mxu0 0.0
    %253 = vmatprep.subr.mxu0 0.0
    %254 = vmatpush1.msra.mxu0 0.0
    %255 = vmatprep.subr.mxu0 0.0
    %256 = vmatpush1.msra.mxu0 0.0
    %257 = vmatprep.subr.mxu0 0.0
    %258 = vmatpush1.msra.mxu0 0.0
    %259 = vmatprep.subr.mxu0 0.0
    %260 = vmatpush1.msra.mxu0 0.0
    %261 = vmatprep.subr.mxu0 0.0
    %262 = vmatpush1.msra.mxu0 0.0
    %263 = vmatprep.subr.mxu0 0.0
    %264 = vmatpush1.msra.mxu0 0.0
    %265 = vmatprep.subr.mxu0 0.0
    %266 = vmatpush1.msra.mxu0 0.0
    %267 = vmatprep.subr.mxu0 0.0
    %268 = vmatpush1.msra.mxu0 0.0
    %269 = vmatprep.subr.mxu0 0.0
    %270 = vmatpush1.msra.mxu0 0.0
    %271 = vmatprep.subr.mxu0 0.0
    %272 = vmatpush1.msra.mxu0 0.0
    %273 = vmatprep.subr.mxu0 0.0
    %274 = vmatpush1.msra.mxu0 0.0
    %275 = vmatprep.subr.mxu0 0.0
    %276 = vmatpush1.msra.mxu0 0.0
    %277 = vmatprep.subr.mxu0 0.0
    %278 = vmatpush1.msra.mxu0 %v116
    %279 = vmatprep.subr.mxu0 0.0
    %280 = vmatpush1.msra.mxu0 %v115
    %281 = vmatprep.subr.mxu0 0.0
    %282 = vmatpush2.msra.mxu0 0.0
    %283 = vmatprep.subr.mxu0 0.0
    %284 = vmatpush2.msra.mxu0 0.0
    %285 = vmatprep.subr.mxu0 0.0
    %286 = vmatpush2.msra.mxu0 0.0
    %287 = vmatprep.subr.mxu0 0.0
    %288 = vmatpush2.msra.mxu0 0.0
    %289 = vmatprep.subr.mxu0 0.0
    %290 = vmatpush2.msra.mxu0 0.0
    %291 = vmatprep.subr.mxu0 0.0
    %292 = vmatpush2.msra.mxu0 0.0
    %293 = vmatprep.subr.mxu0 0.0
    %294 = vmatpush2.msra.mxu0 0.0
    %295 = vmatprep.subr.mxu0 0.0
    %296 = vmatpush2.msra.mxu0 0.0
    %297 = vmatprep.subr.mxu0 0.0
    %298 = vmatpush2.msra.mxu0 0.0
    %299 = vmatprep.subr.mxu0 0.0
    %300 = vmatpush2.msra.mxu0 0.0
    %301 = vmatprep.subr.mxu0 0.0
    %302 = vmatpush2.msra.mxu0 0.0
    %303 = vmatprep.subr.mxu0 0.0
    %304 = vmatpush2.msra.mxu0 0.0
    %305 = vmatprep.subr.mxu0 0.0
    %306 = vmatpush2.msra.mxu0 0.0
    %307 = vmatprep.subr.mxu0 0.0
    %308 = vmatpush2.msra.mxu0 0.0
    %309 = vmatprep.subr.mxu0 0.0
    %310 = vmatpush2.msra.mxu0 0.0
    %311 = vmatprep.subr.mxu0 0.0
    %312 = vmatpush2.msra.mxu0 0.0
    %313 = vmatprep.mubr.f32.mxu0 0.0
    %314 = vmatmul.mubr.f32.gmra.mxu0 %v232
    %v315 = vpop.f32.mrf.mxu0
    %v316 = vadd.f32 0.0, %v315
    %v317 = vpop.f32.mrf.mxu0
    %318 = vmatprep.mubr.f32.mxu0 0.0
    %319 = vmatmul.mubr.f32.gmra.mxu0 %v235
    %v320 = vpop.f32.mrf.mxu0
    %v321 = vadd.f32 0.0, %v320
    %v322 = vpop.f32.mrf.mxu0
    %323 = vmatprep.mubr.f32.mxu0 0.0
    %324 = vmatmul.mubr.f32.gmra.mxu0 %v238
    %v325 = vpop.f32.mrf.mxu0
    %v326 = vadd.f32 0.0, %v325
    %v327 = vpop.f32.mrf.mxu0
    %328 = vmatprep.mubr.f32.mxu0 0.0
    %329 = vmatmul.mubr.f32.gmra.mxu0 %v241
    %v330 = vpop.f32.mrf.mxu0
    %v331 = vadd.f32 0.0, %v330
    %v332 = vpop.f32.mrf.mxu0
    %333 = vmatprep.mubr.f32.mxu0 0.0
    %334 = vmatmul.mubr.f32.gmra.mxu0 %v244
    %v335 = vpop.f32.mrf.mxu0
    %v336 = vadd.f32 0.0, %v335
    %v337 = vpop.f32.mrf.mxu0
    %338 = vmatprep.mubr.f32.mxu0 0.0
    %339 = vmatmul.mubr.f32.gmra.mxu0 %v247
    %v340 = vpop.f32.mrf.mxu0
    %v341 = vadd.f32 0.0, %v340
    %v342 = vpop.f32.mrf.mxu0
    %343 = vdwg.mxu0
    %v345 = vsel %vm117, %v79, 0
    %v348 = vsel %vm117, %v80, 0
    %v351 = vsel %vm117, %v81, 0
    %v354 = vsel %vm117, %v82, 0
    %v357 = vsel %vm117, %v83, 0
    %v360 = vsel %vm117, %v84, 0
    %362 = vmatprep.subr.mxu0 0.0
    %363 = vmatpush1.msra.mxu0 0.0
    %364 = vmatprep.subr.mxu0 0.0
    %365 = vmatpush1.msra.mxu0 0.0
    %366 = vmatprep.subr.mxu0 0.0
    %367 = vmatpush1.msra.mxu0 0.0
    %368 = vmatprep.subr.mxu0 0.0
    %369 = vmatpush1.msra.mxu0 0.0
    %370 = vmatprep.subr.mxu0 0.0
    %371 = vmatpush1.msra.mxu0 0.0
    %372 = vmatprep.subr.mxu0 0.0
    %373 = vmatpush1.msra.mxu0 0.0
    %374 = vmatprep.subr.mxu0 0.0
    %375 = vmatpush1.msra.mxu0 0.0
    %376 = vmatprep.subr.mxu0 0.0
    %377 = vmatpush1.msra.mxu0 0.0
    %378 = vmatprep.subr.mxu0 0.0
    %379 = vmatpush1.msra.mxu0 0.0
    %380 = vmatprep.subr.mxu0 0.0
    %381 = vmatpush1.msra.mxu0 0.0
    %382 = vmatprep.subr.mxu0 0.0
    %383 = vmatpush1.msra.mxu0 0.0
    %384 = vmatprep.subr.mxu0 0.0
    %385 = vmatpush1.msra.mxu0 0.0
    %386 = vmatprep.subr.mxu0 0.0
    %387 = vmatpush1.msra.mxu0 0.0
    %388 = vmatprep.subr.mxu0 0.0
    %389 = vmatpush1.msra.mxu0 0.0
    %390 = vmatprep.subr.mxu0 0.0
    %391 = vmatpush1.msra.mxu0 %v116
    %392 = vmatprep.subr.mxu0 0.0
    %393 = vmatpush1.msra.mxu0 %v115
    %394 = vmatprep.subr.mxu0 0.0
    %395 = vmatpush2.msra.mxu0 0.0
    %396 = vmatprep.subr.mxu0 0.0
    %397 = vmatpush2.msra.mxu0 0.0
    %398 = vmatprep.subr.mxu0 0.0
    %399 = vmatpush2.msra.mxu0 0.0
    %400 = vmatprep.subr.mxu0 0.0
    %401 = vmatpush2.msra.mxu0 0.0
    %402 = vmatprep.subr.mxu0 0.0
    %403 = vmatpush2.msra.mxu0 0.0
    %404 = vmatprep.subr.mxu0 0.0
    %405 = vmatpush2.msra.mxu0 0.0
    %406 = vmatprep.subr.mxu0 0.0
    %407 = vmatpush2.msra.mxu0 0.0
    %408 = vmatprep.subr.mxu0 0.0
    %409 = vmatpush2.msra.mxu0 0.0
    %410 = vmatprep.subr.mxu0 0.0
    %411 = vmatpush2.msra.mxu0 0.0
    %412 = vmatprep.subr.mxu0 0.0
    %413 = vmatpush2.msra.mxu0 0.0
    %414 = vmatprep.subr.mxu0 0.0
    %415 = vmatpush2.msra.mxu0 0.0
    %416 = vmatprep.subr.mxu0 0.0
    %417 = vmatpush2.msra.mxu0 0.0
    %418 = vmatprep.subr.mxu0 0.0
    %419 = vmatpush2.msra.mxu0 0.0
    %420 = vmatprep.subr.mxu0 0.0
    %421 = vmatpush2.msra.mxu0 0.0
    %422 = vmatprep.subr.mxu0 0.0
    %423 = vmatpush2.msra.mxu0 0.0
    %424 = vmatprep.subr.mxu0 0.0
    %425 = vmatpush2.msra.mxu0 0.0
    %426 = vmatprep.mubr.f32.mxu0 0.0
    %427 = vmatmul.mubr.f32.gmra.mxu0 %v345
    %v428 = vpop.f32.mrf.mxu0
    %v429 = vadd.f32 0.0, %v428
    %v430 = vpop.f32.mrf.mxu0
    %431 = vmatprep.mubr.f32.mxu0 0.0
    %432 = vmatmul.mubr.f32.gmra.mxu0 %v348
    %v433 = vpop.f32.mrf.mxu0
    %v434 = vadd.f32 0.0, %v433
    %v435 = vpop.f32.mrf.mxu0
    %436 = vmatprep.mubr.f32.mxu0 0.0
    %437 = vmatmul.mubr.f32.gmra.mxu0 %v351
    %v438 = vpop.f32.mrf.mxu0
    %v439 = vadd.f32 0.0, %v438
    %v440 = vpop.f32.mrf.mxu0
    %441 = vmatprep.mubr.f32.mxu0 0.0
    %442 = vmatmul.mubr.f32.gmra.mxu0 %v354
    %v443 = vpop.f32.mrf.mxu0
    %v444 = vadd.f32 0.0, %v443
    %v445 = vpop.f32.mrf.mxu0
    %446 = vmatprep.mubr.f32.mxu0 0.0
    %447 = vmatmul.mubr.f32.gmra.mxu0 %v357
    %v448 = vpop.f32.mrf.mxu0
    %v449 = vadd.f32 0.0, %v448
    %v450 = vpop.f32.mrf.mxu0
    %451 = vmatprep.mubr.f32.mxu0 0.0
    %452 = vmatmul.mubr.f32.gmra.mxu0 %v360
    %v453 = vpop.f32.mrf.mxu0
    %v454 = vadd.f32 0.0, %v453
    %v455 = vpop.f32.mrf.mxu0
    %456 = vdwg.mxu0
    %v458 = vsel %vm117, %v85, 0
    %v461 = vsel %vm117, %v86, 0
    %v464 = vsel %vm117, %v87, 0
    %v467 = vsel %vm117, %v88, 0
    %v470 = vsel %vm117, %v89, 0
    %v473 = vsel %vm117, %v90, 0
    %475 = vmatprep.subr.mxu0 0.0
    %476 = vmatpush1.msra.mxu0 0.0
    %477 = vmatprep.subr.mxu0 0.0
    %478 = vmatpush1.msra.mxu0 0.0
    %479 = vmatprep.subr.mxu0 0.0
    %480 = vmatpush1.msra.mxu0 0.0
    %481 = vmatprep.subr.mxu0 0.0
    %482 = vmatpush1.msra.mxu0 0.0
    %483 = vmatprep.subr.mxu0 0.0
    %484 = vmatpush1.msra.mxu0 0.0
    %485 = vmatprep.subr.mxu0 0.0
    %486 = vmatpush1.msra.mxu0 0.0
    %487 = vmatprep.subr.mxu0 0.0
    %488 = vmatpush1.msra.mxu0 0.0
    %489 = vmatprep.subr.mxu0 0.0
    %490 = vmatpush1.msra.mxu0 0.0
    %491 = vmatprep.subr.mxu0 0.0
    %492 = vmatpush1.msra.mxu0 0.0
    %493 = vmatprep.subr.mxu0 0.0
    %494 = vmatpush1.msra.mxu0 0.0
    %495 = vmatprep.subr.mxu0 0.0
    %496 = vmatpush1.msra.mxu0 0.0
    %497 = vmatprep.subr.mxu0 0.0
    %498 = vmatpush1.msra.mxu0 0.0
    %499 = vmatprep.subr.mxu0 0.0
    %500 = vmatpush1.msra.mxu0 0.0
    %501 = vmatprep.subr.mxu0 0.0
    %502 = vmatpush1.msra.mxu0 0.0
    %503 = vmatprep.subr.mxu0 0.0
    %504 = vmatpush1.msra.mxu0 %v116
    %505 = vmatprep.subr.mxu0 0.0
    %506 = vmatpush1.msra.mxu0 %v115
    %507 = vmatprep.subr.mxu0 0.0
    %508 = vmatpush2.msra.mxu0 0.0
    %509 = vmatprep.subr.mxu0 0.0
    %510 = vmatpush2.msra.mxu0 0.0
    %511 = vmatprep.subr.mxu0 0.0
    %512 = vmatpush2.msra.mxu0 0.0
    %513 = vmatprep.subr.mxu0 0.0
    %514 = vmatpush2.msra.mxu0 0.0
    %515 = vmatprep.subr.mxu0 0.0
    %516 = vmatpush2.msra.mxu0 0.0
    %517 = vmatprep.subr.mxu0 0.0
    %518 = vmatpush2.msra.mxu0 0.0
    %519 = vmatprep.subr.mxu0 0.0
    %520 = vmatpush2.msra.mxu0 0.0
    %521 = vmatprep.subr.mxu0 0.0
    %522 = vmatpush2.msra.mxu0 0.0
    %523 = vmatprep.subr.mxu0 0.0
    %524 = vmatpush2.msra.mxu0 0.0
    %525 = vmatprep.subr.mxu0 0.0
    %526 = vmatpush2.msra.mxu0 0.0
    %527 = vmatprep.subr.mxu0 0.0
    %528 = vmatpush2.msra.mxu0 0.0
    %529 = vmatprep.subr.mxu0 0.0
    %530 = vmatpush2.msra.mxu0 0.0
    %531 = vmatprep.subr.mxu0 0.0
    %532 = vmatpush2.msra.mxu0 0.0
    %533 = vmatprep.subr.mxu0 0.0
    %534 = vmatpush2.msra.mxu0 0.0
    %535 = vmatprep.subr.mxu0 0.0
    %536 = vmatpush2.msra.mxu0 0.0
    %537 = vmatprep.subr.mxu0 0.0
    %538 = vmatpush2.msra.mxu0 0.0
    %539 = vmatprep.mubr.f32.mxu0 0.0
    %540 = vmatmul.mubr.f32.gmra.mxu0 %v458
    %v541 = vpop.f32.mrf.mxu0
    %v542 = vadd.f32 0.0, %v541
    %v543 = vpop.f32.mrf.mxu0
    %544 = vmatprep.mubr.f32.mxu0 0.0
    %545 = vmatmul.mubr.f32.gmra.mxu0 %v461
    %v546 = vpop.f32.mrf.mxu0
    %v547 = vadd.f32 0.0, %v546
    %v548 = vpop.f32.mrf.mxu0
    %549 = vmatprep.mubr.f32.mxu0 0.0
    %550 = vmatmul.mubr.f32.gmra.mxu0 %v464
    %v551 = vpop.f32.mrf.mxu0
    %v552 = vadd.f32 0.0, %v551
    %v553 = vpop.f32.mrf.mxu0
    %554 = vmatprep.mubr.f32.mxu0 0.0
    %555 = vmatmul.mubr.f32.gmra.mxu0 %v467
    %v556 = vpop.f32.mrf.mxu0
    %v557 = vadd.f32 0.0, %v556
    %v558 = vpop.f32.mrf.mxu0
    %559 = vmatprep.mubr.f32.mxu0 0.0
    %560 = vmatmul.mubr.f32.gmra.mxu0 %v470
    %v561 = vpop.f32.mrf.mxu0
    %v562 = vadd.f32 0.0, %v561
    %v563 = vpop.f32.mrf.mxu0
    %564 = vmatprep.mubr.f32.mxu0 0.0
    %565 = vmatmul.mubr.f32.gmra.mxu0 %v473
    %v566 = vpop.f32.mrf.mxu0
    %v567 = vadd.f32 0.0, %v566
    %v568 = vpop.f32.mrf.mxu0
    %569 = vdwg.mxu0
    %v571 = vsel %vm117, %v91, 0
    %v574 = vsel %vm117, %v92, 0
    %v577 = vsel %vm117, %v93, 0
    %v580 = vsel %vm117, %v94, 0
    %v583 = vsel %vm117, %v95, 0
    %v586 = vsel %vm117, %v96, 0
    %588 = vmatprep.subr.mxu0 0.0
    %589 = vmatpush1.msra.mxu0 0.0
    %590 = vmatprep.subr.mxu0 0.0
    %591 = vmatpush1.msra.mxu0 0.0
    %592 = vmatprep.subr.mxu0 0.0
    %593 = vmatpush1.msra.mxu0 0.0
    %594 = vmatprep.subr.mxu0 0.0
    %595 = vmatpush1.msra.mxu0 0.0
    %596 = vmatprep.subr.mxu0 0.0
    %597 = vmatpush1.msra.mxu0 0.0
    %598 = vmatprep.subr.mxu0 0.0
    %599 = vmatpush1.msra.mxu0 0.0
    %600 = vmatprep.subr.mxu0 0.0
    %601 = vmatpush1.msra.mxu0 0.0
    %602 = vmatprep.subr.mxu0 0.0
    %603 = vmatpush1.msra.mxu0 0.0
    %604 = vmatprep.subr.mxu0 0.0
    %605 = vmatpush1.msra.mxu0 0.0
    %606 = vmatprep.subr.mxu0 0.0
    %607 = vmatpush1.msra.mxu0 0.0
    %608 = vmatprep.subr.mxu0 0.0
    %609 = vmatpush1.msra.mxu0 0.0
    %610 = vmatprep.subr.mxu0 0.0
    %611 = vmatpush1.msra.mxu0 0.0
    %612 = vmatprep.subr.mxu0 0.0
    %613 = vmatpush1.msra.mxu0 0.0
    %614 = vmatprep.subr.mxu0 0.0
    %615 = vmatpush1.msra.mxu0 0.0
    %616 = vmatprep.subr.mxu0 0.0
    %617 = vmatpush1.msra.mxu0 %v116
    %618 = vmatprep.subr.mxu0 0.0
    %619 = vmatpush1.msra.mxu0 %v115
    %620 = vmatprep.subr.mxu0 0.0
    %621 = vmatpush2.msra.mxu0 0.0
    %622 = vmatprep.subr.mxu0 0.0
    %623 = vmatpush2.msra.mxu0 0.0
    %624 = vmatprep.subr.mxu0 0.0
    %625 = vmatpush2.msra.mxu0 0.0
    %626 = vmatprep.subr.mxu0 0.0
    %627 = vmatpush2.msra.mxu0 0.0
    %628 = vmatprep.subr.mxu0 0.0
    %629 = vmatpush2.msra.mxu0 0.0
    %630 = vmatprep.subr.mxu0 0.0
    %631 = vmatpush2.msra.mxu0 0.0
    %632 = vmatprep.subr.mxu0 0.0
    %633 = vmatpush2.msra.mxu0 0.0
    %634 = vmatprep.subr.mxu0 0.0
    %635 = vmatpush2.msra.mxu0 0.0
    %636 = vmatprep.subr.mxu0 0.0
    %637 = vmatpush2.msra.mxu0 0.0
    %638 = vmatprep.subr.mxu0 0.0
    %639 = vmatpush2.msra.mxu0 0.0
    %640 = vmatprep.subr.mxu0 0.0
    %641 = vmatpush2.msra.mxu0 0.0
    %642 = vmatprep.subr.mxu0 0.0
    %643 = vmatpush2.msra.mxu0 0.0
    %644 = vmatprep.subr.mxu0 0.0
    %645 = vmatpush2.msra.mxu0 0.0
    %646 = vmatprep.subr.mxu0 0.0
    %647 = vmatpush2.msra.mxu0 0.0
    %648 = vmatprep.subr.mxu0 0.0
    %649 = vmatpush2.msra.mxu0 0.0
    %650 = vmatprep.subr.mxu0 0.0
    %651 = vmatpush2.msra.mxu0 0.0
    %652 = vmatprep.mubr.f32.mxu0 0.0
    %653 = vmatmul.mubr.f32.gmra.mxu0 %v571
    %v654 = vpop.f32.mrf.mxu0
    %v655 = vadd.f32 0.0, %v654
    %v656 = vpop.f32.mrf.mxu0
    %657 = vmatprep.mubr.f32.mxu0 0.0
    %658 = vmatmul.mubr.f32.gmra.mxu0 %v574
    %v659 = vpop.f32.mrf.mxu0
    %v660 = vadd.f32 0.0, %v659
    %v661 = vpop.f32.mrf.mxu0
    %662 = vmatprep.mubr.f32.mxu0 0.0
    %663 = vmatmul.mubr.f32.gmra.mxu0 %v577
    %v664 = vpop.f32.mrf.mxu0
    %v665 = vadd.f32 0.0, %v664
    %v666 = vpop.f32.mrf.mxu0
    %667 = vmatprep.mubr.f32.mxu0 0.0
    %668 = vmatmul.mubr.f32.gmra.mxu0 %v580
    %v669 = vpop.f32.mrf.mxu0
    %v670 = vadd.f32 0.0, %v669
    %v671 = vpop.f32.mrf.mxu0
    %672 = vmatprep.mubr.f32.mxu0 0.0
    %673 = vmatmul.mubr.f32.gmra.mxu0 %v583
    %v674 = vpop.f32.mrf.mxu0
    %v675 = vadd.f32 0.0, %v674
    %v676 = vpop.f32.mrf.mxu0
    %677 = vmatprep.mubr.f32.mxu0 0.0
    %678 = vmatmul.mubr.f32.gmra.mxu0 %v586
    %v679 = vpop.f32.mrf.mxu0
    %v680 = vadd.f32 0.0, %v679
    %v681 = vpop.f32.mrf.mxu0
    %682 = vdwg.mxu0
    %v684 = vsel %vm117, %v97, 0
    %v687 = vsel %vm117, %v98, 0
    %v690 = vsel %vm117, %v99, 0
    %v693 = vsel %vm117, %v100, 0
    %v696 = vsel %vm117, %v101, 0
    %v699 = vsel %vm117, %v102, 0
    %701 = vmatprep.subr.mxu0 0.0
    %702 = vmatpush1.msra.mxu0 0.0
    %703 = vmatprep.subr.mxu0 0.0
    %704 = vmatpush1.msra.mxu0 0.0
    %705 = vmatprep.subr.mxu0 0.0
    %706 = vmatpush1.msra.mxu0 0.0
    %707 = vmatprep.subr.mxu0 0.0
    %708 = vmatpush1.msra.mxu0 0.0
    %709 = vmatprep.subr.mxu0 0.0
    %710 = vmatpush1.msra.mxu0 0.0
    %711 = vmatprep.subr.mxu0 0.0
    %712 = vmatpush1.msra.mxu0 0.0
    %713 = vmatprep.subr.mxu0 0.0
    %714 = vmatpush1.msra.mxu0 0.0
    %715 = vmatprep.subr.mxu0 0.0
    %716 = vmatpush1.msra.mxu0 0.0
    %717 = vmatprep.subr.mxu0 0.0
    %718 = vmatpush1.msra.mxu0 0.0
    %719 = vmatprep.subr.mxu0 0.0
    %720 = vmatpush1.msra.mxu0 0.0
    %721 = vmatprep.subr.mxu0 0.0
    %722 = vmatpush1.msra.mxu0 0.0
    %723 = vmatprep.subr.mxu0 0.0
    %724 = vmatpush1.msra.mxu0 0.0
    %725 = vmatprep.subr.mxu0 0.0
    %726 = vmatpush1.msra.mxu0 0.0
    %727 = vmatprep.subr.mxu0 0.0
    %728 = vmatpush1.msra.mxu0 0.0
    %729 = vmatprep.subr.mxu0 0.0
    %730 = vmatpush1.msra.mxu0 %v116
    %731 = vmatprep.subr.mxu0 0.0
    %732 = vmatpush1.msra.mxu0 %v115
    %733 = vmatprep.subr.mxu0 0.0
    %734 = vmatpush2.msra.mxu0 0.0
    %735 = vmatprep.subr.mxu0 0.0
    %736 = vmatpush2.msra.mxu0 0.0
    %737 = vmatprep.subr.mxu0 0.0
    %738 = vmatpush2.msra.mxu0 0.0
    %739 = vmatprep.subr.mxu0 0.0
    %740 = vmatpush2.msra.mxu0 0.0
    %741 = vmatprep.subr.mxu0 0.0
    %742 = vmatpush2.msra.mxu0 0.0
    %743 = vmatprep.subr.mxu0 0.0
    %744 = vmatpush2.msra.mxu0 0.0
    %745 = vmatprep.subr.mxu0 0.0
    %746 = vmatpush2.msra.mxu0 0.0
    %747 = vmatprep.subr.mxu0 0.0
    %748 = vmatpush2.msra.mxu0 0.0
    %749 = vmatprep.subr.mxu0 0.0
    %750 = vmatpush2.msra.mxu0 0.0
    %751 = vmatprep.subr.mxu0 0.0
    %752 = vmatpush2.msra.mxu0 0.0
    %753 = vmatprep.subr.mxu0 0.0
    %754 = vmatpush2.msra.mxu0 0.0
    %755 = vmatprep.subr.mxu0 0.0
    %756 = vmatpush2.msra.mxu0 0.0
    %757 = vmatprep.subr.mxu0 0.0
    %758 = vmatpush2.msra.mxu0 0.0
    %759 = vmatprep.subr.mxu0 0.0
    %760 = vmatpush2.msra.mxu0 0.0
    %761 = vmatprep.subr.mxu0 0.0
    %762 = vmatpush2.msra.mxu0 0.0
    %763 = vmatprep.subr.mxu0 0.0
    %764 = vmatpush2.msra.mxu0 0.0
    %765 = vmatprep.mubr.f32.mxu0 0.0
    %766 = vmatmul.mubr.f32.gmra.mxu0 %v684
    %v767 = vpop.f32.mrf.mxu0
    %v768 = vadd.f32 0.0, %v767
    %v769 = vpop.f32.mrf.mxu0
    %770 = vmatprep.mubr.f32.mxu0 0.0
    %771 = vmatmul.mubr.f32.gmra.mxu0 %v687
    %v772 = vpop.f32.mrf.mxu0
    %v773 = vadd.f32 0.0, %v772
    %v774 = vpop.f32.mrf.mxu0
    %775 = vmatprep.mubr.f32.mxu0 0.0
    %776 = vmatmul.mubr.f32.gmra.mxu0 %v690
    %v777 = vpop.f32.mrf.mxu0
    %v778 = vadd.f32 0.0, %v777
    %v779 = vpop.f32.mrf.mxu0
    %780 = vmatprep.mubr.f32.mxu0 0.0
    %781 = vmatmul.mubr.f32.gmra.mxu0 %v693
    %v782 = vpop.f32.mrf.mxu0
    %v783 = vadd.f32 0.0, %v782
    %v784 = vpop.f32.mrf.mxu0
    %785 = vmatprep.mubr.f32.mxu0 0.0
    %786 = vmatmul.mubr.f32.gmra.mxu0 %v696
    %v787 = vpop.f32.mrf.mxu0
    %v788 = vadd.f32 0.0, %v787
    %v789 = vpop.f32.mrf.mxu0
    %790 = vmatprep.mubr.f32.mxu0 0.0
    %791 = vmatmul.mubr.f32.gmra.mxu0 %v699
    %v792 = vpop.f32.mrf.mxu0
    %v793 = vadd.f32 0.0, %v792
    %v794 = vpop.f32.mrf.mxu0
    %795 = vdwg.mxu0
    %v797 = vsel %vm117, %v103, 0
    %v800 = vsel %vm117, %v104, 0
    %v803 = vsel %vm117, %v105, 0
    %v806 = vsel %vm117, %v106, 0
    %v809 = vsel %vm117, %v107, 0
    %v812 = vsel %vm117, %v108, 0
    %814 = vmatprep.subr.mxu0 0.0
    %815 = vmatpush1.msra.mxu0 0.0
    %816 = vmatprep.subr.mxu0 0.0
    %817 = vmatpush1.msra.mxu0 0.0
    %818 = vmatprep.subr.mxu0 0.0
    %819 = vmatpush1.msra.mxu0 0.0
    %820 = vmatprep.subr.mxu0 0.0
    %821 = vmatpush1.msra.mxu0 0.0
    %822 = vmatprep.subr.mxu0 0.0
    %823 = vmatpush1.msra.mxu0 0.0
    %824 = vmatprep.subr.mxu0 0.0
    %825 = vmatpush1.msra.mxu0 0.0
    %826 = vmatprep.subr.mxu0 0.0
    %827 = vmatpush1.msra.mxu0 0.0
    %828 = vmatprep.subr.mxu0 0.0
    %829 = vmatpush1.msra.mxu0 0.0
    %830 = vmatprep.subr.mxu0 0.0
    %831 = vmatpush1.msra.mxu0 0.0
    %832 = vmatprep.subr.mxu0 0.0
    %833 = vmatpush1.msra.mxu0 0.0
    %834 = vmatprep.subr.mxu0 0.0
    %835 = vmatpush1.msra.mxu0 0.0
    %836 = vmatprep.subr.mxu0 0.0
    %837 = vmatpush1.msra.mxu0 0.0
    %838 = vmatprep.subr.mxu0 0.0
    %839 = vmatpush1.msra.mxu0 0.0
    %840 = vmatprep.subr.mxu0 0.0
    %841 = vmatpush1.msra.mxu0 0.0
    %842 = vmatprep.subr.mxu0 0.0
    %843 = vmatpush1.msra.mxu0 %v116
    %844 = vmatprep.subr.mxu0 0.0
    %845 = vmatpush1.msra.mxu0 %v115
    %846 = vmatprep.subr.mxu0 0.0
    %847 = vmatpush2.msra.mxu0 0.0
    %848 = vmatprep.subr.mxu0 0.0
    %849 = vmatpush2.msra.mxu0 0.0
    %850 = vmatprep.subr.mxu0 0.0
    %851 = vmatpush2.msra.mxu0 0.0
    %852 = vmatprep.subr.mxu0 0.0
    %853 = vmatpush2.msra.mxu0 0.0
    %854 = vmatprep.subr.mxu0 0.0
    %855 = vmatpush2.msra.mxu0 0.0
    %856 = vmatprep.subr.mxu0 0.0
    %857 = vmatpush2.msra.mxu0 0.0
    %858 = vmatprep.subr.mxu0 0.0
    %859 = vmatpush2.msra.mxu0 0.0
    %860 = vmatprep.subr.mxu0 0.0
    %861 = vmatpush2.msra.mxu0 0.0
    %862 = vmatprep.subr.mxu0 0.0
    %863 = vmatpush2.msra.mxu0 0.0
    %864 = vmatprep.subr.mxu0 0.0
    %865 = vmatpush2.msra.mxu0 0.0
    %866 = vmatprep.subr.mxu0 0.0
    %867 = vmatpush2.msra.mxu0 0.0
    %868 = vmatprep.subr.mxu0 0.0
    %869 = vmatpush2.msra.mxu0 0.0
    %870 = vmatprep.subr.mxu0 0.0
    %871 = vmatpush2.msra.mxu0 0.0
    %872 = vmatprep.subr.mxu0 0.0
    %873 = vmatpush2.msra.mxu0 0.0
    %874 = vmatprep.subr.mxu0 0.0
    %875 = vmatpush2.msra.mxu0 0.0
    %876 = vmatprep.subr.mxu0 0.0
    %877 = vmatpush2.msra.mxu0 0.0
    %878 = vmatprep.mubr.f32.mxu0 0.0
    %879 = vmatmul.mubr.f32.gmra.mxu0 %v797
    %v880 = vpop.f32.mrf.mxu0
    %v881 = vadd.f32 0.0, %v880
    %v882 = vpop.f32.mrf.mxu0
    %883 = vmatprep.mubr.f32.mxu0 0.0
    %884 = vmatmul.mubr.f32.gmra.mxu0 %v800
    %v885 = vpop.f32.mrf.mxu0
    %v886 = vadd.f32 0.0, %v885
    %v887 = vpop.f32.mrf.mxu0
    %888 = vmatprep.mubr.f32.mxu0 0.0
    %889 = vmatmul.mubr.f32.gmra.mxu0 %v803
    %v890 = vpop.f32.mrf.mxu0
    %v891 = vadd.f32 0.0, %v890
    %v892 = vpop.f32.mrf.mxu0
    %893 = vmatprep.mubr.f32.mxu0 0.0
    %894 = vmatmul.mubr.f32.gmra.mxu0 %v806
    %v895 = vpop.f32.mrf.mxu0
    %v896 = vadd.f32 0.0, %v895
    %v897 = vpop.f32.mrf.mxu0
    %898 = vmatprep.mubr.f32.mxu0 0.0
    %899 = vmatmul.mubr.f32.gmra.mxu0 %v809
    %v900 = vpop.f32.mrf.mxu0
    %v901 = vadd.f32 0.0, %v900
    %v902 = vpop.f32.mrf.mxu0
    %903 = vmatprep.mubr.f32.mxu0 0.0
    %904 = vmatmul.mubr.f32.gmra.mxu0 %v812
    %v905 = vpop.f32.mrf.mxu0
    %v906 = vadd.f32 0.0, %v905
    %v907 = vpop.f32.mrf.mxu0
    %908 = vdwg.mxu0
    %v910 = vsel %vm117, %v109, 0
    %v913 = vsel %vm117, %v110, 0
    %v916 = vsel %vm117, %v111, 0
    %v919 = vsel %vm117, %v112, 0
    %v922 = vsel %vm117, %v113, 0
    %v925 = vsel %vm117, %v114, 0
    %927 = vmatprep.subr.mxu0 0.0
    %928 = vmatpush1.msra.mxu0 0.0
    %929 = vmatprep.subr.mxu0 0.0
    %930 = vmatpush1.msra.mxu0 0.0
    %931 = vmatprep.subr.mxu0 0.0
    %932 = vmatpush1.msra.mxu0 0.0
    %933 = vmatprep.subr.mxu0 0.0
    %934 = vmatpush1.msra.mxu0 0.0
    %935 = vmatprep.subr.mxu0 0.0
    %936 = vmatpush1.msra.mxu0 0.0
    %937 = vmatprep.subr.mxu0 0.0
    %938 = vmatpush1.msra.mxu0 0.0
    %939 = vmatprep.subr.mxu0 0.0
    %940 = vmatpush1.msra.mxu0 0.0
    %941 = vmatprep.subr.mxu0 0.0
    %942 = vmatpush1.msra.mxu0 0.0
    %943 = vmatprep.subr.mxu0 0.0
    %944 = vmatpush1.msra.mxu0 0.0
    %945 = vmatprep.subr.mxu0 0.0
    %946 = vmatpush1.msra.mxu0 0.0
    %947 = vmatprep.subr.mxu0 0.0
    %948 = vmatpush1.msra.mxu0 0.0
    %949 = vmatprep.subr.mxu0 0.0
    %950 = vmatpush1.msra.mxu0 0.0
    %951 = vmatprep.subr.mxu0 0.0
    %952 = vmatpush1.msra.mxu0 0.0
    %953 = vmatprep.subr.mxu0 0.0
    %954 = vmatpush1.msra.mxu0 0.0
    %955 = vmatprep.subr.mxu0 0.0
    %956 = vmatpush1.msra.mxu0 %v116
    %957 = vmatprep.subr.mxu0 0.0
    %958 = vmatpush1.msra.mxu0 %v115
    %959 = vmatprep.subr.mxu0 0.0
    %960 = vmatpush2.msra.mxu0 0.0
    %961 = vmatprep.subr.mxu0 0.0
    %962 = vmatpush2.msra.mxu0 0.0
    %963 = vmatprep.subr.mxu0 0.0
    %964 = vmatpush2.msra.mxu0 0.0
    %965 = vmatprep.subr.mxu0 0.0
    %966 = vmatpush2.msra.mxu0 0.0
    %967 = vmatprep.subr.mxu0 0.0
    %968 = vmatpush2.msra.mxu0 0.0
    %969 = vmatprep.subr.mxu0 0.0
    %970 = vmatpush2.msra.mxu0 0.0
    %971 = vmatprep.subr.mxu0 0.0
    %972 = vmatpush2.msra.mxu0 0.0
    %973 = vmatprep.subr.mxu0 0.0
    %974 = vmatpush2.msra.mxu0 0.0
    %975 = vmatprep.subr.mxu0 0.0
    %976 = vmatpush2.msra.mxu0 0.0
    %977 = vmatprep.subr.mxu0 0.0
    %978 = vmatpush2.msra.mxu0 0.0
    %979 = vmatprep.subr.mxu0 0.0
    %980 = vmatpush2.msra.mxu0 0.0
    %981 = vmatprep.subr.mxu0 0.0
    %982 = vmatpush2.msra.mxu0 0.0
    %983 = vmatprep.subr.mxu0 0.0
    %984 = vmatpush2.msra.mxu0 0.0
    %985 = vmatprep.subr.mxu0 0.0
    %986 = vmatpush2.msra.mxu0 0.0
    %987 = vmatprep.subr.mxu0 0.0
    %988 = vmatpush2.msra.mxu0 0.0
    %989 = vmatprep.subr.mxu0 0.0
    %990 = vmatpush2.msra.mxu0 0.0
    %991 = vmatprep.mubr.f32.mxu0 0.0
    %992 = vmatmul.mubr.f32.gmra.mxu0 %v910
    %v993 = vpop.f32.mrf.mxu0
    %v994 = vadd.f32 0.0, %v993
    %v995 = vpop.f32.mrf.mxu0
    %996 = vmatprep.mubr.f32.mxu0 0.0
    %997 = vmatmul.mubr.f32.gmra.mxu0 %v913
    %v998 = vpop.f32.mrf.mxu0
    %v999 = vadd.f32 0.0, %v998
    %v1000 = vpop.f32.mrf.mxu0
    %1001 = vmatprep.mubr.f32.mxu0 0.0
    %1002 = vmatmul.mubr.f32.gmra.mxu0 %v916
    %v1003 = vpop.f32.mrf.mxu0
    %v1004 = vadd.f32 0.0, %v1003
    %v1005 = vpop.f32.mrf.mxu0
    %1006 = vmatprep.mubr.f32.mxu0 0.0
    %1007 = vmatmul.mubr.f32.gmra.mxu0 %v919
    %v1008 = vpop.f32.mrf.mxu0
    %v1009 = vadd.f32 0.0, %v1008
    %v1010 = vpop.f32.mrf.mxu0
    %1011 = vmatprep.mubr.f32.mxu0 0.0
    %1012 = vmatmul.mubr.f32.gmra.mxu0 %v922
    %v1013 = vpop.f32.mrf.mxu0
    %v1014 = vadd.f32 0.0, %v1013
    %v1015 = vpop.f32.mrf.mxu0
    %1016 = vmatprep.mubr.f32.mxu0 0.0
    %1017 = vmatmul.mubr.f32.gmra.mxu0 %v925
    %v1018 = vpop.f32.mrf.mxu0
    %v1019 = vadd.f32 0.0, %v1018
    %v1020 = vpop.f32.mrf.mxu0
    %1021 = vdwg.mxu0
    %v1022 = vld [vmem:[#allocation4] sm:$0xf]
    %v1023 = vld [vmem:[#allocation4 + $0x4] sm:$0xf]
    %v1024 = vld [vmem:[#allocation4 + $0x8] sm:$0xf]
    %v1025 = vld [vmem:[#allocation4 + $0xc] sm:$0xf]
    %v1026 = vld [vmem:[#allocation4 + $0x10] sm:$0x3]
    %v1027 = vpack.c.bf16 %v208, %v203
    %v1028 = vpack.c.bf16 %v218, %v213
    %v1029 = vpack.c.bf16 %v228, %v223
    %v1030 = vpack.c.bf16 %v321, %v316
    %v1031 = vpack.c.bf16 %v331, %v326
    %v1032 = vpack.c.bf16 %v341, %v336
    %v1033 = vpack.c.bf16 %v434, %v429
    %v1034 = vpack.c.bf16 %v444, %v439
    %v1035 = vpack.c.bf16 %v454, %v449
    %v1036 = vpack.c.bf16 %v547, %v542
    %v1037 = vpack.c.bf16 %v557, %v552
    %v1038 = vpack.c.bf16 %v567, %v562
    %v1039 = vpack.c.bf16 %v660, %v655
    %v1040 = vpack.c.bf16 %v670, %v665
    %v1041 = vpack.c.bf16 %v680, %v675
    %v1042 = vpack.c.bf16 %v773, %v768
    %v1043 = vpack.c.bf16 %v783, %v778
    %v1044 = vpack.c.bf16 %v793, %v788
    %v1045 = vpack.c.bf16 %v886, %v881
    %v1046 = vpack.c.bf16 %v896, %v891
    %v1047 = vpack.c.bf16 %v906, %v901
    %v1048 = vpack.c.bf16 %v999, %v994
    %v1049 = vpack.c.bf16 %v1009, %v1004
    %v1050 = vpack.c.bf16 %v1019, %v1014
    %s1051 = scalar_lea.vmem %s2, 16
    %v1052 = vld [vmem:[%s1051] sm:$0xff]
    %v1053 = vld [vmem:[%s1051 + $0x8] sm:$0xff]
    %1054 = vmatprep.subr.mxu0 0.0
    %1055 = vmatpush1.msra.mxu0 0.0
    %1056 = vmatprep.subr.mxu0 0.0
    %1057 = vmatpush1.msra.mxu0 0.0
    %1058 = vmatprep.subr.mxu0 0.0
    %1059 = vmatpush1.msra.mxu0 0.0
    %1060 = vmatprep.subr.mxu0 0.0
    %1061 = vmatpush1.msra.mxu0 0.0
    %1062 = vmatprep.subr.mxu0 0.0
    %1063 = vmatpush1.msra.mxu0 0.0
    %1064 = vmatprep.subr.mxu0 0.0
    %1065 = vmatpush1.msra.mxu0 0.0
    %1066 = vmatprep.subr.mxu0 0.0
    %1067 = vmatpush1.msra.mxu0 0.0
    %1068 = vmatprep.subr.mxu0 0.0
    %1069 = vmatpush1.msra.mxu0 0.0
    %1070 = vmatprep.subr.mxu0 0.0
    %1071 = vmatpush1.msra.mxu0 0.0
    %1072 = vmatprep.subr.mxu0 0.0
    %1073 = vmatpush1.msra.mxu0 0.0
    %1074 = vmatprep.subr.mxu0 0.0
    %1075 = vmatpush1.msra.mxu0 0.0
    %1076 = vmatprep.subr.mxu0 0.0
    %1077 = vmatpush1.msra.mxu0 0.0
    %1078 = vmatprep.subr.mxu0 0.0
    %1079 = vmatpush1.msra.mxu0 0.0
    %1080 = vmatprep.subr.mxu0 0.0
    %1081 = vmatpush1.msra.mxu0 0.0
    %1082 = vmatprep.subr.mxu0 0.0
    %1083 = vmatpush1.msra.mxu0 %v1053
    %1084 = vmatprep.subr.mxu0 0.0
    %1085 = vmatpush1.msra.mxu0 %v1052
    %1086 = vmatprep.subr.mxu0 0.0
    %1087 = vmatpush2.msra.mxu0 0.0
    %1088 = vmatprep.subr.mxu0 0.0
    %1089 = vmatpush2.msra.mxu0 0.0
    %1090 = vmatprep.subr.mxu0 0.0
    %1091 = vmatpush2.msra.mxu0 0.0
    %1092 = vmatprep.subr.mxu0 0.0
    %1093 = vmatpush2.msra.mxu0 0.0
    %1094 = vmatprep.subr.mxu0 0.0
    %1095 = vmatpush2.msra.mxu0 0.0
    %1096 = vmatprep.subr.mxu0 0.0
    %1097 = vmatpush2.msra.mxu0 0.0
    %1098 = vmatprep.subr.mxu0 0.0
    %1099 = vmatpush2.msra.mxu0 0.0
    %1100 = vmatprep.subr.mxu0 0.0
    %1101 = vmatpush2.msra.mxu0 0.0
    %1102 = vmatprep.subr.mxu0 0.0
    %1103 = vmatpush2.msra.mxu0 0.0
    %1104 = vmatprep.subr.mxu0 0.0
    %1105 = vmatpush2.msra.mxu0 0.0
    %1106 = vmatprep.subr.mxu0 0.0
    %1107 = vmatpush2.msra.mxu0 0.0
    %1108 = vmatprep.subr.mxu0 0.0
    %1109 = vmatpush2.msra.mxu0 0.0
    %1110 = vmatprep.subr.mxu0 0.0
    %1111 = vmatpush2.msra.mxu0 0.0
    %1112 = vmatprep.subr.mxu0 0.0
    %1113 = vmatpush2.msra.mxu0 0.0
    %1114 = vmatprep.subr.mxu0 0.0
    %1115 = vmatpush2.msra.mxu0 0.0
    %1116 = vmatprep.subr.mxu0 0.0
    %1117 = vmatpush2.msra.mxu0 0.0
    %1118 = vmatprep.mubr.f32.mxu0 0.0
    %1119 = vmatmul.mubr.f32.gmra.mxu0 %v119
    %v1120 = vpop.f32.mrf.mxu0
    %v1121 = vadd.f32 0.0, %v1120
    %v1122 = vpop.f32.mrf.mxu0
    %1123 = vmatprep.mubr.f32.mxu0 0.0
    %1124 = vmatmul.mubr.f32.gmra.mxu0 %v122
    %v1125 = vpop.f32.mrf.mxu0
    %v1126 = vadd.f32 0.0, %v1125
    %v1127 = vpop.f32.mrf.mxu0
    %1128 = vmatprep.mubr.f32.mxu0 0.0
    %1129 = vmatmul.mubr.f32.gmra.mxu0 %v125
    %v1130 = vpop.f32.mrf.mxu0
    %v1131 = vadd.f32 0.0, %v1130
    %v1132 = vpop.f32.mrf.mxu0
    %1133 = vmatprep.mubr.f32.mxu0 0.0
    %1134 = vmatmul.mubr.f32.gmra.mxu0 %v128
    %v1135 = vpop.f32.mrf.mxu0
    %v1136 = vadd.f32 0.0, %v1135
    %v1137 = vpop.f32.mrf.mxu0
    %1138 = vmatprep.mubr.f32.mxu0 0.0
    %1139 = vmatmul.mubr.f32.gmra.mxu0 %v131
    %v1140 = vpop.f32.mrf.mxu0
    %v1141 = vadd.f32 0.0, %v1140
    %v1142 = vpop.f32.mrf.mxu0
    %1143 = vmatprep.mubr.f32.mxu0 0.0
    %1144 = vmatmul.mubr.f32.gmra.mxu0 %v134
    %v1145 = vpop.f32.mrf.mxu0
    %v1146 = vadd.f32 0.0, %v1145
    %v1147 = vpop.f32.mrf.mxu0
    %1148 = vdwg.mxu0
    %1149 = vmatprep.subr.mxu0 0.0
    %1150 = vmatpush1.msra.mxu0 0.0
    %1151 = vmatprep.subr.mxu0 0.0
    %1152 = vmatpush1.msra.mxu0 0.0
    %1153 = vmatprep.subr.mxu0 0.0
    %1154 = vmatpush1.msra.mxu0 0.0
    %1155 = vmatprep.subr.mxu0 0.0
    %1156 = vmatpush1.msra.mxu0 0.0
    %1157 = vmatprep.subr.mxu0 0.0
    %1158 = vmatpush1.msra.mxu0 0.0
    %1159 = vmatprep.subr.mxu0 0.0
    %1160 = vmatpush1.msra.mxu0 0.0
    %1161 = vmatprep.subr.mxu0 0.0
    %1162 = vmatpush1.msra.mxu0 0.0
    %1163 = vmatprep.subr.mxu0 0.0
    %1164 = vmatpush1.msra.mxu0 0.0
    %1165 = vmatprep.subr.mxu0 0.0
    %1166 = vmatpush1.msra.mxu0 0.0
    %1167 = vmatprep.subr.mxu0 0.0
    %1168 = vmatpush1.msra.mxu0 0.0
    %1169 = vmatprep.subr.mxu0 0.0
    %1170 = vmatpush1.msra.mxu0 0.0
    %1171 = vmatprep.subr.mxu0 0.0
    %1172 = vmatpush1.msra.mxu0 0.0
    %1173 = vmatprep.subr.mxu0 0.0
    %1174 = vmatpush1.msra.mxu0 0.0
    %1175 = vmatprep.subr.mxu0 0.0
    %1176 = vmatpush1.msra.mxu0 0.0
    %1177 = vmatprep.subr.mxu0 0.0
    %1178 = vmatpush1.msra.mxu0 %v1053
    %1179 = vmatprep.subr.mxu0 0.0
    %1180 = vmatpush1.msra.mxu0 %v1052
    %1181 = vmatprep.subr.mxu0 0.0
    %1182 = vmatpush2.msra.mxu0 0.0
    %1183 = vmatprep.subr.mxu0 0.0
    %1184 = vmatpush2.msra.mxu0 0.0
    %1185 = vmatprep.subr.mxu0 0.0
    %1186 = vmatpush2.msra.mxu0 0.0
    %1187 = vmatprep.subr.mxu0 0.0
    %1188 = vmatpush2.msra.mxu0 0.0
    %1189 = vmatprep.subr.mxu0 0.0
    %1190 = vmatpush2.msra.mxu0 0.0
    %1191 = vmatprep.subr.mxu0 0.0
    %1192 = vmatpush2.msra.mxu0 0.0
    %1193 = vmatprep.subr.mxu0 0.0
    %1194 = vmatpush2.msra.mxu0 0.0
    %1195 = vmatprep.subr.mxu0 0.0
    %1196 = vmatpush2.msra.mxu0 0.0
    %1197 = vmatprep.subr.mxu0 0.0
    %1198 = vmatpush2.msra.mxu0 0.0
    %1199 = vmatprep.subr.mxu0 0.0
    %1200 = vmatpush2.msra.mxu0 0.0
    %1201 = vmatprep.subr.mxu0 0.0
    %1202 = vmatpush2.msra.mxu0 0.0
    %1203 = vmatprep.subr.mxu0 0.0
    %1204 = vmatpush2.msra.mxu0 0.0
    %1205 = vmatprep.subr.mxu0 0.0
    %1206 = vmatpush2.msra.mxu0 0.0
    %1207 = vmatprep.subr.mxu0 0.0
    %1208 = vmatpush2.msra.mxu0 0.0
    %1209 = vmatprep.subr.mxu0 0.0
    %1210 = vmatpush2.msra.mxu0 0.0
    %1211 = vmatprep.subr.mxu0 0.0
    %1212 = vmatpush2.msra.mxu0 0.0
    %1213 = vmatprep.mubr.f32.mxu0 0.0
    %1214 = vmatmul.mubr.f32.gmra.mxu0 %v232
    %v1215 = vpop.f32.mrf.mxu0
    %v1216 = vadd.f32 0.0, %v1215
    %v1217 = vpop.f32.mrf.mxu0
    %1218 = vmatprep.mubr.f32.mxu0 0.0
    %1219 = vmatmul.mubr.f32.gmra.mxu0 %v235
    %v1220 = vpop.f32.mrf.mxu0
    %v1221 = vadd.f32 0.0, %v1220
    %v1222 = vpop.f32.mrf.mxu0
    %1223 = vmatprep.mubr.f32.mxu0 0.0
    %1224 = vmatmul.mubr.f32.gmra.mxu0 %v238
    %v1225 = vpop.f32.mrf.mxu0
    %v1226 = vadd.f32 0.0, %v1225
    %v1227 = vpop.f32.mrf.mxu0
    %1228 = vmatprep.mubr.f32.mxu0 0.0
    %1229 = vmatmul.mubr.f32.gmra.mxu0 %v241
    %v1230 = vpop.f32.mrf.mxu0
    %v1231 = vadd.f32 0.0, %v1230
    %v1232 = vpop.f32.mrf.mxu0
    %1233 = vmatprep.mubr.f32.mxu0 0.0
    %1234 = vmatmul.mubr.f32.gmra.mxu0 %v244
    %v1235 = vpop.f32.mrf.mxu0
    %v1236 = vadd.f32 0.0, %v1235
    %v1237 = vpop.f32.mrf.mxu0
    %1238 = vmatprep.mubr.f32.mxu0 0.0
    %1239 = vmatmul.mubr.f32.gmra.mxu0 %v247
    %v1240 = vpop.f32.mrf.mxu0
    %v1241 = vadd.f32 0.0, %v1240
    %v1242 = vpop.f32.mrf.mxu0
    %1243 = vdwg.mxu0
    %1244 = vmatprep.subr.mxu0 0.0
    %1245 = vmatpush1.msra.mxu0 0.0
    %1246 = vmatprep.subr.mxu0 0.0
    %1247 = vmatpush1.msra.mxu0 0.0
    %1248 = vmatprep.subr.mxu0 0.0
    %1249 = vmatpush1.msra.mxu0 0.0
    %1250 = vmatprep.subr.mxu0 0.0
    %1251 = vmatpush1.msra.mxu0 0.0
    %1252 = vmatprep.subr.mxu0 0.0
    %1253 = vmatpush1.msra.mxu0 0.0
    %1254 = vmatprep.subr.mxu0 0.0
    %1255 = vmatpush1.msra.mxu0 0.0
    %1256 = vmatprep.subr.mxu0 0.0
    %1257 = vmatpush1.msra.mxu0 0.0
    %1258 = vmatprep.subr.mxu0 0.0
    %1259 = vmatpush1.msra.mxu0 0.0
    %1260 = vmatprep.subr.mxu0 0.0
    %1261 = vmatpush1.msra.mxu0 0.0
    %1262 = vmatprep.subr.mxu0 0.0
    %1263 = vmatpush1.msra.mxu0 0.0
    %1264 = vmatprep.subr.mxu0 0.0
    %1265 = vmatpush1.msra.mxu0 0.0
    %1266 = vmatprep.subr.mxu0 0.0
    %1267 = vmatpush1.msra.mxu0 0.0
    %1268 = vmatprep.subr.mxu0 0.0
    %1269 = vmatpush1.msra.mxu0 0.0
    %1270 = vmatprep.subr.mxu0 0.0
    %1271 = vmatpush1.msra.mxu0 0.0
    %1272 = vmatprep.subr.mxu0 0.0
    %1273 = vmatpush1.msra.mxu0 %v1053
    %1274 = vmatprep.subr.mxu0 0.0
    %1275 = vmatpush1.msra.mxu0 %v1052
    %1276 = vmatprep.subr.mxu0 0.0
    %1277 = vmatpush2.msra.mxu0 0.0
    %1278 = vmatprep.subr.mxu0 0.0
    %1279 = vmatpush2.msra.mxu0 0.0
    %1280 = vmatprep.subr.mxu0 0.0
    %1281 = vmatpush2.msra.mxu0 0.0
    %1282 = vmatprep.subr.mxu0 0.0
    %1283 = vmatpush2.msra.mxu0 0.0
    %1284 = vmatprep.subr.mxu0 0.0
    %1285 = vmatpush2.msra.mxu0 0.0
    %1286 = vmatprep.subr.mxu0 0.0
    %1287 = vmatpush2.msra.mxu0 0.0
    %1288 = vmatprep.subr.mxu0 0.0
    %1289 = vmatpush2.msra.mxu0 0.0
    %1290 = vmatprep.subr.mxu0 0.0
    %1291 = vmatpush2.msra.mxu0 0.0
    %1292 = vmatprep.subr.mxu0 0.0
    %1293 = vmatpush2.msra.mxu0 0.0
    %1294 = vmatprep.subr.mxu0 0.0
    %1295 = vmatpush2.msra.mxu0 0.0
    %1296 = vmatprep.subr.mxu0 0.0
    %1297 = vmatpush2.msra.mxu0 0.0
    %1298 = vmatprep.subr.mxu0 0.0
    %1299 = vmatpush2.msra.mxu0 0.0
    %1300 = vmatprep.subr.mxu0 0.0
    %1301 = vmatpush2.msra.mxu0 0.0
    %1302 = vmatprep.subr.mxu0 0.0
    %1303 = vmatpush2.msra.mxu0 0.0
    %1304 = vmatprep.subr.mxu0 0.0
    %1305 = vmatpush2.msra.mxu0 0.0
    %1306 = vmatprep.subr.mxu0 0.0
    %1307 = vmatpush2.msra.mxu0 0.0
    %1308 = vmatprep.mubr.f32.mxu0 0.0
    %1309 = vmatmul.mubr.f32.gmra.mxu0 %v345
    %v1310 = vpop.f32.mrf.mxu0
    %v1311 = vadd.f32 0.0, %v1310
    %v1312 = vpop.f32.mrf.mxu0
    %1313 = vmatprep.mubr.f32.mxu0 0.0
    %1314 = vmatmul.mubr.f32.gmra.mxu0 %v348
    %v1315 = vpop.f32.mrf.mxu0
    %v1316 = vadd.f32 0.0, %v1315
    %v1317 = vpop.f32.mrf.mxu0
    %1318 = vmatprep.mubr.f32.mxu0 0.0
    %1319 = vmatmul.mubr.f32.gmra.mxu0 %v351
    %v1320 = vpop.f32.mrf.mxu0
    %v1321 = vadd.f32 0.0, %v1320
    %v1322 = vpop.f32.mrf.mxu0
    %1323 = vmatprep.mubr.f32.mxu0 0.0
    %1324 = vmatmul.mubr.f32.gmra.mxu0 %v354
    %v1325 = vpop.f32.mrf.mxu0
    %v1326 = vadd.f32 0.0, %v1325
    %v1327 = vpop.f32.mrf.mxu0
    %1328 = vmatprep.mubr.f32.mxu0 0.0
    %1329 = vmatmul.mubr.f32.gmra.mxu0 %v357
    %v1330 = vpop.f32.mrf.mxu0
    %v1331 = vadd.f32 0.0, %v1330
    %v1332 = vpop.f32.mrf.mxu0
    %1333 = vmatprep.mubr.f32.mxu0 0.0
    %1334 = vmatmul.mubr.f32.gmra.mxu0 %v360
    %v1335 = vpop.f32.mrf.mxu0
    %v1336 = vadd.f32 0.0, %v1335
    %v1337 = vpop.f32.mrf.mxu0
    %1338 = vdwg.mxu0
    %1339 = vmatprep.subr.mxu0 0.0
    %1340 = vmatpush1.msra.mxu0 0.0
    %1341 = vmatprep.subr.mxu0 0.0
    %1342 = vmatpush1.msra.mxu0 0.0
    %1343 = vmatprep.subr.mxu0 0.0
    %1344 = vmatpush1.msra.mxu0 0.0
    %1345 = vmatprep.subr.mxu0 0.0
    %1346 = vmatpush1.msra.mxu0 0.0
    %1347 = vmatprep.subr.mxu0 0.0
    %1348 = vmatpush1.msra.mxu0 0.0
    %1349 = vmatprep.subr.mxu0 0.0
    %1350 = vmatpush1.msra.mxu0 0.0
    %1351 = vmatprep.subr.mxu0 0.0
    %1352 = vmatpush1.msra.mxu0 0.0
    %1353 = vmatprep.subr.mxu0 0.0
    %1354 = vmatpush1.msra.mxu0 0.0
    %1355 = vmatprep.subr.mxu0 0.0
    %1356 = vmatpush1.msra.mxu0 0.0
    %1357 = vmatprep.subr.mxu0 0.0
    %1358 = vmatpush1.msra.mxu0 0.0
    %1359 = vmatprep.subr.mxu0 0.0
    %1360 = vmatpush1.msra.mxu0 0.0
    %1361 = vmatprep.subr.mxu0 0.0
    %1362 = vmatpush1.msra.mxu0 0.0
    %1363 = vmatprep.subr.mxu0 0.0
    %1364 = vmatpush1.msra.mxu0 0.0
    %1365 = vmatprep.subr.mxu0 0.0
    %1366 = vmatpush1.msra.mxu0 0.0
    %1367 = vmatprep.subr.mxu0 0.0
    %1368 = vmatpush1.msra.mxu0 %v1053
    %1369 = vmatprep.subr.mxu0 0.0
    %1370 = vmatpush1.msra.mxu0 %v1052
    %1371 = vmatprep.subr.mxu0 0.0
    %1372 = vmatpush2.msra.mxu0 0.0
    %1373 = vmatprep.subr.mxu0 0.0
    %1374 = vmatpush2.msra.mxu0 0.0
    %1375 = vmatprep.subr.mxu0 0.0
    %1376 = vmatpush2.msra.mxu0 0.0
    %1377 = vmatprep.subr.mxu0 0.0
    %1378 = vmatpush2.msra.mxu0 0.0
    %1379 = vmatprep.subr.mxu0 0.0
    %1380 = vmatpush2.msra.mxu0 0.0
    %1381 = vmatprep.subr.mxu0 0.0
    %1382 = vmatpush2.msra.mxu0 0.0
    %1383 = vmatprep.subr.mxu0 0.0
    %1384 = vmatpush2.msra.mxu0 0.0
    %1385 = vmatprep.subr.mxu0 0.0
    %1386 = vmatpush2.msra.mxu0 0.0
    %1387 = vmatprep.subr.mxu0 0.0
    %1388 = vmatpush2.msra.mxu0 0.0
    %1389 = vmatprep.subr.mxu0 0.0
    %1390 = vmatpush2.msra.mxu0 0.0
    %1391 = vmatprep.subr.mxu0 0.0
    %1392 = vmatpush2.msra.mxu0 0.0
    %1393 = vmatprep.subr.mxu0 0.0
    %1394 = vmatpush2.msra.mxu0 0.0
    %1395 = vmatprep.subr.mxu0 0.0
    %1396 = vmatpush2.msra.mxu0 0.0
    %1397 = vmatprep.subr.mxu0 0.0
    %1398 = vmatpush2.msra.mxu0 0.0
    %1399 = vmatprep.subr.mxu0 0.0
    %1400 = vmatpush2.msra.mxu0 0.0
    %1401 = vmatprep.subr.mxu0 0.0
    %1402 = vmatpush2.msra.mxu0 0.0
    %1403 = vmatprep.mubr.f32.mxu0 0.0
    %1404 = vmatmul.mubr.f32.gmra.mxu0 %v458
    %v1405 = vpop.f32.mrf.mxu0
    %v1406 = vadd.f32 0.0, %v1405
    %v1407 = vpop.f32.mrf.mxu0
    %1408 = vmatprep.mubr.f32.mxu0 0.0
    %1409 = vmatmul.mubr.f32.gmra.mxu0 %v461
    %v1410 = vpop.f32.mrf.mxu0
    %v1411 = vadd.f32 0.0, %v1410
    %v1412 = vpop.f32.mrf.mxu0
    %1413 = vmatprep.mubr.f32.mxu0 0.0
    %1414 = vmatmul.mubr.f32.gmra.mxu0 %v464
    %v1415 = vpop.f32.mrf.mxu0
    %v1416 = vadd.f32 0.0, %v1415
    %v1417 = vpop.f32.mrf.mxu0
    %1418 = vmatprep.mubr.f32.mxu0 0.0
    %1419 = vmatmul.mubr.f32.gmra.mxu0 %v467
    %v1420 = vpop.f32.mrf.mxu0
    %v1421 = vadd.f32 0.0, %v1420
    %v1422 = vpop.f32.mrf.mxu0
    %1423 = vmatprep.mubr.f32.mxu0 0.0
    %1424 = vmatmul.mubr.f32.gmra.mxu0 %v470
    %v1425 = vpop.f32.mrf.mxu0
    %v1426 = vadd.f32 0.0, %v1425
    %v1427 = vpop.f32.mrf.mxu0
    %1428 = vmatprep.mubr.f32.mxu0 0.0
    %1429 = vmatmul.mubr.f32.gmra.mxu0 %v473
    %v1430 = vpop.f32.mrf.mxu0
    %v1431 = vadd.f32 0.0, %v1430
    %v1432 = vpop.f32.mrf.mxu0
    %1433 = vdwg.mxu0
    %1434 = vmatprep.subr.mxu0 0.0
    %1435 = vmatpush1.msra.mxu0 0.0
    %1436 = vmatprep.subr.mxu0 0.0
    %1437 = vmatpush1.msra.mxu0 0.0
    %1438 = vmatprep.subr.mxu0 0.0
    %1439 = vmatpush1.msra.mxu0 0.0
    %1440 = vmatprep.subr.mxu0 0.0
    %1441 = vmatpush1.msra.mxu0 0.0
    %1442 = vmatprep.subr.mxu0 0.0
    %1443 = vmatpush1.msra.mxu0 0.0
    %1444 = vmatprep.subr.mxu0 0.0
    %1445 = vmatpush1.msra.mxu0 0.0
    %1446 = vmatprep.subr.mxu0 0.0
    %1447 = vmatpush1.msra.mxu0 0.0
    %1448 = vmatprep.subr.mxu0 0.0
    %1449 = vmatpush1.msra.mxu0 0.0
    %1450 = vmatprep.subr.mxu0 0.0
    %1451 = vmatpush1.msra.mxu0 0.0
    %1452 = vmatprep.subr.mxu0 0.0
    %1453 = vmatpush1.msra.mxu0 0.0
    %1454 = vmatprep.subr.mxu0 0.0
    %1455 = vmatpush1.msra.mxu0 0.0
    %1456 = vmatprep.subr.mxu0 0.0
    %1457 = vmatpush1.msra.mxu0 0.0
    %1458 = vmatprep.subr.mxu0 0.0
    %1459 = vmatpush1.msra.mxu0 0.0
    %1460 = vmatprep.subr.mxu0 0.0
    %1461 = vmatpush1.msra.mxu0 0.0
    %1462 = vmatprep.subr.mxu0 0.0
    %1463 = vmatpush1.msra.mxu0 %v1053
    %1464 = vmatprep.subr.mxu0 0.0
    %1465 = vmatpush1.msra.mxu0 %v1052
    %1466 = vmatprep.subr.mxu0 0.0
    %1467 = vmatpush2.msra.mxu0 0.0
    %1468 = vmatprep.subr.mxu0 0.0
    %1469 = vmatpush2.msra.mxu0 0.0
    %1470 = vmatprep.subr.mxu0 0.0
    %1471 = vmatpush2.msra.mxu0 0.0
    %1472 = vmatprep.subr.mxu0 0.0
    %1473 = vmatpush2.msra.mxu0 0.0
    %1474 = vmatprep.subr.mxu0 0.0
    %1475 = vmatpush2.msra.mxu0 0.0
    %1476 = vmatprep.subr.mxu0 0.0
    %1477 = vmatpush2.msra.mxu0 0.0
    %1478 = vmatprep.subr.mxu0 0.0
    %1479 = vmatpush2.msra.mxu0 0.0
    %1480 = vmatprep.subr.mxu0 0.0
    %1481 = vmatpush2.msra.mxu0 0.0
    %1482 = vmatprep.subr.mxu0 0.0
    %1483 = vmatpush2.msra.mxu0 0.0
    %1484 = vmatprep.subr.mxu0 0.0
    %1485 = vmatpush2.msra.mxu0 0.0
    %1486 = vmatprep.subr.mxu0 0.0
    %1487 = vmatpush2.msra.mxu0 0.0
    %1488 = vmatprep.subr.mxu0 0.0
    %1489 = vmatpush2.msra.mxu0 0.0
    %1490 = vmatprep.subr.mxu0 0.0
    %1491 = vmatpush2.msra.mxu0 0.0
    %1492 = vmatprep.subr.mxu0 0.0
    %1493 = vmatpush2.msra.mxu0 0.0
    %1494 = vmatprep.subr.mxu0 0.0
    %1495 = vmatpush2.msra.mxu0 0.0
    %1496 = vmatprep.subr.mxu0 0.0
    %1497 = vmatpush2.msra.mxu0 0.0
    %1498 = vmatprep.mubr.f32.mxu0 0.0
    %1499 = vmatmul.mubr.f32.gmra.mxu0 %v571
    %v1500 = vpop.f32.mrf.mxu0
    %v1501 = vadd.f32 0.0, %v1500
    %v1502 = vpop.f32.mrf.mxu0
    %1503 = vmatprep.mubr.f32.mxu0 0.0
    %1504 = vmatmul.mubr.f32.gmra.mxu0 %v574
    %v1505 = vpop.f32.mrf.mxu0
    %v1506 = vadd.f32 0.0, %v1505
    %v1507 = vpop.f32.mrf.mxu0
    %1508 = vmatprep.mubr.f32.mxu0 0.0
    %1509 = vmatmul.mubr.f32.gmra.mxu0 %v577
    %v1510 = vpop.f32.mrf.mxu0
    %v1511 = vadd.f32 0.0, %v1510
    %v1512 = vpop.f32.mrf.mxu0
    %1513 = vmatprep.mubr.f32.mxu0 0.0
    %1514 = vmatmul.mubr.f32.gmra.mxu0 %v580
    %v1515 = vpop.f32.mrf.mxu0
    %v1516 = vadd.f32 0.0, %v1515
    %v1517 = vpop.f32.mrf.mxu0
    %1518 = vmatprep.mubr.f32.mxu0 0.0
    %1519 = vmatmul.mubr.f32.gmra.mxu0 %v583
    %v1520 = vpop.f32.mrf.mxu0
    %v1521 = vadd.f32 0.0, %v1520
    %v1522 = vpop.f32.mrf.mxu0
    %1523 = vmatprep.mubr.f32.mxu0 0.0
    %1524 = vmatmul.mubr.f32.gmra.mxu0 %v586
    %v1525 = vpop.f32.mrf.mxu0
    %v1526 = vadd.f32 0.0, %v1525
    %v1527 = vpop.f32.mrf.mxu0
    %1528 = vdwg.mxu0
    %1529 = vmatprep.subr.mxu0 0.0
    %1530 = vmatpush1.msra.mxu0 0.0
    %1531 = vmatprep.subr.mxu0 0.0
    %1532 = vmatpush1.msra.mxu0 0.0
    %1533 = vmatprep.subr.mxu0 0.0
    %1534 = vmatpush1.msra.mxu0 0.0
    %1535 = vmatprep.subr.mxu0 0.0
    %1536 = vmatpush1.msra.mxu0 0.0
    %1537 = vmatprep.subr.mxu0 0.0
    %1538 = vmatpush1.msra.mxu0 0.0
    %1539 = vmatprep.subr.mxu0 0.0
    %1540 = vmatpush1.msra.mxu0 0.0
    %1541 = vmatprep.subr.mxu0 0.0
    %1542 = vmatpush1.msra.mxu0 0.0
    %1543 = vmatprep.subr.mxu0 0.0
    %1544 = vmatpush1.msra.mxu0 0.0
    %1545 = vmatprep.subr.mxu0 0.0
    %1546 = vmatpush1.msra.mxu0 0.0
    %1547 = vmatprep.subr.mxu0 0.0
    %1548 = vmatpush1.msra.mxu0 0.0
    %1549 = vmatprep.subr.mxu0 0.0
    %1550 = vmatpush1.msra.mxu0 0.0
    %1551 = vmatprep.subr.mxu0 0.0
    %1552 = vmatpush1.msra.mxu0 0.0
    %1553 = vmatprep.subr.mxu0 0.0
    %1554 = vmatpush1.msra.mxu0 0.0
    %1555 = vmatprep.subr.mxu0 0.0
    %1556 = vmatpush1.msra.mxu0 0.0
    %1557 = vmatprep.subr.mxu0 0.0
    %1558 = vmatpush1.msra.mxu0 %v1053
    %1559 = vmatprep.subr.mxu0 0.0
    %1560 = vmatpush1.msra.mxu0 %v1052
    %1561 = vmatprep.subr.mxu0 0.0
    %1562 = vmatpush2.msra.mxu0 0.0
    %1563 = vmatprep.subr.mxu0 0.0
    %1564 = vmatpush2.msra.mxu0 0.0
    %1565 = vmatprep.subr.mxu0 0.0
    %1566 = vmatpush2.msra.mxu0 0.0
    %1567 = vmatprep.subr.mxu0 0.0
    %1568 = vmatpush2.msra.mxu0 0.0
    %1569 = vmatprep.subr.mxu0 0.0
    %1570 = vmatpush2.msra.mxu0 0.0
    %1571 = vmatprep.subr.mxu0 0.0
    %1572 = vmatpush2.msra.mxu0 0.0
    %1573 = vmatprep.subr.mxu0 0.0
    %1574 = vmatpush2.msra.mxu0 0.0
    %1575 = vmatprep.subr.mxu0 0.0
    %1576 = vmatpush2.msra.mxu0 0.0
    %1577 = vmatprep.subr.mxu0 0.0
    %1578 = vmatpush2.msra.mxu0 0.0
    %1579 = vmatprep.subr.mxu0 0.0
    %1580 = vmatpush2.msra.mxu0 0.0
    %1581 = vmatprep.subr.mxu0 0.0
    %1582 = vmatpush2.msra.mxu0 0.0
    %1583 = vmatprep.subr.mxu0 0.0
    %1584 = vmatpush2.msra.mxu0 0.0
    %1585 = vmatprep.subr.mxu0 0.0
    %1586 = vmatpush2.msra.mxu0 0.0
    %1587 = vmatprep.subr.mxu0 0.0
    %1588 = vmatpush2.msra.mxu0 0.0
    %1589 = vmatprep.subr.mxu0 0.0
    %1590 = vmatpush2.msra.mxu0 0.0
    %1591 = vmatprep.subr.mxu0 0.0
    %1592 = vmatpush2.msra.mxu0 0.0
    %1593 = vmatprep.mubr.f32.mxu0 0.0
    %1594 = vmatmul.mubr.f32.gmra.mxu0 %v684
    %v1595 = vpop.f32.mrf.mxu0
    %v1596 = vadd.f32 0.0, %v1595
    %v1597 = vpop.f32.mrf.mxu0
    %1598 = vmatprep.mubr.f32.mxu0 0.0
    %1599 = vmatmul.mubr.f32.gmra.mxu0 %v687
    %v1600 = vpop.f32.mrf.mxu0
    %v1601 = vadd.f32 0.0, %v1600
    %v1602 = vpop.f32.mrf.mxu0
    %1603 = vmatprep.mubr.f32.mxu0 0.0
    %1604 = vmatmul.mubr.f32.gmra.mxu0 %v690
    %v1605 = vpop.f32.mrf.mxu0
    %v1606 = vadd.f32 0.0, %v1605
    %v1607 = vpop.f32.mrf.mxu0
    %1608 = vmatprep.mubr.f32.mxu0 0.0
    %1609 = vmatmul.mubr.f32.gmra.mxu0 %v693
    %v1610 = vpop.f32.mrf.mxu0
    %v1611 = vadd.f32 0.0, %v1610
    %v1612 = vpop.f32.mrf.mxu0
    %1613 = vmatprep.mubr.f32.mxu0 0.0
    %1614 = vmatmul.mubr.f32.gmra.mxu0 %v696
    %v1615 = vpop.f32.mrf.mxu0
    %v1616 = vadd.f32 0.0, %v1615
    %v1617 = vpop.f32.mrf.mxu0
    %1618 = vmatprep.mubr.f32.mxu0 0.0
    %1619 = vmatmul.mubr.f32.gmra.mxu0 %v699
    %v1620 = vpop.f32.mrf.mxu0
    %v1621 = vadd.f32 0.0, %v1620
    %v1622 = vpop.f32.mrf.mxu0
    %1623 = vdwg.mxu0
    %1624 = vmatprep.subr.mxu0 0.0
    %1625 = vmatpush1.msra.mxu0 0.0
    %1626 = vmatprep.subr.mxu0 0.0
    %1627 = vmatpush1.msra.mxu0 0.0
    %1628 = vmatprep.subr.mxu0 0.0
    %1629 = vmatpush1.msra.mxu0 0.0
    %1630 = vmatprep.subr.mxu0 0.0
    %1631 = vmatpush1.msra.mxu0 0.0
    %1632 = vmatprep.subr.mxu0 0.0
    %1633 = vmatpush1.msra.mxu0 0.0
    %1634 = vmatprep.subr.mxu0 0.0
    %1635 = vmatpush1.msra.mxu0 0.0
    %1636 = vmatprep.subr.mxu0 0.0
    %1637 = vmatpush1.msra.mxu0 0.0
    %1638 = vmatprep.subr.mxu0 0.0
    %1639 = vmatpush1.msra.mxu0 0.0
    %1640 = vmatprep.subr.mxu0 0.0
    %1641 = vmatpush1.msra.mxu0 0.0
    %1642 = vmatprep.subr.mxu0 0.0
    %1643 = vmatpush1.msra.mxu0 0.0
    %1644 = vmatprep.subr.mxu0 0.0
    %1645 = vmatpush1.msra.mxu0 0.0
    %1646 = vmatprep.subr.mxu0 0.0
    %1647 = vmatpush1.msra.mxu0 0.0
    %1648 = vmatprep.subr.mxu0 0.0
    %1649 = vmatpush1.msra.mxu0 0.0
    %1650 = vmatprep.subr.mxu0 0.0
    %1651 = vmatpush1.msra.mxu0 0.0
    %1652 = vmatprep.subr.mxu0 0.0
    %1653 = vmatpush1.msra.mxu0 %v1053
    %1654 = vmatprep.subr.mxu0 0.0
    %1655 = vmatpush1.msra.mxu0 %v1052
    %1656 = vmatprep.subr.mxu0 0.0
    %1657 = vmatpush2.msra.mxu0 0.0
    %1658 = vmatprep.subr.mxu0 0.0
    %1659 = vmatpush2.msra.mxu0 0.0
    %1660 = vmatprep.subr.mxu0 0.0
    %1661 = vmatpush2.msra.mxu0 0.0
    %1662 = vmatprep.subr.mxu0 0.0
    %1663 = vmatpush2.msra.mxu0 0.0
    %1664 = vmatprep.subr.mxu0 0.0
    %1665 = vmatpush2.msra.mxu0 0.0
    %1666 = vmatprep.subr.mxu0 0.0
    %1667 = vmatpush2.msra.mxu0 0.0
    %1668 = vmatprep.subr.mxu0 0.0
    %1669 = vmatpush2.msra.mxu0 0.0
    %1670 = vmatprep.subr.mxu0 0.0
    %1671 = vmatpush2.msra.mxu0 0.0
    %1672 = vmatprep.subr.mxu0 0.0
    %1673 = vmatpush2.msra.mxu0 0.0
    %1674 = vmatprep.subr.mxu0 0.0
    %1675 = vmatpush2.msra.mxu0 0.0
    %1676 = vmatprep.subr.mxu0 0.0
    %1677 = vmatpush2.msra.mxu0 0.0
    %1678 = vmatprep.subr.mxu0 0.0
    %1679 = vmatpush2.msra.mxu0 0.0
    %1680 = vmatprep.subr.mxu0 0.0
    %1681 = vmatpush2.msra.mxu0 0.0
    %1682 = vmatprep.subr.mxu0 0.0
    %1683 = vmatpush2.msra.mxu0 0.0
    %1684 = vmatprep.subr.mxu0 0.0
    %1685 = vmatpush2.msra.mxu0 0.0
    %1686 = vmatprep.subr.mxu0 0.0
    %1687 = vmatpush2.msra.mxu0 0.0
    %1688 = vmatprep.mubr.f32.mxu0 0.0
    %1689 = vmatmul.mubr.f32.gmra.mxu0 %v797
    %v1690 = vpop.f32.mrf.mxu0
    %v1691 = vadd.f32 0.0, %v1690
    %v1692 = vpop.f32.mrf.mxu0
    %1693 = vmatprep.mubr.f32.mxu0 0.0
    %1694 = vmatmul.mubr.f32.gmra.mxu0 %v800
    %v1695 = vpop.f32.mrf.mxu0
    %v1696 = vadd.f32 0.0, %v1695
    %v1697 = vpop.f32.mrf.mxu0
    %1698 = vmatprep.mubr.f32.mxu0 0.0
    %1699 = vmatmul.mubr.f32.gmra.mxu0 %v803
    %v1700 = vpop.f32.mrf.mxu0
    %v1701 = vadd.f32 0.0, %v1700
    %v1702 = vpop.f32.mrf.mxu0
    %1703 = vmatprep.mubr.f32.mxu0 0.0
    %1704 = vmatmul.mubr.f32.gmra.mxu0 %v806
    %v1705 = vpop.f32.mrf.mxu0
    %v1706 = vadd.f32 0.0, %v1705
    %v1707 = vpop.f32.mrf.mxu0
    %1708 = vmatprep.mubr.f32.mxu0 0.0
    %1709 = vmatmul.mubr.f32.gmra.mxu0 %v809
    %v1710 = vpop.f32.mrf.mxu0
    %v1711 = vadd.f32 0.0, %v1710
    %v1712 = vpop.f32.mrf.mxu0
    %1713 = vmatprep.mubr.f32.mxu0 0.0
    %1714 = vmatmul.mubr.f32.gmra.mxu0 %v812
    %v1715 = vpop.f32.mrf.mxu0
    %v1716 = vadd.f32 0.0, %v1715
    %v1717 = vpop.f32.mrf.mxu0
    %1718 = vdwg.mxu0
    %1719 = vmatprep.subr.mxu0 0.0
    %1720 = vmatpush1.msra.mxu0 0.0
    %1721 = vmatprep.subr.mxu0 0.0
    %1722 = vmatpush1.msra.mxu0 0.0
    %1723 = vmatprep.subr.mxu0 0.0
    %1724 = vmatpush1.msra.mxu0 0.0
    %1725 = vmatprep.subr.mxu0 0.0
    %1726 = vmatpush1.msra.mxu0 0.0
    %1727 = vmatprep.subr.mxu0 0.0
    %1728 = vmatpush1.msra.mxu0 0.0
    %1729 = vmatprep.subr.mxu0 0.0
    %1730 = vmatpush1.msra.mxu0 0.0
    %1731 = vmatprep.subr.mxu0 0.0
    %1732 = vmatpush1.msra.mxu0 0.0
    %1733 = vmatprep.subr.mxu0 0.0
    %1734 = vmatpush1.msra.mxu0 0.0
    %1735 = vmatprep.subr.mxu0 0.0
    %1736 = vmatpush1.msra.mxu0 0.0
    %1737 = vmatprep.subr.mxu0 0.0
    %1738 = vmatpush1.msra.mxu0 0.0
    %1739 = vmatprep.subr.mxu0 0.0
    %1740 = vmatpush1.msra.mxu0 0.0
    %1741 = vmatprep.subr.mxu0 0.0
    %1742 = vmatpush1.msra.mxu0 0.0
    %1743 = vmatprep.subr.mxu0 0.0
    %1744 = vmatpush1.msra.mxu0 0.0
    %1745 = vmatprep.subr.mxu0 0.0
    %1746 = vmatpush1.msra.mxu0 0.0
    %1747 = vmatprep.subr.mxu0 0.0
    %1748 = vmatpush1.msra.mxu0 %v1053
    %1749 = vmatprep.subr.mxu0 0.0
    %1750 = vmatpush1.msra.mxu0 %v1052
    %1751 = vmatprep.subr.mxu0 0.0
    %1752 = vmatpush2.msra.mxu0 0.0
    %1753 = vmatprep.subr.mxu0 0.0
    %1754 = vmatpush2.msra.mxu0 0.0
    %1755 = vmatprep.subr.mxu0 0.0
    %1756 = vmatpush2.msra.mxu0 0.0
    %1757 = vmatprep.subr.mxu0 0.0
    %1758 = vmatpush2.msra.mxu0 0.0
    %1759 = vmatprep.subr.mxu0 0.0
    %1760 = vmatpush2.msra.mxu0 0.0
    %1761 = vmatprep.subr.mxu0 0.0
    %1762 = vmatpush2.msra.mxu0 0.0
    %1763 = vmatprep.subr.mxu0 0.0
    %1764 = vmatpush2.msra.mxu0 0.0
    %1765 = vmatprep.subr.mxu0 0.0
    %1766 = vmatpush2.msra.mxu0 0.0
    %1767 = vmatprep.subr.mxu0 0.0
    %1768 = vmatpush2.msra.mxu0 0.0
    %1769 = vmatprep.subr.mxu0 0.0
    %1770 = vmatpush2.msra.mxu0 0.0
    %1771 = vmatprep.subr.mxu0 0.0
    %1772 = vmatpush2.msra.mxu0 0.0
    %1773 = vmatprep.subr.mxu0 0.0
    %1774 = vmatpush2.msra.mxu0 0.0
    %1775 = vmatprep.subr.mxu0 0.0
    %1776 = vmatpush2.msra.mxu0 0.0
    %1777 = vmatprep.subr.mxu0 0.0
    %1778 = vmatpush2.msra.mxu0 0.0
    %1779 = vmatprep.subr.mxu0 0.0
    %1780 = vmatpush2.msra.mxu0 0.0
    %1781 = vmatprep.subr.mxu0 0.0
    %1782 = vmatpush2.msra.mxu0 0.0
    %1783 = vmatprep.mubr.f32.mxu0 0.0
    %1784 = vmatmul.mubr.f32.gmra.mxu0 %v910
    %v1785 = vpop.f32.mrf.mxu0
    %v1786 = vadd.f32 0.0, %v1785
    %v1787 = vpop.f32.mrf.mxu0
    %1788 = vmatprep.mubr.f32.mxu0 0.0
    %1789 = vmatmul.mubr.f32.gmra.mxu0 %v913
    %v1790 = vpop.f32.mrf.mxu0
    %v1791 = vadd.f32 0.0, %v1790
    %v1792 = vpop.f32.mrf.mxu0
    %1793 = vmatprep.mubr.f32.mxu0 0.0
    %1794 = vmatmul.mubr.f32.gmra.mxu0 %v916
    %v1795 = vpop.f32.mrf.mxu0
    %v1796 = vadd.f32 0.0, %v1795
    %v1797 = vpop.f32.mrf.mxu0
    %1798 = vmatprep.mubr.f32.mxu0 0.0
    %1799 = vmatmul.mubr.f32.gmra.mxu0 %v919
    %v1800 = vpop.f32.mrf.mxu0
    %v1801 = vadd.f32 0.0, %v1800
    %v1802 = vpop.f32.mrf.mxu0
    %1803 = vmatprep.mubr.f32.mxu0 0.0
    %1804 = vmatmul.mubr.f32.gmra.mxu0 %v922
    %v1805 = vpop.f32.mrf.mxu0
    %v1806 = vadd.f32 0.0, %v1805
    %v1807 = vpop.f32.mrf.mxu0
    %1808 = vmatprep.mubr.f32.mxu0 0.0
    %1809 = vmatmul.mubr.f32.gmra.mxu0 %v925
    %v1810 = vpop.f32.mrf.mxu0
    %v1811 = vadd.f32 0.0, %v1810
    %v1812 = vpop.f32.mrf.mxu0
    %1813 = vdwg.mxu0
    %s1814 = scalar_lea.vmem [#allocation4], 20
    %v1815 = vld [vmem:[%s1814] sm:$0xf]
    %v1816 = vld [vmem:[%s1814 + $0x4] sm:$0xf]
    %v1817 = vld [vmem:[%s1814 + $0x8] sm:$0xf]
    %v1818 = vld [vmem:[%s1814 + $0xc] sm:$0xf]
    %v1819 = vld [vmem:[%s1814 + $0x10] sm:$0x3]
    %v1820 = vpack.c.bf16 %v1126, %v1121
    %v1821 = vpack.c.bf16 %v1136, %v1131
    %v1822 = vpack.c.bf16 %v1146, %v1141
    %v1823 = vpack.c.bf16 %v1221, %v1216
    %v1824 = vpack.c.bf16 %v1231, %v1226
    %v1825 = vpack.c.bf16 %v1241, %v1236
    %v1826 = vpack.c.bf16 %v1316, %v1311
    %v1827 = vpack.c.bf16 %v1326, %v1321
    %v1828 = vpack.c.bf16 %v1336, %v1331
    %v1829 = vpack.c.bf16 %v1411, %v1406
    %v1830 = vpack.c.bf16 %v1421, %v1416
    %v1831 = vpack.c.bf16 %v1431, %v1426
    %v1832 = vpack.c.bf16 %v1506, %v1501
    %v1833 = vpack.c.bf16 %v1516, %v1511
    %v1834 = vpack.c.bf16 %v1526, %v1521
    %v1835 = vpack.c.bf16 %v1601, %v1596
    %v1836 = vpack.c.bf16 %v1611, %v1606
    %v1837 = vpack.c.bf16 %v1621, %v1616
    %v1838 = vpack.c.bf16 %v1696, %v1691
    %v1839 = vpack.c.bf16 %v1706, %v1701
    %v1840 = vpack.c.bf16 %v1716, %v1711
    %v1841 = vpack.c.bf16 %v1791, %v1786
    %v1842 = vpack.c.bf16 %v1801, %v1796
    %v1843 = vpack.c.bf16 %v1811, %v1806
    %v1849 = vunpack.c.l.b16 %v1815
    %v1850 = vunpack.c.l.b16 %v1816
    %v1851 = vunpack.c.l.b16 %v1817
    %v1852 = vunpack.c.l.b16 %v1818
    %v1853 = vunpack.c.l.b16 %v1819
    %v1854 = vpack.c.b16 %v1850, %v1849
    %v1855 = vpack.c.b16 %v1852, %v1851
    %v1856 = vpack.c.b16 %v1853, %v1853
    %vm1857 = vcmask 392192
    %v1859 = vsel %vm1857, %v1854, 0
    %v1862 = vsel %vm1857, %v1855, 0
    %v1865 = vsel %vm1857, %v1856, 0
    %1867 = vmatprep.subr.bf16.mxu0 0
    %1868 = vmatpush1.bf16.msra.mxu0 0
    %1869 = vmatprep.subr.bf16.mxu0 0
    %1870 = vmatpush1.bf16.msra.mxu0 0
    %1871 = vmatprep.subr.bf16.mxu0 0
    %1872 = vmatpush1.bf16.msra.mxu0 0
    %1873 = vmatprep.subr.bf16.mxu0 0
    %1874 = vmatpush1.bf16.msra.mxu0 0
    %1875 = vmatprep.subr.bf16.mxu0 0
    %1876 = vmatpush1.bf16.msra.mxu0 0
    %1877 = vmatprep.subr.bf16.mxu0 0
    %1878 = vmatpush1.bf16.msra.mxu0 %v1822
    %1879 = vmatprep.subr.bf16.mxu0 0
    %1880 = vmatpush1.bf16.msra.mxu0 %v1821
    %1881 = vmatprep.subr.bf16.mxu0 0
    %1882 = vmatpush1.bf16.msra.mxu0 %v1820
    %1883 = vmatprep.subr.bf16.mxu0 0
    %1884 = vmatpush2.bf16.msra.mxu0 0
    %1885 = vmatprep.subr.bf16.mxu0 0
    %1886 = vmatpush2.bf16.msra.mxu0 0
    %1887 = vmatprep.subr.bf16.mxu0 0
    %1888 = vmatpush2.bf16.msra.mxu0 0
    %1889 = vmatprep.subr.bf16.mxu0 0
    %1890 = vmatpush2.bf16.msra.mxu0 0
    %1891 = vmatprep.subr.bf16.mxu0 0
    %1892 = vmatpush2.bf16.msra.mxu0 0
    %1893 = vmatprep.subr.bf16.mxu0 0
    %1894 = vmatpush2.bf16.msra.mxu0 0
    %1895 = vmatprep.subr.bf16.mxu0 0
    %1896 = vmatpush2.bf16.msra.mxu0 0
    %1897 = vmatprep.subr.bf16.mxu0 0
    %1898 = vmatpush2.bf16.msra.mxu0 0
    %1899 = vmatprep.mubr.bf16.mxu0 0
    %1900 = vmatmul.mubr.bf16.gmra.mxu0 %v1859
    %v1901 = vpop.f32.mrf.mxu0
    %v1902 = vadd.f32 0.0, %v1901
    %v1903 = vpop.f32.mrf.mxu0
    %v1904 = vpop.f32.mrf.mxu0
    %v1905 = vadd.f32 0.0, %v1904
    %v1906 = vpop.f32.mrf.mxu0
    %1907 = vmatprep.mubr.bf16.mxu0 0
    %1908 = vmatmul.mubr.bf16.gmra.mxu0 %v1862
    %v1909 = vpop.f32.mrf.mxu0
    %v1910 = vadd.f32 0.0, %v1909
    %v1911 = vpop.f32.mrf.mxu0
    %v1912 = vpop.f32.mrf.mxu0
    %v1913 = vadd.f32 0.0, %v1912
    %v1914 = vpop.f32.mrf.mxu0
    %1915 = vmatprep.mubr.bf16.mxu0 0
    %1916 = vmatmul.mubr.bf16.gmra.mxu0 %v1865
    %v1917 = vpop.f32.mrf.mxu0
    %v1918 = vadd.f32 0.0, %v1917
    %v1919 = vpop.f32.mrf.mxu0
    %v1920 = vpop.f32.mrf.mxu0
    %v1921 = vpop.f32.mrf.mxu0
    %1922 = vdwg.mxu0
    %1923 = vmatprep.subr.bf16.mxu0 0
    %1924 = vmatpush1.bf16.msra.mxu0 0
    %1925 = vmatprep.subr.bf16.mxu0 0
    %1926 = vmatpush1.bf16.msra.mxu0 0
    %1927 = vmatprep.subr.bf16.mxu0 0
    %1928 = vmatpush1.bf16.msra.mxu0 0
    %1929 = vmatprep.subr.bf16.mxu0 0
    %1930 = vmatpush1.bf16.msra.mxu0 0
    %1931 = vmatprep.subr.bf16.mxu0 0
    %1932 = vmatpush1.bf16.msra.mxu0 0
    %1933 = vmatprep.subr.bf16.mxu0 0
    %1934 = vmatpush1.bf16.msra.mxu0 %v1825
    %1935 = vmatprep.subr.bf16.mxu0 0
    %1936 = vmatpush1.bf16.msra.mxu0 %v1824
    %1937 = vmatprep.subr.bf16.mxu0 0
    %1938 = vmatpush1.bf16.msra.mxu0 %v1823
    %1939 = vmatprep.subr.bf16.mxu0 0
    %1940 = vmatpush2.bf16.msra.mxu0 0
    %1941 = vmatprep.subr.bf16.mxu0 0
    %1942 = vmatpush2.bf16.msra.mxu0 0
    %1943 = vmatprep.subr.bf16.mxu0 0
    %1944 = vmatpush2.bf16.msra.mxu0 0
    %1945 = vmatprep.subr.bf16.mxu0 0
    %1946 = vmatpush2.bf16.msra.mxu0 0
    %1947 = vmatprep.subr.bf16.mxu0 0
    %1948 = vmatpush2.bf16.msra.mxu0 0
    %1949 = vmatprep.subr.bf16.mxu0 0
    %1950 = vmatpush2.bf16.msra.mxu0 0
    %1951 = vmatprep.subr.bf16.mxu0 0
    %1952 = vmatpush2.bf16.msra.mxu0 0
    %1953 = vmatprep.subr.bf16.mxu0 0
    %1954 = vmatpush2.bf16.msra.mxu0 0
    %1955 = vmatprep.mubr.bf16.mxu0 0
    %1956 = vmatmul.mubr.bf16.gmra.mxu0 %v1859
    %v1957 = vpop.f32.mrf.mxu0
    %v1958 = vadd.f32 0.0, %v1957
    %v1959 = vpop.f32.mrf.mxu0
    %v1960 = vpop.f32.mrf.mxu0
    %v1961 = vadd.f32 0.0, %v1960
    %v1962 = vpop.f32.mrf.mxu0
    %1963 = vmatprep.mubr.bf16.mxu0 0
    %1964 = vmatmul.mubr.bf16.gmra.mxu0 %v1862
    %v1965 = vpop.f32.mrf.mxu0
    %v1966 = vadd.f32 0.0, %v1965
    %v1967 = vpop.f32.mrf.mxu0
    %v1968 = vpop.f32.mrf.mxu0
    %v1969 = vadd.f32 0.0, %v1968
    %v1970 = vpop.f32.mrf.mxu0
    %1971 = vmatprep.mubr.bf16.mxu0 0
    %1972 = vmatmul.mubr.bf16.gmra.mxu0 %v1865
    %v1973 = vpop.f32.mrf.mxu0
    %v1974 = vadd.f32 0.0, %v1973
    %v1975 = vpop.f32.mrf.mxu0
    %v1976 = vpop.f32.mrf.mxu0
    %v1977 = vpop.f32.mrf.mxu0
    %1978 = vdwg.mxu0
    %1979 = vmatprep.subr.bf16.mxu0 0
    %1980 = vmatpush1.bf16.msra.mxu0 0
    %1981 = vmatprep.subr.bf16.mxu0 0
    %1982 = vmatpush1.bf16.msra.mxu0 0
    %1983 = vmatprep.subr.bf16.mxu0 0
    %1984 = vmatpush1.bf16.msra.mxu0 0
    %1985 = vmatprep.subr.bf16.mxu0 0
    %1986 = vmatpush1.bf16.msra.mxu0 0
    %1987 = vmatprep.subr.bf16.mxu0 0
    %1988 = vmatpush1.bf16.msra.mxu0 0
    %1989 = vmatprep.subr.bf16.mxu0 0
    %1990 = vmatpush1.bf16.msra.mxu0 %v1828
    %1991 = vmatprep.subr.bf16.mxu0 0
    %1992 = vmatpush1.bf16.msra.mxu0 %v1827
    %1993 = vmatprep.subr.bf16.mxu0 0
    %1994 = vmatpush1.bf16.msra.mxu0 %v1826
    %1995 = vmatprep.subr.bf16.mxu0 0
    %1996 = vmatpush2.bf16.msra.mxu0 0
    %1997 = vmatprep.subr.bf16.mxu0 0
    %1998 = vmatpush2.bf16.msra.mxu0 0
    %1999 = vmatprep.subr.bf16.mxu0 0
    %2000 = vmatpush2.bf16.msra.mxu0 0
    %2001 = vmatprep.subr.bf16.mxu0 0
    %2002 = vmatpush2.bf16.msra.mxu0 0
    %2003 = vmatprep.subr.bf16.mxu0 0
    %2004 = vmatpush2.bf16.msra.mxu0 0
    %2005 = vmatprep.subr.bf16.mxu0 0
    %2006 = vmatpush2.bf16.msra.mxu0 0
    %2007 = vmatprep.subr.bf16.mxu0 0
    %2008 = vmatpush2.bf16.msra.mxu0 0
    %2009 = vmatprep.subr.bf16.mxu0 0
    %2010 = vmatpush2.bf16.msra.mxu0 0
    %2011 = vmatprep.mubr.bf16.mxu0 0
    %2012 = vmatmul.mubr.bf16.gmra.mxu0 %v1859
    %v2013 = vpop.f32.mrf.mxu0
    %v2014 = vadd.f32 0.0, %v2013
    %v2015 = vpop.f32.mrf.mxu0
    %v2016 = vpop.f32.mrf.mxu0
    %v2017 = vadd.f32 0.0, %v2016
    %v2018 = vpop.f32.mrf.mxu0
    %2019 = vmatprep.mubr.bf16.mxu0 0
    %2020 = vmatmul.mubr.bf16.gmra.mxu0 %v1862
    %v2021 = vpop.f32.mrf.mxu0
    %v2022 = vadd.f32 0.0, %v2021
    %v2023 = vpop.f32.mrf.mxu0
    %v2024 = vpop.f32.mrf.mxu0
    %v2025 = vadd.f32 0.0, %v2024
    %v2026 = vpop.f32.mrf.mxu0
    %2027 = vmatprep.mubr.bf16.mxu0 0
    %2028 = vmatmul.mubr.bf16.gmra.mxu0 %v1865
    %v2029 = vpop.f32.mrf.mxu0
    %v2030 = vadd.f32 0.0, %v2029
    %v2031 = vpop.f32.mrf.mxu0
    %v2032 = vpop.f32.mrf.mxu0
    %v2033 = vpop.f32.mrf.mxu0
    %2034 = vdwg.mxu0
    %2035 = vmatprep.subr.bf16.mxu0 0
    %2036 = vmatpush1.bf16.msra.mxu0 0
    %2037 = vmatprep.subr.bf16.mxu0 0
    %2038 = vmatpush1.bf16.msra.mxu0 0
    %2039 = vmatprep.subr.bf16.mxu0 0
    %2040 = vmatpush1.bf16.msra.mxu0 0
    %2041 = vmatprep.subr.bf16.mxu0 0
    %2042 = vmatpush1.bf16.msra.mxu0 0
    %2043 = vmatprep.subr.bf16.mxu0 0
    %2044 = vmatpush1.bf16.msra.mxu0 0
    %2045 = vmatprep.subr.bf16.mxu0 0
    %2046 = vmatpush1.bf16.msra.mxu0 %v1831
    %2047 = vmatprep.subr.bf16.mxu0 0
    %2048 = vmatpush1.bf16.msra.mxu0 %v1830
    %2049 = vmatprep.subr.bf16.mxu0 0
    %2050 = vmatpush1.bf16.msra.mxu0 %v1829
    %2051 = vmatprep.subr.bf16.mxu0 0
    %2052 = vmatpush2.bf16.msra.mxu0 0
    %2053 = vmatprep.subr.bf16.mxu0 0
    %2054 = vmatpush2.bf16.msra.mxu0 0
    %2055 = vmatprep.subr.bf16.mxu0 0
    %2056 = vmatpush2.bf16.msra.mxu0 0
    %2057 = vmatprep.subr.bf16.mxu0 0
    %2058 = vmatpush2.bf16.msra.mxu0 0
    %2059 = vmatprep.subr.bf16.mxu0 0
    %2060 = vmatpush2.bf16.msra.mxu0 0
    %2061 = vmatprep.subr.bf16.mxu0 0
    %2062 = vmatpush2.bf16.msra.mxu0 0
    %2063 = vmatprep.subr.bf16.mxu0 0
    %2064 = vmatpush2.bf16.msra.mxu0 0
    %2065 = vmatprep.subr.bf16.mxu0 0
    %2066 = vmatpush2.bf16.msra.mxu0 0
    %2067 = vmatprep.mubr.bf16.mxu0 0
    %2068 = vmatmul.mubr.bf16.gmra.mxu0 %v1859
    %v2069 = vpop.f32.mrf.mxu0
    %v2070 = vadd.f32 0.0, %v2069
    %v2071 = vpop.f32.mrf.mxu0
    %v2072 = vpop.f32.mrf.mxu0
    %v2073 = vadd.f32 0.0, %v2072
    %v2074 = vpop.f32.mrf.mxu0
    %2075 = vmatprep.mubr.bf16.mxu0 0
    %2076 = vmatmul.mubr.bf16.gmra.mxu0 %v1862
    %v2077 = vpop.f32.mrf.mxu0
    %v2078 = vadd.f32 0.0, %v2077
    %v2079 = vpop.f32.mrf.mxu0
    %v2080 = vpop.f32.mrf.mxu0
    %v2081 = vadd.f32 0.0, %v2080
    %v2082 = vpop.f32.mrf.mxu0
    %2083 = vmatprep.mubr.bf16.mxu0 0
    %2084 = vmatmul.mubr.bf16.gmra.mxu0 %v1865
    %v2085 = vpop.f32.mrf.mxu0
    %v2086 = vadd.f32 0.0, %v2085
    %v2087 = vpop.f32.mrf.mxu0
    %v2088 = vpop.f32.mrf.mxu0
    %v2089 = vpop.f32.mrf.mxu0
    %2090 = vdwg.mxu0
    %2091 = vmatprep.subr.bf16.mxu0 0
    %2092 = vmatpush1.bf16.msra.mxu0 0
    %2093 = vmatprep.subr.bf16.mxu0 0
    %2094 = vmatpush1.bf16.msra.mxu0 0
    %2095 = vmatprep.subr.bf16.mxu0 0
    %2096 = vmatpush1.bf16.msra.mxu0 0
    %2097 = vmatprep.subr.bf16.mxu0 0
    %2098 = vmatpush1.bf16.msra.mxu0 0
    %2099 = vmatprep.subr.bf16.mxu0 0
    %2100 = vmatpush1.bf16.msra.mxu0 0
    %2101 = vmatprep.subr.bf16.mxu0 0
    %2102 = vmatpush1.bf16.msra.mxu0 %v1834
    %2103 = vmatprep.subr.bf16.mxu0 0
    %2104 = vmatpush1.bf16.msra.mxu0 %v1833
    %2105 = vmatprep.subr.bf16.mxu0 0
    %2106 = vmatpush1.bf16.msra.mxu0 %v1832
    %2107 = vmatprep.subr.bf16.mxu0 0
    %2108 = vmatpush2.bf16.msra.mxu0 0
    %2109 = vmatprep.subr.bf16.mxu0 0
    %2110 = vmatpush2.bf16.msra.mxu0 0
    %2111 = vmatprep.subr.bf16.mxu0 0
    %2112 = vmatpush2.bf16.msra.mxu0 0
    %2113 = vmatprep.subr.bf16.mxu0 0
    %2114 = vmatpush2.bf16.msra.mxu0 0
    %2115 = vmatprep.subr.bf16.mxu0 0
    %2116 = vmatpush2.bf16.msra.mxu0 0
    %2117 = vmatprep.subr.bf16.mxu0 0
    %2118 = vmatpush2.bf16.msra.mxu0 0
    %2119 = vmatprep.subr.bf16.mxu0 0
    %2120 = vmatpush2.bf16.msra.mxu0 0
    %2121 = vmatprep.subr.bf16.mxu0 0
    %2122 = vmatpush2.bf16.msra.mxu0 0
    %2123 = vmatprep.mubr.bf16.mxu0 0
    %2124 = vmatmul.mubr.bf16.gmra.mxu0 %v1859
    %v2125 = vpop.f32.mrf.mxu0
    %v2126 = vadd.f32 0.0, %v2125
    %v2127 = vpop.f32.mrf.mxu0
    %v2128 = vpop.f32.mrf.mxu0
    %v2129 = vadd.f32 0.0, %v2128
    %v2130 = vpop.f32.mrf.mxu0
    %2131 = vmatprep.mubr.bf16.mxu0 0
    %2132 = vmatmul.mubr.bf16.gmra.mxu0 %v1862
    %v2133 = vpop.f32.mrf.mxu0
    %v2134 = vadd.f32 0.0, %v2133
    %v2135 = vpop.f32.mrf.mxu0
    %v2136 = vpop.f32.mrf.mxu0
    %v2137 = vadd.f32 0.0, %v2136
    %v2138 = vpop.f32.mrf.mxu0
    %2139 = vmatprep.mubr.bf16.mxu0 0
    %2140 = vmatmul.mubr.bf16.gmra.mxu0 %v1865
    %v2141 = vpop.f32.mrf.mxu0
    %v2142 = vadd.f32 0.0, %v2141
    %v2143 = vpop.f32.mrf.mxu0
    %v2144 = vpop.f32.mrf.mxu0
    %v2145 = vpop.f32.mrf.mxu0
    %2146 = vdwg.mxu0
    %2147 = vmatprep.subr.bf16.mxu0 0
    %2148 = vmatpush1.bf16.msra.mxu0 0
    %2149 = vmatprep.subr.bf16.mxu0 0
    %2150 = vmatpush1.bf16.msra.mxu0 0
    %2151 = vmatprep.subr.bf16.mxu0 0
    %2152 = vmatpush1.bf16.msra.mxu0 0
    %2153 = vmatprep.subr.bf16.mxu0 0
    %2154 = vmatpush1.bf16.msra.mxu0 0
    %2155 = vmatprep.subr.bf16.mxu0 0
    %2156 = vmatpush1.bf16.msra.mxu0 0
    %2157 = vmatprep.subr.bf16.mxu0 0
    %2158 = vmatpush1.bf16.msra.mxu0 %v1837
    %2159 = vmatprep.subr.bf16.mxu0 0
    %2160 = vmatpush1.bf16.msra.mxu0 %v1836
    %2161 = vmatprep.subr.bf16.mxu0 0
    %2162 = vmatpush1.bf16.msra.mxu0 %v1835
    %2163 = vmatprep.subr.bf16.mxu0 0
    %2164 = vmatpush2.bf16.msra.mxu0 0
    %2165 = vmatprep.subr.bf16.mxu0 0
    %2166 = vmatpush2.bf16.msra.mxu0 0
    %2167 = vmatprep.subr.bf16.mxu0 0
    %2168 = vmatpush2.bf16.msra.mxu0 0
    %2169 = vmatprep.subr.bf16.mxu0 0
    %2170 = vmatpush2.bf16.msra.mxu0 0
    %2171 = vmatprep.subr.bf16.mxu0 0
    %2172 = vmatpush2.bf16.msra.mxu0 0
    %2173 = vmatprep.subr.bf16.mxu0 0
    %2174 = vmatpush2.bf16.msra.mxu0 0
    %2175 = vmatprep.subr.bf16.mxu0 0
    %2176 = vmatpush2.bf16.msra.mxu0 0
    %2177 = vmatprep.subr.bf16.mxu0 0
    %2178 = vmatpush2.bf16.msra.mxu0 0
    %2179 = vmatprep.mubr.bf16.mxu0 0
    %2180 = vmatmul.mubr.bf16.gmra.mxu0 %v1859
    %v2181 = vpop.f32.mrf.mxu0
    %v2182 = vadd.f32 0.0, %v2181
    %v2183 = vpop.f32.mrf.mxu0
    %v2184 = vpop.f32.mrf.mxu0
    %v2185 = vadd.f32 0.0, %v2184
    %v2186 = vpop.f32.mrf.mxu0
    %2187 = vmatprep.mubr.bf16.mxu0 0
    %2188 = vmatmul.mubr.bf16.gmra.mxu0 %v1862
    %v2189 = vpop.f32.mrf.mxu0
    %v2190 = vadd.f32 0.0, %v2189
    %v2191 = vpop.f32.mrf.mxu0
    %v2192 = vpop.f32.mrf.mxu0
    %v2193 = vadd.f32 0.0, %v2192
    %v2194 = vpop.f32.mrf.mxu0
    %2195 = vmatprep.mubr.bf16.mxu0 0
    %2196 = vmatmul.mubr.bf16.gmra.mxu0 %v1865
    %v2197 = vpop.f32.mrf.mxu0
    %v2198 = vadd.f32 0.0, %v2197
    %v2199 = vpop.f32.mrf.mxu0
    %v2200 = vpop.f32.mrf.mxu0
    %v2201 = vpop.f32.mrf.mxu0
    %2202 = vdwg.mxu0
    %2203 = vmatprep.subr.bf16.mxu0 0
    %2204 = vmatpush1.bf16.msra.mxu0 0
    %2205 = vmatprep.subr.bf16.mxu0 0
    %2206 = vmatpush1.bf16.msra.mxu0 0
    %2207 = vmatprep.subr.bf16.mxu0 0
    %2208 = vmatpush1.bf16.msra.mxu0 0
    %2209 = vmatprep.subr.bf16.mxu0 0
    %2210 = vmatpush1.bf16.msra.mxu0 0
    %2211 = vmatprep.subr.bf16.mxu0 0
    %2212 = vmatpush1.bf16.msra.mxu0 0
    %2213 = vmatprep.subr.bf16.mxu0 0
    %2214 = vmatpush1.bf16.msra.mxu0 %v1840
    %2215 = vmatprep.subr.bf16.mxu0 0
    %2216 = vmatpush1.bf16.msra.mxu0 %v1839
    %2217 = vmatprep.subr.bf16.mxu0 0
    %2218 = vmatpush1.bf16.msra.mxu0 %v1838
    %2219 = vmatprep.subr.bf16.mxu0 0
    %2220 = vmatpush2.bf16.msra.mxu0 0
    %2221 = vmatprep.subr.bf16.mxu0 0
    %2222 = vmatpush2.bf16.msra.mxu0 0
    %2223 = vmatprep.subr.bf16.mxu0 0
    %2224 = vmatpush2.bf16.msra.mxu0 0
    %2225 = vmatprep.subr.bf16.mxu0 0
    %2226 = vmatpush2.bf16.msra.mxu0 0
    %2227 = vmatprep.subr.bf16.mxu0 0
    %2228 = vmatpush2.bf16.msra.mxu0 0
    %2229 = vmatprep.subr.bf16.mxu0 0
    %2230 = vmatpush2.bf16.msra.mxu0 0
    %2231 = vmatprep.subr.bf16.mxu0 0
    %2232 = vmatpush2.bf16.msra.mxu0 0
    %2233 = vmatprep.subr.bf16.mxu0 0
    %2234 = vmatpush2.bf16.msra.mxu0 0
    %2235 = vmatprep.mubr.bf16.mxu0 0
    %2236 = vmatmul.mubr.bf16.gmra.mxu0 %v1859
    %v2237 = vpop.f32.mrf.mxu0
    %v2238 = vadd.f32 0.0, %v2237
    %v2239 = vpop.f32.mrf.mxu0
    %v2240 = vpop.f32.mrf.mxu0
    %v2241 = vadd.f32 0.0, %v2240
    %v2242 = vpop.f32.mrf.mxu0
    %2243 = vmatprep.mubr.bf16.mxu0 0
    %2244 = vmatmul.mubr.bf16.gmra.mxu0 %v1862
    %v2245 = vpop.f32.mrf.mxu0
    %v2246 = vadd.f32 0.0, %v2245
    %v2247 = vpop.f32.mrf.mxu0
    %v2248 = vpop.f32.mrf.mxu0
    %v2249 = vadd.f32 0.0, %v2248
    %v2250 = vpop.f32.mrf.mxu0
    %2251 = vmatprep.mubr.bf16.mxu0 0
    %2252 = vmatmul.mubr.bf16.gmra.mxu0 %v1865
    %v2253 = vpop.f32.mrf.mxu0
    %v2254 = vadd.f32 0.0, %v2253
    %v2255 = vpop.f32.mrf.mxu0
    %v2256 = vpop.f32.mrf.mxu0
    %v2257 = vpop.f32.mrf.mxu0
    %2258 = vdwg.mxu0
    %2259 = vmatprep.subr.bf16.mxu0 0
    %2260 = vmatpush1.bf16.msra.mxu0 0
    %2261 = vmatprep.subr.bf16.mxu0 0
    %2262 = vmatpush1.bf16.msra.mxu0 0
    %2263 = vmatprep.subr.bf16.mxu0 0
    %2264 = vmatpush1.bf16.msra.mxu0 0
    %2265 = vmatprep.subr.bf16.mxu0 0
    %2266 = vmatpush1.bf16.msra.mxu0 0
    %2267 = vmatprep.subr.bf16.mxu0 0
    %2268 = vmatpush1.bf16.msra.mxu0 0
    %2269 = vmatprep.subr.bf16.mxu0 0
    %2270 = vmatpush1.bf16.msra.mxu0 %v1843
    %2271 = vmatprep.subr.bf16.mxu0 0
    %2272 = vmatpush1.bf16.msra.mxu0 %v1842
    %2273 = vmatprep.subr.bf16.mxu0 0
    %2274 = vmatpush1.bf16.msra.mxu0 %v1841
    %2275 = vmatprep.subr.bf16.mxu0 0
    %2276 = vmatpush2.bf16.msra.mxu0 0
    %2277 = vmatprep.subr.bf16.mxu0 0
    %2278 = vmatpush2.bf16.msra.mxu0 0
    %2279 = vmatprep.subr.bf16.mxu0 0
    %2280 = vmatpush2.bf16.msra.mxu0 0
    %2281 = vmatprep.subr.bf16.mxu0 0
    %2282 = vmatpush2.bf16.msra.mxu0 0
    %2283 = vmatprep.subr.bf16.mxu0 0
    %2284 = vmatpush2.bf16.msra.mxu0 0
    %2285 = vmatprep.subr.bf16.mxu0 0
    %2286 = vmatpush2.bf16.msra.mxu0 0
    %2287 = vmatprep.subr.bf16.mxu0 0
    %2288 = vmatpush2.bf16.msra.mxu0 0
    %2289 = vmatprep.subr.bf16.mxu0 0
    %2290 = vmatpush2.bf16.msra.mxu0 0
    %2291 = vmatprep.mubr.bf16.mxu0 0
    %2292 = vmatmul.mubr.bf16.gmra.mxu0 %v1859
    %v2293 = vpop.f32.mrf.mxu0
    %v2294 = vadd.f32 0.0, %v2293
    %v2295 = vpop.f32.mrf.mxu0
    %v2296 = vpop.f32.mrf.mxu0
    %v2297 = vadd.f32 0.0, %v2296
    %v2298 = vpop.f32.mrf.mxu0
    %2299 = vmatprep.mubr.bf16.mxu0 0
    %2300 = vmatmul.mubr.bf16.gmra.mxu0 %v1862
    %v2301 = vpop.f32.mrf.mxu0
    %v2302 = vadd.f32 0.0, %v2301
    %v2303 = vpop.f32.mrf.mxu0
    %v2304 = vpop.f32.mrf.mxu0
    %v2305 = vadd.f32 0.0, %v2304
    %v2306 = vpop.f32.mrf.mxu0
    %2307 = vmatprep.mubr.bf16.mxu0 0
    %2308 = vmatmul.mubr.bf16.gmra.mxu0 %v1865
    %v2309 = vpop.f32.mrf.mxu0
    %v2310 = vadd.f32 0.0, %v2309
    %v2311 = vpop.f32.mrf.mxu0
    %v2312 = vpop.f32.mrf.mxu0
    %v2313 = vpop.f32.mrf.mxu0
    %2314 = vdwg.mxu0
    %v2320 = vunpack.c.l.b16 %v1022
    %v2321 = vunpack.c.l.b16 %v1023
    %v2322 = vunpack.c.l.b16 %v1024
    %v2323 = vunpack.c.l.b16 %v1025
    %v2324 = vunpack.c.l.b16 %v1026
    %v2325 = vpack.c.b16 %v2321, %v2320
    %v2326 = vpack.c.b16 %v2323, %v2322
    %v2327 = vpack.c.b16 %v2324, %v2324
    %v2329 = vsel %vm1857, %v2325, 0
    %v2332 = vsel %vm1857, %v2326, 0
    %v2335 = vsel %vm1857, %v2327, 0
    %2337 = vmatprep.subr.bf16.mxu0 0
    %2338 = vmatpush1.bf16.msra.mxu0 0
    %2339 = vmatprep.subr.bf16.mxu0 0
    %2340 = vmatpush1.bf16.msra.mxu0 0
    %2341 = vmatprep.subr.bf16.mxu0 0
    %2342 = vmatpush1.bf16.msra.mxu0 0
    %2343 = vmatprep.subr.bf16.mxu0 0
    %2344 = vmatpush1.bf16.msra.mxu0 0
    %2345 = vmatprep.subr.bf16.mxu0 0
    %2346 = vmatpush1.bf16.msra.mxu0 0
    %2347 = vmatprep.subr.bf16.mxu0 0
    %2348 = vmatpush1.bf16.msra.mxu0 %v1029
    %2349 = vmatprep.subr.bf16.mxu0 0
    %2350 = vmatpush1.bf16.msra.mxu0 %v1028
    %2351 = vmatprep.subr.bf16.mxu0 0
    %2352 = vmatpush1.bf16.msra.mxu0 %v1027
    %2353 = vmatprep.subr.bf16.mxu0 0
    %2354 = vmatpush2.bf16.msra.mxu0 0
    %2355 = vmatprep.subr.bf16.mxu0 0
    %2356 = vmatpush2.bf16.msra.mxu0 0
    %2357 = vmatprep.subr.bf16.mxu0 0
    %2358 = vmatpush2.bf16.msra.mxu0 0
    %2359 = vmatprep.subr.bf16.mxu0 0
    %2360 = vmatpush2.bf16.msra.mxu0 0
    %2361 = vmatprep.subr.bf16.mxu0 0
    %2362 = vmatpush2.bf16.msra.mxu0 0
    %2363 = vmatprep.subr.bf16.mxu0 0
    %2364 = vmatpush2.bf16.msra.mxu0 0
    %2365 = vmatprep.subr.bf16.mxu0 0
    %2366 = vmatpush2.bf16.msra.mxu0 0
    %2367 = vmatprep.subr.bf16.mxu0 0
    %2368 = vmatpush2.bf16.msra.mxu0 0
    %2369 = vmatprep.mubr.bf16.mxu0 0
    %2370 = vmatmul.mubr.bf16.gmra.mxu0 %v2329
    %v2371 = vpop.f32.mrf.mxu0
    %v2372 = vadd.f32 %v1902, %v2371
    %v2373 = vpop.f32.mrf.mxu0
    %v2374 = vpop.f32.mrf.mxu0
    %v2375 = vadd.f32 %v1905, %v2374
    %v2376 = vpop.f32.mrf.mxu0
    %2377 = vmatprep.mubr.bf16.mxu0 0
    %2378 = vmatmul.mubr.bf16.gmra.mxu0 %v2332
    %v2379 = vpop.f32.mrf.mxu0
    %v2380 = vadd.f32 %v1910, %v2379
    %v2381 = vpop.f32.mrf.mxu0
    %v2382 = vpop.f32.mrf.mxu0
    %v2383 = vadd.f32 %v1913, %v2382
    %v2384 = vpop.f32.mrf.mxu0
    %2385 = vmatprep.mubr.bf16.mxu0 0
    %2386 = vmatmul.mubr.bf16.gmra.mxu0 %v2335
    %v2387 = vpop.f32.mrf.mxu0
    %v2388 = vadd.f32 %v1918, %v2387
    %v2389 = vpop.f32.mrf.mxu0
    %v2390 = vpop.f32.mrf.mxu0
    %v2391 = vpop.f32.mrf.mxu0
    %2392 = vdwg.mxu0
    %2393 = vmatprep.subr.bf16.mxu0 0
    %2394 = vmatpush1.bf16.msra.mxu0 0
    %2395 = vmatprep.subr.bf16.mxu0 0
    %2396 = vmatpush1.bf16.msra.mxu0 0
    %2397 = vmatprep.subr.bf16.mxu0 0
    %2398 = vmatpush1.bf16.msra.mxu0 0
    %2399 = vmatprep.subr.bf16.mxu0 0
    %2400 = vmatpush1.bf16.msra.mxu0 0
    %2401 = vmatprep.subr.bf16.mxu0 0
    %2402 = vmatpush1.bf16.msra.mxu0 0
    %2403 = vmatprep.subr.bf16.mxu0 0
    %2404 = vmatpush1.bf16.msra.mxu0 %v1032
    %2405 = vmatprep.subr.bf16.mxu0 0
    %2406 = vmatpush1.bf16.msra.mxu0 %v1031
    %2407 = vmatprep.subr.bf16.mxu0 0
    %2408 = vmatpush1.bf16.msra.mxu0 %v1030
    %2409 = vmatprep.subr.bf16.mxu0 0
    %2410 = vmatpush2.bf16.msra.mxu0 0
    %2411 = vmatprep.subr.bf16.mxu0 0
    %2412 = vmatpush2.bf16.msra.mxu0 0
    %2413 = vmatprep.subr.bf16.mxu0 0
    %2414 = vmatpush2.bf16.msra.mxu0 0
    %2415 = vmatprep.subr.bf16.mxu0 0
    %2416 = vmatpush2.bf16.msra.mxu0 0
    %2417 = vmatprep.subr.bf16.mxu0 0
    %2418 = vmatpush2.bf16.msra.mxu0 0
    %2419 = vmatprep.subr.bf16.mxu0 0
    %2420 = vmatpush2.bf16.msra.mxu0 0
    %2421 = vmatprep.subr.bf16.mxu0 0
    %2422 = vmatpush2.bf16.msra.mxu0 0
    %2423 = vmatprep.subr.bf16.mxu0 0
    %2424 = vmatpush2.bf16.msra.mxu0 0
    %2425 = vmatprep.mubr.bf16.mxu0 0
    %2426 = vmatmul.mubr.bf16.gmra.mxu0 %v2329
    %v2427 = vpop.f32.mrf.mxu0
    %v2428 = vadd.f32 %v1958, %v2427
    %v2429 = vpop.f32.mrf.mxu0
    %v2430 = vpop.f32.mrf.mxu0
    %v2431 = vadd.f32 %v1961, %v2430
    %v2432 = vpop.f32.mrf.mxu0
    %2433 = vmatprep.mubr.bf16.mxu0 0
    %2434 = vmatmul.mubr.bf16.gmra.mxu0 %v2332
    %v2435 = vpop.f32.mrf.mxu0
    %v2436 = vadd.f32 %v1966, %v2435
    %v2437 = vpop.f32.mrf.mxu0
    %v2438 = vpop.f32.mrf.mxu0
    %v2439 = vadd.f32 %v1969, %v2438
    %v2440 = vpop.f32.mrf.mxu0
    %2441 = vmatprep.mubr.bf16.mxu0 0
    %2442 = vmatmul.mubr.bf16.gmra.mxu0 %v2335
    %v2443 = vpop.f32.mrf.mxu0
    %v2444 = vadd.f32 %v1974, %v2443
    %v2445 = vpop.f32.mrf.mxu0
    %v2446 = vpop.f32.mrf.mxu0
    %v2447 = vpop.f32.mrf.mxu0
    %2448 = vdwg.mxu0
    %2449 = vmatprep.subr.bf16.mxu0 0
    %2450 = vmatpush1.bf16.msra.mxu0 0
    %2451 = vmatprep.subr.bf16.mxu0 0
    %2452 = vmatpush1.bf16.msra.mxu0 0
    %2453 = vmatprep.subr.bf16.mxu0 0
    %2454 = vmatpush1.bf16.msra.mxu0 0
    %2455 = vmatprep.subr.bf16.mxu0 0
    %2456 = vmatpush1.bf16.msra.mxu0 0
    %2457 = vmatprep.subr.bf16.mxu0 0
    %2458 = vmatpush1.bf16.msra.mxu0 0
    %2459 = vmatprep.subr.bf16.mxu0 0
    %2460 = vmatpush1.bf16.msra.mxu0 %v1035
    %2461 = vmatprep.subr.bf16.mxu0 0
    %2462 = vmatpush1.bf16.msra.mxu0 %v1034
    %2463 = vmatprep.subr.bf16.mxu0 0
    %2464 = vmatpush1.bf16.msra.mxu0 %v1033
    %2465 = vmatprep.subr.bf16.mxu0 0
    %2466 = vmatpush2.bf16.msra.mxu0 0
    %2467 = vmatprep.subr.bf16.mxu0 0
    %2468 = vmatpush2.bf16.msra.mxu0 0
    %2469 = vmatprep.subr.bf16.mxu0 0
    %2470 = vmatpush2.bf16.msra.mxu0 0
    %2471 = vmatprep.subr.bf16.mxu0 0
    %2472 = vmatpush2.bf16.msra.mxu0 0
    %2473 = vmatprep.subr.bf16.mxu0 0
    %2474 = vmatpush2.bf16.msra.mxu0 0
    %2475 = vmatprep.subr.bf16.mxu0 0
    %2476 = vmatpush2.bf16.msra.mxu0 0
    %2477 = vmatprep.subr.bf16.mxu0 0
    %2478 = vmatpush2.bf16.msra.mxu0 0
    %2479 = vmatprep.subr.bf16.mxu0 0
    %2480 = vmatpush2.bf16.msra.mxu0 0
    %2481 = vmatprep.mubr.bf16.mxu0 0
    %2482 = vmatmul.mubr.bf16.gmra.mxu0 %v2329
    %v2483 = vpop.f32.mrf.mxu0
    %v2484 = vadd.f32 %v2014, %v2483
    %v2485 = vpop.f32.mrf.mxu0
    %v2486 = vpop.f32.mrf.mxu0
    %v2487 = vadd.f32 %v2017, %v2486
    %v2488 = vpop.f32.mrf.mxu0
    %2489 = vmatprep.mubr.bf16.mxu0 0
    %2490 = vmatmul.mubr.bf16.gmra.mxu0 %v2332
    %v2491 = vpop.f32.mrf.mxu0
    %v2492 = vadd.f32 %v2022, %v2491
    %v2493 = vpop.f32.mrf.mxu0
    %v2494 = vpop.f32.mrf.mxu0
    %v2495 = vadd.f32 %v2025, %v2494
    %v2496 = vpop.f32.mrf.mxu0
    %2497 = vmatprep.mubr.bf16.mxu0 0
    %2498 = vmatmul.mubr.bf16.gmra.mxu0 %v2335
    %v2499 = vpop.f32.mrf.mxu0
    %v2500 = vadd.f32 %v2030, %v2499
    %v2501 = vpop.f32.mrf.mxu0
    %v2502 = vpop.f32.mrf.mxu0
    %v2503 = vpop.f32.mrf.mxu0
    %2504 = vdwg.mxu0
    %2505 = vmatprep.subr.bf16.mxu0 0
    %2506 = vmatpush1.bf16.msra.mxu0 0
    %2507 = vmatprep.subr.bf16.mxu0 0
    %2508 = vmatpush1.bf16.msra.mxu0 0
    %2509 = vmatprep.subr.bf16.mxu0 0
    %2510 = vmatpush1.bf16.msra.mxu0 0
    %2511 = vmatprep.subr.bf16.mxu0 0
    %2512 = vmatpush1.bf16.msra.mxu0 0
    %2513 = vmatprep.subr.bf16.mxu0 0
    %2514 = vmatpush1.bf16.msra.mxu0 0
    %2515 = vmatprep.subr.bf16.mxu0 0
    %2516 = vmatpush1.bf16.msra.mxu0 %v1038
    %2517 = vmatprep.subr.bf16.mxu0 0
    %2518 = vmatpush1.bf16.msra.mxu0 %v1037
    %2519 = vmatprep.subr.bf16.mxu0 0
    %2520 = vmatpush1.bf16.msra.mxu0 %v1036
    %2521 = vmatprep.subr.bf16.mxu0 0
    %2522 = vmatpush2.bf16.msra.mxu0 0
    %2523 = vmatprep.subr.bf16.mxu0 0
    %2524 = vmatpush2.bf16.msra.mxu0 0
    %2525 = vmatprep.subr.bf16.mxu0 0
    %2526 = vmatpush2.bf16.msra.mxu0 0
    %2527 = vmatprep.subr.bf16.mxu0 0
    %2528 = vmatpush2.bf16.msra.mxu0 0
    %2529 = vmatprep.subr.bf16.mxu0 0
    %2530 = vmatpush2.bf16.msra.mxu0 0
    %2531 = vmatprep.subr.bf16.mxu0 0
    %2532 = vmatpush2.bf16.msra.mxu0 0
    %2533 = vmatprep.subr.bf16.mxu0 0
    %2534 = vmatpush2.bf16.msra.mxu0 0
    %2535 = vmatprep.subr.bf16.mxu0 0
    %2536 = vmatpush2.bf16.msra.mxu0 0
    %2537 = vmatprep.mubr.bf16.mxu0 0
    %2538 = vmatmul.mubr.bf16.gmra.mxu0 %v2329
    %v2539 = vpop.f32.mrf.mxu0
    %v2540 = vadd.f32 %v2070, %v2539
    %v2541 = vpop.f32.mrf.mxu0
    %v2542 = vpop.f32.mrf.mxu0
    %v2543 = vadd.f32 %v2073, %v2542
    %v2544 = vpop.f32.mrf.mxu0
    %2545 = vmatprep.mubr.bf16.mxu0 0
    %2546 = vmatmul.mubr.bf16.gmra.mxu0 %v2332
    %v2547 = vpop.f32.mrf.mxu0
    %v2548 = vadd.f32 %v2078, %v2547
    %v2549 = vpop.f32.mrf.mxu0
    %v2550 = vpop.f32.mrf.mxu0
    %v2551 = vadd.f32 %v2081, %v2550
    %v2552 = vpop.f32.mrf.mxu0
    %2553 = vmatprep.mubr.bf16.mxu0 0
    %2554 = vmatmul.mubr.bf16.gmra.mxu0 %v2335
    %v2555 = vpop.f32.mrf.mxu0
    %v2556 = vadd.f32 %v2086, %v2555
    %v2557 = vpop.f32.mrf.mxu0
    %v2558 = vpop.f32.mrf.mxu0
    %v2559 = vpop.f32.mrf.mxu0
    %2560 = vdwg.mxu0
    %2561 = vmatprep.subr.bf16.mxu0 0
    %2562 = vmatpush1.bf16.msra.mxu0 0
    %2563 = vmatprep.subr.bf16.mxu0 0
    %2564 = vmatpush1.bf16.msra.mxu0 0
    %2565 = vmatprep.subr.bf16.mxu0 0
    %2566 = vmatpush1.bf16.msra.mxu0 0
    %2567 = vmatprep.subr.bf16.mxu0 0
    %2568 = vmatpush1.bf16.msra.mxu0 0
    %2569 = vmatprep.subr.bf16.mxu0 0
    %2570 = vmatpush1.bf16.msra.mxu0 0
    %2571 = vmatprep.subr.bf16.mxu0 0
    %2572 = vmatpush1.bf16.msra.mxu0 %v1041
    %2573 = vmatprep.subr.bf16.mxu0 0
    %2574 = vmatpush1.bf16.msra.mxu0 %v1040
    %2575 = vmatprep.subr.bf16.mxu0 0
    %2576 = vmatpush1.bf16.msra.mxu0 %v1039
    %2577 = vmatprep.subr.bf16.mxu0 0
    %2578 = vmatpush2.bf16.msra.mxu0 0
    %2579 = vmatprep.subr.bf16.mxu0 0
    %2580 = vmatpush2.bf16.msra.mxu0 0
    %2581 = vmatprep.subr.bf16.mxu0 0
    %2582 = vmatpush2.bf16.msra.mxu0 0
    %2583 = vmatprep.subr.bf16.mxu0 0
    %2584 = vmatpush2.bf16.msra.mxu0 0
    %2585 = vmatprep.subr.bf16.mxu0 0
    %2586 = vmatpush2.bf16.msra.mxu0 0
    %2587 = vmatprep.subr.bf16.mxu0 0
    %2588 = vmatpush2.bf16.msra.mxu0 0
    %2589 = vmatprep.subr.bf16.mxu0 0
    %2590 = vmatpush2.bf16.msra.mxu0 0
    %2591 = vmatprep.subr.bf16.mxu0 0
    %2592 = vmatpush2.bf16.msra.mxu0 0
    %2593 = vmatprep.mubr.bf16.mxu0 0
    %2594 = vmatmul.mubr.bf16.gmra.mxu0 %v2329
    %v2595 = vpop.f32.mrf.mxu0
    %v2596 = vadd.f32 %v2126, %v2595
    %v2597 = vpop.f32.mrf.mxu0
    %v2598 = vpop.f32.mrf.mxu0
    %v2599 = vadd.f32 %v2129, %v2598
    %v2600 = vpop.f32.mrf.mxu0
    %2601 = vmatprep.mubr.bf16.mxu0 0
    %2602 = vmatmul.mubr.bf16.gmra.mxu0 %v2332
    %v2603 = vpop.f32.mrf.mxu0
    %v2604 = vadd.f32 %v2134, %v2603
    %v2605 = vpop.f32.mrf.mxu0
    %v2606 = vpop.f32.mrf.mxu0
    %v2607 = vadd.f32 %v2137, %v2606
    %v2608 = vpop.f32.mrf.mxu0
    %2609 = vmatprep.mubr.bf16.mxu0 0
    %2610 = vmatmul.mubr.bf16.gmra.mxu0 %v2335
    %v2611 = vpop.f32.mrf.mxu0
    %v2612 = vadd.f32 %v2142, %v2611
    %v2613 = vpop.f32.mrf.mxu0
    %v2614 = vpop.f32.mrf.mxu0
    %v2615 = vpop.f32.mrf.mxu0
    %2616 = vdwg.mxu0
    %2617 = vmatprep.subr.bf16.mxu0 0
    %2618 = vmatpush1.bf16.msra.mxu0 0
    %2619 = vmatprep.subr.bf16.mxu0 0
    %2620 = vmatpush1.bf16.msra.mxu0 0
    %2621 = vmatprep.subr.bf16.mxu0 0
    %2622 = vmatpush1.bf16.msra.mxu0 0
    %2623 = vmatprep.subr.bf16.mxu0 0
    %2624 = vmatpush1.bf16.msra.mxu0 0
    %2625 = vmatprep.subr.bf16.mxu0 0
    %2626 = vmatpush1.bf16.msra.mxu0 0
    %2627 = vmatprep.subr.bf16.mxu0 0
    %2628 = vmatpush1.bf16.msra.mxu0 %v1044
    %2629 = vmatprep.subr.bf16.mxu0 0
    %2630 = vmatpush1.bf16.msra.mxu0 %v1043
    %2631 = vmatprep.subr.bf16.mxu0 0
    %2632 = vmatpush1.bf16.msra.mxu0 %v1042
    %2633 = vmatprep.subr.bf16.mxu0 0
    %2634 = vmatpush2.bf16.msra.mxu0 0
    %2635 = vmatprep.subr.bf16.mxu0 0
    %2636 = vmatpush2.bf16.msra.mxu0 0
    %2637 = vmatprep.subr.bf16.mxu0 0
    %2638 = vmatpush2.bf16.msra.mxu0 0
    %2639 = vmatprep.subr.bf16.mxu0 0
    %2640 = vmatpush2.bf16.msra.mxu0 0
    %2641 = vmatprep.subr.bf16.mxu0 0
    %2642 = vmatpush2.bf16.msra.mxu0 0
    %2643 = vmatprep.subr.bf16.mxu0 0
    %2644 = vmatpush2.bf16.msra.mxu0 0
    %2645 = vmatprep.subr.bf16.mxu0 0
    %2646 = vmatpush2.bf16.msra.mxu0 0
    %2647 = vmatprep.subr.bf16.mxu0 0
    %2648 = vmatpush2.bf16.msra.mxu0 0
    %2649 = vmatprep.mubr.bf16.mxu0 0
    %2650 = vmatmul.mubr.bf16.gmra.mxu0 %v2329
    %v2651 = vpop.f32.mrf.mxu0
    %v2652 = vadd.f32 %v2182, %v2651
    %v2653 = vpop.f32.mrf.mxu0
    %v2654 = vpop.f32.mrf.mxu0
    %v2655 = vadd.f32 %v2185, %v2654
    %v2656 = vpop.f32.mrf.mxu0
    %2657 = vmatprep.mubr.bf16.mxu0 0
    %2658 = vmatmul.mubr.bf16.gmra.mxu0 %v2332
    %v2659 = vpop.f32.mrf.mxu0
    %v2660 = vadd.f32 %v2190, %v2659
    %v2661 = vpop.f32.mrf.mxu0
    %v2662 = vpop.f32.mrf.mxu0
    %v2663 = vadd.f32 %v2193, %v2662
    %v2664 = vpop.f32.mrf.mxu0
    %2665 = vmatprep.mubr.bf16.mxu0 0
    %2666 = vmatmul.mubr.bf16.gmra.mxu0 %v2335
    %v2667 = vpop.f32.mrf.mxu0
    %v2668 = vadd.f32 %v2198, %v2667
    %v2669 = vpop.f32.mrf.mxu0
    %v2670 = vpop.f32.mrf.mxu0
    %v2671 = vpop.f32.mrf.mxu0
    %2672 = vdwg.mxu0
    %2673 = vmatprep.subr.bf16.mxu0 0
    %2674 = vmatpush1.bf16.msra.mxu0 0
    %2675 = vmatprep.subr.bf16.mxu0 0
    %2676 = vmatpush1.bf16.msra.mxu0 0
    %2677 = vmatprep.subr.bf16.mxu0 0
    %2678 = vmatpush1.bf16.msra.mxu0 0
    %2679 = vmatprep.subr.bf16.mxu0 0
    %2680 = vmatpush1.bf16.msra.mxu0 0
    %2681 = vmatprep.subr.bf16.mxu0 0
    %2682 = vmatpush1.bf16.msra.mxu0 0
    %2683 = vmatprep.subr.bf16.mxu0 0
    %2684 = vmatpush1.bf16.msra.mxu0 %v1047
    %2685 = vmatprep.subr.bf16.mxu0 0
    %2686 = vmatpush1.bf16.msra.mxu0 %v1046
    %2687 = vmatprep.subr.bf16.mxu0 0
    %2688 = vmatpush1.bf16.msra.mxu0 %v1045
    %2689 = vmatprep.subr.bf16.mxu0 0
    %2690 = vmatpush2.bf16.msra.mxu0 0
    %2691 = vmatprep.subr.bf16.mxu0 0
    %2692 = vmatpush2.bf16.msra.mxu0 0
    %2693 = vmatprep.subr.bf16.mxu0 0
    %2694 = vmatpush2.bf16.msra.mxu0 0
    %2695 = vmatprep.subr.bf16.mxu0 0
    %2696 = vmatpush2.bf16.msra.mxu0 0
    %2697 = vmatprep.subr.bf16.mxu0 0
    %2698 = vmatpush2.bf16.msra.mxu0 0
    %2699 = vmatprep.subr.bf16.mxu0 0
    %2700 = vmatpush2.bf16.msra.mxu0 0
    %2701 = vmatprep.subr.bf16.mxu0 0
    %2702 = vmatpush2.bf16.msra.mxu0 0
    %2703 = vmatprep.subr.bf16.mxu0 0
    %2704 = vmatpush2.bf16.msra.mxu0 0
    %2705 = vmatprep.mubr.bf16.mxu0 0
    %2706 = vmatmul.mubr.bf16.gmra.mxu0 %v2329
    %v2707 = vpop.f32.mrf.mxu0
    %v2708 = vadd.f32 %v2238, %v2707
    %v2709 = vpop.f32.mrf.mxu0
    %v2710 = vpop.f32.mrf.mxu0
    %v2711 = vadd.f32 %v2241, %v2710
    %v2712 = vpop.f32.mrf.mxu0
    %2713 = vmatprep.mubr.bf16.mxu0 0
    %2714 = vmatmul.mubr.bf16.gmra.mxu0 %v2332
    %v2715 = vpop.f32.mrf.mxu0
    %v2716 = vadd.f32 %v2246, %v2715
    %v2717 = vpop.f32.mrf.mxu0
    %v2718 = vpop.f32.mrf.mxu0
    %v2719 = vadd.f32 %v2249, %v2718
    %v2720 = vpop.f32.mrf.mxu0
    %2721 = vmatprep.mubr.bf16.mxu0 0
    %2722 = vmatmul.mubr.bf16.gmra.mxu0 %v2335
    %v2723 = vpop.f32.mrf.mxu0
    %v2724 = vadd.f32 %v2254, %v2723
    %v2725 = vpop.f32.mrf.mxu0
    %v2726 = vpop.f32.mrf.mxu0
    %v2727 = vpop.f32.mrf.mxu0
    %2728 = vdwg.mxu0
    %2729 = vmatprep.subr.bf16.mxu0 0
    %2730 = vmatpush1.bf16.msra.mxu0 0
    %2731 = vmatprep.subr.bf16.mxu0 0
    %2732 = vmatpush1.bf16.msra.mxu0 0
    %2733 = vmatprep.subr.bf16.mxu0 0
    %2734 = vmatpush1.bf16.msra.mxu0 0
    %2735 = vmatprep.subr.bf16.mxu0 0
    %2736 = vmatpush1.bf16.msra.mxu0 0
    %2737 = vmatprep.subr.bf16.mxu0 0
    %2738 = vmatpush1.bf16.msra.mxu0 0
    %2739 = vmatprep.subr.bf16.mxu0 0
    %2740 = vmatpush1.bf16.msra.mxu0 %v1050
    %2741 = vmatprep.subr.bf16.mxu0 0
    %2742 = vmatpush1.bf16.msra.mxu0 %v1049
    %2743 = vmatprep.subr.bf16.mxu0 0
    %2744 = vmatpush1.bf16.msra.mxu0 %v1048
    %2745 = vmatprep.subr.bf16.mxu0 0
    %2746 = vmatpush2.bf16.msra.mxu0 0
    %2747 = vmatprep.subr.bf16.mxu0 0
    %2748 = vmatpush2.bf16.msra.mxu0 0
    %2749 = vmatprep.subr.bf16.mxu0 0
    %2750 = vmatpush2.bf16.msra.mxu0 0
    %2751 = vmatprep.subr.bf16.mxu0 0
    %2752 = vmatpush2.bf16.msra.mxu0 0
    %2753 = vmatprep.subr.bf16.mxu0 0
    %2754 = vmatpush2.bf16.msra.mxu0 0
    %2755 = vmatprep.subr.bf16.mxu0 0
    %2756 = vmatpush2.bf16.msra.mxu0 0
    %2757 = vmatprep.subr.bf16.mxu0 0
    %2758 = vmatpush2.bf16.msra.mxu0 0
    %2759 = vmatprep.subr.bf16.mxu0 0
    %2760 = vmatpush2.bf16.msra.mxu0 0
    %2761 = vmatprep.mubr.bf16.mxu0 0
    %2762 = vmatmul.mubr.bf16.gmra.mxu0 %v2329
    %v2763 = vpop.f32.mrf.mxu0
    %v2764 = vadd.f32 %v2294, %v2763
    %v2765 = vpop.f32.mrf.mxu0
    %v2766 = vpop.f32.mrf.mxu0
    %v2767 = vadd.f32 %v2297, %v2766
    %v2768 = vpop.f32.mrf.mxu0
    %2769 = vmatprep.mubr.bf16.mxu0 0
    %2770 = vmatmul.mubr.bf16.gmra.mxu0 %v2332
    %v2771 = vpop.f32.mrf.mxu0
    %v2772 = vadd.f32 %v2302, %v2771
    %v2773 = vpop.f32.mrf.mxu0
    %v2774 = vpop.f32.mrf.mxu0
    %v2775 = vadd.f32 %v2305, %v2774
    %v2776 = vpop.f32.mrf.mxu0
    %2777 = vmatprep.mubr.bf16.mxu0 0
    %2778 = vmatmul.mubr.bf16.gmra.mxu0 %v2335
    %v2779 = vpop.f32.mrf.mxu0
    %v2780 = vadd.f32 %v2310, %v2779
    %v2781 = vpop.f32.mrf.mxu0
    %v2782 = vpop.f32.mrf.mxu0
    %v2783 = vpop.f32.mrf.mxu0
    %2784 = vdwg.mxu0
    %s2785 = scalar_lea.vmem %s2, 32
    %v2786 = vld [vmem:[%s2785] sm:$0xff]
    %v2787 = vld [vmem:[%s2785 + $0x8] sm:$0xff]
    %2788 = vmatprep.subr.mxu0 0.0
    %2789 = vmatpush1.msra.mxu0 0.0
    %2790 = vmatprep.subr.mxu0 0.0
    %2791 = vmatpush1.msra.mxu0 0.0
    %2792 = vmatprep.subr.mxu0 0.0
    %2793 = vmatpush1.msra.mxu0 0.0
    %2794 = vmatprep.subr.mxu0 0.0
    %2795 = vmatpush1.msra.mxu0 0.0
    %2796 = vmatprep.subr.mxu0 0.0
    %2797 = vmatpush1.msra.mxu0 0.0
    %2798 = vmatprep.subr.mxu0 0.0
    %2799 = vmatpush1.msra.mxu0 0.0
    %2800 = vmatprep.subr.mxu0 0.0
    %2801 = vmatpush1.msra.mxu0 0.0
    %2802 = vmatprep.subr.mxu0 0.0
    %2803 = vmatpush1.msra.mxu0 0.0
    %2804 = vmatprep.subr.mxu0 0.0
    %2805 = vmatpush1.msra.mxu0 0.0
    %2806 = vmatprep.subr.mxu0 0.0
    %2807 = vmatpush1.msra.mxu0 0.0
    %2808 = vmatprep.subr.mxu0 0.0
    %2809 = vmatpush1.msra.mxu0 0.0
    %2810 = vmatprep.subr.mxu0 0.0
    %2811 = vmatpush1.msra.mxu0 0.0
    %2812 = vmatprep.subr.mxu0 0.0
    %2813 = vmatpush1.msra.mxu0 0.0
    %2814 = vmatprep.subr.mxu0 0.0
    %2815 = vmatpush1.msra.mxu0 0.0
    %2816 = vmatprep.subr.mxu0 0.0
    %2817 = vmatpush1.msra.mxu0 %v2787
    %2818 = vmatprep.subr.mxu0 0.0
    %2819 = vmatpush1.msra.mxu0 %v2786
    %2820 = vmatprep.subr.mxu0 0.0
    %2821 = vmatpush2.msra.mxu0 0.0
    %2822 = vmatprep.subr.mxu0 0.0
    %2823 = vmatpush2.msra.mxu0 0.0
    %2824 = vmatprep.subr.mxu0 0.0
    %2825 = vmatpush2.msra.mxu0 0.0
    %2826 = vmatprep.subr.mxu0 0.0
    %2827 = vmatpush2.msra.mxu0 0.0
    %2828 = vmatprep.subr.mxu0 0.0
    %2829 = vmatpush2.msra.mxu0 0.0
    %2830 = vmatprep.subr.mxu0 0.0
    %2831 = vmatpush2.msra.mxu0 0.0
    %2832 = vmatprep.subr.mxu0 0.0
    %2833 = vmatpush2.msra.mxu0 0.0
    %2834 = vmatprep.subr.mxu0 0.0
    %2835 = vmatpush2.msra.mxu0 0.0
    %2836 = vmatprep.subr.mxu0 0.0
    %2837 = vmatpush2.msra.mxu0 0.0
    %2838 = vmatprep.subr.mxu0 0.0
    %2839 = vmatpush2.msra.mxu0 0.0
    %2840 = vmatprep.subr.mxu0 0.0
    %2841 = vmatpush2.msra.mxu0 0.0
    %2842 = vmatprep.subr.mxu0 0.0
    %2843 = vmatpush2.msra.mxu0 0.0
    %2844 = vmatprep.subr.mxu0 0.0
    %2845 = vmatpush2.msra.mxu0 0.0
    %2846 = vmatprep.subr.mxu0 0.0
    %2847 = vmatpush2.msra.mxu0 0.0
    %2848 = vmatprep.subr.mxu0 0.0
    %2849 = vmatpush2.msra.mxu0 0.0
    %2850 = vmatprep.subr.mxu0 0.0
    %2851 = vmatpush2.msra.mxu0 0.0
    %2852 = vmatprep.mubr.f32.mxu0 0.0
    %2853 = vmatmul.mubr.f32.gmra.mxu0 %v119
    %v2854 = vpop.f32.mrf.mxu0
    %v2855 = vadd.f32 0.0, %v2854
    %v2856 = vpop.f32.mrf.mxu0
    %2857 = vmatprep.mubr.f32.mxu0 0.0
    %2858 = vmatmul.mubr.f32.gmra.mxu0 %v122
    %v2859 = vpop.f32.mrf.mxu0
    %v2860 = vadd.f32 0.0, %v2859
    %v2861 = vpop.f32.mrf.mxu0
    %2862 = vmatprep.mubr.f32.mxu0 0.0
    %2863 = vmatmul.mubr.f32.gmra.mxu0 %v125
    %v2864 = vpop.f32.mrf.mxu0
    %v2865 = vadd.f32 0.0, %v2864
    %v2866 = vpop.f32.mrf.mxu0
    %2867 = vmatprep.mubr.f32.mxu0 0.0
    %2868 = vmatmul.mubr.f32.gmra.mxu0 %v128
    %v2869 = vpop.f32.mrf.mxu0
    %v2870 = vadd.f32 0.0, %v2869
    %v2871 = vpop.f32.mrf.mxu0
    %2872 = vmatprep.mubr.f32.mxu0 0.0
    %2873 = vmatmul.mubr.f32.gmra.mxu0 %v131
    %v2874 = vpop.f32.mrf.mxu0
    %v2875 = vadd.f32 0.0, %v2874
    %v2876 = vpop.f32.mrf.mxu0
    %2877 = vmatprep.mubr.f32.mxu0 0.0
    %2878 = vmatmul.mubr.f32.gmra.mxu0 %v134
    %v2879 = vpop.f32.mrf.mxu0
    %v2880 = vadd.f32 0.0, %v2879
    %v2881 = vpop.f32.mrf.mxu0
    %2882 = vdwg.mxu0
    %2883 = vmatprep.subr.mxu0 0.0
    %2884 = vmatpush1.msra.mxu0 0.0
    %2885 = vmatprep.subr.mxu0 0.0
    %2886 = vmatpush1.msra.mxu0 0.0
    %2887 = vmatprep.subr.mxu0 0.0
    %2888 = vmatpush1.msra.mxu0 0.0
    %2889 = vmatprep.subr.mxu0 0.0
    %2890 = vmatpush1.msra.mxu0 0.0
    %2891 = vmatprep.subr.mxu0 0.0
    %2892 = vmatpush1.msra.mxu0 0.0
    %2893 = vmatprep.subr.mxu0 0.0
    %2894 = vmatpush1.msra.mxu0 0.0
    %2895 = vmatprep.subr.mxu0 0.0
    %2896 = vmatpush1.msra.mxu0 0.0
    %2897 = vmatprep.subr.mxu0 0.0
    %2898 = vmatpush1.msra.mxu0 0.0
    %2899 = vmatprep.subr.mxu0 0.0
    %2900 = vmatpush1.msra.mxu0 0.0
    %2901 = vmatprep.subr.mxu0 0.0
    %2902 = vmatpush1.msra.mxu0 0.0
    %2903 = vmatprep.subr.mxu0 0.0
    %2904 = vmatpush1.msra.mxu0 0.0
    %2905 = vmatprep.subr.mxu0 0.0
    %2906 = vmatpush1.msra.mxu0 0.0
    %2907 = vmatprep.subr.mxu0 0.0
    %2908 = vmatpush1.msra.mxu0 0.0
    %2909 = vmatprep.subr.mxu0 0.0
    %2910 = vmatpush1.msra.mxu0 0.0
    %2911 = vmatprep.subr.mxu0 0.0
    %2912 = vmatpush1.msra.mxu0 %v2787
    %2913 = vmatprep.subr.mxu0 0.0
    %2914 = vmatpush1.msra.mxu0 %v2786
    %2915 = vmatprep.subr.mxu0 0.0
    %2916 = vmatpush2.msra.mxu0 0.0
    %2917 = vmatprep.subr.mxu0 0.0
    %2918 = vmatpush2.msra.mxu0 0.0
    %2919 = vmatprep.subr.mxu0 0.0
    %2920 = vmatpush2.msra.mxu0 0.0
    %2921 = vmatprep.subr.mxu0 0.0
    %2922 = vmatpush2.msra.mxu0 0.0
    %2923 = vmatprep.subr.mxu0 0.0
    %2924 = vmatpush2.msra.mxu0 0.0
    %2925 = vmatprep.subr.mxu0 0.0
    %2926 = vmatpush2.msra.mxu0 0.0
    %2927 = vmatprep.subr.mxu0 0.0
    %2928 = vmatpush2.msra.mxu0 0.0
    %2929 = vmatprep.subr.mxu0 0.0
    %2930 = vmatpush2.msra.mxu0 0.0
    %2931 = vmatprep.subr.mxu0 0.0
    %2932 = vmatpush2.msra.mxu0 0.0
    %2933 = vmatprep.subr.mxu0 0.0
    %2934 = vmatpush2.msra.mxu0 0.0
    %2935 = vmatprep.subr.mxu0 0.0
    %2936 = vmatpush2.msra.mxu0 0.0
    %2937 = vmatprep.subr.mxu0 0.0
    %2938 = vmatpush2.msra.mxu0 0.0
    %2939 = vmatprep.subr.mxu0 0.0
    %2940 = vmatpush2.msra.mxu0 0.0
    %2941 = vmatprep.subr.mxu0 0.0
    %2942 = vmatpush2.msra.mxu0 0.0
    %2943 = vmatprep.subr.mxu0 0.0
    %2944 = vmatpush2.msra.mxu0 0.0
    %2945 = vmatprep.subr.mxu0 0.0
    %2946 = vmatpush2.msra.mxu0 0.0
    %2947 = vmatprep.mubr.f32.mxu0 0.0
    %2948 = vmatmul.mubr.f32.gmra.mxu0 %v232
    %v2949 = vpop.f32.mrf.mxu0
    %v2950 = vadd.f32 0.0, %v2949
    %v2951 = vpop.f32.mrf.mxu0
    %2952 = vmatprep.mubr.f32.mxu0 0.0
    %2953 = vmatmul.mubr.f32.gmra.mxu0 %v235
    %v2954 = vpop.f32.mrf.mxu0
    %v2955 = vadd.f32 0.0, %v2954
    %v2956 = vpop.f32.mrf.mxu0
    %2957 = vmatprep.mubr.f32.mxu0 0.0
    %2958 = vmatmul.mubr.f32.gmra.mxu0 %v238
    %v2959 = vpop.f32.mrf.mxu0
    %v2960 = vadd.f32 0.0, %v2959
    %v2961 = vpop.f32.mrf.mxu0
    %2962 = vmatprep.mubr.f32.mxu0 0.0
    %2963 = vmatmul.mubr.f32.gmra.mxu0 %v241
    %v2964 = vpop.f32.mrf.mxu0
    %v2965 = vadd.f32 0.0, %v2964
    %v2966 = vpop.f32.mrf.mxu0
    %2967 = vmatprep.mubr.f32.mxu0 0.0
    %2968 = vmatmul.mubr.f32.gmra.mxu0 %v244
    %v2969 = vpop.f32.mrf.mxu0
    %v2970 = vadd.f32 0.0, %v2969
    %v2971 = vpop.f32.mrf.mxu0
    %2972 = vmatprep.mubr.f32.mxu0 0.0
    %2973 = vmatmul.mubr.f32.gmra.mxu0 %v247
    %v2974 = vpop.f32.mrf.mxu0
    %v2975 = vadd.f32 0.0, %v2974
    %v2976 = vpop.f32.mrf.mxu0
    %2977 = vdwg.mxu0
    %2978 = vmatprep.subr.mxu0 0.0
    %2979 = vmatpush1.msra.mxu0 0.0
    %2980 = vmatprep.subr.mxu0 0.0
    %2981 = vmatpush1.msra.mxu0 0.0
    %2982 = vmatprep.subr.mxu0 0.0
    %2983 = vmatpush1.msra.mxu0 0.0
    %2984 = vmatprep.subr.mxu0 0.0
    %2985 = vmatpush1.msra.mxu0 0.0
    %2986 = vmatprep.subr.mxu0 0.0
    %2987 = vmatpush1.msra.mxu0 0.0
    %2988 = vmatprep.subr.mxu0 0.0
    %2989 = vmatpush1.msra.mxu0 0.0
    %2990 = vmatprep.subr.mxu0 0.0
    %2991 = vmatpush1.msra.mxu0 0.0
    %2992 = vmatprep.subr.mxu0 0.0
    %2993 = vmatpush1.msra.mxu0 0.0
    %2994 = vmatprep.subr.mxu0 0.0
    %2995 = vmatpush1.msra.mxu0 0.0
    %2996 = vmatprep.subr.mxu0 0.0
    %2997 = vmatpush1.msra.mxu0 0.0
    %2998 = vmatprep.subr.mxu0 0.0
    %2999 = vmatpush1.msra.mxu0 0.0
    %3000 = vmatprep.subr.mxu0 0.0
    %3001 = vmatpush1.msra.mxu0 0.0
    %3002 = vmatprep.subr.mxu0 0.0
    %3003 = vmatpush1.msra.mxu0 0.0
    %3004 = vmatprep.subr.mxu0 0.0
    %3005 = vmatpush1.msra.mxu0 0.0
    %3006 = vmatprep.subr.mxu0 0.0
    %3007 = vmatpush1.msra.mxu0 %v2787
    %3008 = vmatprep.subr.mxu0 0.0
    %3009 = vmatpush1.msra.mxu0 %v2786
    %3010 = vmatprep.subr.mxu0 0.0
    %3011 = vmatpush2.msra.mxu0 0.0
    %3012 = vmatprep.subr.mxu0 0.0
    %3013 = vmatpush2.msra.mxu0 0.0
    %3014 = vmatprep.subr.mxu0 0.0
    %3015 = vmatpush2.msra.mxu0 0.0
    %3016 = vmatprep.subr.mxu0 0.0
    %3017 = vmatpush2.msra.mxu0 0.0
    %3018 = vmatprep.subr.mxu0 0.0
    %3019 = vmatpush2.msra.mxu0 0.0
    %3020 = vmatprep.subr.mxu0 0.0
    %3021 = vmatpush2.msra.mxu0 0.0
    %3022 = vmatprep.subr.mxu0 0.0
    %3023 = vmatpush2.msra.mxu0 0.0
    %3024 = vmatprep.subr.mxu0 0.0
    %3025 = vmatpush2.msra.mxu0 0.0
    %3026 = vmatprep.subr.mxu0 0.0
    %3027 = vmatpush2.msra.mxu0 0.0
    %3028 = vmatprep.subr.mxu0 0.0
    %3029 = vmatpush2.msra.mxu0 0.0
    %3030 = vmatprep.subr.mxu0 0.0
    %3031 = vmatpush2.msra.mxu0 0.0
    %3032 = vmatprep.subr.mxu0 0.0
    %3033 = vmatpush2.msra.mxu0 0.0
    %3034 = vmatprep.subr.mxu0 0.0
    %3035 = vmatpush2.msra.mxu0 0.0
    %3036 = vmatprep.subr.mxu0 0.0
    %3037 = vmatpush2.msra.mxu0 0.0
    %3038 = vmatprep.subr.mxu0 0.0
    %3039 = vmatpush2.msra.mxu0 0.0
    %3040 = vmatprep.subr.mxu0 0.0
    %3041 = vmatpush2.msra.mxu0 0.0
    %3042 = vmatprep.mubr.f32.mxu0 0.0
    %3043 = vmatmul.mubr.f32.gmra.mxu0 %v345
    %v3044 = vpop.f32.mrf.mxu0
    %v3045 = vadd.f32 0.0, %v3044
    %v3046 = vpop.f32.mrf.mxu0
    %3047 = vmatprep.mubr.f32.mxu0 0.0
    %3048 = vmatmul.mubr.f32.gmra.mxu0 %v348
    %v3049 = vpop.f32.mrf.mxu0
    %v3050 = vadd.f32 0.0, %v3049
    %v3051 = vpop.f32.mrf.mxu0
    %3052 = vmatprep.mubr.f32.mxu0 0.0
    %3053 = vmatmul.mubr.f32.gmra.mxu0 %v351
    %v3054 = vpop.f32.mrf.mxu0
    %v3055 = vadd.f32 0.0, %v3054
    %v3056 = vpop.f32.mrf.mxu0
    %3057 = vmatprep.mubr.f32.mxu0 0.0
    %3058 = vmatmul.mubr.f32.gmra.mxu0 %v354
    %v3059 = vpop.f32.mrf.mxu0
    %v3060 = vadd.f32 0.0, %v3059
    %v3061 = vpop.f32.mrf.mxu0
    %3062 = vmatprep.mubr.f32.mxu0 0.0
    %3063 = vmatmul.mubr.f32.gmra.mxu0 %v357
    %v3064 = vpop.f32.mrf.mxu0
    %v3065 = vadd.f32 0.0, %v3064
    %v3066 = vpop.f32.mrf.mxu0
    %3067 = vmatprep.mubr.f32.mxu0 0.0
    %3068 = vmatmul.mubr.f32.gmra.mxu0 %v360
    %v3069 = vpop.f32.mrf.mxu0
    %v3070 = vadd.f32 0.0, %v3069
    %v3071 = vpop.f32.mrf.mxu0
    %3072 = vdwg.mxu0
    %3073 = vmatprep.subr.mxu0 0.0
    %3074 = vmatpush1.msra.mxu0 0.0
    %3075 = vmatprep.subr.mxu0 0.0
    %3076 = vmatpush1.msra.mxu0 0.0
    %3077 = vmatprep.subr.mxu0 0.0
    %3078 = vmatpush1.msra.mxu0 0.0
    %3079 = vmatprep.subr.mxu0 0.0
    %3080 = vmatpush1.msra.mxu0 0.0
    %3081 = vmatprep.subr.mxu0 0.0
    %3082 = vmatpush1.msra.mxu0 0.0
    %3083 = vmatprep.subr.mxu0 0.0
    %3084 = vmatpush1.msra.mxu0 0.0
    %3085 = vmatprep.subr.mxu0 0.0
    %3086 = vmatpush1.msra.mxu0 0.0
    %3087 = vmatprep.subr.mxu0 0.0
    %3088 = vmatpush1.msra.mxu0 0.0
    %3089 = vmatprep.subr.mxu0 0.0
    %3090 = vmatpush1.msra.mxu0 0.0
    %3091 = vmatprep.subr.mxu0 0.0
    %3092 = vmatpush1.msra.mxu0 0.0
    %3093 = vmatprep.subr.mxu0 0.0
    %3094 = vmatpush1.msra.mxu0 0.0
    %3095 = vmatprep.subr.mxu0 0.0
    %3096 = vmatpush1.msra.mxu0 0.0
    %3097 = vmatprep.subr.mxu0 0.0
    %3098 = vmatpush1.msra.mxu0 0.0
    %3099 = vmatprep.subr.mxu0 0.0
    %3100 = vmatpush1.msra.mxu0 0.0
    %3101 = vmatprep.subr.mxu0 0.0
    %3102 = vmatpush1.msra.mxu0 %v2787
    %3103 = vmatprep.subr.mxu0 0.0
    %3104 = vmatpush1.msra.mxu0 %v2786
    %3105 = vmatprep.subr.mxu0 0.0
    %3106 = vmatpush2.msra.mxu0 0.0
    %3107 = vmatprep.subr.mxu0 0.0
    %3108 = vmatpush2.msra.mxu0 0.0
    %3109 = vmatprep.subr.mxu0 0.0
    %3110 = vmatpush2.msra.mxu0 0.0
    %3111 = vmatprep.subr.mxu0 0.0
    %3112 = vmatpush2.msra.mxu0 0.0
    %3113 = vmatprep.subr.mxu0 0.0
    %3114 = vmatpush2.msra.mxu0 0.0
    %3115 = vmatprep.subr.mxu0 0.0
    %3116 = vmatpush2.msra.mxu0 0.0
    %3117 = vmatprep.subr.mxu0 0.0
    %3118 = vmatpush2.msra.mxu0 0.0
    %3119 = vmatprep.subr.mxu0 0.0
    %3120 = vmatpush2.msra.mxu0 0.0
    %3121 = vmatprep.subr.mxu0 0.0
    %3122 = vmatpush2.msra.mxu0 0.0
    %3123 = vmatprep.subr.mxu0 0.0
    %3124 = vmatpush2.msra.mxu0 0.0
    %3125 = vmatprep.subr.mxu0 0.0
    %3126 = vmatpush2.msra.mxu0 0.0
    %3127 = vmatprep.subr.mxu0 0.0
    %3128 = vmatpush2.msra.mxu0 0.0
    %3129 = vmatprep.subr.mxu0 0.0
    %3130 = vmatpush2.msra.mxu0 0.0
    %3131 = vmatprep.subr.mxu0 0.0
    %3132 = vmatpush2.msra.mxu0 0.0
    %3133 = vmatprep.subr.mxu0 0.0
    %3134 = vmatpush2.msra.mxu0 0.0
    %3135 = vmatprep.subr.mxu0 0.0
    %3136 = vmatpush2.msra.mxu0 0.0
    %3137 = vmatprep.mubr.f32.mxu0 0.0
    %3138 = vmatmul.mubr.f32.gmra.mxu0 %v458
    %v3139 = vpop.f32.mrf.mxu0
    %v3140 = vadd.f32 0.0, %v3139
    %v3141 = vpop.f32.mrf.mxu0
    %3142 = vmatprep.mubr.f32.mxu0 0.0
    %3143 = vmatmul.mubr.f32.gmra.mxu0 %v461
    %v3144 = vpop.f32.mrf.mxu0
    %v3145 = vadd.f32 0.0, %v3144
    %v3146 = vpop.f32.mrf.mxu0
    %3147 = vmatprep.mubr.f32.mxu0 0.0
    %3148 = vmatmul.mubr.f32.gmra.mxu0 %v464
    %v3149 = vpop.f32.mrf.mxu0
    %v3150 = vadd.f32 0.0, %v3149
    %v3151 = vpop.f32.mrf.mxu0
    %3152 = vmatprep.mubr.f32.mxu0 0.0
    %3153 = vmatmul.mubr.f32.gmra.mxu0 %v467
    %v3154 = vpop.f32.mrf.mxu0
    %v3155 = vadd.f32 0.0, %v3154
    %v3156 = vpop.f32.mrf.mxu0
    %3157 = vmatprep.mubr.f32.mxu0 0.0
    %3158 = vmatmul.mubr.f32.gmra.mxu0 %v470
    %v3159 = vpop.f32.mrf.mxu0
    %v3160 = vadd.f32 0.0, %v3159
    %v3161 = vpop.f32.mrf.mxu0
    %3162 = vmatprep.mubr.f32.mxu0 0.0
    %3163 = vmatmul.mubr.f32.gmra.mxu0 %v473
    %v3164 = vpop.f32.mrf.mxu0
    %v3165 = vadd.f32 0.0, %v3164
    %v3166 = vpop.f32.mrf.mxu0
    %3167 = vdwg.mxu0
    %3168 = vmatprep.subr.mxu0 0.0
    %3169 = vmatpush1.msra.mxu0 0.0
    %3170 = vmatprep.subr.mxu0 0.0
    %3171 = vmatpush1.msra.mxu0 0.0
    %3172 = vmatprep.subr.mxu0 0.0
    %3173 = vmatpush1.msra.mxu0 0.0
    %3174 = vmatprep.subr.mxu0 0.0
    %3175 = vmatpush1.msra.mxu0 0.0
    %3176 = vmatprep.subr.mxu0 0.0
    %3177 = vmatpush1.msra.mxu0 0.0
    %3178 = vmatprep.subr.mxu0 0.0
    %3179 = vmatpush1.msra.mxu0 0.0
    %3180 = vmatprep.subr.mxu0 0.0
    %3181 = vmatpush1.msra.mxu0 0.0
    %3182 = vmatprep.subr.mxu0 0.0
    %3183 = vmatpush1.msra.mxu0 0.0
    %3184 = vmatprep.subr.mxu0 0.0
    %3185 = vmatpush1.msra.mxu0 0.0
    %3186 = vmatprep.subr.mxu0 0.0
    %3187 = vmatpush1.msra.mxu0 0.0
    %3188 = vmatprep.subr.mxu0 0.0
    %3189 = vmatpush1.msra.mxu0 0.0
    %3190 = vmatprep.subr.mxu0 0.0
    %3191 = vmatpush1.msra.mxu0 0.0
    %3192 = vmatprep.subr.mxu0 0.0
    %3193 = vmatpush1.msra.mxu0 0.0
    %3194 = vmatprep.subr.mxu0 0.0
    %3195 = vmatpush1.msra.mxu0 0.0
    %3196 = vmatprep.subr.mxu0 0.0
    %3197 = vmatpush1.msra.mxu0 %v2787
    %3198 = vmatprep.subr.mxu0 0.0
    %3199 = vmatpush1.msra.mxu0 %v2786
    %3200 = vmatprep.subr.mxu0 0.0
    %3201 = vmatpush2.msra.mxu0 0.0
    %3202 = vmatprep.subr.mxu0 0.0
    %3203 = vmatpush2.msra.mxu0 0.0
    %3204 = vmatprep.subr.mxu0 0.0
    %3205 = vmatpush2.msra.mxu0 0.0
    %3206 = vmatprep.subr.mxu0 0.0
    %3207 = vmatpush2.msra.mxu0 0.0
    %3208 = vmatprep.subr.mxu0 0.0
    %3209 = vmatpush2.msra.mxu0 0.0
    %3210 = vmatprep.subr.mxu0 0.0
    %3211 = vmatpush2.msra.mxu0 0.0
    %3212 = vmatprep.subr.mxu0 0.0
    %3213 = vmatpush2.msra.mxu0 0.0
    %3214 = vmatprep.subr.mxu0 0.0
    %3215 = vmatpush2.msra.mxu0 0.0
    %3216 = vmatprep.subr.mxu0 0.0
    %3217 = vmatpush2.msra.mxu0 0.0
    %3218 = vmatprep.subr.mxu0 0.0
    %3219 = vmatpush2.msra.mxu0 0.0
    %3220 = vmatprep.subr.mxu0 0.0
    %3221 = vmatpush2.msra.mxu0 0.0
    %3222 = vmatprep.subr.mxu0 0.0
    %3223 = vmatpush2.msra.mxu0 0.0
    %3224 = vmatprep.subr.mxu0 0.0
    %3225 = vmatpush2.msra.mxu0 0.0
    %3226 = vmatprep.subr.mxu0 0.0
    %3227 = vmatpush2.msra.mxu0 0.0
    %3228 = vmatprep.subr.mxu0 0.0
    %3229 = vmatpush2.msra.mxu0 0.0
    %3230 = vmatprep.subr.mxu0 0.0
    %3231 = vmatpush2.msra.mxu0 0.0
    %3232 = vmatprep.mubr.f32.mxu0 0.0
    %3233 = vmatmul.mubr.f32.gmra.mxu0 %v571
    %v3234 = vpop.f32.mrf.mxu0
    %v3235 = vadd.f32 0.0, %v3234
    %v3236 = vpop.f32.mrf.mxu0
    %3237 = vmatprep.mubr.f32.mxu0 0.0
    %3238 = vmatmul.mubr.f32.gmra.mxu0 %v574
    %v3239 = vpop.f32.mrf.mxu0
    %v3240 = vadd.f32 0.0, %v3239
    %v3241 = vpop.f32.mrf.mxu0
    %3242 = vmatprep.mubr.f32.mxu0 0.0
    %3243 = vmatmul.mubr.f32.gmra.mxu0 %v577
    %v3244 = vpop.f32.mrf.mxu0
    %v3245 = vadd.f32 0.0, %v3244
    %v3246 = vpop.f32.mrf.mxu0
    %3247 = vmatprep.mubr.f32.mxu0 0.0
    %3248 = vmatmul.mubr.f32.gmra.mxu0 %v580
    %v3249 = vpop.f32.mrf.mxu0
    %v3250 = vadd.f32 0.0, %v3249
    %v3251 = vpop.f32.mrf.mxu0
    %3252 = vmatprep.mubr.f32.mxu0 0.0
    %3253 = vmatmul.mubr.f32.gmra.mxu0 %v583
    %v3254 = vpop.f32.mrf.mxu0
    %v3255 = vadd.f32 0.0, %v3254
    %v3256 = vpop.f32.mrf.mxu0
    %3257 = vmatprep.mubr.f32.mxu0 0.0
    %3258 = vmatmul.mubr.f32.gmra.mxu0 %v586
    %v3259 = vpop.f32.mrf.mxu0
    %v3260 = vadd.f32 0.0, %v3259
    %v3261 = vpop.f32.mrf.mxu0
    %3262 = vdwg.mxu0
    %3263 = vmatprep.subr.mxu0 0.0
    %3264 = vmatpush1.msra.mxu0 0.0
    %3265 = vmatprep.subr.mxu0 0.0
    %3266 = vmatpush1.msra.mxu0 0.0
    %3267 = vmatprep.subr.mxu0 0.0
    %3268 = vmatpush1.msra.mxu0 0.0
    %3269 = vmatprep.subr.mxu0 0.0
    %3270 = vmatpush1.msra.mxu0 0.0
    %3271 = vmatprep.subr.mxu0 0.0
    %3272 = vmatpush1.msra.mxu0 0.0
    %3273 = vmatprep.subr.mxu0 0.0
    %3274 = vmatpush1.msra.mxu0 0.0
    %3275 = vmatprep.subr.mxu0 0.0
    %3276 = vmatpush1.msra.mxu0 0.0
    %3277 = vmatprep.subr.mxu0 0.0
    %3278 = vmatpush1.msra.mxu0 0.0
    %3279 = vmatprep.subr.mxu0 0.0
    %3280 = vmatpush1.msra.mxu0 0.0
    %3281 = vmatprep.subr.mxu0 0.0
    %3282 = vmatpush1.msra.mxu0 0.0
    %3283 = vmatprep.subr.mxu0 0.0
    %3284 = vmatpush1.msra.mxu0 0.0
    %3285 = vmatprep.subr.mxu0 0.0
    %3286 = vmatpush1.msra.mxu0 0.0
    %3287 = vmatprep.subr.mxu0 0.0
    %3288 = vmatpush1.msra.mxu0 0.0
    %3289 = vmatprep.subr.mxu0 0.0
    %3290 = vmatpush1.msra.mxu0 0.0
    %3291 = vmatprep.subr.mxu0 0.0
    %3292 = vmatpush1.msra.mxu0 %v2787
    %3293 = vmatprep.subr.mxu0 0.0
    %3294 = vmatpush1.msra.mxu0 %v2786
    %3295 = vmatprep.subr.mxu0 0.0
    %3296 = vmatpush2.msra.mxu0 0.0
    %3297 = vmatprep.subr.mxu0 0.0
    %3298 = vmatpush2.msra.mxu0 0.0
    %3299 = vmatprep.subr.mxu0 0.0
    %3300 = vmatpush2.msra.mxu0 0.0
    %3301 = vmatprep.subr.mxu0 0.0
    %3302 = vmatpush2.msra.mxu0 0.0
    %3303 = vmatprep.subr.mxu0 0.0
    %3304 = vmatpush2.msra.mxu0 0.0
    %3305 = vmatprep.subr.mxu0 0.0
    %3306 = vmatpush2.msra.mxu0 0.0
    %3307 = vmatprep.subr.mxu0 0.0
    %3308 = vmatpush2.msra.mxu0 0.0
    %3309 = vmatprep.subr.mxu0 0.0
    %3310 = vmatpush2.msra.mxu0 0.0
    %3311 = vmatprep.subr.mxu0 0.0
    %3312 = vmatpush2.msra.mxu0 0.0
    %3313 = vmatprep.subr.mxu0 0.0
    %3314 = vmatpush2.msra.mxu0 0.0
    %3315 = vmatprep.subr.mxu0 0.0
    %3316 = vmatpush2.msra.mxu0 0.0
    %3317 = vmatprep.subr.mxu0 0.0
    %3318 = vmatpush2.msra.mxu0 0.0
    %3319 = vmatprep.subr.mxu0 0.0
    %3320 = vmatpush2.msra.mxu0 0.0
    %3321 = vmatprep.subr.mxu0 0.0
    %3322 = vmatpush2.msra.mxu0 0.0
    %3323 = vmatprep.subr.mxu0 0.0
    %3324 = vmatpush2.msra.mxu0 0.0
    %3325 = vmatprep.subr.mxu0 0.0
    %3326 = vmatpush2.msra.mxu0 0.0
    %3327 = vmatprep.mubr.f32.mxu0 0.0
    %3328 = vmatmul.mubr.f32.gmra.mxu0 %v684
    %v3329 = vpop.f32.mrf.mxu0
    %v3330 = vadd.f32 0.0, %v3329
    %v3331 = vpop.f32.mrf.mxu0
    %3332 = vmatprep.mubr.f32.mxu0 0.0
    %3333 = vmatmul.mubr.f32.gmra.mxu0 %v687
    %v3334 = vpop.f32.mrf.mxu0
    %v3335 = vadd.f32 0.0, %v3334
    %v3336 = vpop.f32.mrf.mxu0
    %3337 = vmatprep.mubr.f32.mxu0 0.0
    %3338 = vmatmul.mubr.f32.gmra.mxu0 %v690
    %v3339 = vpop.f32.mrf.mxu0
    %v3340 = vadd.f32 0.0, %v3339
    %v3341 = vpop.f32.mrf.mxu0
    %3342 = vmatprep.mubr.f32.mxu0 0.0
    %3343 = vmatmul.mubr.f32.gmra.mxu0 %v693
    %v3344 = vpop.f32.mrf.mxu0
    %v3345 = vadd.f32 0.0, %v3344
    %v3346 = vpop.f32.mrf.mxu0
    %3347 = vmatprep.mubr.f32.mxu0 0.0
    %3348 = vmatmul.mubr.f32.gmra.mxu0 %v696
    %v3349 = vpop.f32.mrf.mxu0
    %v3350 = vadd.f32 0.0, %v3349
    %v3351 = vpop.f32.mrf.mxu0
    %3352 = vmatprep.mubr.f32.mxu0 0.0
    %3353 = vmatmul.mubr.f32.gmra.mxu0 %v699
    %v3354 = vpop.f32.mrf.mxu0
    %v3355 = vadd.f32 0.0, %v3354
    %v3356 = vpop.f32.mrf.mxu0
    %3357 = vdwg.mxu0
    %3358 = vmatprep.subr.mxu0 0.0
    %3359 = vmatpush1.msra.mxu0 0.0
    %3360 = vmatprep.subr.mxu0 0.0
    %3361 = vmatpush1.msra.mxu0 0.0
    %3362 = vmatprep.subr.mxu0 0.0
    %3363 = vmatpush1.msra.mxu0 0.0
    %3364 = vmatprep.subr.mxu0 0.0
    %3365 = vmatpush1.msra.mxu0 0.0
    %3366 = vmatprep.subr.mxu0 0.0
    %3367 = vmatpush1.msra.mxu0 0.0
    %3368 = vmatprep.subr.mxu0 0.0
    %3369 = vmatpush1.msra.mxu0 0.0
    %3370 = vmatprep.subr.mxu0 0.0
    %3371 = vmatpush1.msra.mxu0 0.0
    %3372 = vmatprep.subr.mxu0 0.0
    %3373 = vmatpush1.msra.mxu0 0.0
    %3374 = vmatprep.subr.mxu0 0.0
    %3375 = vmatpush1.msra.mxu0 0.0
    %3376 = vmatprep.subr.mxu0 0.0
    %3377 = vmatpush1.msra.mxu0 0.0
    %3378 = vmatprep.subr.mxu0 0.0
    %3379 = vmatpush1.msra.mxu0 0.0
    %3380 = vmatprep.subr.mxu0 0.0
    %3381 = vmatpush1.msra.mxu0 0.0
    %3382 = vmatprep.subr.mxu0 0.0
    %3383 = vmatpush1.msra.mxu0 0.0
    %3384 = vmatprep.subr.mxu0 0.0
    %3385 = vmatpush1.msra.mxu0 0.0
    %3386 = vmatprep.subr.mxu0 0.0
    %3387 = vmatpush1.msra.mxu0 %v2787
    %3388 = vmatprep.subr.mxu0 0.0
    %3389 = vmatpush1.msra.mxu0 %v2786
    %3390 = vmatprep.subr.mxu0 0.0
    %3391 = vmatpush2.msra.mxu0 0.0
    %3392 = vmatprep.subr.mxu0 0.0
    %3393 = vmatpush2.msra.mxu0 0.0
    %3394 = vmatprep.subr.mxu0 0.0
    %3395 = vmatpush2.msra.mxu0 0.0
    %3396 = vmatprep.subr.mxu0 0.0
    %3397 = vmatpush2.msra.mxu0 0.0
    %3398 = vmatprep.subr.mxu0 0.0
    %3399 = vmatpush2.msra.mxu0 0.0
    %3400 = vmatprep.subr.mxu0 0.0
    %3401 = vmatpush2.msra.mxu0 0.0
    %3402 = vmatprep.subr.mxu0 0.0
    %3403 = vmatpush2.msra.mxu0 0.0
    %3404 = vmatprep.subr.mxu0 0.0
    %3405 = vmatpush2.msra.mxu0 0.0
    %3406 = vmatprep.subr.mxu0 0.0
    %3407 = vmatpush2.msra.mxu0 0.0
    %3408 = vmatprep.subr.mxu0 0.0
    %3409 = vmatpush2.msra.mxu0 0.0
    %3410 = vmatprep.subr.mxu0 0.0
    %3411 = vmatpush2.msra.mxu0 0.0
    %3412 = vmatprep.subr.mxu0 0.0
    %3413 = vmatpush2.msra.mxu0 0.0
    %3414 = vmatprep.subr.mxu0 0.0
    %3415 = vmatpush2.msra.mxu0 0.0
    %3416 = vmatprep.subr.mxu0 0.0
    %3417 = vmatpush2.msra.mxu0 0.0
    %3418 = vmatprep.subr.mxu0 0.0
    %3419 = vmatpush2.msra.mxu0 0.0
    %3420 = vmatprep.subr.mxu0 0.0
    %3421 = vmatpush2.msra.mxu0 0.0
    %3422 = vmatprep.mubr.f32.mxu0 0.0
    %3423 = vmatmul.mubr.f32.gmra.mxu0 %v797
    %v3424 = vpop.f32.mrf.mxu0
    %v3425 = vadd.f32 0.0, %v3424
    %v3426 = vpop.f32.mrf.mxu0
    %3427 = vmatprep.mubr.f32.mxu0 0.0
    %3428 = vmatmul.mubr.f32.gmra.mxu0 %v800
    %v3429 = vpop.f32.mrf.mxu0
    %v3430 = vadd.f32 0.0, %v3429
    %v3431 = vpop.f32.mrf.mxu0
    %3432 = vmatprep.mubr.f32.mxu0 0.0
    %3433 = vmatmul.mubr.f32.gmra.mxu0 %v803
    %v3434 = vpop.f32.mrf.mxu0
    %v3435 = vadd.f32 0.0, %v3434
    %v3436 = vpop.f32.mrf.mxu0
    %3437 = vmatprep.mubr.f32.mxu0 0.0
    %3438 = vmatmul.mubr.f32.gmra.mxu0 %v806
    %v3439 = vpop.f32.mrf.mxu0
    %v3440 = vadd.f32 0.0, %v3439
    %v3441 = vpop.f32.mrf.mxu0
    %3442 = vmatprep.mubr.f32.mxu0 0.0
    %3443 = vmatmul.mubr.f32.gmra.mxu0 %v809
    %v3444 = vpop.f32.mrf.mxu0
    %v3445 = vadd.f32 0.0, %v3444
    %v3446 = vpop.f32.mrf.mxu0
    %3447 = vmatprep.mubr.f32.mxu0 0.0
    %3448 = vmatmul.mubr.f32.gmra.mxu0 %v812
    %v3449 = vpop.f32.mrf.mxu0
    %v3450 = vadd.f32 0.0, %v3449
    %v3451 = vpop.f32.mrf.mxu0
    %3452 = vdwg.mxu0
    %3453 = vmatprep.subr.mxu0 0.0
    %3454 = vmatpush1.msra.mxu0 0.0
    %3455 = vmatprep.subr.mxu0 0.0
    %3456 = vmatpush1.msra.mxu0 0.0
    %3457 = vmatprep.subr.mxu0 0.0
    %3458 = vmatpush1.msra.mxu0 0.0
    %3459 = vmatprep.subr.mxu0 0.0
    %3460 = vmatpush1.msra.mxu0 0.0
    %3461 = vmatprep.subr.mxu0 0.0
    %3462 = vmatpush1.msra.mxu0 0.0
    %3463 = vmatprep.subr.mxu0 0.0
    %3464 = vmatpush1.msra.mxu0 0.0
    %3465 = vmatprep.subr.mxu0 0.0
    %3466 = vmatpush1.msra.mxu0 0.0
    %3467 = vmatprep.subr.mxu0 0.0
    %3468 = vmatpush1.msra.mxu0 0.0
    %3469 = vmatprep.subr.mxu0 0.0
    %3470 = vmatpush1.msra.mxu0 0.0
    %3471 = vmatprep.subr.mxu0 0.0
    %3472 = vmatpush1.msra.mxu0 0.0
    %3473 = vmatprep.subr.mxu0 0.0
    %3474 = vmatpush1.msra.mxu0 0.0
    %3475 = vmatprep.subr.mxu0 0.0
    %3476 = vmatpush1.msra.mxu0 0.0
    %3477 = vmatprep.subr.mxu0 0.0
    %3478 = vmatpush1.msra.mxu0 0.0
    %3479 = vmatprep.subr.mxu0 0.0
    %3480 = vmatpush1.msra.mxu0 0.0
    %3481 = vmatprep.subr.mxu0 0.0
    %3482 = vmatpush1.msra.mxu0 %v2787
    %3483 = vmatprep.subr.mxu0 0.0
    %3484 = vmatpush1.msra.mxu0 %v2786
    %3485 = vmatprep.subr.mxu0 0.0
    %3486 = vmatpush2.msra.mxu0 0.0
    %3487 = vmatprep.subr.mxu0 0.0
    %3488 = vmatpush2.msra.mxu0 0.0
    %3489 = vmatprep.subr.mxu0 0.0
    %3490 = vmatpush2.msra.mxu0 0.0
    %3491 = vmatprep.subr.mxu0 0.0
    %3492 = vmatpush2.msra.mxu0 0.0
    %3493 = vmatprep.subr.mxu0 0.0
    %3494 = vmatpush2.msra.mxu0 0.0
    %3495 = vmatprep.subr.mxu0 0.0
    %3496 = vmatpush2.msra.mxu0 0.0
    %3497 = vmatprep.subr.mxu0 0.0
    %3498 = vmatpush2.msra.mxu0 0.0
    %3499 = vmatprep.subr.mxu0 0.0
    %3500 = vmatpush2.msra.mxu0 0.0
    %3501 = vmatprep.subr.mxu0 0.0
    %3502 = vmatpush2.msra.mxu0 0.0
    %3503 = vmatprep.subr.mxu0 0.0
    %3504 = vmatpush2.msra.mxu0 0.0
    %3505 = vmatprep.subr.mxu0 0.0
    %3506 = vmatpush2.msra.mxu0 0.0
    %3507 = vmatprep.subr.mxu0 0.0
    %3508 = vmatpush2.msra.mxu0 0.0
    %3509 = vmatprep.subr.mxu0 0.0
    %3510 = vmatpush2.msra.mxu0 0.0
    %3511 = vmatprep.subr.mxu0 0.0
    %3512 = vmatpush2.msra.mxu0 0.0
    %3513 = vmatprep.subr.mxu0 0.0
    %3514 = vmatpush2.msra.mxu0 0.0
    %3515 = vmatprep.subr.mxu0 0.0
    %3516 = vmatpush2.msra.mxu0 0.0
    %3517 = vmatprep.mubr.f32.mxu0 0.0
    %3518 = vmatmul.mubr.f32.gmra.mxu0 %v910
    %v3519 = vpop.f32.mrf.mxu0
    %v3520 = vadd.f32 0.0, %v3519
    %v3521 = vpop.f32.mrf.mxu0
    %3522 = vmatprep.mubr.f32.mxu0 0.0
    %3523 = vmatmul.mubr.f32.gmra.mxu0 %v913
    %v3524 = vpop.f32.mrf.mxu0
    %v3525 = vadd.f32 0.0, %v3524
    %v3526 = vpop.f32.mrf.mxu0
    %3527 = vmatprep.mubr.f32.mxu0 0.0
    %3528 = vmatmul.mubr.f32.gmra.mxu0 %v916
    %v3529 = vpop.f32.mrf.mxu0
    %v3530 = vadd.f32 0.0, %v3529
    %v3531 = vpop.f32.mrf.mxu0
    %3532 = vmatprep.mubr.f32.mxu0 0.0
    %3533 = vmatmul.mubr.f32.gmra.mxu0 %v919
    %v3534 = vpop.f32.mrf.mxu0
    %v3535 = vadd.f32 0.0, %v3534
    %v3536 = vpop.f32.mrf.mxu0
    %3537 = vmatprep.mubr.f32.mxu0 0.0
    %3538 = vmatmul.mubr.f32.gmra.mxu0 %v922
    %v3539 = vpop.f32.mrf.mxu0
    %v3540 = vadd.f32 0.0, %v3539
    %v3541 = vpop.f32.mrf.mxu0
    %3542 = vmatprep.mubr.f32.mxu0 0.0
    %3543 = vmatmul.mubr.f32.gmra.mxu0 %v925
    %v3544 = vpop.f32.mrf.mxu0
    %v3545 = vadd.f32 0.0, %v3544
    %v3546 = vpop.f32.mrf.mxu0
    %3547 = vdwg.mxu0
    %s3548 = scalar_lea.vmem [#allocation4], 40
    %v3549 = vld [vmem:[%s3548] sm:$0xf]
    %v3550 = vld [vmem:[%s3548 + $0x4] sm:$0xf]
    %v3551 = vld [vmem:[%s3548 + $0x8] sm:$0xf]
    %v3552 = vld [vmem:[%s3548 + $0xc] sm:$0xf]
    %v3553 = vld [vmem:[%s3548 + $0x10] sm:$0x3]
    %v3554 = vpack.c.bf16 %v2860, %v2855
    %v3555 = vpack.c.bf16 %v2870, %v2865
    %v3556 = vpack.c.bf16 %v2880, %v2875
    %v3557 = vpack.c.bf16 %v2955, %v2950
    %v3558 = vpack.c.bf16 %v2965, %v2960
    %v3559 = vpack.c.bf16 %v2975, %v2970
    %v3560 = vpack.c.bf16 %v3050, %v3045
    %v3561 = vpack.c.bf16 %v3060, %v3055
    %v3562 = vpack.c.bf16 %v3070, %v3065
    %v3563 = vpack.c.bf16 %v3145, %v3140
    %v3564 = vpack.c.bf16 %v3155, %v3150
    %v3565 = vpack.c.bf16 %v3165, %v3160
    %v3566 = vpack.c.bf16 %v3240, %v3235
    %v3567 = vpack.c.bf16 %v3250, %v3245
    %v3568 = vpack.c.bf16 %v3260, %v3255
    %v3569 = vpack.c.bf16 %v3335, %v3330
    %v3570 = vpack.c.bf16 %v3345, %v3340
    %v3571 = vpack.c.bf16 %v3355, %v3350
    %v3572 = vpack.c.bf16 %v3430, %v3425
    %v3573 = vpack.c.bf16 %v3440, %v3435
    %v3574 = vpack.c.bf16 %v3450, %v3445
    %v3575 = vpack.c.bf16 %v3525, %v3520
    %v3576 = vpack.c.bf16 %v3535, %v3530
    %v3577 = vpack.c.bf16 %v3545, %v3540
    %v3583 = vunpack.c.l.b16 %v3549
    %v3584 = vunpack.c.l.b16 %v3550
    %v3585 = vunpack.c.l.b16 %v3551
    %v3586 = vunpack.c.l.b16 %v3552
    %v3587 = vunpack.c.l.b16 %v3553
    %v3588 = vpack.c.b16 %v3584, %v3583
    %v3589 = vpack.c.b16 %v3586, %v3585
    %v3590 = vpack.c.b16 %v3587, %v3587
    %v3592 = vsel %vm1857, %v3588, 0
    %v3595 = vsel %vm1857, %v3589, 0
    %v3598 = vsel %vm1857, %v3590, 0
    %3600 = vmatprep.subr.bf16.mxu0 0
    %3601 = vmatpush1.bf16.msra.mxu0 0
    %3602 = vmatprep.subr.bf16.mxu0 0
    %3603 = vmatpush1.bf16.msra.mxu0 0
    %3604 = vmatprep.subr.bf16.mxu0 0
    %3605 = vmatpush1.bf16.msra.mxu0 0
    %3606 = vmatprep.subr.bf16.mxu0 0
    %3607 = vmatpush1.bf16.msra.mxu0 0
    %3608 = vmatprep.subr.bf16.mxu0 0
    %3609 = vmatpush1.bf16.msra.mxu0 0
    %3610 = vmatprep.subr.bf16.mxu0 0
    %3611 = vmatpush1.bf16.msra.mxu0 %v3556
    %3612 = vmatprep.subr.bf16.mxu0 0
    %3613 = vmatpush1.bf16.msra.mxu0 %v3555
    %3614 = vmatprep.subr.bf16.mxu0 0
    %3615 = vmatpush1.bf16.msra.mxu0 %v3554
    %3616 = vmatprep.subr.bf16.mxu0 0
    %3617 = vmatpush2.bf16.msra.mxu0 0
    %3618 = vmatprep.subr.bf16.mxu0 0
    %3619 = vmatpush2.bf16.msra.mxu0 0
    %3620 = vmatprep.subr.bf16.mxu0 0
    %3621 = vmatpush2.bf16.msra.mxu0 0
    %3622 = vmatprep.subr.bf16.mxu0 0
    %3623 = vmatpush2.bf16.msra.mxu0 0
    %3624 = vmatprep.subr.bf16.mxu0 0
    %3625 = vmatpush2.bf16.msra.mxu0 0
    %3626 = vmatprep.subr.bf16.mxu0 0
    %3627 = vmatpush2.bf16.msra.mxu0 0
    %3628 = vmatprep.subr.bf16.mxu0 0
    %3629 = vmatpush2.bf16.msra.mxu0 0
    %3630 = vmatprep.subr.bf16.mxu0 0
    %3631 = vmatpush2.bf16.msra.mxu0 0
    %3632 = vmatprep.mubr.bf16.mxu0 0
    %3633 = vmatmul.mubr.bf16.gmra.mxu0 %v3592
    %v3634 = vpop.f32.mrf.mxu0
    %v3635 = vadd.f32 0.0, %v3634
    %v3636 = vpop.f32.mrf.mxu0
    %v3637 = vpop.f32.mrf.mxu0
    %v3638 = vadd.f32 0.0, %v3637
    %v3639 = vpop.f32.mrf.mxu0
    %3640 = vmatprep.mubr.bf16.mxu0 0
    %3641 = vmatmul.mubr.bf16.gmra.mxu0 %v3595
    %v3642 = vpop.f32.mrf.mxu0
    %v3643 = vadd.f32 0.0, %v3642
    %v3644 = vpop.f32.mrf.mxu0
    %v3645 = vpop.f32.mrf.mxu0
    %v3646 = vadd.f32 0.0, %v3645
    %v3647 = vpop.f32.mrf.mxu0
    %3648 = vmatprep.mubr.bf16.mxu0 0
    %3649 = vmatmul.mubr.bf16.gmra.mxu0 %v3598
    %v3650 = vpop.f32.mrf.mxu0
    %v3651 = vadd.f32 0.0, %v3650
    %v3652 = vpop.f32.mrf.mxu0
    %v3653 = vpop.f32.mrf.mxu0
    %v3654 = vpop.f32.mrf.mxu0
    %3655 = vdwg.mxu0
    %3656 = vmatprep.subr.bf16.mxu0 0
    %3657 = vmatpush1.bf16.msra.mxu0 0
    %3658 = vmatprep.subr.bf16.mxu0 0
    %3659 = vmatpush1.bf16.msra.mxu0 0
    %3660 = vmatprep.subr.bf16.mxu0 0
    %3661 = vmatpush1.bf16.msra.mxu0 0
    %3662 = vmatprep.subr.bf16.mxu0 0
    %3663 = vmatpush1.bf16.msra.mxu0 0
    %3664 = vmatprep.subr.bf16.mxu0 0
    %3665 = vmatpush1.bf16.msra.mxu0 0
    %3666 = vmatprep.subr.bf16.mxu0 0
    %3667 = vmatpush1.bf16.msra.mxu0 %v3559
    %3668 = vmatprep.subr.bf16.mxu0 0
    %3669 = vmatpush1.bf16.msra.mxu0 %v3558
    %3670 = vmatprep.subr.bf16.mxu0 0
    %3671 = vmatpush1.bf16.msra.mxu0 %v3557
    %3672 = vmatprep.subr.bf16.mxu0 0
    %3673 = vmatpush2.bf16.msra.mxu0 0
    %3674 = vmatprep.subr.bf16.mxu0 0
    %3675 = vmatpush2.bf16.msra.mxu0 0
    %3676 = vmatprep.subr.bf16.mxu0 0
    %3677 = vmatpush2.bf16.msra.mxu0 0
    %3678 = vmatprep.subr.bf16.mxu0 0
    %3679 = vmatpush2.bf16.msra.mxu0 0
    %3680 = vmatprep.subr.bf16.mxu0 0
    %3681 = vmatpush2.bf16.msra.mxu0 0
    %3682 = vmatprep.subr.bf16.mxu0 0
    %3683 = vmatpush2.bf16.msra.mxu0 0
    %3684 = vmatprep.subr.bf16.mxu0 0
    %3685 = vmatpush2.bf16.msra.mxu0 0
    %3686 = vmatprep.subr.bf16.mxu0 0
    %3687 = vmatpush2.bf16.msra.mxu0 0
    %3688 = vmatprep.mubr.bf16.mxu0 0
    %3689 = vmatmul.mubr.bf16.gmra.mxu0 %v3592
    %v3690 = vpop.f32.mrf.mxu0
    %v3691 = vadd.f32 0.0, %v3690
    %v3692 = vpop.f32.mrf.mxu0
    %v3693 = vpop.f32.mrf.mxu0
    %v3694 = vadd.f32 0.0, %v3693
    %v3695 = vpop.f32.mrf.mxu0
    %3696 = vmatprep.mubr.bf16.mxu0 0
    %3697 = vmatmul.mubr.bf16.gmra.mxu0 %v3595
    %v3698 = vpop.f32.mrf.mxu0
    %v3699 = vadd.f32 0.0, %v3698
    %v3700 = vpop.f32.mrf.mxu0
    %v3701 = vpop.f32.mrf.mxu0
    %v3702 = vadd.f32 0.0, %v3701
    %v3703 = vpop.f32.mrf.mxu0
    %3704 = vmatprep.mubr.bf16.mxu0 0
    %3705 = vmatmul.mubr.bf16.gmra.mxu0 %v3598
    %v3706 = vpop.f32.mrf.mxu0
    %v3707 = vadd.f32 0.0, %v3706
    %v3708 = vpop.f32.mrf.mxu0
    %v3709 = vpop.f32.mrf.mxu0
    %v3710 = vpop.f32.mrf.mxu0
    %3711 = vdwg.mxu0
    %3712 = vmatprep.subr.bf16.mxu0 0
    %3713 = vmatpush1.bf16.msra.mxu0 0
    %3714 = vmatprep.subr.bf16.mxu0 0
    %3715 = vmatpush1.bf16.msra.mxu0 0
    %3716 = vmatprep.subr.bf16.mxu0 0
    %3717 = vmatpush1.bf16.msra.mxu0 0
    %3718 = vmatprep.subr.bf16.mxu0 0
    %3719 = vmatpush1.bf16.msra.mxu0 0
    %3720 = vmatprep.subr.bf16.mxu0 0
    %3721 = vmatpush1.bf16.msra.mxu0 0
    %3722 = vmatprep.subr.bf16.mxu0 0
    %3723 = vmatpush1.bf16.msra.mxu0 %v3562
    %3724 = vmatprep.subr.bf16.mxu0 0
    %3725 = vmatpush1.bf16.msra.mxu0 %v3561
    %3726 = vmatprep.subr.bf16.mxu0 0
    %3727 = vmatpush1.bf16.msra.mxu0 %v3560
    %3728 = vmatprep.subr.bf16.mxu0 0
    %3729 = vmatpush2.bf16.msra.mxu0 0
    %3730 = vmatprep.subr.bf16.mxu0 0
    %3731 = vmatpush2.bf16.msra.mxu0 0
    %3732 = vmatprep.subr.bf16.mxu0 0
    %3733 = vmatpush2.bf16.msra.mxu0 0
    %3734 = vmatprep.subr.bf16.mxu0 0
    %3735 = vmatpush2.bf16.msra.mxu0 0
    %3736 = vmatprep.subr.bf16.mxu0 0
    %3737 = vmatpush2.bf16.msra.mxu0 0
    %3738 = vmatprep.subr.bf16.mxu0 0
    %3739 = vmatpush2.bf16.msra.mxu0 0
    %3740 = vmatprep.subr.bf16.mxu0 0
    %3741 = vmatpush2.bf16.msra.mxu0 0
    %3742 = vmatprep.subr.bf16.mxu0 0
    %3743 = vmatpush2.bf16.msra.mxu0 0
    %3744 = vmatprep.mubr.bf16.mxu0 0
    %3745 = vmatmul.mubr.bf16.gmra.mxu0 %v3592
    %v3746 = vpop.f32.mrf.mxu0
    %v3747 = vadd.f32 0.0, %v3746
    %v3748 = vpop.f32.mrf.mxu0
    %v3749 = vpop.f32.mrf.mxu0
    %v3750 = vadd.f32 0.0, %v3749
    %v3751 = vpop.f32.mrf.mxu0
    %3752 = vmatprep.mubr.bf16.mxu0 0
    %3753 = vmatmul.mubr.bf16.gmra.mxu0 %v3595
    %v3754 = vpop.f32.mrf.mxu0
    %v3755 = vadd.f32 0.0, %v3754
    %v3756 = vpop.f32.mrf.mxu0
    %v3757 = vpop.f32.mrf.mxu0
    %v3758 = vadd.f32 0.0, %v3757
    %v3759 = vpop.f32.mrf.mxu0
    %3760 = vmatprep.mubr.bf16.mxu0 0
    %3761 = vmatmul.mubr.bf16.gmra.mxu0 %v3598
    %v3762 = vpop.f32.mrf.mxu0
    %v3763 = vadd.f32 0.0, %v3762
    %v3764 = vpop.f32.mrf.mxu0
    %v3765 = vpop.f32.mrf.mxu0
    %v3766 = vpop.f32.mrf.mxu0
    %3767 = vdwg.mxu0
    %3768 = vmatprep.subr.bf16.mxu0 0
    %3769 = vmatpush1.bf16.msra.mxu0 0
    %3770 = vmatprep.subr.bf16.mxu0 0
    %3771 = vmatpush1.bf16.msra.mxu0 0
    %3772 = vmatprep.subr.bf16.mxu0 0
    %3773 = vmatpush1.bf16.msra.mxu0 0
    %3774 = vmatprep.subr.bf16.mxu0 0
    %3775 = vmatpush1.bf16.msra.mxu0 0
    %3776 = vmatprep.subr.bf16.mxu0 0
    %3777 = vmatpush1.bf16.msra.mxu0 0
    %3778 = vmatprep.subr.bf16.mxu0 0
    %3779 = vmatpush1.bf16.msra.mxu0 %v3565
    %3780 = vmatprep.subr.bf16.mxu0 0
    %3781 = vmatpush1.bf16.msra.mxu0 %v3564
    %3782 = vmatprep.subr.bf16.mxu0 0
    %3783 = vmatpush1.bf16.msra.mxu0 %v3563
    %3784 = vmatprep.subr.bf16.mxu0 0
    %3785 = vmatpush2.bf16.msra.mxu0 0
    %3786 = vmatprep.subr.bf16.mxu0 0
    %3787 = vmatpush2.bf16.msra.mxu0 0
    %3788 = vmatprep.subr.bf16.mxu0 0
    %3789 = vmatpush2.bf16.msra.mxu0 0
    %3790 = vmatprep.subr.bf16.mxu0 0
    %3791 = vmatpush2.bf16.msra.mxu0 0
    %3792 = vmatprep.subr.bf16.mxu0 0
    %3793 = vmatpush2.bf16.msra.mxu0 0
    %3794 = vmatprep.subr.bf16.mxu0 0
    %3795 = vmatpush2.bf16.msra.mxu0 0
    %3796 = vmatprep.subr.bf16.mxu0 0
    %3797 = vmatpush2.bf16.msra.mxu0 0
    %3798 = vmatprep.subr.bf16.mxu0 0
    %3799 = vmatpush2.bf16.msra.mxu0 0
    %3800 = vmatprep.mubr.bf16.mxu0 0
    %3801 = vmatmul.mubr.bf16.gmra.mxu0 %v3592
    %v3802 = vpop.f32.mrf.mxu0
    %v3803 = vadd.f32 0.0, %v3802
    %v3804 = vpop.f32.mrf.mxu0
    %v3805 = vpop.f32.mrf.mxu0
    %v3806 = vadd.f32 0.0, %v3805
    %v3807 = vpop.f32.mrf.mxu0
    %3808 = vmatprep.mubr.bf16.mxu0 0
    %3809 = vmatmul.mubr.bf16.gmra.mxu0 %v3595
    %v3810 = vpop.f32.mrf.mxu0
    %v3811 = vadd.f32 0.0, %v3810
    %v3812 = vpop.f32.mrf.mxu0
    %v3813 = vpop.f32.mrf.mxu0
    %v3814 = vadd.f32 0.0, %v3813
    %v3815 = vpop.f32.mrf.mxu0
    %3816 = vmatprep.mubr.bf16.mxu0 0
    %3817 = vmatmul.mubr.bf16.gmra.mxu0 %v3598
    %v3818 = vpop.f32.mrf.mxu0
    %v3819 = vadd.f32 0.0, %v3818
    %v3820 = vpop.f32.mrf.mxu0
    %v3821 = vpop.f32.mrf.mxu0
    %v3822 = vpop.f32.mrf.mxu0
    %3823 = vdwg.mxu0
    %3824 = vmatprep.subr.bf16.mxu0 0
    %3825 = vmatpush1.bf16.msra.mxu0 0
    %3826 = vmatprep.subr.bf16.mxu0 0
    %3827 = vmatpush1.bf16.msra.mxu0 0
    %3828 = vmatprep.subr.bf16.mxu0 0
    %3829 = vmatpush1.bf16.msra.mxu0 0
    %3830 = vmatprep.subr.bf16.mxu0 0
    %3831 = vmatpush1.bf16.msra.mxu0 0
    %3832 = vmatprep.subr.bf16.mxu0 0
    %3833 = vmatpush1.bf16.msra.mxu0 0
    %3834 = vmatprep.subr.bf16.mxu0 0
    %3835 = vmatpush1.bf16.msra.mxu0 %v3568
    %3836 = vmatprep.subr.bf16.mxu0 0
    %3837 = vmatpush1.bf16.msra.mxu0 %v3567
    %3838 = vmatprep.subr.bf16.mxu0 0
    %3839 = vmatpush1.bf16.msra.mxu0 %v3566
    %3840 = vmatprep.subr.bf16.mxu0 0
    %3841 = vmatpush2.bf16.msra.mxu0 0
    %3842 = vmatprep.subr.bf16.mxu0 0
    %3843 = vmatpush2.bf16.msra.mxu0 0
    %3844 = vmatprep.subr.bf16.mxu0 0
    %3845 = vmatpush2.bf16.msra.mxu0 0
    %3846 = vmatprep.subr.bf16.mxu0 0
    %3847 = vmatpush2.bf16.msra.mxu0 0
    %3848 = vmatprep.subr.bf16.mxu0 0
    %3849 = vmatpush2.bf16.msra.mxu0 0
    %3850 = vmatprep.subr.bf16.mxu0 0
    %3851 = vmatpush2.bf16.msra.mxu0 0
    %3852 = vmatprep.subr.bf16.mxu0 0
    %3853 = vmatpush2.bf16.msra.mxu0 0
    %3854 = vmatprep.subr.bf16.mxu0 0
    %3855 = vmatpush2.bf16.msra.mxu0 0
    %3856 = vmatprep.mubr.bf16.mxu0 0
    %3857 = vmatmul.mubr.bf16.gmra.mxu0 %v3592
    %v3858 = vpop.f32.mrf.mxu0
    %v3859 = vadd.f32 0.0, %v3858
    %v3860 = vpop.f32.mrf.mxu0
    %v3861 = vpop.f32.mrf.mxu0
    %v3862 = vadd.f32 0.0, %v3861
    %v3863 = vpop.f32.mrf.mxu0
    %3864 = vmatprep.mubr.bf16.mxu0 0
    %3865 = vmatmul.mubr.bf16.gmra.mxu0 %v3595
    %v3866 = vpop.f32.mrf.mxu0
    %v3867 = vadd.f32 0.0, %v3866
    %v3868 = vpop.f32.mrf.mxu0
    %v3869 = vpop.f32.mrf.mxu0
    %v3870 = vadd.f32 0.0, %v3869
    %v3871 = vpop.f32.mrf.mxu0
    %3872 = vmatprep.mubr.bf16.mxu0 0
    %3873 = vmatmul.mubr.bf16.gmra.mxu0 %v3598
    %v3874 = vpop.f32.mrf.mxu0
    %v3875 = vadd.f32 0.0, %v3874
    %v3876 = vpop.f32.mrf.mxu0
    %v3877 = vpop.f32.mrf.mxu0
    %v3878 = vpop.f32.mrf.mxu0
    %3879 = vdwg.mxu0
    %3880 = vmatprep.subr.bf16.mxu0 0
    %3881 = vmatpush1.bf16.msra.mxu0 0
    %3882 = vmatprep.subr.bf16.mxu0 0
    %3883 = vmatpush1.bf16.msra.mxu0 0
    %3884 = vmatprep.subr.bf16.mxu0 0
    %3885 = vmatpush1.bf16.msra.mxu0 0
    %3886 = vmatprep.subr.bf16.mxu0 0
    %3887 = vmatpush1.bf16.msra.mxu0 0
    %3888 = vmatprep.subr.bf16.mxu0 0
    %3889 = vmatpush1.bf16.msra.mxu0 0
    %3890 = vmatprep.subr.bf16.mxu0 0
    %3891 = vmatpush1.bf16.msra.mxu0 %v3571
    %3892 = vmatprep.subr.bf16.mxu0 0
    %3893 = vmatpush1.bf16.msra.mxu0 %v3570
    %3894 = vmatprep.subr.bf16.mxu0 0
    %3895 = vmatpush1.bf16.msra.mxu0 %v3569
    %3896 = vmatprep.subr.bf16.mxu0 0
    %3897 = vmatpush2.bf16.msra.mxu0 0
    %3898 = vmatprep.subr.bf16.mxu0 0
    %3899 = vmatpush2.bf16.msra.mxu0 0
    %3900 = vmatprep.subr.bf16.mxu0 0
    %3901 = vmatpush2.bf16.msra.mxu0 0
    %3902 = vmatprep.subr.bf16.mxu0 0
    %3903 = vmatpush2.bf16.msra.mxu0 0
    %3904 = vmatprep.subr.bf16.mxu0 0
    %3905 = vmatpush2.bf16.msra.mxu0 0
    %3906 = vmatprep.subr.bf16.mxu0 0
    %3907 = vmatpush2.bf16.msra.mxu0 0
    %3908 = vmatprep.subr.bf16.mxu0 0
    %3909 = vmatpush2.bf16.msra.mxu0 0
    %3910 = vmatprep.subr.bf16.mxu0 0
    %3911 = vmatpush2.bf16.msra.mxu0 0
    %3912 = vmatprep.mubr.bf16.mxu0 0
    %3913 = vmatmul.mubr.bf16.gmra.mxu0 %v3592
    %v3914 = vpop.f32.mrf.mxu0
    %v3915 = vadd.f32 0.0, %v3914
    %v3916 = vpop.f32.mrf.mxu0
    %v3917 = vpop.f32.mrf.mxu0
    %v3918 = vadd.f32 0.0, %v3917
    %v3919 = vpop.f32.mrf.mxu0
    %3920 = vmatprep.mubr.bf16.mxu0 0
    %3921 = vmatmul.mubr.bf16.gmra.mxu0 %v3595
    %v3922 = vpop.f32.mrf.mxu0
    %v3923 = vadd.f32 0.0, %v3922
    %v3924 = vpop.f32.mrf.mxu0
    %v3925 = vpop.f32.mrf.mxu0
    %v3926 = vadd.f32 0.0, %v3925
    %v3927 = vpop.f32.mrf.mxu0
    %3928 = vmatprep.mubr.bf16.mxu0 0
    %3929 = vmatmul.mubr.bf16.gmra.mxu0 %v3598
    %v3930 = vpop.f32.mrf.mxu0
    %v3931 = vadd.f32 0.0, %v3930
    %v3932 = vpop.f32.mrf.mxu0
    %v3933 = vpop.f32.mrf.mxu0
    %v3934 = vpop.f32.mrf.mxu0
    %3935 = vdwg.mxu0
    %3936 = vmatprep.subr.bf16.mxu0 0
    %3937 = vmatpush1.bf16.msra.mxu0 0
    %3938 = vmatprep.subr.bf16.mxu0 0
    %3939 = vmatpush1.bf16.msra.mxu0 0
    %3940 = vmatprep.subr.bf16.mxu0 0
    %3941 = vmatpush1.bf16.msra.mxu0 0
    %3942 = vmatprep.subr.bf16.mxu0 0
    %3943 = vmatpush1.bf16.msra.mxu0 0
    %3944 = vmatprep.subr.bf16.mxu0 0
    %3945 = vmatpush1.bf16.msra.mxu0 0
    %3946 = vmatprep.subr.bf16.mxu0 0
    %3947 = vmatpush1.bf16.msra.mxu0 %v3574
    %3948 = vmatprep.subr.bf16.mxu0 0
    %3949 = vmatpush1.bf16.msra.mxu0 %v3573
    %3950 = vmatprep.subr.bf16.mxu0 0
    %3951 = vmatpush1.bf16.msra.mxu0 %v3572
    %3952 = vmatprep.subr.bf16.mxu0 0
    %3953 = vmatpush2.bf16.msra.mxu0 0
    %3954 = vmatprep.subr.bf16.mxu0 0
    %3955 = vmatpush2.bf16.msra.mxu0 0
    %3956 = vmatprep.subr.bf16.mxu0 0
    %3957 = vmatpush2.bf16.msra.mxu0 0
    %3958 = vmatprep.subr.bf16.mxu0 0
    %3959 = vmatpush2.bf16.msra.mxu0 0
    %3960 = vmatprep.subr.bf16.mxu0 0
    %3961 = vmatpush2.bf16.msra.mxu0 0
    %3962 = vmatprep.subr.bf16.mxu0 0
    %3963 = vmatpush2.bf16.msra.mxu0 0
    %3964 = vmatprep.subr.bf16.mxu0 0
    %3965 = vmatpush2.bf16.msra.mxu0 0
    %3966 = vmatprep.subr.bf16.mxu0 0
    %3967 = vmatpush2.bf16.msra.mxu0 0
    %3968 = vmatprep.mubr.bf16.mxu0 0
    %3969 = vmatmul.mubr.bf16.gmra.mxu0 %v3592
    %v3970 = vpop.f32.mrf.mxu0
    %v3971 = vadd.f32 0.0, %v3970
    %v3972 = vpop.f32.mrf.mxu0
    %v3973 = vpop.f32.mrf.mxu0
    %v3974 = vadd.f32 0.0, %v3973
    %v3975 = vpop.f32.mrf.mxu0
    %3976 = vmatprep.mubr.bf16.mxu0 0
    %3977 = vmatmul.mubr.bf16.gmra.mxu0 %v3595
    %v3978 = vpop.f32.mrf.mxu0
    %v3979 = vadd.f32 0.0, %v3978
    %v3980 = vpop.f32.mrf.mxu0
    %v3981 = vpop.f32.mrf.mxu0
    %v3982 = vadd.f32 0.0, %v3981
    %v3983 = vpop.f32.mrf.mxu0
    %3984 = vmatprep.mubr.bf16.mxu0 0
    %3985 = vmatmul.mubr.bf16.gmra.mxu0 %v3598
    %v3986 = vpop.f32.mrf.mxu0
    %v3987 = vadd.f32 0.0, %v3986
    %v3988 = vpop.f32.mrf.mxu0
    %v3989 = vpop.f32.mrf.mxu0
    %v3990 = vpop.f32.mrf.mxu0
    %3991 = vdwg.mxu0
    %3992 = vmatprep.subr.bf16.mxu0 0
    %3993 = vmatpush1.bf16.msra.mxu0 0
    %3994 = vmatprep.subr.bf16.mxu0 0
    %3995 = vmatpush1.bf16.msra.mxu0 0
    %3996 = vmatprep.subr.bf16.mxu0 0
    %3997 = vmatpush1.bf16.msra.mxu0 0
    %3998 = vmatprep.subr.bf16.mxu0 0
    %3999 = vmatpush1.bf16.msra.mxu0 0
    %4000 = vmatprep.subr.bf16.mxu0 0
    %4001 = vmatpush1.bf16.msra.mxu0 0
    %4002 = vmatprep.subr.bf16.mxu0 0
    %4003 = vmatpush1.bf16.msra.mxu0 %v3577
    %4004 = vmatprep.subr.bf16.mxu0 0
    %4005 = vmatpush1.bf16.msra.mxu0 %v3576
    %4006 = vmatprep.subr.bf16.mxu0 0
    %4007 = vmatpush1.bf16.msra.mxu0 %v3575
    %4008 = vmatprep.subr.bf16.mxu0 0
    %4009 = vmatpush2.bf16.msra.mxu0 0
    %4010 = vmatprep.subr.bf16.mxu0 0
    %4011 = vmatpush2.bf16.msra.mxu0 0
    %4012 = vmatprep.subr.bf16.mxu0 0
    %4013 = vmatpush2.bf16.msra.mxu0 0
    %4014 = vmatprep.subr.bf16.mxu0 0
    %4015 = vmatpush2.bf16.msra.mxu0 0
    %4016 = vmatprep.subr.bf16.mxu0 0
    %4017 = vmatpush2.bf16.msra.mxu0 0
    %4018 = vmatprep.subr.bf16.mxu0 0
    %4019 = vmatpush2.bf16.msra.mxu0 0
    %4020 = vmatprep.subr.bf16.mxu0 0
    %4021 = vmatpush2.bf16.msra.mxu0 0
    %4022 = vmatprep.subr.bf16.mxu0 0
    %4023 = vmatpush2.bf16.msra.mxu0 0
    %4024 = vmatprep.mubr.bf16.mxu0 0
    %4025 = vmatmul.mubr.bf16.gmra.mxu0 %v3592
    %v4026 = vpop.f32.mrf.mxu0
    %v4027 = vadd.f32 0.0, %v4026
    %v4028 = vpop.f32.mrf.mxu0
    %v4029 = vpop.f32.mrf.mxu0
    %v4030 = vadd.f32 0.0, %v4029
    %v4031 = vpop.f32.mrf.mxu0
    %4032 = vmatprep.mubr.bf16.mxu0 0
    %4033 = vmatmul.mubr.bf16.gmra.mxu0 %v3595
    %v4034 = vpop.f32.mrf.mxu0
    %v4035 = vadd.f32 0.0, %v4034
    %v4036 = vpop.f32.mrf.mxu0
    %v4037 = vpop.f32.mrf.mxu0
    %v4038 = vadd.f32 0.0, %v4037
    %v4039 = vpop.f32.mrf.mxu0
    %4040 = vmatprep.mubr.bf16.mxu0 0
    %4041 = vmatmul.mubr.bf16.gmra.mxu0 %v3598
    %v4042 = vpop.f32.mrf.mxu0
    %v4043 = vadd.f32 0.0, %v4042
    %v4044 = vpop.f32.mrf.mxu0
    %v4045 = vpop.f32.mrf.mxu0
    %v4046 = vpop.f32.mrf.mxu0
    %4047 = vdwg.mxu0
    %v4048 = vadd.f32 %v2372, %v3635
    %v4049 = vadd.f32 %v2375, %v3638
    %v4050 = vadd.f32 %v2380, %v3643
    %v4051 = vadd.f32 %v2383, %v3646
    %v4052 = vadd.f32 %v2388, %v3651
    %v4053 = vadd.f32 %v2428, %v3691
    %v4054 = vadd.f32 %v2431, %v3694
    %v4055 = vadd.f32 %v2436, %v3699
    %v4056 = vadd.f32 %v2439, %v3702
    %v4057 = vadd.f32 %v2444, %v3707
    %v4058 = vadd.f32 %v2484, %v3747
    %v4059 = vadd.f32 %v2487, %v3750
    %v4060 = vadd.f32 %v2492, %v3755
    %v4061 = vadd.f32 %v2495, %v3758
    %v4062 = vadd.f32 %v2500, %v3763
    %v4063 = vadd.f32 %v2540, %v3803
    %v4064 = vadd.f32 %v2543, %v3806
    %v4065 = vadd.f32 %v2548, %v3811
    %v4066 = vadd.f32 %v2551, %v3814
    %v4067 = vadd.f32 %v2556, %v3819
    %v4068 = vadd.f32 %v2596, %v3859
    %v4069 = vadd.f32 %v2599, %v3862
    %v4070 = vadd.f32 %v2604, %v3867
    %v4071 = vadd.f32 %v2607, %v3870
    %v4072 = vadd.f32 %v2612, %v3875
    %v4073 = vadd.f32 %v2652, %v3915
    %v4074 = vadd.f32 %v2655, %v3918
    %v4075 = vadd.f32 %v2660, %v3923
    %v4076 = vadd.f32 %v2663, %v3926
    %v4077 = vadd.f32 %v2668, %v3931
    %v4078 = vadd.f32 %v2708, %v3971
    %v4079 = vadd.f32 %v2711, %v3974
    %v4080 = vadd.f32 %v2716, %v3979
    %v4081 = vadd.f32 %v2719, %v3982
    %v4082 = vadd.f32 %v2724, %v3987
    %v4083 = vadd.f32 %v2764, %v4027
    %v4084 = vadd.f32 %v2767, %v4030
    %v4085 = vadd.f32 %v2772, %v4035
    %v4086 = vadd.f32 %v2775, %v4038
    %v4087 = vadd.f32 %v2780, %v4043
    %v4088 = vld [vmem:[%s3] sm:$0xff]
    %v4089 = vld [vmem:[%s3 + $0x8] sm:$0xff]
    %v4090 = vld [vmem:[%s3 + $0x10] sm:$0xff]
    %v4091 = vld [vmem:[%s3 + $0x18] sm:$0xff]
    %v4092 = vld [vmem:[%s3 + $0x20] sm:$0xf]
    %v4093 = vadd.f32 %v4048, %v4088
    %v4094 = vadd.f32 %v4049, %v4089
    %v4095 = vadd.f32 %v4050, %v4090
    %v4096 = vadd.f32 %v4051, %v4091
    %v4097 = vadd.f32 %v4052, %v4092
    %v4098 = vadd.f32 %v4053, %v4088
    %v4099 = vadd.f32 %v4054, %v4089
    %v4100 = vadd.f32 %v4055, %v4090
    %v4101 = vadd.f32 %v4056, %v4091
    %v4102 = vadd.f32 %v4057, %v4092
    %v4103 = vadd.f32 %v4058, %v4088
    %v4104 = vadd.f32 %v4059, %v4089
    %v4105 = vadd.f32 %v4060, %v4090
    %v4106 = vadd.f32 %v4061, %v4091
    %v4107 = vadd.f32 %v4062, %v4092
    %v4108 = vadd.f32 %v4063, %v4088
    %v4109 = vadd.f32 %v4064, %v4089
    %v4110 = vadd.f32 %v4065, %v4090
    %v4111 = vadd.f32 %v4066, %v4091
    %v4112 = vadd.f32 %v4067, %v4092
    %v4113 = vadd.f32 %v4068, %v4088
    %v4114 = vadd.f32 %v4069, %v4089
    %v4115 = vadd.f32 %v4070, %v4090
    %v4116 = vadd.f32 %v4071, %v4091
    %v4117 = vadd.f32 %v4072, %v4092
    %v4118 = vadd.f32 %v4073, %v4088
    %v4119 = vadd.f32 %v4074, %v4089
    %v4120 = vadd.f32 %v4075, %v4090
    %v4121 = vadd.f32 %v4076, %v4091
    %v4122 = vadd.f32 %v4077, %v4092
    %v4123 = vadd.f32 %v4078, %v4088
    %v4124 = vadd.f32 %v4079, %v4089
    %v4125 = vadd.f32 %v4080, %v4090
    %v4126 = vadd.f32 %v4081, %v4091
    %v4127 = vadd.f32 %v4082, %v4092
    %v4128 = vadd.f32 %v4083, %v4088
    %v4129 = vadd.f32 %v4084, %v4089
    %v4130 = vadd.f32 %v4085, %v4090
    %v4131 = vadd.f32 %v4086, %v4091
    %v4132 = vadd.f32 %v4087, %v4092
    %v4133 = vmax.f32 %v4093, 0.0
    %v4134 = vmax.f32 %v4094, 0.0
    %v4135 = vmax.f32 %v4095, 0.0
    %v4136 = vmax.f32 %v4096, 0.0
    %v4137 = vmax.f32 %v4097, 0.0
    %v4138 = vmax.f32 %v4098, 0.0
    %v4139 = vmax.f32 %v4099, 0.0
    %v4140 = vmax.f32 %v4100, 0.0
    %v4141 = vmax.f32 %v4101, 0.0
    %v4142 = vmax.f32 %v4102, 0.0
    %v4143 = vmax.f32 %v4103, 0.0
    %v4144 = vmax.f32 %v4104, 0.0
    %v4145 = vmax.f32 %v4105, 0.0
    %v4146 = vmax.f32 %v4106, 0.0
    %v4147 = vmax.f32 %v4107, 0.0
    %v4148 = vmax.f32 %v4108, 0.0
    %v4149 = vmax.f32 %v4109, 0.0
    %v4150 = vmax.f32 %v4110, 0.0
    %v4151 = vmax.f32 %v4111, 0.0
    %v4152 = vmax.f32 %v4112, 0.0
    %v4153 = vmax.f32 %v4113, 0.0
    %v4154 = vmax.f32 %v4114, 0.0
    %v4155 = vmax.f32 %v4115, 0.0
    %v4156 = vmax.f32 %v4116, 0.0
    %v4157 = vmax.f32 %v4117, 0.0
    %v4158 = vmax.f32 %v4118, 0.0
    %v4159 = vmax.f32 %v4119, 0.0
    %v4160 = vmax.f32 %v4120, 0.0
    %v4161 = vmax.f32 %v4121, 0.0
    %v4162 = vmax.f32 %v4122, 0.0
    %v4163 = vmax.f32 %v4123, 0.0
    %v4164 = vmax.f32 %v4124, 0.0
    %v4165 = vmax.f32 %v4125, 0.0
    %v4166 = vmax.f32 %v4126, 0.0
    %v4167 = vmax.f32 %v4127, 0.0
    %v4168 = vmax.f32 %v4128, 0.0
    %v4169 = vmax.f32 %v4129, 0.0
    %v4170 = vmax.f32 %v4130, 0.0
    %v4171 = vmax.f32 %v4131, 0.0
    %v4172 = vmax.f32 %v4132, 0.0
    %v4173 = vcombine.low %v4133, %v4143
    %v4174 = vcombine.high %v4133, %v4143
    %v4176 = vunpack.c.l.s4 1983009808
    %v4177 = vunpack.c.0.s8 %v4176
    %v4178 = vlaneseq
    %v4179 = vshrl.u32 %v4178, 7
    %v4180 = vsub.s32 %v4177, %v4179
    %v4181 = vrot.slane %v4173, %v4180
    %v4183 = vunpack.c.l.s4 1983009808
    %v4184 = vunpack.c.0.s8 %v4183
    %v4185 = vlaneseq
    %v4186 = vshrl.u32 %v4185, 7
    %v4187 = vsub.s32 %v4184, %v4186
    %v4188 = vrot.slane %v4174, %v4187
    %v4189 = vcombine.low %v4138, %v4148
    %v4190 = vcombine.high %v4138, %v4148
    %v4192 = vunpack.c.l.s4 1983009808
    %v4193 = vunpack.c.0.s8 %v4192
    %v4194 = vlaneseq
    %v4195 = vshrl.u32 %v4194, 7
    %v4196 = vsub.s32 %v4193, %v4195
    %v4197 = vrot.slane %v4189, %v4196
    %v4199 = vunpack.c.l.s4 1983009808
    %v4200 = vunpack.c.0.s8 %v4199
    %v4201 = vlaneseq
    %v4202 = vshrl.u32 %v4201, 7
    %v4203 = vsub.s32 %v4200, %v4202
    %v4204 = vrot.slane %v4190, %v4203
    %v4205 = vcombine.low %v4153, %v4163
    %v4206 = vcombine.high %v4153, %v4163
    %v4208 = vunpack.c.l.s4 1983009808
    %v4209 = vunpack.c.0.s8 %v4208
    %v4210 = vlaneseq
    %v4211 = vshrl.u32 %v4210, 7
    %v4212 = vsub.s32 %v4209, %v4211
    %v4213 = vrot.slane %v4205, %v4212
    %v4215 = vunpack.c.l.s4 1983009808
    %v4216 = vunpack.c.0.s8 %v4215
    %v4217 = vlaneseq
    %v4218 = vshrl.u32 %v4217, 7
    %v4219 = vsub.s32 %v4216, %v4218
    %v4220 = vrot.slane %v4206, %v4219
    %v4221 = vcombine.low %v4158, %v4168
    %v4222 = vcombine.high %v4158, %v4168
    %v4224 = vunpack.c.l.s4 1983009808
    %v4225 = vunpack.c.0.s8 %v4224
    %v4226 = vlaneseq
    %v4227 = vshrl.u32 %v4226, 7
    %v4228 = vsub.s32 %v4225, %v4227
    %v4229 = vrot.slane %v4221, %v4228
    %v4231 = vunpack.c.l.s4 1983009808
    %v4232 = vunpack.c.0.s8 %v4231
    %v4233 = vlaneseq
    %v4234 = vshrl.u32 %v4233, 7
    %v4235 = vsub.s32 %v4232, %v4234
    %v4236 = vrot.slane %v4222, %v4235
    %v4237 = vcombine.low %v4181, %v4197
    %v4238 = vcombine.high %v4181, %v4197
    %v4240 = vunpack.c.l.s4 1934713408
    %v4241 = vunpack.c.0.s8 %v4240
    %v4242 = vlaneseq
    %v4243 = vshrl.u32 %v4242, 7
    %v4244 = vsub.s32 %v4241, %v4243
    %v4245 = vrot.slane %v4237, %v4244
    %v4247 = vunpack.c.l.s4 1934713408
    %v4248 = vunpack.c.0.s8 %v4247
    %v4249 = vlaneseq
    %v4250 = vshrl.u32 %v4249, 7
    %v4251 = vsub.s32 %v4248, %v4250
    %v4252 = vrot.slane %v4238, %v4251
    %v4253 = vcombine.low %v4188, %v4204
    %v4254 = vcombine.high %v4188, %v4204
    %v4256 = vunpack.c.l.s4 1934713408
    %v4257 = vunpack.c.0.s8 %v4256
    %v4258 = vlaneseq
    %v4259 = vshrl.u32 %v4258, 7
    %v4260 = vsub.s32 %v4257, %v4259
    %v4261 = vrot.slane %v4253, %v4260
    %v4263 = vunpack.c.l.s4 1934713408
    %v4264 = vunpack.c.0.s8 %v4263
    %v4265 = vlaneseq
    %v4266 = vshrl.u32 %v4265, 7
    %v4267 = vsub.s32 %v4264, %v4266
    %v4268 = vrot.slane %v4254, %v4267
    %v4269 = vcombine.low %v4213, %v4229
    %v4270 = vcombine.high %v4213, %v4229
    %v4272 = vunpack.c.l.s4 1934713408
    %v4273 = vunpack.c.0.s8 %v4272
    %v4274 = vlaneseq
    %v4275 = vshrl.u32 %v4274, 7
    %v4276 = vsub.s32 %v4273, %v4275
    %v4277 = vrot.slane %v4269, %v4276
    %v4279 = vunpack.c.l.s4 1934713408
    %v4280 = vunpack.c.0.s8 %v4279
    %v4281 = vlaneseq
    %v4282 = vshrl.u32 %v4281, 7
    %v4283 = vsub.s32 %v4280, %v4282
    %v4284 = vrot.slane %v4270, %v4283
    %v4285 = vcombine.low %v4220, %v4236
    %v4286 = vcombine.high %v4220, %v4236
    %v4288 = vunpack.c.l.s4 1934713408
    %v4289 = vunpack.c.0.s8 %v4288
    %v4290 = vlaneseq
    %v4291 = vshrl.u32 %v4290, 7
    %v4292 = vsub.s32 %v4289, %v4291
    %v4293 = vrot.slane %v4285, %v4292
    %v4295 = vunpack.c.l.s4 1934713408
    %v4296 = vunpack.c.0.s8 %v4295
    %v4297 = vlaneseq
    %v4298 = vshrl.u32 %v4297, 7
    %v4299 = vsub.s32 %v4296, %v4298
    %v4300 = vrot.slane %v4286, %v4299
    %v4301 = vcombine.low %v4245, %v4277
    %v4302 = vcombine.high %v4245, %v4277
    %v4303 = vcombine.low %v4252, %v4284
    %v4304 = vcombine.high %v4252, %v4284
    %v4305 = vcombine.low %v4261, %v4293
    %v4306 = vcombine.high %v4261, %v4293
    %v4307 = vcombine.low %v4268, %v4300
    %v4308 = vcombine.high %v4268, %v4300
    %v4309 = vcombine.low %v4134, %v4144
    %v4310 = vcombine.high %v4134, %v4144
    %v4312 = vunpack.c.l.s4 1983009808
    %v4313 = vunpack.c.0.s8 %v4312
    %v4314 = vlaneseq
    %v4315 = vshrl.u32 %v4314, 7
    %v4316 = vsub.s32 %v4313, %v4315
    %v4317 = vrot.slane %v4309, %v4316
    %v4319 = vunpack.c.l.s4 1983009808
    %v4320 = vunpack.c.0.s8 %v4319
    %v4321 = vlaneseq
    %v4322 = vshrl.u32 %v4321, 7
    %v4323 = vsub.s32 %v4320, %v4322
    %v4324 = vrot.slane %v4310, %v4323
    %v4325 = vcombine.low %v4139, %v4149
    %v4326 = vcombine.high %v4139, %v4149
    %v4328 = vunpack.c.l.s4 1983009808
    %v4329 = vunpack.c.0.s8 %v4328
    %v4330 = vlaneseq
    %v4331 = vshrl.u32 %v4330, 7
    %v4332 = vsub.s32 %v4329, %v4331
    %v4333 = vrot.slane %v4325, %v4332
    %v4335 = vunpack.c.l.s4 1983009808
    %v4336 = vunpack.c.0.s8 %v4335
    %v4337 = vlaneseq
    %v4338 = vshrl.u32 %v4337, 7
    %v4339 = vsub.s32 %v4336, %v4338
    %v4340 = vrot.slane %v4326, %v4339
    %v4341 = vcombine.low %v4154, %v4164
    %v4342 = vcombine.high %v4154, %v4164
    %v4344 = vunpack.c.l.s4 1983009808
    %v4345 = vunpack.c.0.s8 %v4344
    %v4346 = vlaneseq
    %v4347 = vshrl.u32 %v4346, 7
    %v4348 = vsub.s32 %v4345, %v4347
    %v4349 = vrot.slane %v4341, %v4348
    %v4351 = vunpack.c.l.s4 1983009808
    %v4352 = vunpack.c.0.s8 %v4351
    %v4353 = vlaneseq
    %v4354 = vshrl.u32 %v4353, 7
    %v4355 = vsub.s32 %v4352, %v4354
    %v4356 = vrot.slane %v4342, %v4355
    %v4357 = vcombine.low %v4159, %v4169
    %v4358 = vcombine.high %v4159, %v4169
    %v4360 = vunpack.c.l.s4 1983009808
    %v4361 = vunpack.c.0.s8 %v4360
    %v4362 = vlaneseq
    %v4363 = vshrl.u32 %v4362, 7
    %v4364 = vsub.s32 %v4361, %v4363
    %v4365 = vrot.slane %v4357, %v4364
    %v4367 = vunpack.c.l.s4 1983009808
    %v4368 = vunpack.c.0.s8 %v4367
    %v4369 = vlaneseq
    %v4370 = vshrl.u32 %v4369, 7
    %v4371 = vsub.s32 %v4368, %v4370
    %v4372 = vrot.slane %v4358, %v4371
    %v4373 = vcombine.low %v4317, %v4333
    %v4374 = vcombine.high %v4317, %v4333
    %v4376 = vunpack.c.l.s4 1934713408
    %v4377 = vunpack.c.0.s8 %v4376
    %v4378 = vlaneseq
    %v4379 = vshrl.u32 %v4378, 7
    %v4380 = vsub.s32 %v4377, %v4379
    %v4381 = vrot.slane %v4373, %v4380
    %v4383 = vunpack.c.l.s4 1934713408
    %v4384 = vunpack.c.0.s8 %v4383
    %v4385 = vlaneseq
    %v4386 = vshrl.u32 %v4385, 7
    %v4387 = vsub.s32 %v4384, %v4386
    %v4388 = vrot.slane %v4374, %v4387
    %v4389 = vcombine.low %v4324, %v4340
    %v4390 = vcombine.high %v4324, %v4340
    %v4392 = vunpack.c.l.s4 1934713408
    %v4393 = vunpack.c.0.s8 %v4392
    %v4394 = vlaneseq
    %v4395 = vshrl.u32 %v4394, 7
    %v4396 = vsub.s32 %v4393, %v4395
    %v4397 = vrot.slane %v4389, %v4396
    %v4399 = vunpack.c.l.s4 1934713408
    %v4400 = vunpack.c.0.s8 %v4399
    %v4401 = vlaneseq
    %v4402 = vshrl.u32 %v4401, 7
    %v4403 = vsub.s32 %v4400, %v4402
    %v4404 = vrot.slane %v4390, %v4403
    %v4405 = vcombine.low %v4349, %v4365
    %v4406 = vcombine.high %v4349, %v4365
    %v4408 = vunpack.c.l.s4 1934713408
    %v4409 = vunpack.c.0.s8 %v4408
    %v4410 = vlaneseq
    %v4411 = vshrl.u32 %v4410, 7
    %v4412 = vsub.s32 %v4409, %v4411
    %v4413 = vrot.slane %v4405, %v4412
    %v4415 = vunpack.c.l.s4 1934713408
    %v4416 = vunpack.c.0.s8 %v4415
    %v4417 = vlaneseq
    %v4418 = vshrl.u32 %v4417, 7
    %v4419 = vsub.s32 %v4416, %v4418
    %v4420 = vrot.slane %v4406, %v4419
    %v4421 = vcombine.low %v4356, %v4372
    %v4422 = vcombine.high %v4356, %v4372
    %v4424 = vunpack.c.l.s4 1934713408
    %v4425 = vunpack.c.0.s8 %v4424
    %v4426 = vlaneseq
    %v4427 = vshrl.u32 %v4426, 7
    %v4428 = vsub.s32 %v4425, %v4427
    %v4429 = vrot.slane %v4421, %v4428
    %v4431 = vunpack.c.l.s4 1934713408
    %v4432 = vunpack.c.0.s8 %v4431
    %v4433 = vlaneseq
    %v4434 = vshrl.u32 %v4433, 7
    %v4435 = vsub.s32 %v4432, %v4434
    %v4436 = vrot.slane %v4422, %v4435
    %v4437 = vcombine.low %v4381, %v4413
    %v4438 = vcombine.high %v4381, %v4413
    %v4439 = vcombine.low %v4388, %v4420
    %v4440 = vcombine.high %v4388, %v4420
    %v4441 = vcombine.low %v4397, %v4429
    %v4442 = vcombine.high %v4397, %v4429
    %v4443 = vcombine.low %v4404, %v4436
    %v4444 = vcombine.high %v4404, %v4436
    %v4445 = vcombine.low %v4135, %v4145
    %v4446 = vcombine.high %v4135, %v4145
    %v4448 = vunpack.c.l.s4 1983009808
    %v4449 = vunpack.c.0.s8 %v4448
    %v4450 = vlaneseq
    %v4451 = vshrl.u32 %v4450, 7
    %v4452 = vsub.s32 %v4449, %v4451
    %v4453 = vrot.slane %v4445, %v4452
    %v4455 = vunpack.c.l.s4 1983009808
    %v4456 = vunpack.c.0.s8 %v4455
    %v4457 = vlaneseq
    %v4458 = vshrl.u32 %v4457, 7
    %v4459 = vsub.s32 %v4456, %v4458
    %v4460 = vrot.slane %v4446, %v4459
    %v4461 = vcombine.low %v4140, %v4150
    %v4462 = vcombine.high %v4140, %v4150
    %v4464 = vunpack.c.l.s4 1983009808
    %v4465 = vunpack.c.0.s8 %v4464
    %v4466 = vlaneseq
    %v4467 = vshrl.u32 %v4466, 7
    %v4468 = vsub.s32 %v4465, %v4467
    %v4469 = vrot.slane %v4461, %v4468
    %v4471 = vunpack.c.l.s4 1983009808
    %v4472 = vunpack.c.0.s8 %v4471
    %v4473 = vlaneseq
    %v4474 = vshrl.u32 %v4473, 7
    %v4475 = vsub.s32 %v4472, %v4474
    %v4476 = vrot.slane %v4462, %v4475
    %v4477 = vcombine.low %v4155, %v4165
    %v4478 = vcombine.high %v4155, %v4165
    %v4480 = vunpack.c.l.s4 1983009808
    %v4481 = vunpack.c.0.s8 %v4480
    %v4482 = vlaneseq
    %v4483 = vshrl.u32 %v4482, 7
    %v4484 = vsub.s32 %v4481, %v4483
    %v4485 = vrot.slane %v4477, %v4484
    %v4487 = vunpack.c.l.s4 1983009808
    %v4488 = vunpack.c.0.s8 %v4487
    %v4489 = vlaneseq
    %v4490 = vshrl.u32 %v4489, 7
    %v4491 = vsub.s32 %v4488, %v4490
    %v4492 = vrot.slane %v4478, %v4491
    %v4493 = vcombine.low %v4160, %v4170
    %v4494 = vcombine.high %v4160, %v4170
    %v4496 = vunpack.c.l.s4 1983009808
    %v4497 = vunpack.c.0.s8 %v4496
    %v4498 = vlaneseq
    %v4499 = vshrl.u32 %v4498, 7
    %v4500 = vsub.s32 %v4497, %v4499
    %v4501 = vrot.slane %v4493, %v4500
    %v4503 = vunpack.c.l.s4 1983009808
    %v4504 = vunpack.c.0.s8 %v4503
    %v4505 = vlaneseq
    %v4506 = vshrl.u32 %v4505, 7
    %v4507 = vsub.s32 %v4504, %v4506
    %v4508 = vrot.slane %v4494, %v4507
    %v4509 = vcombine.low %v4453, %v4469
    %v4510 = vcombine.high %v4453, %v4469
    %v4512 = vunpack.c.l.s4 1934713408
    %v4513 = vunpack.c.0.s8 %v4512
    %v4514 = vlaneseq
    %v4515 = vshrl.u32 %v4514, 7
    %v4516 = vsub.s32 %v4513, %v4515
    %v4517 = vrot.slane %v4509, %v4516
    %v4519 = vunpack.c.l.s4 1934713408
    %v4520 = vunpack.c.0.s8 %v4519
    %v4521 = vlaneseq
    %v4522 = vshrl.u32 %v4521, 7
    %v4523 = vsub.s32 %v4520, %v4522
    %v4524 = vrot.slane %v4510, %v4523
    %v4525 = vcombine.low %v4460, %v4476
    %v4526 = vcombine.high %v4460, %v4476
    %v4528 = vunpack.c.l.s4 1934713408
    %v4529 = vunpack.c.0.s8 %v4528
    %v4530 = vlaneseq
    %v4531 = vshrl.u32 %v4530, 7
    %v4532 = vsub.s32 %v4529, %v4531
    %v4533 = vrot.slane %v4525, %v4532
    %v4535 = vunpack.c.l.s4 1934713408
    %v4536 = vunpack.c.0.s8 %v4535
    %v4537 = vlaneseq
    %v4538 = vshrl.u32 %v4537, 7
    %v4539 = vsub.s32 %v4536, %v4538
    %v4540 = vrot.slane %v4526, %v4539
    %v4541 = vcombine.low %v4485, %v4501
    %v4542 = vcombine.high %v4485, %v4501
    %v4544 = vunpack.c.l.s4 1934713408
    %v4545 = vunpack.c.0.s8 %v4544
    %v4546 = vlaneseq
    %v4547 = vshrl.u32 %v4546, 7
    %v4548 = vsub.s32 %v4545, %v4547
    %v4549 = vrot.slane %v4541, %v4548
    %v4551 = vunpack.c.l.s4 1934713408
    %v4552 = vunpack.c.0.s8 %v4551
    %v4553 = vlaneseq
    %v4554 = vshrl.u32 %v4553, 7
    %v4555 = vsub.s32 %v4552, %v4554
    %v4556 = vrot.slane %v4542, %v4555
    %v4557 = vcombine.low %v4492, %v4508
    %v4558 = vcombine.high %v4492, %v4508
    %v4560 = vunpack.c.l.s4 1934713408
    %v4561 = vunpack.c.0.s8 %v4560
    %v4562 = vlaneseq
    %v4563 = vshrl.u32 %v4562, 7
    %v4564 = vsub.s32 %v4561, %v4563
    %v4565 = vrot.slane %v4557, %v4564
    %v4567 = vunpack.c.l.s4 1934713408
    %v4568 = vunpack.c.0.s8 %v4567
    %v4569 = vlaneseq
    %v4570 = vshrl.u32 %v4569, 7
    %v4571 = vsub.s32 %v4568, %v4570
    %v4572 = vrot.slane %v4558, %v4571
    %v4573 = vcombine.low %v4517, %v4549
    %v4574 = vcombine.high %v4517, %v4549
    %v4575 = vcombine.low %v4524, %v4556
    %v4576 = vcombine.high %v4524, %v4556
    %v4577 = vcombine.low %v4533, %v4565
    %v4578 = vcombine.high %v4533, %v4565
    %v4579 = vcombine.low %v4540, %v4572
    %v4580 = vcombine.high %v4540, %v4572
    %v4581 = vcombine.low %v4136, %v4146
    %v4582 = vcombine.high %v4136, %v4146
    %v4584 = vunpack.c.l.s4 1983009808
    %v4585 = vunpack.c.0.s8 %v4584
    %v4586 = vlaneseq
    %v4587 = vshrl.u32 %v4586, 7
    %v4588 = vsub.s32 %v4585, %v4587
    %v4589 = vrot.slane %v4581, %v4588
    %v4591 = vunpack.c.l.s4 1983009808
    %v4592 = vunpack.c.0.s8 %v4591
    %v4593 = vlaneseq
    %v4594 = vshrl.u32 %v4593, 7
    %v4595 = vsub.s32 %v4592, %v4594
    %v4596 = vrot.slane %v4582, %v4595
    %v4597 = vcombine.low %v4141, %v4151
    %v4598 = vcombine.high %v4141, %v4151
    %v4600 = vunpack.c.l.s4 1983009808
    %v4601 = vunpack.c.0.s8 %v4600
    %v4602 = vlaneseq
    %v4603 = vshrl.u32 %v4602, 7
    %v4604 = vsub.s32 %v4601, %v4603
    %v4605 = vrot.slane %v4597, %v4604
    %v4607 = vunpack.c.l.s4 1983009808
    %v4608 = vunpack.c.0.s8 %v4607
    %v4609 = vlaneseq
    %v4610 = vshrl.u32 %v4609, 7
    %v4611 = vsub.s32 %v4608, %v4610
    %v4612 = vrot.slane %v4598, %v4611
    %v4613 = vcombine.low %v4156, %v4166
    %v4614 = vcombine.high %v4156, %v4166
    %v4616 = vunpack.c.l.s4 1983009808
    %v4617 = vunpack.c.0.s8 %v4616
    %v4618 = vlaneseq
    %v4619 = vshrl.u32 %v4618, 7
    %v4620 = vsub.s32 %v4617, %v4619
    %v4621 = vrot.slane %v4613, %v4620
    %v4623 = vunpack.c.l.s4 1983009808
    %v4624 = vunpack.c.0.s8 %v4623
    %v4625 = vlaneseq
    %v4626 = vshrl.u32 %v4625, 7
    %v4627 = vsub.s32 %v4624, %v4626
    %v4628 = vrot.slane %v4614, %v4627
    %v4629 = vcombine.low %v4161, %v4171
    %v4630 = vcombine.high %v4161, %v4171
    %v4632 = vunpack.c.l.s4 1983009808
    %v4633 = vunpack.c.0.s8 %v4632
    %v4634 = vlaneseq
    %v4635 = vshrl.u32 %v4634, 7
    %v4636 = vsub.s32 %v4633, %v4635
    %v4637 = vrot.slane %v4629, %v4636
    %v4639 = vunpack.c.l.s4 1983009808
    %v4640 = vunpack.c.0.s8 %v4639
    %v4641 = vlaneseq
    %v4642 = vshrl.u32 %v4641, 7
    %v4643 = vsub.s32 %v4640, %v4642
    %v4644 = vrot.slane %v4630, %v4643
    %v4645 = vcombine.low %v4589, %v4605
    %v4646 = vcombine.high %v4589, %v4605
    %v4648 = vunpack.c.l.s4 1934713408
    %v4649 = vunpack.c.0.s8 %v4648
    %v4650 = vlaneseq
    %v4651 = vshrl.u32 %v4650, 7
    %v4652 = vsub.s32 %v4649, %v4651
    %v4653 = vrot.slane %v4645, %v4652
    %v4655 = vunpack.c.l.s4 1934713408
    %v4656 = vunpack.c.0.s8 %v4655
    %v4657 = vlaneseq
    %v4658 = vshrl.u32 %v4657, 7
    %v4659 = vsub.s32 %v4656, %v4658
    %v4660 = vrot.slane %v4646, %v4659
    %v4661 = vcombine.low %v4596, %v4612
    %v4662 = vcombine.high %v4596, %v4612
    %v4664 = vunpack.c.l.s4 1934713408
    %v4665 = vunpack.c.0.s8 %v4664
    %v4666 = vlaneseq
    %v4667 = vshrl.u32 %v4666, 7
    %v4668 = vsub.s32 %v4665, %v4667
    %v4669 = vrot.slane %v4661, %v4668
    %v4671 = vunpack.c.l.s4 1934713408
    %v4672 = vunpack.c.0.s8 %v4671
    %v4673 = vlaneseq
    %v4674 = vshrl.u32 %v4673, 7
    %v4675 = vsub.s32 %v4672, %v4674
    %v4676 = vrot.slane %v4662, %v4675
    %v4677 = vcombine.low %v4621, %v4637
    %v4678 = vcombine.high %v4621, %v4637
    %v4680 = vunpack.c.l.s4 1934713408
    %v4681 = vunpack.c.0.s8 %v4680
    %v4682 = vlaneseq
    %v4683 = vshrl.u32 %v4682, 7
    %v4684 = vsub.s32 %v4681, %v4683
    %v4685 = vrot.slane %v4677, %v4684
    %v4687 = vunpack.c.l.s4 1934713408
    %v4688 = vunpack.c.0.s8 %v4687
    %v4689 = vlaneseq
    %v4690 = vshrl.u32 %v4689, 7
    %v4691 = vsub.s32 %v4688, %v4690
    %v4692 = vrot.slane %v4678, %v4691
    %v4693 = vcombine.low %v4628, %v4644
    %v4694 = vcombine.high %v4628, %v4644
    %v4696 = vunpack.c.l.s4 1934713408
    %v4697 = vunpack.c.0.s8 %v4696
    %v4698 = vlaneseq
    %v4699 = vshrl.u32 %v4698, 7
    %v4700 = vsub.s32 %v4697, %v4699
    %v4701 = vrot.slane %v4693, %v4700
    %v4703 = vunpack.c.l.s4 1934713408
    %v4704 = vunpack.c.0.s8 %v4703
    %v4705 = vlaneseq
    %v4706 = vshrl.u32 %v4705, 7
    %v4707 = vsub.s32 %v4704, %v4706
    %v4708 = vrot.slane %v4694, %v4707
    %v4709 = vcombine.low %v4653, %v4685
    %v4710 = vcombine.high %v4653, %v4685
    %v4711 = vcombine.low %v4660, %v4692
    %v4712 = vcombine.high %v4660, %v4692
    %v4713 = vcombine.low %v4669, %v4701
    %v4714 = vcombine.high %v4669, %v4701
    %v4715 = vcombine.low %v4676, %v4708
    %v4716 = vcombine.high %v4676, %v4708
    %v4717 = vcombine.low %v4137, %v4147
    %v4719 = vunpack.c.l.s4 1983009808
    %v4720 = vunpack.c.0.s8 %v4719
    %v4721 = vlaneseq
    %v4722 = vshrl.u32 %v4721, 7
    %v4723 = vsub.s32 %v4720, %v4722
    %v4724 = vrot.slane %v4717, %v4723
    %v4725 = vcombine.low %v4142, %v4152
    %v4727 = vunpack.c.l.s4 1983009808
    %v4728 = vunpack.c.0.s8 %v4727
    %v4729 = vlaneseq
    %v4730 = vshrl.u32 %v4729, 7
    %v4731 = vsub.s32 %v4728, %v4730
    %v4732 = vrot.slane %v4725, %v4731
    %v4733 = vcombine.low %v4157, %v4167
    %v4735 = vunpack.c.l.s4 1983009808
    %v4736 = vunpack.c.0.s8 %v4735
    %v4737 = vlaneseq
    %v4738 = vshrl.u32 %v4737, 7
    %v4739 = vsub.s32 %v4736, %v4738
    %v4740 = vrot.slane %v4733, %v4739
    %v4741 = vcombine.low %v4162, %v4172
    %v4743 = vunpack.c.l.s4 1983009808
    %v4744 = vunpack.c.0.s8 %v4743
    %v4745 = vlaneseq
    %v4746 = vshrl.u32 %v4745, 7
    %v4747 = vsub.s32 %v4744, %v4746
    %v4748 = vrot.slane %v4741, %v4747
    %v4749 = vcombine.low %v4724, %v4732
    %v4750 = vcombine.high %v4724, %v4732
    %v4752 = vunpack.c.l.s4 1934713408
    %v4753 = vunpack.c.0.s8 %v4752
    %v4754 = vlaneseq
    %v4755 = vshrl.u32 %v4754, 7
    %v4756 = vsub.s32 %v4753, %v4755
    %v4757 = vrot.slane %v4749, %v4756
    %v4759 = vunpack.c.l.s4 1934713408
    %v4760 = vunpack.c.0.s8 %v4759
    %v4761 = vlaneseq
    %v4762 = vshrl.u32 %v4761, 7
    %v4763 = vsub.s32 %v4760, %v4762
    %v4764 = vrot.slane %v4750, %v4763
    %v4765 = vcombine.low %v4740, %v4748
    %v4766 = vcombine.high %v4740, %v4748
    %v4768 = vunpack.c.l.s4 1934713408
    %v4769 = vunpack.c.0.s8 %v4768
    %v4770 = vlaneseq
    %v4771 = vshrl.u32 %v4770, 7
    %v4772 = vsub.s32 %v4769, %v4771
    %v4773 = vrot.slane %v4765, %v4772
    %v4775 = vunpack.c.l.s4 1934713408
    %v4776 = vunpack.c.0.s8 %v4775
    %v4777 = vlaneseq
    %v4778 = vshrl.u32 %v4777, 7
    %v4779 = vsub.s32 %v4776, %v4778
    %v4780 = vrot.slane %v4766, %v4779
    %v4781 = vcombine.low %v4757, %v4773
    %v4782 = vcombine.high %v4757, %v4773
    %v4783 = vcombine.low %v4764, %v4780
    %v4784 = vcombine.high %v4764, %v4780
    %4786 = vrot.lane.b32.xlu0 %v4302, 7
    %v4787 = vpop.permute.xlu0 %4786
    %4790 = vrot.lane.b32.xlu0 %v4303, 14
    %v4791 = vpop.permute.xlu0 %4790
    %4794 = vrot.lane.b32.xlu0 %v4304, 21
    %v4795 = vpop.permute.xlu0 %4794
    %4798 = vrot.lane.b32.xlu0 %v4305, 28
    %v4799 = vpop.permute.xlu0 %4798
    %4802 = vrot.lane.b32.xlu0 %v4306, 35
    %v4803 = vpop.permute.xlu0 %4802
    %4806 = vrot.lane.b32.xlu0 %v4307, 42
    %v4807 = vpop.permute.xlu0 %4806
    %4810 = vrot.lane.b32.xlu0 %v4308, 49
    %v4811 = vpop.permute.xlu0 %4810
    %4814 = vrot.lane.b32.xlu0 %v4437, 56
    %v4815 = vpop.permute.xlu0 %4814
    %4818 = vrot.lane.b32.xlu0 %v4438, 63
    %v4819 = vpop.permute.xlu0 %4818
    %4822 = vrot.lane.b32.xlu0 %v4439, 70
    %v4823 = vpop.permute.xlu0 %4822
    %4826 = vrot.lane.b32.xlu0 %v4440, 77
    %v4827 = vpop.permute.xlu0 %4826
    %4830 = vrot.lane.b32.xlu0 %v4441, 84
    %v4831 = vpop.permute.xlu0 %4830
    %4834 = vrot.lane.b32.xlu0 %v4442, 91
    %v4835 = vpop.permute.xlu0 %4834
    %4838 = vrot.lane.b32.xlu0 %v4443, 98
    %v4839 = vpop.permute.xlu0 %4838
    %4842 = vrot.lane.b32.xlu0 %v4444, 105
    %v4843 = vpop.permute.xlu0 %4842
    %4846 = vrot.lane.b32.xlu0 %v4573, 112
    %v4847 = vpop.permute.xlu0 %4846
    %4850 = vrot.lane.b32.xlu0 %v4574, 119
    %v4851 = vpop.permute.xlu0 %4850
    %4854 = vrot.lane.b32.xlu0 %v4575, 126
    %v4855 = vpop.permute.xlu0 %4854
    %4858 = vrot.lane.b32.xlu0 %v4576, 5
    %v4859 = vpop.permute.xlu0 %4858
    %4862 = vrot.lane.b32.xlu0 %v4577, 12
    %v4863 = vpop.permute.xlu0 %4862
    %4866 = vrot.lane.b32.xlu0 %v4578, 19
    %v4867 = vpop.permute.xlu0 %4866
    %4870 = vrot.lane.b32.xlu0 %v4579, 26
    %v4871 = vpop.permute.xlu0 %4870
    %4874 = vrot.lane.b32.xlu0 %v4580, 33
    %v4875 = vpop.permute.xlu0 %4874
    %4878 = vrot.lane.b32.xlu0 %v4709, 40
    %v4879 = vpop.permute.xlu0 %4878
    %4882 = vrot.lane.b32.xlu0 %v4710, 47
    %v4883 = vpop.permute.xlu0 %4882
    %4886 = vrot.lane.b32.xlu0 %v4711, 54
    %v4887 = vpop.permute.xlu0 %4886
    %4890 = vrot.lane.b32.xlu0 %v4712, 61
    %v4891 = vpop.permute.xlu0 %4890
    %4894 = vrot.lane.b32.xlu0 %v4713, 68
    %v4895 = vpop.permute.xlu0 %4894
    %4898 = vrot.lane.b32.xlu0 %v4714, 75
    %v4899 = vpop.permute.xlu0 %4898
    %4902 = vrot.lane.b32.xlu0 %v4715, 82
    %v4903 = vpop.permute.xlu0 %4902
    %4906 = vrot.lane.b32.xlu0 %v4716, 89
    %v4907 = vpop.permute.xlu0 %4906
    %4910 = vrot.lane.b32.xlu0 %v4781, 96
    %v4911 = vpop.permute.xlu0 %4910
    %4914 = vrot.lane.b32.xlu0 %v4782, 103
    %v4915 = vpop.permute.xlu0 %4914
    %4918 = vrot.lane.b32.xlu0 %v4783, 110
    %v4919 = vpop.permute.xlu0 %4918
    %4922 = vrot.lane.b32.xlu0 %v4784, 117
    %v4923 = vpop.permute.xlu0 %4922
    %vm4925 = vcmask 56320
    %v4926 = vsel %vm4925, %v4301, %v4787
    %vm4927 = vcmask 113664
    %v4928 = vsel %vm4927, %v4926, %v4791
    %vm4929 = vcmask 171008
    %v4930 = vsel %vm4929, %v4928, %v4795
    %vm4931 = vcmask 228352
    %v4932 = vsel %vm4931, %v4930, %v4799
    %vm4933 = vcmask 285696
    %v4934 = vsel %vm4933, %v4932, %v4803
    %vm4935 = vcmask 343040
    %v4936 = vsel %vm4935, %v4934, %v4807
    %vm4937 = vcmask 400384
    %v4938 = vsel %vm4937, %v4936, %v4811
    %vm4939 = vcmask 457728
    %v4940 = vsel %vm4939, %v4938, %v4815
    %vm4941 = vcmask 515072
    %v4942 = vsel %vm4941, %v4940, %v4819
    %vm4943 = vcmask 572416
    %v4944 = vsel %vm4943, %v4942, %v4823
    %vm4945 = vcmask 629760
    %v4946 = vsel %vm4945, %v4944, %v4827
    %vm4947 = vcmask 687104
    %v4948 = vsel %vm4947, %v4946, %v4831
    %vm4949 = vcmask 744448
    %v4950 = vsel %vm4949, %v4948, %v4835
    %vm4951 = vcmask 801792
    %v4952 = vsel %vm4951, %v4950, %v4839
    %vm4953 = vcmask 859136
    %v4954 = vsel %vm4953, %v4952, %v4843
    %vm4955 = vcmask 916480
    %v4956 = vsel %vm4955, %v4954, %v4847
    %vm4957 = vcmask 973824
    %v4958 = vsel %vm4957, %v4956, %v4851
    %vm4959 = vcmask 1031168
    %v4960 = vsel %vm4959, %v4958, %v4855
    %vm4961 = vcmask 39936
    %v4962 = vsel %vm4961, %v4855, %v4859
    %vm4963 = vcmask 97280
    %v4964 = vsel %vm4963, %v4962, %v4863
    %vm4965 = vcmask 154624
    %v4966 = vsel %vm4965, %v4964, %v4867
    %vm4967 = vcmask 211968
    %v4968 = vsel %vm4967, %v4966, %v4871
    %vm4969 = vcmask 269312
    %v4970 = vsel %vm4969, %v4968, %v4875
    %vm4971 = vcmask 326656
    %v4972 = vsel %vm4971, %v4970, %v4879
    %vm4973 = vcmask 384000
    %v4974 = vsel %vm4973, %v4972, %v4883
    %vm4975 = vcmask 441344
    %v4976 = vsel %vm4975, %v4974, %v4887
    %vm4977 = vcmask 498688
    %v4978 = vsel %vm4977, %v4976, %v4891
    %vm4979 = vcmask 556032
    %v4980 = vsel %vm4979, %v4978, %v4895
    %vm4981 = vcmask 613376
    %v4982 = vsel %vm4981, %v4980, %v4899
    %vm4983 = vcmask 670720
    %v4984 = vsel %vm4983, %v4982, %v4903
    %vm4985 = vcmask 728064
    %v4986 = vsel %vm4985, %v4984, %v4907
    %vm4987 = vcmask 785408
    %v4988 = vsel %vm4987, %v4986, %v4911
    %vm4989 = vcmask 842752
    %v4990 = vsel %vm4989, %v4988, %v4915
    %vm4991 = vcmask 900096
    %v4992 = vsel %vm4991, %v4990, %v4919
    %vm4993 = vcmask 957440
    %v4994 = vsel %vm4993, %v4992, %v4923
    %v4995 = vpack.c.bf16 %v4960, %v4960
    %v4996 = vpack.c.bf16 %v4994, %v4994
    %v4997 = vld [vmem:[%s4] sm:$0xf]
    %v4998 = vld [vmem:[%s4 + $0x4] sm:$0xf]
    %v4999 = vld [vmem:[%s4 + $0x8] sm:$0xf]
    %v5000 = vld [vmem:[%s4 + $0xc] sm:$0xf]
    %v5001 = vld [vmem:[%s4 + $0x10] sm:$0xf]
    %v5002 = vld [vmem:[%s4 + $0x14] sm:$0xf]
    %v5003 = vld [vmem:[%s4 + $0x18] sm:$0xf]
    %v5004 = vld [vmem:[%s4 + $0x1c] sm:$0xf]
    %v5005 = vld [vmem:[%s4 + $0x20] sm:$0xf]
    %v5006 = vld [vmem:[%s4 + $0x24] sm:$0xf]
    %v5007 = vld [vmem:[%s4 + $0x28] sm:$0xf]
    %v5008 = vld [vmem:[%s4 + $0x2c] sm:$0xf]
    %v5009 = vld [vmem:[%s4 + $0x30] sm:$0xf]
    %v5010 = vld [vmem:[%s4 + $0x34] sm:$0xf]
    %v5011 = vld [vmem:[%s4 + $0x38] sm:$0xf]
    %v5012 = vld [vmem:[%s4 + $0x3c] sm:$0xf]
    %v5013 = vld [vmem:[%s4 + $0x40] sm:$0xf]
    %v5014 = vld [vmem:[%s4 + $0x44] sm:$0xf]
    %v5015 = vld [vmem:[%s4 + $0x48] sm:$0xf]
    %v5016 = vld [vmem:[%s4 + $0x4c] sm:$0xf]
    %v5017 = vld [vmem:[%s4 + $0x50] sm:$0xf]
    %v5018 = vld [vmem:[%s4 + $0x54] sm:$0xf]
    %v5019 = vld [vmem:[%s4 + $0x58] sm:$0xf]
    %v5020 = vld [vmem:[%s4 + $0x5c] sm:$0xf]
    %v5021 = vld [vmem:[%s4 + $0x60] sm:$0xf]
    %v5022 = vld [vmem:[%s4 + $0x64] sm:$0xf]
    %v5023 = vld [vmem:[%s4 + $0x68] sm:$0xf]
    %v5024 = vld [vmem:[%s4 + $0x6c] sm:$0xf]
    %v5025 = vld [vmem:[%s4 + $0x70] sm:$0xf]
    %v5026 = vld [vmem:[%s4 + $0x74] sm:$0xf]
    %v5027 = vld [vmem:[%s4 + $0x78] sm:$0xf]
    %v5028 = vld [vmem:[%s4 + $0x7c] sm:$0x3]
    %v5029 = vld [vmem:[%s5] sm:$0x1]
    %v5031 = vlaneseq
    %v5032 = vshrl.u32 %v5031, 7
    %v5033 = vsub.s32 0, %v5032
    %v5034 = vrot.slane %v5029, %v5033
    %v5068 = vunpack.c.l.b16 %v4997
    %v5069 = vunpack.c.l.b16 %v4998
    %v5070 = vunpack.c.l.b16 %v4999
    %v5071 = vunpack.c.l.b16 %v5000
    %v5072 = vunpack.c.l.b16 %v5001
    %v5073 = vunpack.c.l.b16 %v5002
    %v5074 = vunpack.c.l.b16 %v5003
    %v5075 = vunpack.c.l.b16 %v5004
    %v5076 = vunpack.c.l.b16 %v5005
    %v5077 = vunpack.c.l.b16 %v5006
    %v5078 = vunpack.c.l.b16 %v5007
    %v5079 = vunpack.c.l.b16 %v5008
    %v5080 = vunpack.c.l.b16 %v5009
    %v5081 = vunpack.c.l.b16 %v5010
    %v5082 = vunpack.c.l.b16 %v5011
    %v5083 = vunpack.c.l.b16 %v5012
    %v5084 = vunpack.c.l.b16 %v5013
    %v5085 = vunpack.c.l.b16 %v5014
    %v5086 = vunpack.c.l.b16 %v5015
    %v5087 = vunpack.c.l.b16 %v5016
    %v5088 = vunpack.c.l.b16 %v5017
    %v5089 = vunpack.c.l.b16 %v5018
    %v5090 = vunpack.c.l.b16 %v5019
    %v5091 = vunpack.c.l.b16 %v5020
    %v5092 = vunpack.c.l.b16 %v5021
    %v5093 = vunpack.c.l.b16 %v5022
    %v5094 = vunpack.c.l.b16 %v5023
    %v5095 = vunpack.c.l.b16 %v5024
    %v5096 = vunpack.c.l.b16 %v5025
    %v5097 = vunpack.c.l.b16 %v5026
    %v5098 = vunpack.c.l.b16 %v5027
    %v5099 = vunpack.c.l.b16 %v5028
    %v5100 = vpack.c.b16 %v5069, %v5068
    %v5101 = vpack.c.b16 %v5071, %v5070
    %v5102 = vpack.c.b16 %v5073, %v5072
    %v5103 = vpack.c.b16 %v5075, %v5074
    %v5104 = vpack.c.b16 %v5077, %v5076
    %v5105 = vpack.c.b16 %v5079, %v5078
    %v5106 = vpack.c.b16 %v5081, %v5080
    %v5107 = vpack.c.b16 %v5083, %v5082
    %v5108 = vpack.c.b16 %v5085, %v5084
    %v5109 = vpack.c.b16 %v5087, %v5086
    %v5110 = vpack.c.b16 %v5089, %v5088
    %v5111 = vpack.c.b16 %v5091, %v5090
    %v5112 = vpack.c.b16 %v5093, %v5092
    %v5113 = vpack.c.b16 %v5095, %v5094
    %v5114 = vpack.c.b16 %v5097, %v5096
    %v5115 = vpack.c.b16 %v5099, %v5098
    %vm5131 = vcmask 1014784
    %v5133 = vsel %vm5131, %v4996, 0
    %vm5135 = vcmask 1045504
    %v5137 = vsel %vm5135, %v5115, 0
    %5139 = vmatprep.subr.bf16.mxu0 0
    %5140 = vmatpush1.bf16.msra.mxu0 %v5107
    %5141 = vmatprep.subr.bf16.mxu0 0
    %5142 = vmatpush1.bf16.msra.mxu0 %v5106
    %5143 = vmatprep.subr.bf16.mxu0 0
    %5144 = vmatpush1.bf16.msra.mxu0 %v5105
    %5145 = vmatprep.subr.bf16.mxu0 0
    %5146 = vmatpush1.bf16.msra.mxu0 %v5104
    %5147 = vmatprep.subr.bf16.mxu0 0
    %5148 = vmatpush1.bf16.msra.mxu0 %v5103
    %5149 = vmatprep.subr.bf16.mxu0 0
    %5150 = vmatpush1.bf16.msra.mxu0 %v5102
    %5151 = vmatprep.subr.bf16.mxu0 0
    %5152 = vmatpush1.bf16.msra.mxu0 %v5101
    %5153 = vmatprep.subr.bf16.mxu0 0
    %5154 = vmatpush1.bf16.msra.mxu0 %v5100
    %5155 = vmatprep.subr.bf16.mxu0 0
    %5156 = vmatpush2.bf16.msra.mxu0 %v5137
    %5157 = vmatprep.subr.bf16.mxu0 0
    %5158 = vmatpush2.bf16.msra.mxu0 %v5114
    %5159 = vmatprep.subr.bf16.mxu0 0
    %5160 = vmatpush2.bf16.msra.mxu0 %v5113
    %5161 = vmatprep.subr.bf16.mxu0 0
    %5162 = vmatpush2.bf16.msra.mxu0 %v5112
    %5163 = vmatprep.subr.bf16.mxu0 0
    %5164 = vmatpush2.bf16.msra.mxu0 %v5111
    %5165 = vmatprep.subr.bf16.mxu0 0
    %5166 = vmatpush2.bf16.msra.mxu0 %v5110
    %5167 = vmatprep.subr.bf16.mxu0 0
    %5168 = vmatpush2.bf16.msra.mxu0 %v5109
    %5169 = vmatprep.subr.bf16.mxu0 0
    %5170 = vmatpush2.bf16.msra.mxu0 %v5108
    %5171 = vmatprep.mubr.bf16.mxu0 %v5133
    %5172 = vmatmul.mubr.bf16.gmra.mxu0 %v4995
    %v5173 = vpop.f32.mrf.mxu0
    %v5174 = vadd.f32 %v5034, %v5173
    %v5175 = vpop.f32.mrf.mxu0
    %v5176 = vpop.f32.mrf.mxu0
    %v5177 = vpop.f32.mrf.mxu0
    %5178 = vdwg.mxu0
    %v5179 = vmax.f32 %v5174, 0.0
    %v5180 = vpack.c.bf16 %v5179, %v5179
    %v5181 = vld [vmem:[%s6] sm:$0xff]
    %v5182 = vld [vmem:[%s6 + $0x8] sm:$0xff]
    %v5183 = vld [vmem:[%s6 + $0x10] sm:$0xff]
    %v5184 = vld [vmem:[%s6 + $0x18] sm:$0xff]
    %v5185 = vld [vmem:[%s6 + $0x20] sm:$0xff]
    %v5186 = vld [vmem:[%s6 + $0x28] sm:$0xff]
    %v5187 = vld [vmem:[%s6 + $0x30] sm:$0xff]
    %v5188 = vld [vmem:[%s6 + $0x38] sm:$0xff]
    %v5189 = vld [vmem:[%s6 + $0x40] sm:$0xff]
    %v5190 = vld [vmem:[%s6 + $0x48] sm:$0xff]
    %v5191 = vld [vmem:[%s6 + $0x50] sm:$0xff]
    %v5192 = vld [vmem:[%s6 + $0x58] sm:$0xff]
    %v5193 = vld [vmem:[%s6 + $0x60] sm:$0xff]
    %v5194 = vld [vmem:[%s6 + $0x68] sm:$0xff]
    %v5195 = vld [vmem:[%s6 + $0x70] sm:$0xff]
    %v5196 = vld [vmem:[%s6 + $0x78] sm:$0xff]
    %v5197 = vld [vmem:[%s7] sm:$0x3]
    %v5199 = vlaneseq
    %v5200 = vshrl.u32 %v5199, 7
    %v5201 = vsub.s32 0, %v5200
    %v5202 = vrot.slane %v5197, %v5201
    %v5203 = vlaneseq
    %v5204 = vshrl.u32 %v5203, 7
    %v5205 = vsub.s32 1, %v5204
    %v5206 = vrot.slane %v5197, %v5205
    %v5225 = vunpack.c.l.b16 %v5181
    %v5226 = vunpack.c.h.b16 %v5181
    %v5227 = vunpack.c.l.b16 %v5182
    %v5228 = vunpack.c.h.b16 %v5182
    %v5229 = vunpack.c.l.b16 %v5183
    %v5230 = vunpack.c.h.b16 %v5183
    %v5231 = vunpack.c.l.b16 %v5184
    %v5232 = vunpack.c.h.b16 %v5184
    %v5233 = vunpack.c.l.b16 %v5185
    %v5234 = vunpack.c.h.b16 %v5185
    %v5235 = vunpack.c.l.b16 %v5186
    %v5236 = vunpack.c.h.b16 %v5186
    %v5237 = vunpack.c.l.b16 %v5187
    %v5238 = vunpack.c.h.b16 %v5187
    %v5239 = vunpack.c.l.b16 %v5188
    %v5240 = vunpack.c.h.b16 %v5188
    %v5241 = vunpack.c.l.b16 %v5189
    %v5242 = vunpack.c.h.b16 %v5189
    %v5243 = vunpack.c.l.b16 %v5190
    %v5244 = vunpack.c.h.b16 %v5190
    %v5245 = vunpack.c.l.b16 %v5191
    %v5246 = vunpack.c.h.b16 %v5191
    %v5247 = vunpack.c.l.b16 %v5192
    %v5248 = vunpack.c.h.b16 %v5192
    %v5249 = vunpack.c.l.b16 %v5193
    %v5250 = vunpack.c.h.b16 %v5193
    %v5251 = vunpack.c.l.b16 %v5194
    %v5252 = vunpack.c.h.b16 %v5194
    %v5253 = vunpack.c.l.b16 %v5195
    %v5254 = vunpack.c.h.b16 %v5195
    %v5255 = vunpack.c.l.b16 %v5196
    %v5256 = vunpack.c.h.b16 %v5196
    %v5257 = vpack.c.b16 %v5227, %v5225
    %v5258 = vpack.c.b16 %v5228, %v5226
    %v5259 = vpack.c.b16 %v5231, %v5229
    %v5260 = vpack.c.b16 %v5232, %v5230
    %v5261 = vpack.c.b16 %v5235, %v5233
    %v5262 = vpack.c.b16 %v5236, %v5234
    %v5263 = vpack.c.b16 %v5239, %v5237
    %v5264 = vpack.c.b16 %v5240, %v5238
    %v5265 = vpack.c.b16 %v5243, %v5241
    %v5266 = vpack.c.b16 %v5244, %v5242
    %v5267 = vpack.c.b16 %v5247, %v5245
    %v5268 = vpack.c.b16 %v5248, %v5246
    %v5269 = vpack.c.b16 %v5251, %v5249
    %v5270 = vpack.c.b16 %v5252, %v5250
    %v5271 = vpack.c.b16 %v5255, %v5253
    %v5272 = vpack.c.b16 %v5256, %v5254
    %5289 = vmatprep.subr.bf16.mxu0 %v5272
    %5290 = vmatpush1.bf16.msra.mxu0 %v5271
    %5291 = vmatprep.subr.bf16.mxu0 %v5270
    %5292 = vmatpush1.bf16.msra.mxu0 %v5269
    %5293 = vmatprep.subr.bf16.mxu0 %v5268
    %5294 = vmatpush1.bf16.msra.mxu0 %v5267
    %5295 = vmatprep.subr.bf16.mxu0 %v5266
    %5296 = vmatpush1.bf16.msra.mxu0 %v5265
    %5297 = vmatprep.subr.bf16.mxu0 %v5264
    %5298 = vmatpush1.bf16.msra.mxu0 %v5263
    %5299 = vmatprep.subr.bf16.mxu0 %v5262
    %5300 = vmatpush1.bf16.msra.mxu0 %v5261
    %5301 = vmatprep.subr.bf16.mxu0 %v5260
    %5302 = vmatpush1.bf16.msra.mxu0 %v5259
    %5303 = vmatprep.subr.bf16.mxu0 %v5258
    %5304 = vmatpush1.bf16.msra.mxu0 %v5257
    %5305 = vmatprep.subr.bf16.mxu0 0
    %5306 = vmatpush2.bf16.msra.mxu0 0
    %5307 = vmatprep.subr.bf16.mxu0 0
    %5308 = vmatpush2.bf16.msra.mxu0 0
    %5309 = vmatprep.subr.bf16.mxu0 0
    %5310 = vmatpush2.bf16.msra.mxu0 0
    %5311 = vmatprep.subr.bf16.mxu0 0
    %5312 = vmatpush2.bf16.msra.mxu0 0
    %5313 = vmatprep.subr.bf16.mxu0 0
    %5314 = vmatpush2.bf16.msra.mxu0 0
    %5315 = vmatprep.subr.bf16.mxu0 0
    %5316 = vmatpush2.bf16.msra.mxu0 0
    %5317 = vmatprep.subr.bf16.mxu0 0
    %5318 = vmatpush2.bf16.msra.mxu0 0
    %5319 = vmatprep.subr.bf16.mxu0 0
    %5320 = vmatpush2.bf16.msra.mxu0 0
    %5321 = vmatprep.mubr.bf16.mxu0 0
    %5322 = vmatmul.mubr.bf16.gmra.mxu0 %v5180
    %v5323 = vpop.f32.mrf.mxu0
    %v5324 = vadd.f32 %v5202, %v5323
    %v5325 = vpop.f32.mrf.mxu0
    %v5326 = vadd.f32 %v5206, %v5325
    %v5327 = vpop.f32.mrf.mxu0
    %v5328 = vpop.f32.mrf.mxu0
    %5329 = vdwg.mxu0
    %v5330 = vmax.f32 %v5324, 0.0
    %v5331 = vmax.f32 %v5326, 0.0
    %5333 = vrot.lane.b32.xlu0 %v5330, 121
    %v5334 = vpop.permute.xlu0 %5333
    %5336 = vrot.lane.b32.xlu0 %v5330, 114
    %v5337 = vpop.permute.xlu0 %5336
    %5339 = vrot.lane.b32.xlu0 %v5330, 107
    %v5340 = vpop.permute.xlu0 %5339
    %5342 = vrot.lane.b32.xlu0 %v5330, 100
    %v5343 = vpop.permute.xlu0 %5342
    %5345 = vrot.lane.b32.xlu0 %v5330, 93
    %v5346 = vpop.permute.xlu0 %5345
    %5348 = vrot.lane.b32.xlu0 %v5330, 86
    %v5349 = vpop.permute.xlu0 %5348
    %5351 = vrot.lane.b32.xlu0 %v5330, 79
    %v5352 = vpop.permute.xlu0 %5351
    %5354 = vrot.lane.b32.xlu0 %v5330, 72
    %v5355 = vpop.permute.xlu0 %5354
    %5357 = vrot.lane.b32.xlu0 %v5330, 65
    %v5358 = vpop.permute.xlu0 %5357
    %5360 = vrot.lane.b32.xlu0 %v5330, 58
    %v5361 = vpop.permute.xlu0 %5360
    %5363 = vrot.lane.b32.xlu0 %v5330, 51
    %v5364 = vpop.permute.xlu0 %5363
    %5366 = vrot.lane.b32.xlu0 %v5330, 44
    %v5367 = vpop.permute.xlu0 %5366
    %5369 = vrot.lane.b32.xlu0 %v5330, 37
    %v5370 = vpop.permute.xlu0 %5369
    %5372 = vrot.lane.b32.xlu0 %v5330, 30
    %v5373 = vpop.permute.xlu0 %5372
    %5375 = vrot.lane.b32.xlu0 %v5330, 23
    %v5376 = vpop.permute.xlu0 %5375
    %5378 = vrot.lane.b32.xlu0 %v5330, 16
    %v5379 = vpop.permute.xlu0 %5378
    %5381 = vrot.lane.b32.xlu0 %v5330, 9
    %v5382 = vpop.permute.xlu0 %5381
    %5385 = vrot.lane.b32.xlu0 %v5330, 2
    %v5386 = vpop.permute.xlu0 %5385
    %5387 = vrot.lane.b32.xlu0 %v5331, 2
    %v5388 = vpop.permute.xlu0 %5387
    %vm5389 = vcmask 15360
    %v5390 = vsel %vm5389, %v5386, %v5388
    %5392 = vrot.lane.b32.xlu0 %v5331, 123
    %v5393 = vpop.permute.xlu0 %5392
    %5395 = vrot.lane.b32.xlu0 %v5331, 116
    %v5396 = vpop.permute.xlu0 %5395
    %5398 = vrot.lane.b32.xlu0 %v5331, 109
    %v5399 = vpop.permute.xlu0 %5398
    %5401 = vrot.lane.b32.xlu0 %v5331, 102
    %v5402 = vpop.permute.xlu0 %5401
    %5404 = vrot.lane.b32.xlu0 %v5331, 95
    %v5405 = vpop.permute.xlu0 %5404
    %5407 = vrot.lane.b32.xlu0 %v5331, 88
    %v5408 = vpop.permute.xlu0 %5407
    %5410 = vrot.lane.b32.xlu0 %v5331, 81
    %v5411 = vpop.permute.xlu0 %5410
    %5413 = vrot.lane.b32.xlu0 %v5331, 74
    %v5414 = vpop.permute.xlu0 %5413
    %5416 = vrot.lane.b32.xlu0 %v5331, 67
    %v5417 = vpop.permute.xlu0 %5416
    %5419 = vrot.lane.b32.xlu0 %v5331, 60
    %v5420 = vpop.permute.xlu0 %5419
    %5422 = vrot.lane.b32.xlu0 %v5331, 53
    %v5423 = vpop.permute.xlu0 %5422
    %5425 = vrot.lane.b32.xlu0 %v5331, 46
    %v5426 = vpop.permute.xlu0 %5425
    %5428 = vrot.lane.b32.xlu0 %v5331, 39
    %v5429 = vpop.permute.xlu0 %5428
    %5431 = vrot.lane.b32.xlu0 %v5331, 32
    %v5432 = vpop.permute.xlu0 %5431
    %5434 = vrot.lane.b32.xlu0 %v5331, 25
    %v5435 = vpop.permute.xlu0 %5434
    %5437 = vrot.lane.b32.xlu0 %v5331, 18
    %v5438 = vpop.permute.xlu0 %5437
    %5440 = vrot.lane.b32.xlu0 %v5331, 11
    %v5441 = vpop.permute.xlu0 %5440
    %v5443 = vcombine.low %v5330, %v5337
    %v5444 = vcombine.high %v5330, %v5337
    %v5446 = vunpack.c.l.s4 1983009808
    %v5447 = vunpack.c.0.s8 %v5446
    %v5448 = vlaneseq
    %v5449 = vshrl.u32 %v5448, 7
    %v5450 = vsub.s32 %v5447, %v5449
    %v5451 = vrot.slane %v5443, %v5450
    %v5453 = vunpack.c.l.s4 1983009808
    %v5454 = vunpack.c.0.s8 %v5453
    %v5455 = vlaneseq
    %v5456 = vshrl.u32 %v5455, 7
    %v5457 = vsub.s32 %v5454, %v5456
    %v5458 = vrot.slane %v5444, %v5457
    %v5459 = vcombine.low %v5334, %v5340
    %v5460 = vcombine.high %v5334, %v5340
    %v5462 = vunpack.c.l.s4 1983009808
    %v5463 = vunpack.c.0.s8 %v5462
    %v5464 = vlaneseq
    %v5465 = vshrl.u32 %v5464, 7
    %v5466 = vsub.s32 %v5463, %v5465
    %v5467 = vrot.slane %v5459, %v5466
    %v5469 = vunpack.c.l.s4 1983009808
    %v5470 = vunpack.c.0.s8 %v5469
    %v5471 = vlaneseq
    %v5472 = vshrl.u32 %v5471, 7
    %v5473 = vsub.s32 %v5470, %v5472
    %v5474 = vrot.slane %v5460, %v5473
    %v5475 = vcombine.low %v5343, %v5349
    %v5476 = vcombine.high %v5343, %v5349
    %v5478 = vunpack.c.l.s4 1983009808
    %v5479 = vunpack.c.0.s8 %v5478
    %v5480 = vlaneseq
    %v5481 = vshrl.u32 %v5480, 7
    %v5482 = vsub.s32 %v5479, %v5481
    %v5483 = vrot.slane %v5475, %v5482
    %v5485 = vunpack.c.l.s4 1983009808
    %v5486 = vunpack.c.0.s8 %v5485
    %v5487 = vlaneseq
    %v5488 = vshrl.u32 %v5487, 7
    %v5489 = vsub.s32 %v5486, %v5488
    %v5490 = vrot.slane %v5476, %v5489
    %v5491 = vcombine.low %v5346, %v5352
    %v5492 = vcombine.high %v5346, %v5352
    %v5494 = vunpack.c.l.s4 1983009808
    %v5495 = vunpack.c.0.s8 %v5494
    %v5496 = vlaneseq
    %v5497 = vshrl.u32 %v5496, 7
    %v5498 = vsub.s32 %v5495, %v5497
    %v5499 = vrot.slane %v5491, %v5498
    %v5501 = vunpack.c.l.s4 1983009808
    %v5502 = vunpack.c.0.s8 %v5501
    %v5503 = vlaneseq
    %v5504 = vshrl.u32 %v5503, 7
    %v5505 = vsub.s32 %v5502, %v5504
    %v5506 = vrot.slane %v5492, %v5505
    %v5507 = vcombine.low %v5451, %v5467
    %v5508 = vcombine.high %v5451, %v5467
    %v5510 = vunpack.c.l.s4 1934713408
    %v5511 = vunpack.c.0.s8 %v5510
    %v5512 = vlaneseq
    %v5513 = vshrl.u32 %v5512, 7
    %v5514 = vsub.s32 %v5511, %v5513
    %v5515 = vrot.slane %v5507, %v5514
    %v5517 = vunpack.c.l.s4 1934713408
    %v5518 = vunpack.c.0.s8 %v5517
    %v5519 = vlaneseq
    %v5520 = vshrl.u32 %v5519, 7
    %v5521 = vsub.s32 %v5518, %v5520
    %v5522 = vrot.slane %v5508, %v5521
    %v5523 = vcombine.low %v5458, %v5474
    %v5524 = vcombine.high %v5458, %v5474
    %v5526 = vunpack.c.l.s4 1934713408
    %v5527 = vunpack.c.0.s8 %v5526
    %v5528 = vlaneseq
    %v5529 = vshrl.u32 %v5528, 7
    %v5530 = vsub.s32 %v5527, %v5529
    %v5531 = vrot.slane %v5523, %v5530
    %v5533 = vunpack.c.l.s4 1934713408
    %v5534 = vunpack.c.0.s8 %v5533
    %v5535 = vlaneseq
    %v5536 = vshrl.u32 %v5535, 7
    %v5537 = vsub.s32 %v5534, %v5536
    %v5538 = vrot.slane %v5524, %v5537
    %v5539 = vcombine.low %v5483, %v5499
    %v5540 = vcombine.high %v5483, %v5499
    %v5542 = vunpack.c.l.s4 1934713408
    %v5543 = vunpack.c.0.s8 %v5542
    %v5544 = vlaneseq
    %v5545 = vshrl.u32 %v5544, 7
    %v5546 = vsub.s32 %v5543, %v5545
    %v5547 = vrot.slane %v5539, %v5546
    %v5549 = vunpack.c.l.s4 1934713408
    %v5550 = vunpack.c.0.s8 %v5549
    %v5551 = vlaneseq
    %v5552 = vshrl.u32 %v5551, 7
    %v5553 = vsub.s32 %v5550, %v5552
    %v5554 = vrot.slane %v5540, %v5553
    %v5555 = vcombine.low %v5490, %v5506
    %v5556 = vcombine.high %v5490, %v5506
    %v5558 = vunpack.c.l.s4 1934713408
    %v5559 = vunpack.c.0.s8 %v5558
    %v5560 = vlaneseq
    %v5561 = vshrl.u32 %v5560, 7
    %v5562 = vsub.s32 %v5559, %v5561
    %v5563 = vrot.slane %v5555, %v5562
    %v5565 = vunpack.c.l.s4 1934713408
    %v5566 = vunpack.c.0.s8 %v5565
    %v5567 = vlaneseq
    %v5568 = vshrl.u32 %v5567, 7
    %v5569 = vsub.s32 %v5566, %v5568
    %v5570 = vrot.slane %v5556, %v5569
    %v5571 = vcombine.low %v5515, %v5547
    %v5572 = vcombine.high %v5515, %v5547
    %v5573 = vcombine.low %v5522, %v5554
    %v5574 = vcombine.high %v5522, %v5554
    %v5575 = vcombine.low %v5531, %v5563
    %v5576 = vcombine.high %v5531, %v5563
    %v5577 = vcombine.low %v5538, %v5570
    %v5578 = vcombine.high %v5538, %v5570
    %v5579 = vcombine.low %v5355, %v5361
    %v5580 = vcombine.high %v5355, %v5361
    %v5582 = vunpack.c.l.s4 1983009808
    %v5583 = vunpack.c.0.s8 %v5582
    %v5584 = vlaneseq
    %v5585 = vshrl.u32 %v5584, 7
    %v5586 = vsub.s32 %v5583, %v5585
    %v5587 = vrot.slane %v5579, %v5586
    %v5589 = vunpack.c.l.s4 1983009808
    %v5590 = vunpack.c.0.s8 %v5589
    %v5591 = vlaneseq
    %v5592 = vshrl.u32 %v5591, 7
    %v5593 = vsub.s32 %v5590, %v5592
    %v5594 = vrot.slane %v5580, %v5593
    %v5595 = vcombine.low %v5358, %v5364
    %v5596 = vcombine.high %v5358, %v5364
    %v5598 = vunpack.c.l.s4 1983009808
    %v5599 = vunpack.c.0.s8 %v5598
    %v5600 = vlaneseq
    %v5601 = vshrl.u32 %v5600, 7
    %v5602 = vsub.s32 %v5599, %v5601
    %v5603 = vrot.slane %v5595, %v5602
    %v5605 = vunpack.c.l.s4 1983009808
    %v5606 = vunpack.c.0.s8 %v5605
    %v5607 = vlaneseq
    %v5608 = vshrl.u32 %v5607, 7
    %v5609 = vsub.s32 %v5606, %v5608
    %v5610 = vrot.slane %v5596, %v5609
    %v5611 = vcombine.low %v5367, %v5373
    %v5612 = vcombine.high %v5367, %v5373
    %v5614 = vunpack.c.l.s4 1983009808
    %v5615 = vunpack.c.0.s8 %v5614
    %v5616 = vlaneseq
    %v5617 = vshrl.u32 %v5616, 7
    %v5618 = vsub.s32 %v5615, %v5617
    %v5619 = vrot.slane %v5611, %v5618
    %v5621 = vunpack.c.l.s4 1983009808
    %v5622 = vunpack.c.0.s8 %v5621
    %v5623 = vlaneseq
    %v5624 = vshrl.u32 %v5623, 7
    %v5625 = vsub.s32 %v5622, %v5624
    %v5626 = vrot.slane %v5612, %v5625
    %v5627 = vcombine.low %v5370, %v5376
    %v5628 = vcombine.high %v5370, %v5376
    %v5630 = vunpack.c.l.s4 1983009808
    %v5631 = vunpack.c.0.s8 %v5630
    %v5632 = vlaneseq
    %v5633 = vshrl.u32 %v5632, 7
    %v5634 = vsub.s32 %v5631, %v5633
    %v5635 = vrot.slane %v5627, %v5634
    %v5637 = vunpack.c.l.s4 1983009808
    %v5638 = vunpack.c.0.s8 %v5637
    %v5639 = vlaneseq
    %v5640 = vshrl.u32 %v5639, 7
    %v5641 = vsub.s32 %v5638, %v5640
    %v5642 = vrot.slane %v5628, %v5641
    %v5643 = vcombine.low %v5587, %v5603
    %v5644 = vcombine.high %v5587, %v5603
    %v5646 = vunpack.c.l.s4 1934713408
    %v5647 = vunpack.c.0.s8 %v5646
    %v5648 = vlaneseq
    %v5649 = vshrl.u32 %v5648, 7
    %v5650 = vsub.s32 %v5647, %v5649
    %v5651 = vrot.slane %v5643, %v5650
    %v5653 = vunpack.c.l.s4 1934713408
    %v5654 = vunpack.c.0.s8 %v5653
    %v5655 = vlaneseq
    %v5656 = vshrl.u32 %v5655, 7
    %v5657 = vsub.s32 %v5654, %v5656
    %v5658 = vrot.slane %v5644, %v5657
    %v5659 = vcombine.low %v5594, %v5610
    %v5660 = vcombine.high %v5594, %v5610
    %v5662 = vunpack.c.l.s4 1934713408
    %v5663 = vunpack.c.0.s8 %v5662
    %v5664 = vlaneseq
    %v5665 = vshrl.u32 %v5664, 7
    %v5666 = vsub.s32 %v5663, %v5665
    %v5667 = vrot.slane %v5659, %v5666
    %v5669 = vunpack.c.l.s4 1934713408
    %v5670 = vunpack.c.0.s8 %v5669
    %v5671 = vlaneseq
    %v5672 = vshrl.u32 %v5671, 7
    %v5673 = vsub.s32 %v5670, %v5672
    %v5674 = vrot.slane %v5660, %v5673
    %v5675 = vcombine.low %v5619, %v5635
    %v5676 = vcombine.high %v5619, %v5635
    %v5678 = vunpack.c.l.s4 1934713408
    %v5679 = vunpack.c.0.s8 %v5678
    %v5680 = vlaneseq
    %v5681 = vshrl.u32 %v5680, 7
    %v5682 = vsub.s32 %v5679, %v5681
    %v5683 = vrot.slane %v5675, %v5682
    %v5685 = vunpack.c.l.s4 1934713408
    %v5686 = vunpack.c.0.s8 %v5685
    %v5687 = vlaneseq
    %v5688 = vshrl.u32 %v5687, 7
    %v5689 = vsub.s32 %v5686, %v5688
    %v5690 = vrot.slane %v5676, %v5689
    %v5691 = vcombine.low %v5626, %v5642
    %v5692 = vcombine.high %v5626, %v5642
    %v5694 = vunpack.c.l.s4 1934713408
    %v5695 = vunpack.c.0.s8 %v5694
    %v5696 = vlaneseq
    %v5697 = vshrl.u32 %v5696, 7
    %v5698 = vsub.s32 %v5695, %v5697
    %v5699 = vrot.slane %v5691, %v5698
    %v5701 = vunpack.c.l.s4 1934713408
    %v5702 = vunpack.c.0.s8 %v5701
    %v5703 = vlaneseq
    %v5704 = vshrl.u32 %v5703, 7
    %v5705 = vsub.s32 %v5702, %v5704
    %v5706 = vrot.slane %v5692, %v5705
    %v5707 = vcombine.low %v5651, %v5683
    %v5708 = vcombine.high %v5651, %v5683
    %v5709 = vcombine.low %v5658, %v5690
    %v5710 = vcombine.high %v5658, %v5690
    %v5711 = vcombine.low %v5667, %v5699
    %v5712 = vcombine.high %v5667, %v5699
    %v5713 = vcombine.low %v5674, %v5706
    %v5714 = vcombine.high %v5674, %v5706
    %v5715 = vcombine.low %v5379, %v5390
    %v5716 = vcombine.high %v5379, %v5390
    %v5718 = vunpack.c.l.s4 1983009808
    %v5719 = vunpack.c.0.s8 %v5718
    %v5720 = vlaneseq
    %v5721 = vshrl.u32 %v5720, 7
    %v5722 = vsub.s32 %v5719, %v5721
    %v5723 = vrot.slane %v5715, %v5722
    %v5725 = vunpack.c.l.s4 1983009808
    %v5726 = vunpack.c.0.s8 %v5725
    %v5727 = vlaneseq
    %v5728 = vshrl.u32 %v5727, 7
    %v5729 = vsub.s32 %v5726, %v5728
    %v5730 = vrot.slane %v5716, %v5729
    %v5731 = vcombine.low %v5382, %v5393
    %v5732 = vcombine.high %v5382, %v5393
    %v5734 = vunpack.c.l.s4 1983009808
    %v5735 = vunpack.c.0.s8 %v5734
    %v5736 = vlaneseq
    %v5737 = vshrl.u32 %v5736, 7
    %v5738 = vsub.s32 %v5735, %v5737
    %v5739 = vrot.slane %v5731, %v5738
    %v5741 = vunpack.c.l.s4 1983009808
    %v5742 = vunpack.c.0.s8 %v5741
    %v5743 = vlaneseq
    %v5744 = vshrl.u32 %v5743, 7
    %v5745 = vsub.s32 %v5742, %v5744
    %v5746 = vrot.slane %v5732, %v5745
    %v5747 = vcombine.low %v5396, %v5402
    %v5748 = vcombine.high %v5396, %v5402
    %v5750 = vunpack.c.l.s4 1983009808
    %v5751 = vunpack.c.0.s8 %v5750
    %v5752 = vlaneseq
    %v5753 = vshrl.u32 %v5752, 7
    %v5754 = vsub.s32 %v5751, %v5753
    %v5755 = vrot.slane %v5747, %v5754
    %v5757 = vunpack.c.l.s4 1983009808
    %v5758 = vunpack.c.0.s8 %v5757
    %v5759 = vlaneseq
    %v5760 = vshrl.u32 %v5759, 7
    %v5761 = vsub.s32 %v5758, %v5760
    %v5762 = vrot.slane %v5748, %v5761
    %v5763 = vcombine.low %v5399, %v5405
    %v5764 = vcombine.high %v5399, %v5405
    %v5766 = vunpack.c.l.s4 1983009808
    %v5767 = vunpack.c.0.s8 %v5766
    %v5768 = vlaneseq
    %v5769 = vshrl.u32 %v5768, 7
    %v5770 = vsub.s32 %v5767, %v5769
    %v5771 = vrot.slane %v5763, %v5770
    %v5773 = vunpack.c.l.s4 1983009808
    %v5774 = vunpack.c.0.s8 %v5773
    %v5775 = vlaneseq
    %v5776 = vshrl.u32 %v5775, 7
    %v5777 = vsub.s32 %v5774, %v5776
    %v5778 = vrot.slane %v5764, %v5777
    %v5779 = vcombine.low %v5723, %v5739
    %v5780 = vcombine.high %v5723, %v5739
    %v5782 = vunpack.c.l.s4 1934713408
    %v5783 = vunpack.c.0.s8 %v5782
    %v5784 = vlaneseq
    %v5785 = vshrl.u32 %v5784, 7
    %v5786 = vsub.s32 %v5783, %v5785
    %v5787 = vrot.slane %v5779, %v5786
    %v5789 = vunpack.c.l.s4 1934713408
    %v5790 = vunpack.c.0.s8 %v5789
    %v5791 = vlaneseq
    %v5792 = vshrl.u32 %v5791, 7
    %v5793 = vsub.s32 %v5790, %v5792
    %v5794 = vrot.slane %v5780, %v5793
    %v5795 = vcombine.low %v5730, %v5746
    %v5796 = vcombine.high %v5730, %v5746
    %v5798 = vunpack.c.l.s4 1934713408
    %v5799 = vunpack.c.0.s8 %v5798
    %v5800 = vlaneseq
    %v5801 = vshrl.u32 %v5800, 7
    %v5802 = vsub.s32 %v5799, %v5801
    %v5803 = vrot.slane %v5795, %v5802
    %v5805 = vunpack.c.l.s4 1934713408
    %v5806 = vunpack.c.0.s8 %v5805
    %v5807 = vlaneseq
    %v5808 = vshrl.u32 %v5807, 7
    %v5809 = vsub.s32 %v5806, %v5808
    %v5810 = vrot.slane %v5796, %v5809
    %v5811 = vcombine.low %v5755, %v5771
    %v5812 = vcombine.high %v5755, %v5771
    %v5814 = vunpack.c.l.s4 1934713408
    %v5815 = vunpack.c.0.s8 %v5814
    %v5816 = vlaneseq
    %v5817 = vshrl.u32 %v5816, 7
    %v5818 = vsub.s32 %v5815, %v5817
    %v5819 = vrot.slane %v5811, %v5818
    %v5821 = vunpack.c.l.s4 1934713408
    %v5822 = vunpack.c.0.s8 %v5821
    %v5823 = vlaneseq
    %v5824 = vshrl.u32 %v5823, 7
    %v5825 = vsub.s32 %v5822, %v5824
    %v5826 = vrot.slane %v5812, %v5825
    %v5827 = vcombine.low %v5762, %v5778
    %v5828 = vcombine.high %v5762, %v5778
    %v5830 = vunpack.c.l.s4 1934713408
    %v5831 = vunpack.c.0.s8 %v5830
    %v5832 = vlaneseq
    %v5833 = vshrl.u32 %v5832, 7
    %v5834 = vsub.s32 %v5831, %v5833
    %v5835 = vrot.slane %v5827, %v5834
    %v5837 = vunpack.c.l.s4 1934713408
    %v5838 = vunpack.c.0.s8 %v5837
    %v5839 = vlaneseq
    %v5840 = vshrl.u32 %v5839, 7
    %v5841 = vsub.s32 %v5838, %v5840
    %v5842 = vrot.slane %v5828, %v5841
    %v5843 = vcombine.low %v5787, %v5819
    %v5844 = vcombine.high %v5787, %v5819
    %v5845 = vcombine.low %v5794, %v5826
    %v5846 = vcombine.high %v5794, %v5826
    %v5847 = vcombine.low %v5803, %v5835
    %v5848 = vcombine.high %v5803, %v5835
    %v5849 = vcombine.low %v5810, %v5842
    %v5850 = vcombine.high %v5810, %v5842
    %v5851 = vcombine.low %v5408, %v5414
    %v5852 = vcombine.high %v5408, %v5414
    %v5854 = vunpack.c.l.s4 1983009808
    %v5855 = vunpack.c.0.s8 %v5854
    %v5856 = vlaneseq
    %v5857 = vshrl.u32 %v5856, 7
    %v5858 = vsub.s32 %v5855, %v5857
    %v5859 = vrot.slane %v5851, %v5858
    %v5861 = vunpack.c.l.s4 1983009808
    %v5862 = vunpack.c.0.s8 %v5861
    %v5863 = vlaneseq
    %v5864 = vshrl.u32 %v5863, 7
    %v5865 = vsub.s32 %v5862, %v5864
    %v5866 = vrot.slane %v5852, %v5865
    %v5867 = vcombine.low %v5411, %v5417
    %v5868 = vcombine.high %v5411, %v5417
    %v5870 = vunpack.c.l.s4 1983009808
    %v5871 = vunpack.c.0.s8 %v5870
    %v5872 = vlaneseq
    %v5873 = vshrl.u32 %v5872, 7
    %v5874 = vsub.s32 %v5871, %v5873
    %v5875 = vrot.slane %v5867, %v5874
    %v5877 = vunpack.c.l.s4 1983009808
    %v5878 = vunpack.c.0.s8 %v5877
    %v5879 = vlaneseq
    %v5880 = vshrl.u32 %v5879, 7
    %v5881 = vsub.s32 %v5878, %v5880
    %v5882 = vrot.slane %v5868, %v5881
    %v5883 = vcombine.low %v5420, %v5426
    %v5884 = vcombine.high %v5420, %v5426
    %v5886 = vunpack.c.l.s4 1983009808
    %v5887 = vunpack.c.0.s8 %v5886
    %v5888 = vlaneseq
    %v5889 = vshrl.u32 %v5888, 7
    %v5890 = vsub.s32 %v5887, %v5889
    %v5891 = vrot.slane %v5883, %v5890
    %v5893 = vunpack.c.l.s4 1983009808
    %v5894 = vunpack.c.0.s8 %v5893
    %v5895 = vlaneseq
    %v5896 = vshrl.u32 %v5895, 7
    %v5897 = vsub.s32 %v5894, %v5896
    %v5898 = vrot.slane %v5884, %v5897
    %v5899 = vcombine.low %v5423, %v5429
    %v5900 = vcombine.high %v5423, %v5429
    %v5902 = vunpack.c.l.s4 1983009808
    %v5903 = vunpack.c.0.s8 %v5902
    %v5904 = vlaneseq
    %v5905 = vshrl.u32 %v5904, 7
    %v5906 = vsub.s32 %v5903, %v5905
    %v5907 = vrot.slane %v5899, %v5906
    %v5909 = vunpack.c.l.s4 1983009808
    %v5910 = vunpack.c.0.s8 %v5909
    %v5911 = vlaneseq
    %v5912 = vshrl.u32 %v5911, 7
    %v5913 = vsub.s32 %v5910, %v5912
    %v5914 = vrot.slane %v5900, %v5913
    %v5915 = vcombine.low %v5859, %v5875
    %v5916 = vcombine.high %v5859, %v5875
    %v5918 = vunpack.c.l.s4 1934713408
    %v5919 = vunpack.c.0.s8 %v5918
    %v5920 = vlaneseq
    %v5921 = vshrl.u32 %v5920, 7
    %v5922 = vsub.s32 %v5919, %v5921
    %v5923 = vrot.slane %v5915, %v5922
    %v5925 = vunpack.c.l.s4 1934713408
    %v5926 = vunpack.c.0.s8 %v5925
    %v5927 = vlaneseq
    %v5928 = vshrl.u32 %v5927, 7
    %v5929 = vsub.s32 %v5926, %v5928
    %v5930 = vrot.slane %v5916, %v5929
    %v5931 = vcombine.low %v5866, %v5882
    %v5932 = vcombine.high %v5866, %v5882
    %v5934 = vunpack.c.l.s4 1934713408
    %v5935 = vunpack.c.0.s8 %v5934
    %v5936 = vlaneseq
    %v5937 = vshrl.u32 %v5936, 7
    %v5938 = vsub.s32 %v5935, %v5937
    %v5939 = vrot.slane %v5931, %v5938
    %v5941 = vunpack.c.l.s4 1934713408
    %v5942 = vunpack.c.0.s8 %v5941
    %v5943 = vlaneseq
    %v5944 = vshrl.u32 %v5943, 7
    %v5945 = vsub.s32 %v5942, %v5944
    %v5946 = vrot.slane %v5932, %v5945
    %v5947 = vcombine.low %v5891, %v5907
    %v5948 = vcombine.high %v5891, %v5907
    %v5950 = vunpack.c.l.s4 1934713408
    %v5951 = vunpack.c.0.s8 %v5950
    %v5952 = vlaneseq
    %v5953 = vshrl.u32 %v5952, 7
    %v5954 = vsub.s32 %v5951, %v5953
    %v5955 = vrot.slane %v5947, %v5954
    %v5957 = vunpack.c.l.s4 1934713408
    %v5958 = vunpack.c.0.s8 %v5957
    %v5959 = vlaneseq
    %v5960 = vshrl.u32 %v5959, 7
    %v5961 = vsub.s32 %v5958, %v5960
    %v5962 = vrot.slane %v5948, %v5961
    %v5963 = vcombine.low %v5898, %v5914
    %v5964 = vcombine.high %v5898, %v5914
    %v5966 = vunpack.c.l.s4 1934713408
    %v5967 = vunpack.c.0.s8 %v5966
    %v5968 = vlaneseq
    %v5969 = vshrl.u32 %v5968, 7
    %v5970 = vsub.s32 %v5967, %v5969
    %v5971 = vrot.slane %v5963, %v5970
    %v5973 = vunpack.c.l.s4 1934713408
    %v5974 = vunpack.c.0.s8 %v5973
    %v5975 = vlaneseq
    %v5976 = vshrl.u32 %v5975, 7
    %v5977 = vsub.s32 %v5974, %v5976
    %v5978 = vrot.slane %v5964, %v5977
    %v5979 = vcombine.low %v5923, %v5955
    %v5980 = vcombine.high %v5923, %v5955
    %v5981 = vcombine.low %v5930, %v5962
    %v5982 = vcombine.high %v5930, %v5962
    %v5983 = vcombine.low %v5939, %v5971
    %v5984 = vcombine.high %v5939, %v5971
    %v5985 = vcombine.low %v5946, %v5978
    %v5986 = vcombine.high %v5946, %v5978
    %v5987 = vcombine.low %v5432, %v5438
    %v5988 = vcombine.high %v5432, %v5438
    %v5990 = vunpack.c.l.s4 1983009808
    %v5991 = vunpack.c.0.s8 %v5990
    %v5992 = vlaneseq
    %v5993 = vshrl.u32 %v5992, 7
    %v5994 = vsub.s32 %v5991, %v5993
    %v5995 = vrot.slane %v5987, %v5994
    %v5997 = vunpack.c.l.s4 1983009808
    %v5998 = vunpack.c.0.s8 %v5997
    %v5999 = vlaneseq
    %v6000 = vshrl.u32 %v5999, 7
    %v6001 = vsub.s32 %v5998, %v6000
    %v6002 = vrot.slane %v5988, %v6001
    %v6003 = vcombine.low %v5435, %v5441
    %v6004 = vcombine.high %v5435, %v5441
    %v6006 = vunpack.c.l.s4 1983009808
    %v6007 = vunpack.c.0.s8 %v6006
    %v6008 = vlaneseq
    %v6009 = vshrl.u32 %v6008, 7
    %v6010 = vsub.s32 %v6007, %v6009
    %v6011 = vrot.slane %v6003, %v6010
    %v6013 = vunpack.c.l.s4 1983009808
    %v6014 = vunpack.c.0.s8 %v6013
    %v6015 = vlaneseq
    %v6016 = vshrl.u32 %v6015, 7
    %v6017 = vsub.s32 %v6014, %v6016
    %v6018 = vrot.slane %v6004, %v6017
    %v6019 = vcombine.low %v5995, %v6011
    %v6020 = vcombine.high %v5995, %v6011
    %v6022 = vunpack.c.l.s4 1934713408
    %v6023 = vunpack.c.0.s8 %v6022
    %v6024 = vlaneseq
    %v6025 = vshrl.u32 %v6024, 7
    %v6026 = vsub.s32 %v6023, %v6025
    %v6027 = vrot.slane %v6019, %v6026
    %v6029 = vunpack.c.l.s4 1934713408
    %v6030 = vunpack.c.0.s8 %v6029
    %v6031 = vlaneseq
    %v6032 = vshrl.u32 %v6031, 7
    %v6033 = vsub.s32 %v6030, %v6032
    %v6034 = vrot.slane %v6020, %v6033
    %v6035 = vcombine.low %v6002, %v6018
    %v6036 = vcombine.high %v6002, %v6018
    %v6038 = vunpack.c.l.s4 1934713408
    %v6039 = vunpack.c.0.s8 %v6038
    %v6040 = vlaneseq
    %v6041 = vshrl.u32 %v6040, 7
    %v6042 = vsub.s32 %v6039, %v6041
    %v6043 = vrot.slane %v6035, %v6042
    %v6045 = vunpack.c.l.s4 1934713408
    %v6046 = vunpack.c.0.s8 %v6045
    %v6047 = vlaneseq
    %v6048 = vshrl.u32 %v6047, 7
    %v6049 = vsub.s32 %v6046, %v6048
    %v6050 = vrot.slane %v6036, %v6049
    %v6051 = vcombine.high %v6027, 0.0
    %v6052 = vcombine.high %v6034, 0.0
    %v6053 = vcombine.high %v6043, 0.0
    %v6054 = vcombine.high %v6050, 0.0
    %v6055 = vpack.c.bf16 %v5707, %v5571
    %v6056 = vpack.c.bf16 %v5979, %v5843
    %v6057 = vpack.c.bf16 %v6027, %v6027
    %v6058 = vpack.c.bf16 %v5708, %v5572
    %v6059 = vpack.c.bf16 %v5980, %v5844
    %v6060 = vpack.c.bf16 %v6051, %v6051
    %v6061 = vpack.c.bf16 %v5709, %v5573
    %v6062 = vpack.c.bf16 %v5981, %v5845
    %v6063 = vpack.c.bf16 %v6034, %v6034
    %v6064 = vpack.c.bf16 %v5710, %v5574
    %v6065 = vpack.c.bf16 %v5982, %v5846
    %v6066 = vpack.c.bf16 %v6052, %v6052
    %v6067 = vpack.c.bf16 %v5711, %v5575
    %v6068 = vpack.c.bf16 %v5983, %v5847
    %v6069 = vpack.c.bf16 %v6043, %v6043
    %v6070 = vpack.c.bf16 %v5712, %v5576
    %v6071 = vpack.c.bf16 %v5984, %v5848
    %v6072 = vpack.c.bf16 %v6053, %v6053
    %v6073 = vpack.c.bf16 %v5713, %v5577
    %v6074 = vpack.c.bf16 %v5985, %v5849
    %v6075 = vpack.c.bf16 %v6050, %v6050
    %v6076 = vpack.c.bf16 %v5714, %v5578
    %v6077 = vpack.c.bf16 %v5986, %v5850
    %v6078 = vpack.c.bf16 %v6054, %v6054
    %v6079 = vld [vmem:[%s10] sm:$0xff]
    %v6080 = vld [vmem:[%s10 + $0x8] sm:$0xff]
    %v6081 = vld [vmem:[%s10 + $0x10] sm:$0xff]
    %v6082 = vld [vmem:[%s10 + $0x18] sm:$0xff]
    %v6083 = vld [vmem:[%s10 + $0x20] sm:$0xff]
    %v6084 = vld [vmem:[%s10 + $0x28] sm:$0xff]
    %v6085 = vld [vmem:[%s10 + $0x30] sm:$0x3f]
    %v6086 = vld [vmem:[%s8] sm:$0xf]
    %v6087 = vld [vmem:[%s8 + $0x4] sm:$0xf]
    %v6088 = vld [vmem:[%s8 + $0x8] sm:$0xf]
    %v6089 = vld [vmem:[%s8 + $0xc] sm:$0xf]
    %v6090 = vld [vmem:[%s8 + $0x10] sm:$0xf]
    %v6091 = vld [vmem:[%s8 + $0x14] sm:$0xf]
    %v6092 = vld [vmem:[%s8 + $0x18] sm:$0x7]
    %v6100 = vunpack.c.l.b16 %v6086
    %v6101 = vunpack.c.l.b16 %v6087
    %v6102 = vunpack.c.l.b16 %v6088
    %v6103 = vunpack.c.l.b16 %v6089
    %v6104 = vunpack.c.l.b16 %v6090
    %v6105 = vunpack.c.l.b16 %v6091
    %v6106 = vunpack.c.l.b16 %v6092
    %v6107 = vpack.c.b16 %v6101, %v6100
    %v6108 = vpack.c.b16 %v6103, %v6102
    %v6109 = vpack.c.b16 %v6105, %v6104
    %v6110 = vpack.c.b16 %v6106, %v6106
    %vm6111 = vcmask 293888
    %v6113 = vsel %vm6111, %v6107, 0
    %v6116 = vsel %vm6111, %v6108, 0
    %v6119 = vsel %vm6111, %v6109, 0
    %v6122 = vsel %vm6111, %v6110, 0
    %vm6124 = vcmask 1041408
    %v6126 = vsel %vm6124, %v6057, 0
    %6128 = vmatprep.subr.bf16.mxu0 0
    %6129 = vmatpush1.bf16.msra.mxu0 0
    %6130 = vmatprep.subr.bf16.mxu0 0
    %6131 = vmatpush1.bf16.msra.mxu0 0
    %6132 = vmatprep.subr.bf16.mxu0 0
    %6133 = vmatpush1.bf16.msra.mxu0 0
    %6134 = vmatprep.subr.bf16.mxu0 0
    %6135 = vmatpush1.bf16.msra.mxu0 0
    %6136 = vmatprep.subr.bf16.mxu0 0
    %6137 = vmatpush1.bf16.msra.mxu0 0
    %6138 = vmatprep.subr.bf16.mxu0 0
    %6139 = vmatpush1.bf16.msra.mxu0 %v6126
    %6140 = vmatprep.subr.bf16.mxu0 0
    %6141 = vmatpush1.bf16.msra.mxu0 %v6056
    %6142 = vmatprep.subr.bf16.mxu0 0
    %6143 = vmatpush1.bf16.msra.mxu0 %v6055
    %6144 = vmatprep.subr.bf16.mxu0 0
    %6145 = vmatpush2.bf16.msra.mxu0 0
    %6146 = vmatprep.subr.bf16.mxu0 0
    %6147 = vmatpush2.bf16.msra.mxu0 0
    %6148 = vmatprep.subr.bf16.mxu0 0
    %6149 = vmatpush2.bf16.msra.mxu0 0
    %6150 = vmatprep.subr.bf16.mxu0 0
    %6151 = vmatpush2.bf16.msra.mxu0 0
    %6152 = vmatprep.subr.bf16.mxu0 0
    %6153 = vmatpush2.bf16.msra.mxu0 0
    %6154 = vmatprep.subr.bf16.mxu0 0
    %6155 = vmatpush2.bf16.msra.mxu0 0
    %6156 = vmatprep.subr.bf16.mxu0 0
    %6157 = vmatpush2.bf16.msra.mxu0 0
    %6158 = vmatprep.subr.bf16.mxu0 0
    %6159 = vmatpush2.bf16.msra.mxu0 0
    %6160 = vmatprep.mubr.bf16.mxu0 0
    %6161 = vmatmul.mubr.bf16.gmra.mxu0 %v6113
    %v6162 = vpop.f32.mrf.mxu0
    %v6163 = vadd.f32 0.0, %v6162
    %v6164 = vpop.f32.mrf.mxu0
    %v6165 = vpop.f32.mrf.mxu0
    %v6166 = vadd.f32 0.0, %v6165
    %v6167 = vpop.f32.mrf.mxu0
    %6168 = vmatprep.mubr.bf16.mxu0 0
    %6169 = vmatmul.mubr.bf16.gmra.mxu0 %v6116
    %v6170 = vpop.f32.mrf.mxu0
    %v6171 = vadd.f32 0.0, %v6170
    %v6172 = vpop.f32.mrf.mxu0
    %v6173 = vpop.f32.mrf.mxu0
    %v6174 = vadd.f32 0.0, %v6173
    %v6175 = vpop.f32.mrf.mxu0
    %6176 = vmatprep.mubr.bf16.mxu0 0
    %6177 = vmatmul.mubr.bf16.gmra.mxu0 %v6119
    %v6178 = vpop.f32.mrf.mxu0
    %v6179 = vadd.f32 0.0, %v6178
    %v6180 = vpop.f32.mrf.mxu0
    %v6181 = vpop.f32.mrf.mxu0
    %v6182 = vadd.f32 0.0, %v6181
    %v6183 = vpop.f32.mrf.mxu0
    %6184 = vmatprep.mubr.bf16.mxu0 0
    %6185 = vmatmul.mubr.bf16.gmra.mxu0 %v6122
    %v6186 = vpop.f32.mrf.mxu0
    %v6187 = vadd.f32 0.0, %v6186
    %v6188 = vpop.f32.mrf.mxu0
    %v6189 = vpop.f32.mrf.mxu0
    %v6190 = vpop.f32.mrf.mxu0
    %6191 = vdwg.mxu0
    %v6193 = vsel %vm6124, %v6060, 0
    %6195 = vmatprep.subr.bf16.mxu0 0
    %6196 = vmatpush1.bf16.msra.mxu0 0
    %6197 = vmatprep.subr.bf16.mxu0 0
    %6198 = vmatpush1.bf16.msra.mxu0 0
    %6199 = vmatprep.subr.bf16.mxu0 0
    %6200 = vmatpush1.bf16.msra.mxu0 0
    %6201 = vmatprep.subr.bf16.mxu0 0
    %6202 = vmatpush1.bf16.msra.mxu0 0
    %6203 = vmatprep.subr.bf16.mxu0 0
    %6204 = vmatpush1.bf16.msra.mxu0 0
    %6205 = vmatprep.subr.bf16.mxu0 0
    %6206 = vmatpush1.bf16.msra.mxu0 %v6193
    %6207 = vmatprep.subr.bf16.mxu0 0
    %6208 = vmatpush1.bf16.msra.mxu0 %v6059
    %6209 = vmatprep.subr.bf16.mxu0 0
    %6210 = vmatpush1.bf16.msra.mxu0 %v6058
    %6211 = vmatprep.subr.bf16.mxu0 0
    %6212 = vmatpush2.bf16.msra.mxu0 0
    %6213 = vmatprep.subr.bf16.mxu0 0
    %6214 = vmatpush2.bf16.msra.mxu0 0
    %6215 = vmatprep.subr.bf16.mxu0 0
    %6216 = vmatpush2.bf16.msra.mxu0 0
    %6217 = vmatprep.subr.bf16.mxu0 0
    %6218 = vmatpush2.bf16.msra.mxu0 0
    %6219 = vmatprep.subr.bf16.mxu0 0
    %6220 = vmatpush2.bf16.msra.mxu0 0
    %6221 = vmatprep.subr.bf16.mxu0 0
    %6222 = vmatpush2.bf16.msra.mxu0 0
    %6223 = vmatprep.subr.bf16.mxu0 0
    %6224 = vmatpush2.bf16.msra.mxu0 0
    %6225 = vmatprep.subr.bf16.mxu0 0
    %6226 = vmatpush2.bf16.msra.mxu0 0
    %6227 = vmatprep.mubr.bf16.mxu0 0
    %6228 = vmatmul.mubr.bf16.gmra.mxu0 %v6113
    %v6229 = vpop.f32.mrf.mxu0
    %v6230 = vadd.f32 0.0, %v6229
    %v6231 = vpop.f32.mrf.mxu0
    %v6232 = vpop.f32.mrf.mxu0
    %v6233 = vadd.f32 0.0, %v6232
    %v6234 = vpop.f32.mrf.mxu0
    %6235 = vmatprep.mubr.bf16.mxu0 0
    %6236 = vmatmul.mubr.bf16.gmra.mxu0 %v6116
    %v6237 = vpop.f32.mrf.mxu0
    %v6238 = vadd.f32 0.0, %v6237
    %v6239 = vpop.f32.mrf.mxu0
    %v6240 = vpop.f32.mrf.mxu0
    %v6241 = vadd.f32 0.0, %v6240
    %v6242 = vpop.f32.mrf.mxu0
    %6243 = vmatprep.mubr.bf16.mxu0 0
    %6244 = vmatmul.mubr.bf16.gmra.mxu0 %v6119
    %v6245 = vpop.f32.mrf.mxu0
    %v6246 = vadd.f32 0.0, %v6245
    %v6247 = vpop.f32.mrf.mxu0
    %v6248 = vpop.f32.mrf.mxu0
    %v6249 = vadd.f32 0.0, %v6248
    %v6250 = vpop.f32.mrf.mxu0
    %6251 = vmatprep.mubr.bf16.mxu0 0
    %6252 = vmatmul.mubr.bf16.gmra.mxu0 %v6122
    %v6253 = vpop.f32.mrf.mxu0
    %v6254 = vadd.f32 0.0, %v6253
    %v6255 = vpop.f32.mrf.mxu0
    %v6256 = vpop.f32.mrf.mxu0
    %v6257 = vpop.f32.mrf.mxu0
    %6258 = vdwg.mxu0
    %v6260 = vsel %vm6124, %v6063, 0
    %6262 = vmatprep.subr.bf16.mxu0 0
    %6263 = vmatpush1.bf16.msra.mxu0 0
    %6264 = vmatprep.subr.bf16.mxu0 0
    %6265 = vmatpush1.bf16.msra.mxu0 0
    %6266 = vmatprep.subr.bf16.mxu0 0
    %6267 = vmatpush1.bf16.msra.mxu0 0
    %6268 = vmatprep.subr.bf16.mxu0 0
    %6269 = vmatpush1.bf16.msra.mxu0 0
    %6270 = vmatprep.subr.bf16.mxu0 0
    %6271 = vmatpush1.bf16.msra.mxu0 0
    %6272 = vmatprep.subr.bf16.mxu0 0
    %6273 = vmatpush1.bf16.msra.mxu0 %v6260
    %6274 = vmatprep.subr.bf16.mxu0 0
    %6275 = vmatpush1.bf16.msra.mxu0 %v6062
    %6276 = vmatprep.subr.bf16.mxu0 0
    %6277 = vmatpush1.bf16.msra.mxu0 %v6061
    %6278 = vmatprep.subr.bf16.mxu0 0
    %6279 = vmatpush2.bf16.msra.mxu0 0
    %6280 = vmatprep.subr.bf16.mxu0 0
    %6281 = vmatpush2.bf16.msra.mxu0 0
    %6282 = vmatprep.subr.bf16.mxu0 0
    %6283 = vmatpush2.bf16.msra.mxu0 0
    %6284 = vmatprep.subr.bf16.mxu0 0
    %6285 = vmatpush2.bf16.msra.mxu0 0
    %6286 = vmatprep.subr.bf16.mxu0 0
    %6287 = vmatpush2.bf16.msra.mxu0 0
    %6288 = vmatprep.subr.bf16.mxu0 0
    %6289 = vmatpush2.bf16.msra.mxu0 0
    %6290 = vmatprep.subr.bf16.mxu0 0
    %6291 = vmatpush2.bf16.msra.mxu0 0
    %6292 = vmatprep.subr.bf16.mxu0 0
    %6293 = vmatpush2.bf16.msra.mxu0 0
    %6294 = vmatprep.mubr.bf16.mxu0 0
    %6295 = vmatmul.mubr.bf16.gmra.mxu0 %v6113
    %v6296 = vpop.f32.mrf.mxu0
    %v6297 = vadd.f32 0.0, %v6296
    %v6298 = vpop.f32.mrf.mxu0
    %v6299 = vpop.f32.mrf.mxu0
    %v6300 = vadd.f32 0.0, %v6299
    %v6301 = vpop.f32.mrf.mxu0
    %6302 = vmatprep.mubr.bf16.mxu0 0
    %6303 = vmatmul.mubr.bf16.gmra.mxu0 %v6116
    %v6304 = vpop.f32.mrf.mxu0
    %v6305 = vadd.f32 0.0, %v6304
    %v6306 = vpop.f32.mrf.mxu0
    %v6307 = vpop.f32.mrf.mxu0
    %v6308 = vadd.f32 0.0, %v6307
    %v6309 = vpop.f32.mrf.mxu0
    %6310 = vmatprep.mubr.bf16.mxu0 0
    %6311 = vmatmul.mubr.bf16.gmra.mxu0 %v6119
    %v6312 = vpop.f32.mrf.mxu0
    %v6313 = vadd.f32 0.0, %v6312
    %v6314 = vpop.f32.mrf.mxu0
    %v6315 = vpop.f32.mrf.mxu0
    %v6316 = vadd.f32 0.0, %v6315
    %v6317 = vpop.f32.mrf.mxu0
    %6318 = vmatprep.mubr.bf16.mxu0 0
    %6319 = vmatmul.mubr.bf16.gmra.mxu0 %v6122
    %v6320 = vpop.f32.mrf.mxu0
    %v6321 = vadd.f32 0.0, %v6320
    %v6322 = vpop.f32.mrf.mxu0
    %v6323 = vpop.f32.mrf.mxu0
    %v6324 = vpop.f32.mrf.mxu0
    %6325 = vdwg.mxu0
    %v6327 = vsel %vm6124, %v6066, 0
    %6329 = vmatprep.subr.bf16.mxu0 0
    %6330 = vmatpush1.bf16.msra.mxu0 0
    %6331 = vmatprep.subr.bf16.mxu0 0
    %6332 = vmatpush1.bf16.msra.mxu0 0
    %6333 = vmatprep.subr.bf16.mxu0 0
    %6334 = vmatpush1.bf16.msra.mxu0 0
    %6335 = vmatprep.subr.bf16.mxu0 0
    %6336 = vmatpush1.bf16.msra.mxu0 0
    %6337 = vmatprep.subr.bf16.mxu0 0
    %6338 = vmatpush1.bf16.msra.mxu0 0
    %6339 = vmatprep.subr.bf16.mxu0 0
    %6340 = vmatpush1.bf16.msra.mxu0 %v6327
    %6341 = vmatprep.subr.bf16.mxu0 0
    %6342 = vmatpush1.bf16.msra.mxu0 %v6065
    %6343 = vmatprep.subr.bf16.mxu0 0
    %6344 = vmatpush1.bf16.msra.mxu0 %v6064
    %6345 = vmatprep.subr.bf16.mxu0 0
    %6346 = vmatpush2.bf16.msra.mxu0 0
    %6347 = vmatprep.subr.bf16.mxu0 0
    %6348 = vmatpush2.bf16.msra.mxu0 0
    %6349 = vmatprep.subr.bf16.mxu0 0
    %6350 = vmatpush2.bf16.msra.mxu0 0
    %6351 = vmatprep.subr.bf16.mxu0 0
    %6352 = vmatpush2.bf16.msra.mxu0 0
    %6353 = vmatprep.subr.bf16.mxu0 0
    %6354 = vmatpush2.bf16.msra.mxu0 0
    %6355 = vmatprep.subr.bf16.mxu0 0
    %6356 = vmatpush2.bf16.msra.mxu0 0
    %6357 = vmatprep.subr.bf16.mxu0 0
    %6358 = vmatpush2.bf16.msra.mxu0 0
    %6359 = vmatprep.subr.bf16.mxu0 0
    %6360 = vmatpush2.bf16.msra.mxu0 0
    %6361 = vmatprep.mubr.bf16.mxu0 0
    %6362 = vmatmul.mubr.bf16.gmra.mxu0 %v6113
    %v6363 = vpop.f32.mrf.mxu0
    %v6364 = vadd.f32 0.0, %v6363
    %v6365 = vpop.f32.mrf.mxu0
    %v6366 = vpop.f32.mrf.mxu0
    %v6367 = vadd.f32 0.0, %v6366
    %v6368 = vpop.f32.mrf.mxu0
    %6369 = vmatprep.mubr.bf16.mxu0 0
    %6370 = vmatmul.mubr.bf16.gmra.mxu0 %v6116
    %v6371 = vpop.f32.mrf.mxu0
    %v6372 = vadd.f32 0.0, %v6371
    %v6373 = vpop.f32.mrf.mxu0
    %v6374 = vpop.f32.mrf.mxu0
    %v6375 = vadd.f32 0.0, %v6374
    %v6376 = vpop.f32.mrf.mxu0
    %6377 = vmatprep.mubr.bf16.mxu0 0
    %6378 = vmatmul.mubr.bf16.gmra.mxu0 %v6119
    %v6379 = vpop.f32.mrf.mxu0
    %v6380 = vadd.f32 0.0, %v6379
    %v6381 = vpop.f32.mrf.mxu0
    %v6382 = vpop.f32.mrf.mxu0
    %v6383 = vadd.f32 0.0, %v6382
    %v6384 = vpop.f32.mrf.mxu0
    %6385 = vmatprep.mubr.bf16.mxu0 0
    %6386 = vmatmul.mubr.bf16.gmra.mxu0 %v6122
    %v6387 = vpop.f32.mrf.mxu0
    %v6388 = vadd.f32 0.0, %v6387
    %v6389 = vpop.f32.mrf.mxu0
    %v6390 = vpop.f32.mrf.mxu0
    %v6391 = vpop.f32.mrf.mxu0
    %6392 = vdwg.mxu0
    %v6394 = vsel %vm6124, %v6069, 0
    %6396 = vmatprep.subr.bf16.mxu0 0
    %6397 = vmatpush1.bf16.msra.mxu0 0
    %6398 = vmatprep.subr.bf16.mxu0 0
    %6399 = vmatpush1.bf16.msra.mxu0 0
    %6400 = vmatprep.subr.bf16.mxu0 0
    %6401 = vmatpush1.bf16.msra.mxu0 0
    %6402 = vmatprep.subr.bf16.mxu0 0
    %6403 = vmatpush1.bf16.msra.mxu0 0
    %6404 = vmatprep.subr.bf16.mxu0 0
    %6405 = vmatpush1.bf16.msra.mxu0 0
    %6406 = vmatprep.subr.bf16.mxu0 0
    %6407 = vmatpush1.bf16.msra.mxu0 %v6394
    %6408 = vmatprep.subr.bf16.mxu0 0
    %6409 = vmatpush1.bf16.msra.mxu0 %v6068
    %6410 = vmatprep.subr.bf16.mxu0 0
    %6411 = vmatpush1.bf16.msra.mxu0 %v6067
    %6412 = vmatprep.subr.bf16.mxu0 0
    %6413 = vmatpush2.bf16.msra.mxu0 0
    %6414 = vmatprep.subr.bf16.mxu0 0
    %6415 = vmatpush2.bf16.msra.mxu0 0
    %6416 = vmatprep.subr.bf16.mxu0 0
    %6417 = vmatpush2.bf16.msra.mxu0 0
    %6418 = vmatprep.subr.bf16.mxu0 0
    %6419 = vmatpush2.bf16.msra.mxu0 0
    %6420 = vmatprep.subr.bf16.mxu0 0
    %6421 = vmatpush2.bf16.msra.mxu0 0
    %6422 = vmatprep.subr.bf16.mxu0 0
    %6423 = vmatpush2.bf16.msra.mxu0 0
    %6424 = vmatprep.subr.bf16.mxu0 0
    %6425 = vmatpush2.bf16.msra.mxu0 0
    %6426 = vmatprep.subr.bf16.mxu0 0
    %6427 = vmatpush2.bf16.msra.mxu0 0
    %6428 = vmatprep.mubr.bf16.mxu0 0
    %6429 = vmatmul.mubr.bf16.gmra.mxu0 %v6113
    %v6430 = vpop.f32.mrf.mxu0
    %v6431 = vadd.f32 0.0, %v6430
    %v6432 = vpop.f32.mrf.mxu0
    %v6433 = vpop.f32.mrf.mxu0
    %v6434 = vadd.f32 0.0, %v6433
    %v6435 = vpop.f32.mrf.mxu0
    %6436 = vmatprep.mubr.bf16.mxu0 0
    %6437 = vmatmul.mubr.bf16.gmra.mxu0 %v6116
    %v6438 = vpop.f32.mrf.mxu0
    %v6439 = vadd.f32 0.0, %v6438
    %v6440 = vpop.f32.mrf.mxu0
    %v6441 = vpop.f32.mrf.mxu0
    %v6442 = vadd.f32 0.0, %v6441
    %v6443 = vpop.f32.mrf.mxu0
    %6444 = vmatprep.mubr.bf16.mxu0 0
    %6445 = vmatmul.mubr.bf16.gmra.mxu0 %v6119
    %v6446 = vpop.f32.mrf.mxu0
    %v6447 = vadd.f32 0.0, %v6446
    %v6448 = vpop.f32.mrf.mxu0
    %v6449 = vpop.f32.mrf.mxu0
    %v6450 = vadd.f32 0.0, %v6449
    %v6451 = vpop.f32.mrf.mxu0
    %6452 = vmatprep.mubr.bf16.mxu0 0
    %6453 = vmatmul.mubr.bf16.gmra.mxu0 %v6122
    %v6454 = vpop.f32.mrf.mxu0
    %v6455 = vadd.f32 0.0, %v6454
    %v6456 = vpop.f32.mrf.mxu0
    %v6457 = vpop.f32.mrf.mxu0
    %v6458 = vpop.f32.mrf.mxu0
    %6459 = vdwg.mxu0
    %v6461 = vsel %vm6124, %v6072, 0
    %6463 = vmatprep.subr.bf16.mxu0 0
    %6464 = vmatpush1.bf16.msra.mxu0 0
    %6465 = vmatprep.subr.bf16.mxu0 0
    %6466 = vmatpush1.bf16.msra.mxu0 0
    %6467 = vmatprep.subr.bf16.mxu0 0
    %6468 = vmatpush1.bf16.msra.mxu0 0
    %6469 = vmatprep.subr.bf16.mxu0 0
    %6470 = vmatpush1.bf16.msra.mxu0 0
    %6471 = vmatprep.subr.bf16.mxu0 0
    %6472 = vmatpush1.bf16.msra.mxu0 0
    %6473 = vmatprep.subr.bf16.mxu0 0
    %6474 = vmatpush1.bf16.msra.mxu0 %v6461
    %6475 = vmatprep.subr.bf16.mxu0 0
    %6476 = vmatpush1.bf16.msra.mxu0 %v6071
    %6477 = vmatprep.subr.bf16.mxu0 0
    %6478 = vmatpush1.bf16.msra.mxu0 %v6070
    %6479 = vmatprep.subr.bf16.mxu0 0
    %6480 = vmatpush2.bf16.msra.mxu0 0
    %6481 = vmatprep.subr.bf16.mxu0 0
    %6482 = vmatpush2.bf16.msra.mxu0 0
    %6483 = vmatprep.subr.bf16.mxu0 0
    %6484 = vmatpush2.bf16.msra.mxu0 0
    %6485 = vmatprep.subr.bf16.mxu0 0
    %6486 = vmatpush2.bf16.msra.mxu0 0
    %6487 = vmatprep.subr.bf16.mxu0 0
    %6488 = vmatpush2.bf16.msra.mxu0 0
    %6489 = vmatprep.subr.bf16.mxu0 0
    %6490 = vmatpush2.bf16.msra.mxu0 0
    %6491 = vmatprep.subr.bf16.mxu0 0
    %6492 = vmatpush2.bf16.msra.mxu0 0
    %6493 = vmatprep.subr.bf16.mxu0 0
    %6494 = vmatpush2.bf16.msra.mxu0 0
    %6495 = vmatprep.mubr.bf16.mxu0 0
    %6496 = vmatmul.mubr.bf16.gmra.mxu0 %v6113
    %v6497 = vpop.f32.mrf.mxu0
    %v6498 = vadd.f32 0.0, %v6497
    %v6499 = vpop.f32.mrf.mxu0
    %v6500 = vpop.f32.mrf.mxu0
    %v6501 = vadd.f32 0.0, %v6500
    %v6502 = vpop.f32.mrf.mxu0
    %6503 = vmatprep.mubr.bf16.mxu0 0
    %6504 = vmatmul.mubr.bf16.gmra.mxu0 %v6116
    %v6505 = vpop.f32.mrf.mxu0
    %v6506 = vadd.f32 0.0, %v6505
    %v6507 = vpop.f32.mrf.mxu0
    %v6508 = vpop.f32.mrf.mxu0
    %v6509 = vadd.f32 0.0, %v6508
    %v6510 = vpop.f32.mrf.mxu0
    %6511 = vmatprep.mubr.bf16.mxu0 0
    %6512 = vmatmul.mubr.bf16.gmra.mxu0 %v6119
    %v6513 = vpop.f32.mrf.mxu0
    %v6514 = vadd.f32 0.0, %v6513
    %v6515 = vpop.f32.mrf.mxu0
    %v6516 = vpop.f32.mrf.mxu0
    %v6517 = vadd.f32 0.0, %v6516
    %v6518 = vpop.f32.mrf.mxu0
    %6519 = vmatprep.mubr.bf16.mxu0 0
    %6520 = vmatmul.mubr.bf16.gmra.mxu0 %v6122
    %v6521 = vpop.f32.mrf.mxu0
    %v6522 = vadd.f32 0.0, %v6521
    %v6523 = vpop.f32.mrf.mxu0
    %v6524 = vpop.f32.mrf.mxu0
    %v6525 = vpop.f32.mrf.mxu0
    %6526 = vdwg.mxu0
    %v6528 = vsel %vm6124, %v6075, 0
    %6530 = vmatprep.subr.bf16.mxu0 0
    %6531 = vmatpush1.bf16.msra.mxu0 0
    %6532 = vmatprep.subr.bf16.mxu0 0
    %6533 = vmatpush1.bf16.msra.mxu0 0
    %6534 = vmatprep.subr.bf16.mxu0 0
    %6535 = vmatpush1.bf16.msra.mxu0 0
    %6536 = vmatprep.subr.bf16.mxu0 0
    %6537 = vmatpush1.bf16.msra.mxu0 0
    %6538 = vmatprep.subr.bf16.mxu0 0
    %6539 = vmatpush1.bf16.msra.mxu0 0
    %6540 = vmatprep.subr.bf16.mxu0 0
    %6541 = vmatpush1.bf16.msra.mxu0 %v6528
    %6542 = vmatprep.subr.bf16.mxu0 0
    %6543 = vmatpush1.bf16.msra.mxu0 %v6074
    %6544 = vmatprep.subr.bf16.mxu0 0
    %6545 = vmatpush1.bf16.msra.mxu0 %v6073
    %6546 = vmatprep.subr.bf16.mxu0 0
    %6547 = vmatpush2.bf16.msra.mxu0 0
    %6548 = vmatprep.subr.bf16.mxu0 0
    %6549 = vmatpush2.bf16.msra.mxu0 0
    %6550 = vmatprep.subr.bf16.mxu0 0
    %6551 = vmatpush2.bf16.msra.mxu0 0
    %6552 = vmatprep.subr.bf16.mxu0 0
    %6553 = vmatpush2.bf16.msra.mxu0 0
    %6554 = vmatprep.subr.bf16.mxu0 0
    %6555 = vmatpush2.bf16.msra.mxu0 0
    %6556 = vmatprep.subr.bf16.mxu0 0
    %6557 = vmatpush2.bf16.msra.mxu0 0
    %6558 = vmatprep.subr.bf16.mxu0 0
    %6559 = vmatpush2.bf16.msra.mxu0 0
    %6560 = vmatprep.subr.bf16.mxu0 0
    %6561 = vmatpush2.bf16.msra.mxu0 0
    %6562 = vmatprep.mubr.bf16.mxu0 0
    %6563 = vmatmul.mubr.bf16.gmra.mxu0 %v6113
    %v6564 = vpop.f32.mrf.mxu0
    %v6565 = vadd.f32 0.0, %v6564
    %v6566 = vpop.f32.mrf.mxu0
    %v6567 = vpop.f32.mrf.mxu0
    %v6568 = vadd.f32 0.0, %v6567
    %v6569 = vpop.f32.mrf.mxu0
    %6570 = vmatprep.mubr.bf16.mxu0 0
    %6571 = vmatmul.mubr.bf16.gmra.mxu0 %v6116
    %v6572 = vpop.f32.mrf.mxu0
    %v6573 = vadd.f32 0.0, %v6572
    %v6574 = vpop.f32.mrf.mxu0
    %v6575 = vpop.f32.mrf.mxu0
    %v6576 = vadd.f32 0.0, %v6575
    %v6577 = vpop.f32.mrf.mxu0
    %6578 = vmatprep.mubr.bf16.mxu0 0
    %6579 = vmatmul.mubr.bf16.gmra.mxu0 %v6119
    %v6580 = vpop.f32.mrf.mxu0
    %v6581 = vadd.f32 0.0, %v6580
    %v6582 = vpop.f32.mrf.mxu0
    %v6583 = vpop.f32.mrf.mxu0
    %v6584 = vadd.f32 0.0, %v6583
    %v6585 = vpop.f32.mrf.mxu0
    %6586 = vmatprep.mubr.bf16.mxu0 0
    %6587 = vmatmul.mubr.bf16.gmra.mxu0 %v6122
    %v6588 = vpop.f32.mrf.mxu0
    %v6589 = vadd.f32 0.0, %v6588
    %v6590 = vpop.f32.mrf.mxu0
    %v6591 = vpop.f32.mrf.mxu0
    %v6592 = vpop.f32.mrf.mxu0
    %6593 = vdwg.mxu0
    %v6595 = vsel %vm6124, %v6078, 0
    %6597 = vmatprep.subr.bf16.mxu0 0
    %6598 = vmatpush1.bf16.msra.mxu0 0
    %6599 = vmatprep.subr.bf16.mxu0 0
    %6600 = vmatpush1.bf16.msra.mxu0 0
    %6601 = vmatprep.subr.bf16.mxu0 0
    %6602 = vmatpush1.bf16.msra.mxu0 0
    %6603 = vmatprep.subr.bf16.mxu0 0
    %6604 = vmatpush1.bf16.msra.mxu0 0
    %6605 = vmatprep.subr.bf16.mxu0 0
    %6606 = vmatpush1.bf16.msra.mxu0 0
    %6607 = vmatprep.subr.bf16.mxu0 0
    %6608 = vmatpush1.bf16.msra.mxu0 %v6595
    %6609 = vmatprep.subr.bf16.mxu0 0
    %6610 = vmatpush1.bf16.msra.mxu0 %v6077
    %6611 = vmatprep.subr.bf16.mxu0 0
    %6612 = vmatpush1.bf16.msra.mxu0 %v6076
    %6613 = vmatprep.subr.bf16.mxu0 0
    %6614 = vmatpush2.bf16.msra.mxu0 0
    %6615 = vmatprep.subr.bf16.mxu0 0
    %6616 = vmatpush2.bf16.msra.mxu0 0
    %6617 = vmatprep.subr.bf16.mxu0 0
    %6618 = vmatpush2.bf16.msra.mxu0 0
    %6619 = vmatprep.subr.bf16.mxu0 0
    %6620 = vmatpush2.bf16.msra.mxu0 0
    %6621 = vmatprep.subr.bf16.mxu0 0
    %6622 = vmatpush2.bf16.msra.mxu0 0
    %6623 = vmatprep.subr.bf16.mxu0 0
    %6624 = vmatpush2.bf16.msra.mxu0 0
    %6625 = vmatprep.subr.bf16.mxu0 0
    %6626 = vmatpush2.bf16.msra.mxu0 0
    %6627 = vmatprep.subr.bf16.mxu0 0
    %6628 = vmatpush2.bf16.msra.mxu0 0
    %6629 = vmatprep.mubr.bf16.mxu0 0
    %6630 = vmatmul.mubr.bf16.gmra.mxu0 %v6113
    %v6631 = vpop.f32.mrf.mxu0
    %v6632 = vadd.f32 0.0, %v6631
    %v6633 = vpop.f32.mrf.mxu0
    %v6634 = vpop.f32.mrf.mxu0
    %v6635 = vadd.f32 0.0, %v6634
    %v6636 = vpop.f32.mrf.mxu0
    %6637 = vmatprep.mubr.bf16.mxu0 0
    %6638 = vmatmul.mubr.bf16.gmra.mxu0 %v6116
    %v6639 = vpop.f32.mrf.mxu0
    %v6640 = vadd.f32 0.0, %v6639
    %v6641 = vpop.f32.mrf.mxu0
    %v6642 = vpop.f32.mrf.mxu0
    %v6643 = vadd.f32 0.0, %v6642
    %v6644 = vpop.f32.mrf.mxu0
    %6645 = vmatprep.mubr.bf16.mxu0 0
    %6646 = vmatmul.mubr.bf16.gmra.mxu0 %v6119
    %v6647 = vpop.f32.mrf.mxu0
    %v6648 = vadd.f32 0.0, %v6647
    %v6649 = vpop.f32.mrf.mxu0
    %v6650 = vpop.f32.mrf.mxu0
    %v6651 = vadd.f32 0.0, %v6650
    %v6652 = vpop.f32.mrf.mxu0
    %6653 = vmatprep.mubr.bf16.mxu0 0
    %6654 = vmatmul.mubr.bf16.gmra.mxu0 %v6122
    %v6655 = vpop.f32.mrf.mxu0
    %v6656 = vadd.f32 0.0, %v6655
    %v6657 = vpop.f32.mrf.mxu0
    %v6658 = vpop.f32.mrf.mxu0
    %v6659 = vpop.f32.mrf.mxu0
    %6660 = vdwg.mxu0
    %v6661 = vld [vmem:[%s9] sm:$0x7f]
    %v6663 = vsel %vm4925, %v6163, 0
    %v6666 = vsel %vm4925, %v6166, 0
    %v6669 = vsel %vm4925, %v6171, 0
    %v6672 = vsel %vm4925, %v6174, 0
    %v6675 = vsel %vm4925, %v6179, 0
    %v6678 = vsel %vm4925, %v6182, 0
    %v6681 = vsel %vm4925, %v6187, 0
    %vm6683 = vcmask 1046528
    %v6685 = vsel %vm6683, %v6661, 0
    %6687 = vmatprep.subr.mxu0 0.0
    %6688 = vmatpush1.msra.mxu0 0.0
    %6689 = vmatprep.subr.mxu0 0.0
    %6690 = vmatpush1.msra.mxu0 0.0
    %6691 = vmatprep.subr.mxu0 0.0
    %6692 = vmatpush1.msra.mxu0 0.0
    %6693 = vmatprep.subr.mxu0 0.0
    %6694 = vmatpush1.msra.mxu0 0.0
    %6695 = vmatprep.subr.mxu0 0.0
    %6696 = vmatpush1.msra.mxu0 0.0
    %6697 = vmatprep.subr.mxu0 0.0
    %6698 = vmatpush1.msra.mxu0 0.0
    %6699 = vmatprep.subr.mxu0 0.0
    %6700 = vmatpush1.msra.mxu0 0.0
    %6701 = vmatprep.subr.mxu0 0.0
    %6702 = vmatpush1.msra.mxu0 0.0
    %6703 = vmatprep.subr.mxu0 0.0
    %6704 = vmatpush1.msra.mxu0 0.0
    %6705 = vmatprep.subr.mxu0 0.0
    %6706 = vmatpush1.msra.mxu0 0.0
    %6707 = vmatprep.subr.mxu0 0.0
    %6708 = vmatpush1.msra.mxu0 0.0
    %6709 = vmatprep.subr.mxu0 0.0
    %6710 = vmatpush1.msra.mxu0 0.0
    %6711 = vmatprep.subr.mxu0 0.0
    %6712 = vmatpush1.msra.mxu0 0.0
    %6713 = vmatprep.subr.mxu0 0.0
    %6714 = vmatpush1.msra.mxu0 0.0
    %6715 = vmatprep.subr.mxu0 0.0
    %6716 = vmatpush1.msra.mxu0 0.0
    %6717 = vmatprep.subr.mxu0 0.0
    %6718 = vmatpush1.msra.mxu0 %v6685
    %6719 = vmatprep.subr.mxu0 0.0
    %6720 = vmatpush2.msra.mxu0 0.0
    %6721 = vmatprep.subr.mxu0 0.0
    %6722 = vmatpush2.msra.mxu0 0.0
    %6723 = vmatprep.subr.mxu0 0.0
    %6724 = vmatpush2.msra.mxu0 0.0
    %6725 = vmatprep.subr.mxu0 0.0
    %6726 = vmatpush2.msra.mxu0 0.0
    %6727 = vmatprep.subr.mxu0 0.0
    %6728 = vmatpush2.msra.mxu0 0.0
    %6729 = vmatprep.subr.mxu0 0.0
    %6730 = vmatpush2.msra.mxu0 0.0
    %6731 = vmatprep.subr.mxu0 0.0
    %6732 = vmatpush2.msra.mxu0 0.0
    %6733 = vmatprep.subr.mxu0 0.0
    %6734 = vmatpush2.msra.mxu0 0.0
    %6735 = vmatprep.subr.mxu0 0.0
    %6736 = vmatpush2.msra.mxu0 0.0
    %6737 = vmatprep.subr.mxu0 0.0
    %6738 = vmatpush2.msra.mxu0 0.0
    %6739 = vmatprep.subr.mxu0 0.0
    %6740 = vmatpush2.msra.mxu0 0.0
    %6741 = vmatprep.subr.mxu0 0.0
    %6742 = vmatpush2.msra.mxu0 0.0
    %6743 = vmatprep.subr.mxu0 0.0
    %6744 = vmatpush2.msra.mxu0 0.0
    %6745 = vmatprep.subr.mxu0 0.0
    %6746 = vmatpush2.msra.mxu0 0.0
    %6747 = vmatprep.subr.mxu0 0.0
    %6748 = vmatpush2.msra.mxu0 0.0
    %6749 = vmatprep.subr.mxu0 0.0
    %6750 = vmatpush2.msra.mxu0 0.0
    %6751 = vmatprep.mubr.f32.mxu0 0.0
    %6752 = vmatmul.mubr.f32.gmra.mxu0 %v6663
    %v6753 = vpop.f32.mrf.mxu0
    %v6754 = vadd.f32 0.0, %v6753
    %v6755 = vpop.f32.mrf.mxu0
    %6756 = vmatprep.mubr.f32.mxu0 0.0
    %6757 = vmatmul.mubr.f32.gmra.mxu0 %v6666
    %v6758 = vpop.f32.mrf.mxu0
    %v6759 = vadd.f32 0.0, %v6758
    %v6760 = vpop.f32.mrf.mxu0
    %6761 = vmatprep.mubr.f32.mxu0 0.0
    %6762 = vmatmul.mubr.f32.gmra.mxu0 %v6669
    %v6763 = vpop.f32.mrf.mxu0
    %v6764 = vadd.f32 0.0, %v6763
    %v6765 = vpop.f32.mrf.mxu0
    %6766 = vmatprep.mubr.f32.mxu0 0.0
    %6767 = vmatmul.mubr.f32.gmra.mxu0 %v6672
    %v6768 = vpop.f32.mrf.mxu0
    %v6769 = vadd.f32 0.0, %v6768
    %v6770 = vpop.f32.mrf.mxu0
    %6771 = vmatprep.mubr.f32.mxu0 0.0
    %6772 = vmatmul.mubr.f32.gmra.mxu0 %v6675
    %v6773 = vpop.f32.mrf.mxu0
    %v6774 = vadd.f32 0.0, %v6773
    %v6775 = vpop.f32.mrf.mxu0
    %6776 = vmatprep.mubr.f32.mxu0 0.0
    %6777 = vmatmul.mubr.f32.gmra.mxu0 %v6678
    %v6778 = vpop.f32.mrf.mxu0
    %v6779 = vadd.f32 0.0, %v6778
    %v6780 = vpop.f32.mrf.mxu0
    %6781 = vmatprep.mubr.f32.mxu0 0.0
    %6782 = vmatmul.mubr.f32.gmra.mxu0 %v6681
    %v6783 = vpop.f32.mrf.mxu0
    %v6784 = vadd.f32 0.0, %v6783
    %v6785 = vpop.f32.mrf.mxu0
    %6786 = vdwg.mxu0
    %v6788 = vsel %vm4925, %v6230, 0
    %v6791 = vsel %vm4925, %v6233, 0
    %v6794 = vsel %vm4925, %v6238, 0
    %v6797 = vsel %vm4925, %v6241, 0
    %v6800 = vsel %vm4925, %v6246, 0
    %v6803 = vsel %vm4925, %v6249, 0
    %v6806 = vsel %vm4925, %v6254, 0
    %6808 = vmatprep.subr.mxu0 0.0
    %6809 = vmatpush1.msra.mxu0 0.0
    %6810 = vmatprep.subr.mxu0 0.0
    %6811 = vmatpush1.msra.mxu0 0.0
    %6812 = vmatprep.subr.mxu0 0.0
    %6813 = vmatpush1.msra.mxu0 0.0
    %6814 = vmatprep.subr.mxu0 0.0
    %6815 = vmatpush1.msra.mxu0 0.0
    %6816 = vmatprep.subr.mxu0 0.0
    %6817 = vmatpush1.msra.mxu0 0.0
    %6818 = vmatprep.subr.mxu0 0.0
    %6819 = vmatpush1.msra.mxu0 0.0
    %6820 = vmatprep.subr.mxu0 0.0
    %6821 = vmatpush1.msra.mxu0 0.0
    %6822 = vmatprep.subr.mxu0 0.0
    %6823 = vmatpush1.msra.mxu0 0.0
    %6824 = vmatprep.subr.mxu0 0.0
    %6825 = vmatpush1.msra.mxu0 0.0
    %6826 = vmatprep.subr.mxu0 0.0
    %6827 = vmatpush1.msra.mxu0 0.0
    %6828 = vmatprep.subr.mxu0 0.0
    %6829 = vmatpush1.msra.mxu0 0.0
    %6830 = vmatprep.subr.mxu0 0.0
    %6831 = vmatpush1.msra.mxu0 0.0
    %6832 = vmatprep.subr.mxu0 0.0
    %6833 = vmatpush1.msra.mxu0 0.0
    %6834 = vmatprep.subr.mxu0 0.0
    %6835 = vmatpush1.msra.mxu0 0.0
    %6836 = vmatprep.subr.mxu0 0.0
    %6837 = vmatpush1.msra.mxu0 0.0
    %6838 = vmatprep.subr.mxu0 0.0
    %6839 = vmatpush1.msra.mxu0 %v6685
    %6840 = vmatprep.subr.mxu0 0.0
    %6841 = vmatpush2.msra.mxu0 0.0
    %6842 = vmatprep.subr.mxu0 0.0
    %6843 = vmatpush2.msra.mxu0 0.0
    %6844 = vmatprep.subr.mxu0 0.0
    %6845 = vmatpush2.msra.mxu0 0.0
    %6846 = vmatprep.subr.mxu0 0.0
    %6847 = vmatpush2.msra.mxu0 0.0
    %6848 = vmatprep.subr.mxu0 0.0
    %6849 = vmatpush2.msra.mxu0 0.0
    %6850 = vmatprep.subr.mxu0 0.0
    %6851 = vmatpush2.msra.mxu0 0.0
    %6852 = vmatprep.subr.mxu0 0.0
    %6853 = vmatpush2.msra.mxu0 0.0
    %6854 = vmatprep.subr.mxu0 0.0
    %6855 = vmatpush2.msra.mxu0 0.0
    %6856 = vmatprep.subr.mxu0 0.0
    %6857 = vmatpush2.msra.mxu0 0.0
    %6858 = vmatprep.subr.mxu0 0.0
    %6859 = vmatpush2.msra.mxu0 0.0
    %6860 = vmatprep.subr.mxu0 0.0
    %6861 = vmatpush2.msra.mxu0 0.0
    %6862 = vmatprep.subr.mxu0 0.0
    %6863 = vmatpush2.msra.mxu0 0.0
    %6864 = vmatprep.subr.mxu0 0.0
    %6865 = vmatpush2.msra.mxu0 0.0
    %6866 = vmatprep.subr.mxu0 0.0
    %6867 = vmatpush2.msra.mxu0 0.0
    %6868 = vmatprep.subr.mxu0 0.0
    %6869 = vmatpush2.msra.mxu0 0.0
    %6870 = vmatprep.subr.mxu0 0.0
    %6871 = vmatpush2.msra.mxu0 0.0
    %6872 = vmatprep.mubr.f32.mxu0 0.0
    %6873 = vmatmul.mubr.f32.gmra.mxu0 %v6788
    %v6874 = vpop.f32.mrf.mxu0
    %v6875 = vadd.f32 0.0, %v6874
    %v6876 = vpop.f32.mrf.mxu0
    %6877 = vmatprep.mubr.f32.mxu0 0.0
    %6878 = vmatmul.mubr.f32.gmra.mxu0 %v6791
    %v6879 = vpop.f32.mrf.mxu0
    %v6880 = vadd.f32 0.0, %v6879
    %v6881 = vpop.f32.mrf.mxu0
    %6882 = vmatprep.mubr.f32.mxu0 0.0
    %6883 = vmatmul.mubr.f32.gmra.mxu0 %v6794
    %v6884 = vpop.f32.mrf.mxu0
    %v6885 = vadd.f32 0.0, %v6884
    %v6886 = vpop.f32.mrf.mxu0
    %6887 = vmatprep.mubr.f32.mxu0 0.0
    %6888 = vmatmul.mubr.f32.gmra.mxu0 %v6797
    %v6889 = vpop.f32.mrf.mxu0
    %v6890 = vadd.f32 0.0, %v6889
    %v6891 = vpop.f32.mrf.mxu0
    %6892 = vmatprep.mubr.f32.mxu0 0.0
    %6893 = vmatmul.mubr.f32.gmra.mxu0 %v6800
    %v6894 = vpop.f32.mrf.mxu0
    %v6895 = vadd.f32 0.0, %v6894
    %v6896 = vpop.f32.mrf.mxu0
    %6897 = vmatprep.mubr.f32.mxu0 0.0
    %6898 = vmatmul.mubr.f32.gmra.mxu0 %v6803
    %v6899 = vpop.f32.mrf.mxu0
    %v6900 = vadd.f32 0.0, %v6899
    %v6901 = vpop.f32.mrf.mxu0
    %6902 = vmatprep.mubr.f32.mxu0 0.0
    %6903 = vmatmul.mubr.f32.gmra.mxu0 %v6806
    %v6904 = vpop.f32.mrf.mxu0
    %v6905 = vadd.f32 0.0, %v6904
    %v6906 = vpop.f32.mrf.mxu0
    %6907 = vdwg.mxu0
    %v6909 = vsel %vm4925, %v6297, 0
    %v6912 = vsel %vm4925, %v6300, 0
    %v6915 = vsel %vm4925, %v6305, 0
    %v6918 = vsel %vm4925, %v6308, 0
    %v6921 = vsel %vm4925, %v6313, 0
    %v6924 = vsel %vm4925, %v6316, 0
    %v6927 = vsel %vm4925, %v6321, 0
    %6929 = vmatprep.subr.mxu0 0.0
    %6930 = vmatpush1.msra.mxu0 0.0
    %6931 = vmatprep.subr.mxu0 0.0
    %6932 = vmatpush1.msra.mxu0 0.0
    %6933 = vmatprep.subr.mxu0 0.0
    %6934 = vmatpush1.msra.mxu0 0.0
    %6935 = vmatprep.subr.mxu0 0.0
    %6936 = vmatpush1.msra.mxu0 0.0
    %6937 = vmatprep.subr.mxu0 0.0
    %6938 = vmatpush1.msra.mxu0 0.0
    %6939 = vmatprep.subr.mxu0 0.0
    %6940 = vmatpush1.msra.mxu0 0.0
    %6941 = vmatprep.subr.mxu0 0.0
    %6942 = vmatpush1.msra.mxu0 0.0
    %6943 = vmatprep.subr.mxu0 0.0
    %6944 = vmatpush1.msra.mxu0 0.0
    %6945 = vmatprep.subr.mxu0 0.0
    %6946 = vmatpush1.msra.mxu0 0.0
    %6947 = vmatprep.subr.mxu0 0.0
    %6948 = vmatpush1.msra.mxu0 0.0
    %6949 = vmatprep.subr.mxu0 0.0
    %6950 = vmatpush1.msra.mxu0 0.0
    %6951 = vmatprep.subr.mxu0 0.0
    %6952 = vmatpush1.msra.mxu0 0.0
    %6953 = vmatprep.subr.mxu0 0.0
    %6954 = vmatpush1.msra.mxu0 0.0
    %6955 = vmatprep.subr.mxu0 0.0
    %6956 = vmatpush1.msra.mxu0 0.0
    %6957 = vmatprep.subr.mxu0 0.0
    %6958 = vmatpush1.msra.mxu0 0.0
    %6959 = vmatprep.subr.mxu0 0.0
    %6960 = vmatpush1.msra.mxu0 %v6685
    %6961 = vmatprep.subr.mxu0 0.0
    %6962 = vmatpush2.msra.mxu0 0.0
    %6963 = vmatprep.subr.mxu0 0.0
    %6964 = vmatpush2.msra.mxu0 0.0
    %6965 = vmatprep.subr.mxu0 0.0
    %6966 = vmatpush2.msra.mxu0 0.0
    %6967 = vmatprep.subr.mxu0 0.0
    %6968 = vmatpush2.msra.mxu0 0.0
    %6969 = vmatprep.subr.mxu0 0.0
    %6970 = vmatpush2.msra.mxu0 0.0
    %6971 = vmatprep.subr.mxu0 0.0
    %6972 = vmatpush2.msra.mxu0 0.0
    %6973 = vmatprep.subr.mxu0 0.0
    %6974 = vmatpush2.msra.mxu0 0.0
    %6975 = vmatprep.subr.mxu0 0.0
    %6976 = vmatpush2.msra.mxu0 0.0
    %6977 = vmatprep.subr.mxu0 0.0
    %6978 = vmatpush2.msra.mxu0 0.0
    %6979 = vmatprep.subr.mxu0 0.0
    %6980 = vmatpush2.msra.mxu0 0.0
    %6981 = vmatprep.subr.mxu0 0.0
    %6982 = vmatpush2.msra.mxu0 0.0
    %6983 = vmatprep.subr.mxu0 0.0
    %6984 = vmatpush2.msra.mxu0 0.0
    %6985 = vmatprep.subr.mxu0 0.0
    %6986 = vmatpush2.msra.mxu0 0.0
    %6987 = vmatprep.subr.mxu0 0.0
    %6988 = vmatpush2.msra.mxu0 0.0
    %6989 = vmatprep.subr.mxu0 0.0
    %6990 = vmatpush2.msra.mxu0 0.0
    %6991 = vmatprep.subr.mxu0 0.0
    %6992 = vmatpush2.msra.mxu0 0.0
    %6993 = vmatprep.mubr.f32.mxu0 0.0
    %6994 = vmatmul.mubr.f32.gmra.mxu0 %v6909
    %v6995 = vpop.f32.mrf.mxu0
    %v6996 = vadd.f32 0.0, %v6995
    %v6997 = vpop.f32.mrf.mxu0
    %6998 = vmatprep.mubr.f32.mxu0 0.0
    %6999 = vmatmul.mubr.f32.gmra.mxu0 %v6912
    %v7000 = vpop.f32.mrf.mxu0
    %v7001 = vadd.f32 0.0, %v7000
    %v7002 = vpop.f32.mrf.mxu0
    %7003 = vmatprep.mubr.f32.mxu0 0.0
    %7004 = vmatmul.mubr.f32.gmra.mxu0 %v6915
    %v7005 = vpop.f32.mrf.mxu0
    %v7006 = vadd.f32 0.0, %v7005
    %v7007 = vpop.f32.mrf.mxu0
    %7008 = vmatprep.mubr.f32.mxu0 0.0
    %7009 = vmatmul.mubr.f32.gmra.mxu0 %v6918
    %v7010 = vpop.f32.mrf.mxu0
    %v7011 = vadd.f32 0.0, %v7010
    %v7012 = vpop.f32.mrf.mxu0
    %7013 = vmatprep.mubr.f32.mxu0 0.0
    %7014 = vmatmul.mubr.f32.gmra.mxu0 %v6921
    %v7015 = vpop.f32.mrf.mxu0
    %v7016 = vadd.f32 0.0, %v7015
    %v7017 = vpop.f32.mrf.mxu0
    %7018 = vmatprep.mubr.f32.mxu0 0.0
    %7019 = vmatmul.mubr.f32.gmra.mxu0 %v6924
    %v7020 = vpop.f32.mrf.mxu0
    %v7021 = vadd.f32 0.0, %v7020
    %v7022 = vpop.f32.mrf.mxu0
    %7023 = vmatprep.mubr.f32.mxu0 0.0
    %7024 = vmatmul.mubr.f32.gmra.mxu0 %v6927
    %v7025 = vpop.f32.mrf.mxu0
    %v7026 = vadd.f32 0.0, %v7025
    %v7027 = vpop.f32.mrf.mxu0
    %7028 = vdwg.mxu0
    %v7030 = vsel %vm4925, %v6364, 0
    %v7033 = vsel %vm4925, %v6367, 0
    %v7036 = vsel %vm4925, %v6372, 0
    %v7039 = vsel %vm4925, %v6375, 0
    %v7042 = vsel %vm4925, %v6380, 0
    %v7045 = vsel %vm4925, %v6383, 0
    %v7048 = vsel %vm4925, %v6388, 0
    %7050 = vmatprep.subr.mxu0 0.0
    %7051 = vmatpush1.msra.mxu0 0.0
    %7052 = vmatprep.subr.mxu0 0.0
    %7053 = vmatpush1.msra.mxu0 0.0
    %7054 = vmatprep.subr.mxu0 0.0
    %7055 = vmatpush1.msra.mxu0 0.0
    %7056 = vmatprep.subr.mxu0 0.0
    %7057 = vmatpush1.msra.mxu0 0.0
    %7058 = vmatprep.subr.mxu0 0.0
    %7059 = vmatpush1.msra.mxu0 0.0
    %7060 = vmatprep.subr.mxu0 0.0
    %7061 = vmatpush1.msra.mxu0 0.0
    %7062 = vmatprep.subr.mxu0 0.0
    %7063 = vmatpush1.msra.mxu0 0.0
    %7064 = vmatprep.subr.mxu0 0.0
    %7065 = vmatpush1.msra.mxu0 0.0
    %7066 = vmatprep.subr.mxu0 0.0
    %7067 = vmatpush1.msra.mxu0 0.0
    %7068 = vmatprep.subr.mxu0 0.0
    %7069 = vmatpush1.msra.mxu0 0.0
    %7070 = vmatprep.subr.mxu0 0.0
    %7071 = vmatpush1.msra.mxu0 0.0
    %7072 = vmatprep.subr.mxu0 0.0
    %7073 = vmatpush1.msra.mxu0 0.0
    %7074 = vmatprep.subr.mxu0 0.0
    %7075 = vmatpush1.msra.mxu0 0.0
    %7076 = vmatprep.subr.mxu0 0.0
    %7077 = vmatpush1.msra.mxu0 0.0
    %7078 = vmatprep.subr.mxu0 0.0
    %7079 = vmatpush1.msra.mxu0 0.0
    %7080 = vmatprep.subr.mxu0 0.0
    %7081 = vmatpush1.msra.mxu0 %v6685
    %7082 = vmatprep.subr.mxu0 0.0
    %7083 = vmatpush2.msra.mxu0 0.0
    %7084 = vmatprep.subr.mxu0 0.0
    %7085 = vmatpush2.msra.mxu0 0.0
    %7086 = vmatprep.subr.mxu0 0.0
    %7087 = vmatpush2.msra.mxu0 0.0
    %7088 = vmatprep.subr.mxu0 0.0
    %7089 = vmatpush2.msra.mxu0 0.0
    %7090 = vmatprep.subr.mxu0 0.0
    %7091 = vmatpush2.msra.mxu0 0.0
    %7092 = vmatprep.subr.mxu0 0.0
    %7093 = vmatpush2.msra.mxu0 0.0
    %7094 = vmatprep.subr.mxu0 0.0
    %7095 = vmatpush2.msra.mxu0 0.0
    %7096 = vmatprep.subr.mxu0 0.0
    %7097 = vmatpush2.msra.mxu0 0.0
    %7098 = vmatprep.subr.mxu0 0.0
    %7099 = vmatpush2.msra.mxu0 0.0
    %7100 = vmatprep.subr.mxu0 0.0
    %7101 = vmatpush2.msra.mxu0 0.0
    %7102 = vmatprep.subr.mxu0 0.0
    %7103 = vmatpush2.msra.mxu0 0.0
    %7104 = vmatprep.subr.mxu0 0.0
    %7105 = vmatpush2.msra.mxu0 0.0
    %7106 = vmatprep.subr.mxu0 0.0
    %7107 = vmatpush2.msra.mxu0 0.0
    %7108 = vmatprep.subr.mxu0 0.0
    %7109 = vmatpush2.msra.mxu0 0.0
    %7110 = vmatprep.subr.mxu0 0.0
    %7111 = vmatpush2.msra.mxu0 0.0
    %7112 = vmatprep.subr.mxu0 0.0
    %7113 = vmatpush2.msra.mxu0 0.0
    %7114 = vmatprep.mubr.f32.mxu0 0.0
    %7115 = vmatmul.mubr.f32.gmra.mxu0 %v7030
    %v7116 = vpop.f32.mrf.mxu0
    %v7117 = vadd.f32 0.0, %v7116
    %v7118 = vpop.f32.mrf.mxu0
    %7119 = vmatprep.mubr.f32.mxu0 0.0
    %7120 = vmatmul.mubr.f32.gmra.mxu0 %v7033
    %v7121 = vpop.f32.mrf.mxu0
    %v7122 = vadd.f32 0.0, %v7121
    %v7123 = vpop.f32.mrf.mxu0
    %7124 = vmatprep.mubr.f32.mxu0 0.0
    %7125 = vmatmul.mubr.f32.gmra.mxu0 %v7036
    %v7126 = vpop.f32.mrf.mxu0
    %v7127 = vadd.f32 0.0, %v7126
    %v7128 = vpop.f32.mrf.mxu0
    %7129 = vmatprep.mubr.f32.mxu0 0.0
    %7130 = vmatmul.mubr.f32.gmra.mxu0 %v7039
    %v7131 = vpop.f32.mrf.mxu0
    %v7132 = vadd.f32 0.0, %v7131
    %v7133 = vpop.f32.mrf.mxu0
    %7134 = vmatprep.mubr.f32.mxu0 0.0
    %7135 = vmatmul.mubr.f32.gmra.mxu0 %v7042
    %v7136 = vpop.f32.mrf.mxu0
    %v7137 = vadd.f32 0.0, %v7136
    %v7138 = vpop.f32.mrf.mxu0
    %7139 = vmatprep.mubr.f32.mxu0 0.0
    %7140 = vmatmul.mubr.f32.gmra.mxu0 %v7045
    %v7141 = vpop.f32.mrf.mxu0
    %v7142 = vadd.f32 0.0, %v7141
    %v7143 = vpop.f32.mrf.mxu0
    %7144 = vmatprep.mubr.f32.mxu0 0.0
    %7145 = vmatmul.mubr.f32.gmra.mxu0 %v7048
    %v7146 = vpop.f32.mrf.mxu0
    %v7147 = vadd.f32 0.0, %v7146
    %v7148 = vpop.f32.mrf.mxu0
    %7149 = vdwg.mxu0
    %v7151 = vsel %vm4925, %v6431, 0
    %v7154 = vsel %vm4925, %v6434, 0
    %v7157 = vsel %vm4925, %v6439, 0
    %v7160 = vsel %vm4925, %v6442, 0
    %v7163 = vsel %vm4925, %v6447, 0
    %v7166 = vsel %vm4925, %v6450, 0
    %v7169 = vsel %vm4925, %v6455, 0
    %7171 = vmatprep.subr.mxu0 0.0
    %7172 = vmatpush1.msra.mxu0 0.0
    %7173 = vmatprep.subr.mxu0 0.0
    %7174 = vmatpush1.msra.mxu0 0.0
    %7175 = vmatprep.subr.mxu0 0.0
    %7176 = vmatpush1.msra.mxu0 0.0
    %7177 = vmatprep.subr.mxu0 0.0
    %7178 = vmatpush1.msra.mxu0 0.0
    %7179 = vmatprep.subr.mxu0 0.0
    %7180 = vmatpush1.msra.mxu0 0.0
    %7181 = vmatprep.subr.mxu0 0.0
    %7182 = vmatpush1.msra.mxu0 0.0
    %7183 = vmatprep.subr.mxu0 0.0
    %7184 = vmatpush1.msra.mxu0 0.0
    %7185 = vmatprep.subr.mxu0 0.0
    %7186 = vmatpush1.msra.mxu0 0.0
    %7187 = vmatprep.subr.mxu0 0.0
    %7188 = vmatpush1.msra.mxu0 0.0
    %7189 = vmatprep.subr.mxu0 0.0
    %7190 = vmatpush1.msra.mxu0 0.0
    %7191 = vmatprep.subr.mxu0 0.0
    %7192 = vmatpush1.msra.mxu0 0.0
    %7193 = vmatprep.subr.mxu0 0.0
    %7194 = vmatpush1.msra.mxu0 0.0
    %7195 = vmatprep.subr.mxu0 0.0
    %7196 = vmatpush1.msra.mxu0 0.0
    %7197 = vmatprep.subr.mxu0 0.0
    %7198 = vmatpush1.msra.mxu0 0.0
    %7199 = vmatprep.subr.mxu0 0.0
    %7200 = vmatpush1.msra.mxu0 0.0
    %7201 = vmatprep.subr.mxu0 0.0
    %7202 = vmatpush1.msra.mxu0 %v6685
    %7203 = vmatprep.subr.mxu0 0.0
    %7204 = vmatpush2.msra.mxu0 0.0
    %7205 = vmatprep.subr.mxu0 0.0
    %7206 = vmatpush2.msra.mxu0 0.0
    %7207 = vmatprep.subr.mxu0 0.0
    %7208 = vmatpush2.msra.mxu0 0.0
    %7209 = vmatprep.subr.mxu0 0.0
    %7210 = vmatpush2.msra.mxu0 0.0
    %7211 = vmatprep.subr.mxu0 0.0
    %7212 = vmatpush2.msra.mxu0 0.0
    %7213 = vmatprep.subr.mxu0 0.0
    %7214 = vmatpush2.msra.mxu0 0.0
    %7215 = vmatprep.subr.mxu0 0.0
    %7216 = vmatpush2.msra.mxu0 0.0
    %7217 = vmatprep.subr.mxu0 0.0
    %7218 = vmatpush2.msra.mxu0 0.0
    %7219 = vmatprep.subr.mxu0 0.0
    %7220 = vmatpush2.msra.mxu0 0.0
    %7221 = vmatprep.subr.mxu0 0.0
    %7222 = vmatpush2.msra.mxu0 0.0
    %7223 = vmatprep.subr.mxu0 0.0
    %7224 = vmatpush2.msra.mxu0 0.0
    %7225 = vmatprep.subr.mxu0 0.0
    %7226 = vmatpush2.msra.mxu0 0.0
    %7227 = vmatprep.subr.mxu0 0.0
    %7228 = vmatpush2.msra.mxu0 0.0
    %7229 = vmatprep.subr.mxu0 0.0
    %7230 = vmatpush2.msra.mxu0 0.0
    %7231 = vmatprep.subr.mxu0 0.0
    %7232 = vmatpush2.msra.mxu0 0.0
    %7233 = vmatprep.subr.mxu0 0.0
    %7234 = vmatpush2.msra.mxu0 0.0
    %7235 = vmatprep.mubr.f32.mxu0 0.0
    %7236 = vmatmul.mubr.f32.gmra.mxu0 %v7151
    %v7237 = vpop.f32.mrf.mxu0
    %v7238 = vadd.f32 0.0, %v7237
    %v7239 = vpop.f32.mrf.mxu0
    %7240 = vmatprep.mubr.f32.mxu0 0.0
    %7241 = vmatmul.mubr.f32.gmra.mxu0 %v7154
    %v7242 = vpop.f32.mrf.mxu0
    %v7243 = vadd.f32 0.0, %v7242
    %v7244 = vpop.f32.mrf.mxu0
    %7245 = vmatprep.mubr.f32.mxu0 0.0
    %7246 = vmatmul.mubr.f32.gmra.mxu0 %v7157
    %v7247 = vpop.f32.mrf.mxu0
    %v7248 = vadd.f32 0.0, %v7247
    %v7249 = vpop.f32.mrf.mxu0
    %7250 = vmatprep.mubr.f32.mxu0 0.0
    %7251 = vmatmul.mubr.f32.gmra.mxu0 %v7160
    %v7252 = vpop.f32.mrf.mxu0
    %v7253 = vadd.f32 0.0, %v7252
    %v7254 = vpop.f32.mrf.mxu0
    %7255 = vmatprep.mubr.f32.mxu0 0.0
    %7256 = vmatmul.mubr.f32.gmra.mxu0 %v7163
    %v7257 = vpop.f32.mrf.mxu0
    %v7258 = vadd.f32 0.0, %v7257
    %v7259 = vpop.f32.mrf.mxu0
    %7260 = vmatprep.mubr.f32.mxu0 0.0
    %7261 = vmatmul.mubr.f32.gmra.mxu0 %v7166
    %v7262 = vpop.f32.mrf.mxu0
    %v7263 = vadd.f32 0.0, %v7262
    %v7264 = vpop.f32.mrf.mxu0
    %7265 = vmatprep.mubr.f32.mxu0 0.0
    %7266 = vmatmul.mubr.f32.gmra.mxu0 %v7169
    %v7267 = vpop.f32.mrf.mxu0
    %v7268 = vadd.f32 0.0, %v7267
    %v7269 = vpop.f32.mrf.mxu0
    %7270 = vdwg.mxu0
    %v7272 = vsel %vm4925, %v6498, 0
    %v7275 = vsel %vm4925, %v6501, 0
    %v7278 = vsel %vm4925, %v6506, 0
    %v7281 = vsel %vm4925, %v6509, 0
    %v7284 = vsel %vm4925, %v6514, 0
    %v7287 = vsel %vm4925, %v6517, 0
    %v7290 = vsel %vm4925, %v6522, 0
    %7292 = vmatprep.subr.mxu0 0.0
    %7293 = vmatpush1.msra.mxu0 0.0
    %7294 = vmatprep.subr.mxu0 0.0
    %7295 = vmatpush1.msra.mxu0 0.0
    %7296 = vmatprep.subr.mxu0 0.0
    %7297 = vmatpush1.msra.mxu0 0.0
    %7298 = vmatprep.subr.mxu0 0.0
    %7299 = vmatpush1.msra.mxu0 0.0
    %7300 = vmatprep.subr.mxu0 0.0
    %7301 = vmatpush1.msra.mxu0 0.0
    %7302 = vmatprep.subr.mxu0 0.0
    %7303 = vmatpush1.msra.mxu0 0.0
    %7304 = vmatprep.subr.mxu0 0.0
    %7305 = vmatpush1.msra.mxu0 0.0
    %7306 = vmatprep.subr.mxu0 0.0
    %7307 = vmatpush1.msra.mxu0 0.0
    %7308 = vmatprep.subr.mxu0 0.0
    %7309 = vmatpush1.msra.mxu0 0.0
    %7310 = vmatprep.subr.mxu0 0.0
    %7311 = vmatpush1.msra.mxu0 0.0
    %7312 = vmatprep.subr.mxu0 0.0
    %7313 = vmatpush1.msra.mxu0 0.0
    %7314 = vmatprep.subr.mxu0 0.0
    %7315 = vmatpush1.msra.mxu0 0.0
    %7316 = vmatprep.subr.mxu0 0.0
    %7317 = vmatpush1.msra.mxu0 0.0
    %7318 = vmatprep.subr.mxu0 0.0
    %7319 = vmatpush1.msra.mxu0 0.0
    %7320 = vmatprep.subr.mxu0 0.0
    %7321 = vmatpush1.msra.mxu0 0.0
    %7322 = vmatprep.subr.mxu0 0.0
    %7323 = vmatpush1.msra.mxu0 %v6685
    %7324 = vmatprep.subr.mxu0 0.0
    %7325 = vmatpush2.msra.mxu0 0.0
    %7326 = vmatprep.subr.mxu0 0.0
    %7327 = vmatpush2.msra.mxu0 0.0
    %7328 = vmatprep.subr.mxu0 0.0
    %7329 = vmatpush2.msra.mxu0 0.0
    %7330 = vmatprep.subr.mxu0 0.0
    %7331 = vmatpush2.msra.mxu0 0.0
    %7332 = vmatprep.subr.mxu0 0.0
    %7333 = vmatpush2.msra.mxu0 0.0
    %7334 = vmatprep.subr.mxu0 0.0
    %7335 = vmatpush2.msra.mxu0 0.0
    %7336 = vmatprep.subr.mxu0 0.0
    %7337 = vmatpush2.msra.mxu0 0.0
    %7338 = vmatprep.subr.mxu0 0.0
    %7339 = vmatpush2.msra.mxu0 0.0
    %7340 = vmatprep.subr.mxu0 0.0
    %7341 = vmatpush2.msra.mxu0 0.0
    %7342 = vmatprep.subr.mxu0 0.0
    %7343 = vmatpush2.msra.mxu0 0.0
    %7344 = vmatprep.subr.mxu0 0.0
    %7345 = vmatpush2.msra.mxu0 0.0
    %7346 = vmatprep.subr.mxu0 0.0
    %7347 = vmatpush2.msra.mxu0 0.0
    %7348 = vmatprep.subr.mxu0 0.0
    %7349 = vmatpush2.msra.mxu0 0.0
    %7350 = vmatprep.subr.mxu0 0.0
    %7351 = vmatpush2.msra.mxu0 0.0
    %7352 = vmatprep.subr.mxu0 0.0
    %7353 = vmatpush2.msra.mxu0 0.0
    %7354 = vmatprep.subr.mxu0 0.0
    %7355 = vmatpush2.msra.mxu0 0.0
    %7356 = vmatprep.mubr.f32.mxu0 0.0
    %7357 = vmatmul.mubr.f32.gmra.mxu0 %v7272
    %v7358 = vpop.f32.mrf.mxu0
    %v7359 = vadd.f32 0.0, %v7358
    %v7360 = vpop.f32.mrf.mxu0
    %7361 = vmatprep.mubr.f32.mxu0 0.0
    %7362 = vmatmul.mubr.f32.gmra.mxu0 %v7275
    %v7363 = vpop.f32.mrf.mxu0
    %v7364 = vadd.f32 0.0, %v7363
    %v7365 = vpop.f32.mrf.mxu0
    %7366 = vmatprep.mubr.f32.mxu0 0.0
    %7367 = vmatmul.mubr.f32.gmra.mxu0 %v7278
    %v7368 = vpop.f32.mrf.mxu0
    %v7369 = vadd.f32 0.0, %v7368
    %v7370 = vpop.f32.mrf.mxu0
    %7371 = vmatprep.mubr.f32.mxu0 0.0
    %7372 = vmatmul.mubr.f32.gmra.mxu0 %v7281
    %v7373 = vpop.f32.mrf.mxu0
    %v7374 = vadd.f32 0.0, %v7373
    %v7375 = vpop.f32.mrf.mxu0
    %7376 = vmatprep.mubr.f32.mxu0 0.0
    %7377 = vmatmul.mubr.f32.gmra.mxu0 %v7284
    %v7378 = vpop.f32.mrf.mxu0
    %v7379 = vadd.f32 0.0, %v7378
    %v7380 = vpop.f32.mrf.mxu0
    %7381 = vmatprep.mubr.f32.mxu0 0.0
    %7382 = vmatmul.mubr.f32.gmra.mxu0 %v7287
    %v7383 = vpop.f32.mrf.mxu0
    %v7384 = vadd.f32 0.0, %v7383
    %v7385 = vpop.f32.mrf.mxu0
    %7386 = vmatprep.mubr.f32.mxu0 0.0
    %7387 = vmatmul.mubr.f32.gmra.mxu0 %v7290
    %v7388 = vpop.f32.mrf.mxu0
    %v7389 = vadd.f32 0.0, %v7388
    %v7390 = vpop.f32.mrf.mxu0
    %7391 = vdwg.mxu0
    %v7393 = vsel %vm4925, %v6565, 0
    %v7396 = vsel %vm4925, %v6568, 0
    %v7399 = vsel %vm4925, %v6573, 0
    %v7402 = vsel %vm4925, %v6576, 0
    %v7405 = vsel %vm4925, %v6581, 0
    %v7408 = vsel %vm4925, %v6584, 0
    %v7411 = vsel %vm4925, %v6589, 0
    %7413 = vmatprep.subr.mxu0 0.0
    %7414 = vmatpush1.msra.mxu0 0.0
    %7415 = vmatprep.subr.mxu0 0.0
    %7416 = vmatpush1.msra.mxu0 0.0
    %7417 = vmatprep.subr.mxu0 0.0
    %7418 = vmatpush1.msra.mxu0 0.0
    %7419 = vmatprep.subr.mxu0 0.0
    %7420 = vmatpush1.msra.mxu0 0.0
    %7421 = vmatprep.subr.mxu0 0.0
    %7422 = vmatpush1.msra.mxu0 0.0
    %7423 = vmatprep.subr.mxu0 0.0
    %7424 = vmatpush1.msra.mxu0 0.0
    %7425 = vmatprep.subr.mxu0 0.0
    %7426 = vmatpush1.msra.mxu0 0.0
    %7427 = vmatprep.subr.mxu0 0.0
    %7428 = vmatpush1.msra.mxu0 0.0
    %7429 = vmatprep.subr.mxu0 0.0
    %7430 = vmatpush1.msra.mxu0 0.0
    %7431 = vmatprep.subr.mxu0 0.0
    %7432 = vmatpush1.msra.mxu0 0.0
    %7433 = vmatprep.subr.mxu0 0.0
    %7434 = vmatpush1.msra.mxu0 0.0
    %7435 = vmatprep.subr.mxu0 0.0
    %7436 = vmatpush1.msra.mxu0 0.0
    %7437 = vmatprep.subr.mxu0 0.0
    %7438 = vmatpush1.msra.mxu0 0.0
    %7439 = vmatprep.subr.mxu0 0.0
    %7440 = vmatpush1.msra.mxu0 0.0
    %7441 = vmatprep.subr.mxu0 0.0
    %7442 = vmatpush1.msra.mxu0 0.0
    %7443 = vmatprep.subr.mxu0 0.0
    %7444 = vmatpush1.msra.mxu0 %v6685
    %7445 = vmatprep.subr.mxu0 0.0
    %7446 = vmatpush2.msra.mxu0 0.0
    %7447 = vmatprep.subr.mxu0 0.0
    %7448 = vmatpush2.msra.mxu0 0.0
    %7449 = vmatprep.subr.mxu0 0.0
    %7450 = vmatpush2.msra.mxu0 0.0
    %7451 = vmatprep.subr.mxu0 0.0
    %7452 = vmatpush2.msra.mxu0 0.0
    %7453 = vmatprep.subr.mxu0 0.0
    %7454 = vmatpush2.msra.mxu0 0.0
    %7455 = vmatprep.subr.mxu0 0.0
    %7456 = vmatpush2.msra.mxu0 0.0
    %7457 = vmatprep.subr.mxu0 0.0
    %7458 = vmatpush2.msra.mxu0 0.0
    %7459 = vmatprep.subr.mxu0 0.0
    %7460 = vmatpush2.msra.mxu0 0.0
    %7461 = vmatprep.subr.mxu0 0.0
    %7462 = vmatpush2.msra.mxu0 0.0
    %7463 = vmatprep.subr.mxu0 0.0
    %7464 = vmatpush2.msra.mxu0 0.0
    %7465 = vmatprep.subr.mxu0 0.0
    %7466 = vmatpush2.msra.mxu0 0.0
    %7467 = vmatprep.subr.mxu0 0.0
    %7468 = vmatpush2.msra.mxu0 0.0
    %7469 = vmatprep.subr.mxu0 0.0
    %7470 = vmatpush2.msra.mxu0 0.0
    %7471 = vmatprep.subr.mxu0 0.0
    %7472 = vmatpush2.msra.mxu0 0.0
    %7473 = vmatprep.subr.mxu0 0.0
    %7474 = vmatpush2.msra.mxu0 0.0
    %7475 = vmatprep.subr.mxu0 0.0
    %7476 = vmatpush2.msra.mxu0 0.0
    %7477 = vmatprep.mubr.f32.mxu0 0.0
    %7478 = vmatmul.mubr.f32.gmra.mxu0 %v7393
    %v7479 = vpop.f32.mrf.mxu0
    %v7480 = vadd.f32 0.0, %v7479
    %v7481 = vpop.f32.mrf.mxu0
    %7482 = vmatprep.mubr.f32.mxu0 0.0
    %7483 = vmatmul.mubr.f32.gmra.mxu0 %v7396
    %v7484 = vpop.f32.mrf.mxu0
    %v7485 = vadd.f32 0.0, %v7484
    %v7486 = vpop.f32.mrf.mxu0
    %7487 = vmatprep.mubr.f32.mxu0 0.0
    %7488 = vmatmul.mubr.f32.gmra.mxu0 %v7399
    %v7489 = vpop.f32.mrf.mxu0
    %v7490 = vadd.f32 0.0, %v7489
    %v7491 = vpop.f32.mrf.mxu0
    %7492 = vmatprep.mubr.f32.mxu0 0.0
    %7493 = vmatmul.mubr.f32.gmra.mxu0 %v7402
    %v7494 = vpop.f32.mrf.mxu0
    %v7495 = vadd.f32 0.0, %v7494
    %v7496 = vpop.f32.mrf.mxu0
    %7497 = vmatprep.mubr.f32.mxu0 0.0
    %7498 = vmatmul.mubr.f32.gmra.mxu0 %v7405
    %v7499 = vpop.f32.mrf.mxu0
    %v7500 = vadd.f32 0.0, %v7499
    %v7501 = vpop.f32.mrf.mxu0
    %7502 = vmatprep.mubr.f32.mxu0 0.0
    %7503 = vmatmul.mubr.f32.gmra.mxu0 %v7408
    %v7504 = vpop.f32.mrf.mxu0
    %v7505 = vadd.f32 0.0, %v7504
    %v7506 = vpop.f32.mrf.mxu0
    %7507 = vmatprep.mubr.f32.mxu0 0.0
    %7508 = vmatmul.mubr.f32.gmra.mxu0 %v7411
    %v7509 = vpop.f32.mrf.mxu0
    %v7510 = vadd.f32 0.0, %v7509
    %v7511 = vpop.f32.mrf.mxu0
    %7512 = vdwg.mxu0
    %v7514 = vsel %vm4925, %v6632, 0
    %v7517 = vsel %vm4925, %v6635, 0
    %v7520 = vsel %vm4925, %v6640, 0
    %v7523 = vsel %vm4925, %v6643, 0
    %v7526 = vsel %vm4925, %v6648, 0
    %v7529 = vsel %vm4925, %v6651, 0
    %v7532 = vsel %vm4925, %v6656, 0
    %7534 = vmatprep.subr.mxu0 0.0
    %7535 = vmatpush1.msra.mxu0 0.0
    %7536 = vmatprep.subr.mxu0 0.0
    %7537 = vmatpush1.msra.mxu0 0.0
    %7538 = vmatprep.subr.mxu0 0.0
    %7539 = vmatpush1.msra.mxu0 0.0
    %7540 = vmatprep.subr.mxu0 0.0
    %7541 = vmatpush1.msra.mxu0 0.0
    %7542 = vmatprep.subr.mxu0 0.0
    %7543 = vmatpush1.msra.mxu0 0.0
    %7544 = vmatprep.subr.mxu0 0.0
    %7545 = vmatpush1.msra.mxu0 0.0
    %7546 = vmatprep.subr.mxu0 0.0
    %7547 = vmatpush1.msra.mxu0 0.0
    %7548 = vmatprep.subr.mxu0 0.0
    %7549 = vmatpush1.msra.mxu0 0.0
    %7550 = vmatprep.subr.mxu0 0.0
    %7551 = vmatpush1.msra.mxu0 0.0
    %7552 = vmatprep.subr.mxu0 0.0
    %7553 = vmatpush1.msra.mxu0 0.0
    %7554 = vmatprep.subr.mxu0 0.0
    %7555 = vmatpush1.msra.mxu0 0.0
    %7556 = vmatprep.subr.mxu0 0.0
    %7557 = vmatpush1.msra.mxu0 0.0
    %7558 = vmatprep.subr.mxu0 0.0
    %7559 = vmatpush1.msra.mxu0 0.0
    %7560 = vmatprep.subr.mxu0 0.0
    %7561 = vmatpush1.msra.mxu0 0.0
    %7562 = vmatprep.subr.mxu0 0.0
    %7563 = vmatpush1.msra.mxu0 0.0
    %7564 = vmatprep.subr.mxu0 0.0
    %7565 = vmatpush1.msra.mxu0 %v6685
    %7566 = vmatprep.subr.mxu0 0.0
    %7567 = vmatpush2.msra.mxu0 0.0
    %7568 = vmatprep.subr.mxu0 0.0
    %7569 = vmatpush2.msra.mxu0 0.0
    %7570 = vmatprep.subr.mxu0 0.0
    %7571 = vmatpush2.msra.mxu0 0.0
    %7572 = vmatprep.subr.mxu0 0.0
    %7573 = vmatpush2.msra.mxu0 0.0
    %7574 = vmatprep.subr.mxu0 0.0
    %7575 = vmatpush2.msra.mxu0 0.0
    %7576 = vmatprep.subr.mxu0 0.0
    %7577 = vmatpush2.msra.mxu0 0.0
    %7578 = vmatprep.subr.mxu0 0.0
    %7579 = vmatpush2.msra.mxu0 0.0
    %7580 = vmatprep.subr.mxu0 0.0
    %7581 = vmatpush2.msra.mxu0 0.0
    %7582 = vmatprep.subr.mxu0 0.0
    %7583 = vmatpush2.msra.mxu0 0.0
    %7584 = vmatprep.subr.mxu0 0.0
    %7585 = vmatpush2.msra.mxu0 0.0
    %7586 = vmatprep.subr.mxu0 0.0
    %7587 = vmatpush2.msra.mxu0 0.0
    %7588 = vmatprep.subr.mxu0 0.0
    %7589 = vmatpush2.msra.mxu0 0.0
    %7590 = vmatprep.subr.mxu0 0.0
    %7591 = vmatpush2.msra.mxu0 0.0
    %7592 = vmatprep.subr.mxu0 0.0
    %7593 = vmatpush2.msra.mxu0 0.0
    %7594 = vmatprep.subr.mxu0 0.0
    %7595 = vmatpush2.msra.mxu0 0.0
    %7596 = vmatprep.subr.mxu0 0.0
    %7597 = vmatpush2.msra.mxu0 0.0
    %7598 = vmatprep.mubr.f32.mxu0 0.0
    %7599 = vmatmul.mubr.f32.gmra.mxu0 %v7514
    %v7600 = vpop.f32.mrf.mxu0
    %v7601 = vadd.f32 0.0, %v7600
    %v7602 = vpop.f32.mrf.mxu0
    %7603 = vmatprep.mubr.f32.mxu0 0.0
    %7604 = vmatmul.mubr.f32.gmra.mxu0 %v7517
    %v7605 = vpop.f32.mrf.mxu0
    %v7606 = vadd.f32 0.0, %v7605
    %v7607 = vpop.f32.mrf.mxu0
    %7608 = vmatprep.mubr.f32.mxu0 0.0
    %7609 = vmatmul.mubr.f32.gmra.mxu0 %v7520
    %v7610 = vpop.f32.mrf.mxu0
    %v7611 = vadd.f32 0.0, %v7610
    %v7612 = vpop.f32.mrf.mxu0
    %7613 = vmatprep.mubr.f32.mxu0 0.0
    %7614 = vmatmul.mubr.f32.gmra.mxu0 %v7523
    %v7615 = vpop.f32.mrf.mxu0
    %v7616 = vadd.f32 0.0, %v7615
    %v7617 = vpop.f32.mrf.mxu0
    %7618 = vmatprep.mubr.f32.mxu0 0.0
    %7619 = vmatmul.mubr.f32.gmra.mxu0 %v7526
    %v7620 = vpop.f32.mrf.mxu0
    %v7621 = vadd.f32 0.0, %v7620
    %v7622 = vpop.f32.mrf.mxu0
    %7623 = vmatprep.mubr.f32.mxu0 0.0
    %7624 = vmatmul.mubr.f32.gmra.mxu0 %v7529
    %v7625 = vpop.f32.mrf.mxu0
    %v7626 = vadd.f32 0.0, %v7625
    %v7627 = vpop.f32.mrf.mxu0
    %7628 = vmatprep.mubr.f32.mxu0 0.0
    %7629 = vmatmul.mubr.f32.gmra.mxu0 %v7532
    %v7630 = vpop.f32.mrf.mxu0
    %v7631 = vadd.f32 0.0, %v7630
    %v7632 = vpop.f32.mrf.mxu0
    %7633 = vdwg.mxu0
    %v7634 = vadd.f32 %v6079, %v6754
    %v7635 = vadd.f32 %v6080, %v6759
    %v7636 = vadd.f32 %v6081, %v6764
    %v7637 = vadd.f32 %v6082, %v6769
    %v7638 = vadd.f32 %v6083, %v6774
    %v7639 = vadd.f32 %v6084, %v6779
    %v7640 = vadd.f32 %v6085, %v6784
    %v7641 = vadd.f32 %v6079, %v6875
    %v7642 = vadd.f32 %v6080, %v6880
    %v7643 = vadd.f32 %v6081, %v6885
    %v7644 = vadd.f32 %v6082, %v6890
    %v7645 = vadd.f32 %v6083, %v6895
    %v7646 = vadd.f32 %v6084, %v6900
    %v7647 = vadd.f32 %v6085, %v6905
    %v7648 = vadd.f32 %v6079, %v6996
    %v7649 = vadd.f32 %v6080, %v7001
    %v7650 = vadd.f32 %v6081, %v7006
    %v7651 = vadd.f32 %v6082, %v7011
    %v7652 = vadd.f32 %v6083, %v7016
    %v7653 = vadd.f32 %v6084, %v7021
    %v7654 = vadd.f32 %v6085, %v7026
    %v7655 = vadd.f32 %v6079, %v7117
    %v7656 = vadd.f32 %v6080, %v7122
    %v7657 = vadd.f32 %v6081, %v7127
    %v7658 = vadd.f32 %v6082, %v7132
    %v7659 = vadd.f32 %v6083, %v7137
    %v7660 = vadd.f32 %v6084, %v7142
    %v7661 = vadd.f32 %v6085, %v7147
    %v7662 = vadd.f32 %v6079, %v7238
    %v7663 = vadd.f32 %v6080, %v7243
    %v7664 = vadd.f32 %v6081, %v7248
    %v7665 = vadd.f32 %v6082, %v7253
    %v7666 = vadd.f32 %v6083, %v7258
    %v7667 = vadd.f32 %v6084, %v7263
    %v7668 = vadd.f32 %v6085, %v7268
    %v7669 = vadd.f32 %v6079, %v7359
    %v7670 = vadd.f32 %v6080, %v7364
    %v7671 = vadd.f32 %v6081, %v7369
    %v7672 = vadd.f32 %v6082, %v7374
    %v7673 = vadd.f32 %v6083, %v7379
    %v7674 = vadd.f32 %v6084, %v7384
    %v7675 = vadd.f32 %v6085, %v7389
    %v7676 = vadd.f32 %v6079, %v7480
    %v7677 = vadd.f32 %v6080, %v7485
    %v7678 = vadd.f32 %v6081, %v7490
    %v7679 = vadd.f32 %v6082, %v7495
    %v7680 = vadd.f32 %v6083, %v7500
    %v7681 = vadd.f32 %v6084, %v7505
    %v7682 = vadd.f32 %v6085, %v7510
    %v7683 = vadd.f32 %v6079, %v7601
    %v7684 = vadd.f32 %v6080, %v7606
    %v7685 = vadd.f32 %v6081, %v7611
    %v7686 = vadd.f32 %v6082, %v7616
    %v7687 = vadd.f32 %v6083, %v7621
    %v7688 = vadd.f32 %v6084, %v7626
    %v7689 = vadd.f32 %v6085, %v7631
    %s7690 = scalar_lea.vmem %s8, 28
    %v7691 = vld [vmem:[%s7690] sm:$0xf]
    %v7692 = vld [vmem:[%s7690 + $0x4] sm:$0xf]
    %v7693 = vld [vmem:[%s7690 + $0x8] sm:$0xf]
    %v7694 = vld [vmem:[%s7690 + $0xc] sm:$0xf]
    %v7695 = vld [vmem:[%s7690 + $0x10] sm:$0xf]
    %v7696 = vld [vmem:[%s7690 + $0x14] sm:$0xf]
    %v7697 = vld [vmem:[%s7690 + $0x18] sm:$0x7]
    %v7705 = vunpack.c.l.b16 %v7691
    %v7706 = vunpack.c.l.b16 %v7692
    %v7707 = vunpack.c.l.b16 %v7693
    %v7708 = vunpack.c.l.b16 %v7694
    %v7709 = vunpack.c.l.b16 %v7695
    %v7710 = vunpack.c.l.b16 %v7696
    %v7711 = vunpack.c.l.b16 %v7697
    %v7712 = vpack.c.b16 %v7706, %v7705
    %v7713 = vpack.c.b16 %v7708, %v7707
    %v7714 = vpack.c.b16 %v7710, %v7709
    %v7715 = vpack.c.b16 %v7711, %v7711
    %v7717 = vsel %vm6111, %v7712, 0
    %v7720 = vsel %vm6111, %v7713, 0
    %v7723 = vsel %vm6111, %v7714, 0
    %v7726 = vsel %vm6111, %v7715, 0
    %7728 = vmatprep.subr.bf16.mxu0 0
    %7729 = vmatpush1.bf16.msra.mxu0 0
    %7730 = vmatprep.subr.bf16.mxu0 0
    %7731 = vmatpush1.bf16.msra.mxu0 0
    %7732 = vmatprep.subr.bf16.mxu0 0
    %7733 = vmatpush1.bf16.msra.mxu0 0
    %7734 = vmatprep.subr.bf16.mxu0 0
    %7735 = vmatpush1.bf16.msra.mxu0 0
    %7736 = vmatprep.subr.bf16.mxu0 0
    %7737 = vmatpush1.bf16.msra.mxu0 0
    %7738 = vmatprep.subr.bf16.mxu0 0
    %7739 = vmatpush1.bf16.msra.mxu0 %v6126
    %7740 = vmatprep.subr.bf16.mxu0 0
    %7741 = vmatpush1.bf16.msra.mxu0 %v6056
    %7742 = vmatprep.subr.bf16.mxu0 0
    %7743 = vmatpush1.bf16.msra.mxu0 %v6055
    %7744 = vmatprep.subr.bf16.mxu0 0
    %7745 = vmatpush2.bf16.msra.mxu0 0
    %7746 = vmatprep.subr.bf16.mxu0 0
    %7747 = vmatpush2.bf16.msra.mxu0 0
    %7748 = vmatprep.subr.bf16.mxu0 0
    %7749 = vmatpush2.bf16.msra.mxu0 0
    %7750 = vmatprep.subr.bf16.mxu0 0
    %7751 = vmatpush2.bf16.msra.mxu0 0
    %7752 = vmatprep.subr.bf16.mxu0 0
    %7753 = vmatpush2.bf16.msra.mxu0 0
    %7754 = vmatprep.subr.bf16.mxu0 0
    %7755 = vmatpush2.bf16.msra.mxu0 0
    %7756 = vmatprep.subr.bf16.mxu0 0
    %7757 = vmatpush2.bf16.msra.mxu0 0
    %7758 = vmatprep.subr.bf16.mxu0 0
    %7759 = vmatpush2.bf16.msra.mxu0 0
    %7760 = vmatprep.mubr.bf16.mxu0 0
    %7761 = vmatmul.mubr.bf16.gmra.mxu0 %v7717
    %v7762 = vpop.f32.mrf.mxu0
    %v7763 = vadd.f32 0.0, %v7762
    %v7764 = vpop.f32.mrf.mxu0
    %v7765 = vpop.f32.mrf.mxu0
    %v7766 = vadd.f32 0.0, %v7765
    %v7767 = vpop.f32.mrf.mxu0
    %7768 = vmatprep.mubr.bf16.mxu0 0
    %7769 = vmatmul.mubr.bf16.gmra.mxu0 %v7720
    %v7770 = vpop.f32.mrf.mxu0
    %v7771 = vadd.f32 0.0, %v7770
    %v7772 = vpop.f32.mrf.mxu0
    %v7773 = vpop.f32.mrf.mxu0
    %v7774 = vadd.f32 0.0, %v7773
    %v7775 = vpop.f32.mrf.mxu0
    %7776 = vmatprep.mubr.bf16.mxu0 0
    %7777 = vmatmul.mubr.bf16.gmra.mxu0 %v7723
    %v7778 = vpop.f32.mrf.mxu0
    %v7779 = vadd.f32 0.0, %v7778
    %v7780 = vpop.f32.mrf.mxu0
    %v7781 = vpop.f32.mrf.mxu0
    %v7782 = vadd.f32 0.0, %v7781
    %v7783 = vpop.f32.mrf.mxu0
    %7784 = vmatprep.mubr.bf16.mxu0 0
    %7785 = vmatmul.mubr.bf16.gmra.mxu0 %v7726
    %v7786 = vpop.f32.mrf.mxu0
    %v7787 = vadd.f32 0.0, %v7786
    %v7788 = vpop.f32.mrf.mxu0
    %v7789 = vpop.f32.mrf.mxu0
    %v7790 = vpop.f32.mrf.mxu0
    %7791 = vdwg.mxu0
    %7792 = vmatprep.subr.bf16.mxu0 0
    %7793 = vmatpush1.bf16.msra.mxu0 0
    %7794 = vmatprep.subr.bf16.mxu0 0
    %7795 = vmatpush1.bf16.msra.mxu0 0
    %7796 = vmatprep.subr.bf16.mxu0 0
    %7797 = vmatpush1.bf16.msra.mxu0 0
    %7798 = vmatprep.subr.bf16.mxu0 0
    %7799 = vmatpush1.bf16.msra.mxu0 0
    %7800 = vmatprep.subr.bf16.mxu0 0
    %7801 = vmatpush1.bf16.msra.mxu0 0
    %7802 = vmatprep.subr.bf16.mxu0 0
    %7803 = vmatpush1.bf16.msra.mxu0 %v6193
    %7804 = vmatprep.subr.bf16.mxu0 0
    %7805 = vmatpush1.bf16.msra.mxu0 %v6059
    %7806 = vmatprep.subr.bf16.mxu0 0
    %7807 = vmatpush1.bf16.msra.mxu0 %v6058
    %7808 = vmatprep.subr.bf16.mxu0 0
    %7809 = vmatpush2.bf16.msra.mxu0 0
    %7810 = vmatprep.subr.bf16.mxu0 0
    %7811 = vmatpush2.bf16.msra.mxu0 0
    %7812 = vmatprep.subr.bf16.mxu0 0
    %7813 = vmatpush2.bf16.msra.mxu0 0
    %7814 = vmatprep.subr.bf16.mxu0 0
    %7815 = vmatpush2.bf16.msra.mxu0 0
    %7816 = vmatprep.subr.bf16.mxu0 0
    %7817 = vmatpush2.bf16.msra.mxu0 0
    %7818 = vmatprep.subr.bf16.mxu0 0
    %7819 = vmatpush2.bf16.msra.mxu0 0
    %7820 = vmatprep.subr.bf16.mxu0 0
    %7821 = vmatpush2.bf16.msra.mxu0 0
    %7822 = vmatprep.subr.bf16.mxu0 0
    %7823 = vmatpush2.bf16.msra.mxu0 0
    %7824 = vmatprep.mubr.bf16.mxu0 0
    %7825 = vmatmul.mubr.bf16.gmra.mxu0 %v7717
    %v7826 = vpop.f32.mrf.mxu0
    %v7827 = vadd.f32 0.0, %v7826
    %v7828 = vpop.f32.mrf.mxu0
    %v7829 = vpop.f32.mrf.mxu0
    %v7830 = vadd.f32 0.0, %v7829
    %v7831 = vpop.f32.mrf.mxu0
    %7832 = vmatprep.mubr.bf16.mxu0 0
    %7833 = vmatmul.mubr.bf16.gmra.mxu0 %v7720
    %v7834 = vpop.f32.mrf.mxu0
    %v7835 = vadd.f32 0.0, %v7834
    %v7836 = vpop.f32.mrf.mxu0
    %v7837 = vpop.f32.mrf.mxu0
    %v7838 = vadd.f32 0.0, %v7837
    %v7839 = vpop.f32.mrf.mxu0
    %7840 = vmatprep.mubr.bf16.mxu0 0
    %7841 = vmatmul.mubr.bf16.gmra.mxu0 %v7723
    %v7842 = vpop.f32.mrf.mxu0
    %v7843 = vadd.f32 0.0, %v7842
    %v7844 = vpop.f32.mrf.mxu0
    %v7845 = vpop.f32.mrf.mxu0
    %v7846 = vadd.f32 0.0, %v7845
    %v7847 = vpop.f32.mrf.mxu0
    %7848 = vmatprep.mubr.bf16.mxu0 0
    %7849 = vmatmul.mubr.bf16.gmra.mxu0 %v7726
    %v7850 = vpop.f32.mrf.mxu0
    %v7851 = vadd.f32 0.0, %v7850
    %v7852 = vpop.f32.mrf.mxu0
    %v7853 = vpop.f32.mrf.mxu0
    %v7854 = vpop.f32.mrf.mxu0
    %7855 = vdwg.mxu0
    %7856 = vmatprep.subr.bf16.mxu0 0
    %7857 = vmatpush1.bf16.msra.mxu0 0
    %7858 = vmatprep.subr.bf16.mxu0 0
    %7859 = vmatpush1.bf16.msra.mxu0 0
    %7860 = vmatprep.subr.bf16.mxu0 0
    %7861 = vmatpush1.bf16.msra.mxu0 0
    %7862 = vmatprep.subr.bf16.mxu0 0
    %7863 = vmatpush1.bf16.msra.mxu0 0
    %7864 = vmatprep.subr.bf16.mxu0 0
    %7865 = vmatpush1.bf16.msra.mxu0 0
    %7866 = vmatprep.subr.bf16.mxu0 0
    %7867 = vmatpush1.bf16.msra.mxu0 %v6260
    %7868 = vmatprep.subr.bf16.mxu0 0
    %7869 = vmatpush1.bf16.msra.mxu0 %v6062
    %7870 = vmatprep.subr.bf16.mxu0 0
    %7871 = vmatpush1.bf16.msra.mxu0 %v6061
    %7872 = vmatprep.subr.bf16.mxu0 0
    %7873 = vmatpush2.bf16.msra.mxu0 0
    %7874 = vmatprep.subr.bf16.mxu0 0
    %7875 = vmatpush2.bf16.msra.mxu0 0
    %7876 = vmatprep.subr.bf16.mxu0 0
    %7877 = vmatpush2.bf16.msra.mxu0 0
    %7878 = vmatprep.subr.bf16.mxu0 0
    %7879 = vmatpush2.bf16.msra.mxu0 0
    %7880 = vmatprep.subr.bf16.mxu0 0
    %7881 = vmatpush2.bf16.msra.mxu0 0
    %7882 = vmatprep.subr.bf16.mxu0 0
    %7883 = vmatpush2.bf16.msra.mxu0 0
    %7884 = vmatprep.subr.bf16.mxu0 0
    %7885 = vmatpush2.bf16.msra.mxu0 0
    %7886 = vmatprep.subr.bf16.mxu0 0
    %7887 = vmatpush2.bf16.msra.mxu0 0
    %7888 = vmatprep.mubr.bf16.mxu0 0
    %7889 = vmatmul.mubr.bf16.gmra.mxu0 %v7717
    %v7890 = vpop.f32.mrf.mxu0
    %v7891 = vadd.f32 0.0, %v7890
    %v7892 = vpop.f32.mrf.mxu0
    %v7893 = vpop.f32.mrf.mxu0
    %v7894 = vadd.f32 0.0, %v7893
    %v7895 = vpop.f32.mrf.mxu0
    %7896 = vmatprep.mubr.bf16.mxu0 0
    %7897 = vmatmul.mubr.bf16.gmra.mxu0 %v7720
    %v7898 = vpop.f32.mrf.mxu0
    %v7899 = vadd.f32 0.0, %v7898
    %v7900 = vpop.f32.mrf.mxu0
    %v7901 = vpop.f32.mrf.mxu0
    %v7902 = vadd.f32 0.0, %v7901
    %v7903 = vpop.f32.mrf.mxu0
    %7904 = vmatprep.mubr.bf16.mxu0 0
    %7905 = vmatmul.mubr.bf16.gmra.mxu0 %v7723
    %v7906 = vpop.f32.mrf.mxu0
    %v7907 = vadd.f32 0.0, %v7906
    %v7908 = vpop.f32.mrf.mxu0
    %v7909 = vpop.f32.mrf.mxu0
    %v7910 = vadd.f32 0.0, %v7909
    %v7911 = vpop.f32.mrf.mxu0
    %7912 = vmatprep.mubr.bf16.mxu0 0
    %7913 = vmatmul.mubr.bf16.gmra.mxu0 %v7726
    %v7914 = vpop.f32.mrf.mxu0
    %v7915 = vadd.f32 0.0, %v7914
    %v7916 = vpop.f32.mrf.mxu0
    %v7917 = vpop.f32.mrf.mxu0
    %v7918 = vpop.f32.mrf.mxu0
    %7919 = vdwg.mxu0
    %7920 = vmatprep.subr.bf16.mxu0 0
    %7921 = vmatpush1.bf16.msra.mxu0 0
    %7922 = vmatprep.subr.bf16.mxu0 0
    %7923 = vmatpush1.bf16.msra.mxu0 0
    %7924 = vmatprep.subr.bf16.mxu0 0
    %7925 = vmatpush1.bf16.msra.mxu0 0
    %7926 = vmatprep.subr.bf16.mxu0 0
    %7927 = vmatpush1.bf16.msra.mxu0 0
    %7928 = vmatprep.subr.bf16.mxu0 0
    %7929 = vmatpush1.bf16.msra.mxu0 0
    %7930 = vmatprep.subr.bf16.mxu0 0
    %7931 = vmatpush1.bf16.msra.mxu0 %v6327
    %7932 = vmatprep.subr.bf16.mxu0 0
    %7933 = vmatpush1.bf16.msra.mxu0 %v6065
    %7934 = vmatprep.subr.bf16.mxu0 0
    %7935 = vmatpush1.bf16.msra.mxu0 %v6064
    %7936 = vmatprep.subr.bf16.mxu0 0
    %7937 = vmatpush2.bf16.msra.mxu0 0
    %7938 = vmatprep.subr.bf16.mxu0 0
    %7939 = vmatpush2.bf16.msra.mxu0 0
    %7940 = vmatprep.subr.bf16.mxu0 0
    %7941 = vmatpush2.bf16.msra.mxu0 0
    %7942 = vmatprep.subr.bf16.mxu0 0
    %7943 = vmatpush2.bf16.msra.mxu0 0
    %7944 = vmatprep.subr.bf16.mxu0 0
    %7945 = vmatpush2.bf16.msra.mxu0 0
    %7946 = vmatprep.subr.bf16.mxu0 0
    %7947 = vmatpush2.bf16.msra.mxu0 0
    %7948 = vmatprep.subr.bf16.mxu0 0
    %7949 = vmatpush2.bf16.msra.mxu0 0
    %7950 = vmatprep.subr.bf16.mxu0 0
    %7951 = vmatpush2.bf16.msra.mxu0 0
    %7952 = vmatprep.mubr.bf16.mxu0 0
    %7953 = vmatmul.mubr.bf16.gmra.mxu0 %v7717
    %v7954 = vpop.f32.mrf.mxu0
    %v7955 = vadd.f32 0.0, %v7954
    %v7956 = vpop.f32.mrf.mxu0
    %v7957 = vpop.f32.mrf.mxu0
    %v7958 = vadd.f32 0.0, %v7957
    %v7959 = vpop.f32.mrf.mxu0
    %7960 = vmatprep.mubr.bf16.mxu0 0
    %7961 = vmatmul.mubr.bf16.gmra.mxu0 %v7720
    %v7962 = vpop.f32.mrf.mxu0
    %v7963 = vadd.f32 0.0, %v7962
    %v7964 = vpop.f32.mrf.mxu0
    %v7965 = vpop.f32.mrf.mxu0
    %v7966 = vadd.f32 0.0, %v7965
    %v7967 = vpop.f32.mrf.mxu0
    %7968 = vmatprep.mubr.bf16.mxu0 0
    %7969 = vmatmul.mubr.bf16.gmra.mxu0 %v7723
    %v7970 = vpop.f32.mrf.mxu0
    %v7971 = vadd.f32 0.0, %v7970
    %v7972 = vpop.f32.mrf.mxu0
    %v7973 = vpop.f32.mrf.mxu0
    %v7974 = vadd.f32 0.0, %v7973
    %v7975 = vpop.f32.mrf.mxu0
    %7976 = vmatprep.mubr.bf16.mxu0 0
    %7977 = vmatmul.mubr.bf16.gmra.mxu0 %v7726
    %v7978 = vpop.f32.mrf.mxu0
    %v7979 = vadd.f32 0.0, %v7978
    %v7980 = vpop.f32.mrf.mxu0
    %v7981 = vpop.f32.mrf.mxu0
    %v7982 = vpop.f32.mrf.mxu0
    %7983 = vdwg.mxu0
    %7984 = vmatprep.subr.bf16.mxu0 0
    %7985 = vmatpush1.bf16.msra.mxu0 0
    %7986 = vmatprep.subr.bf16.mxu0 0
    %7987 = vmatpush1.bf16.msra.mxu0 0
    %7988 = vmatprep.subr.bf16.mxu0 0
    %7989 = vmatpush1.bf16.msra.mxu0 0
    %7990 = vmatprep.subr.bf16.mxu0 0
    %7991 = vmatpush1.bf16.msra.mxu0 0
    %7992 = vmatprep.subr.bf16.mxu0 0
    %7993 = vmatpush1.bf16.msra.mxu0 0
    %7994 = vmatprep.subr.bf16.mxu0 0
    %7995 = vmatpush1.bf16.msra.mxu0 %v6394
    %7996 = vmatprep.subr.bf16.mxu0 0
    %7997 = vmatpush1.bf16.msra.mxu0 %v6068
    %7998 = vmatprep.subr.bf16.mxu0 0
    %7999 = vmatpush1.bf16.msra.mxu0 %v6067
    %8000 = vmatprep.subr.bf16.mxu0 0
    %8001 = vmatpush2.bf16.msra.mxu0 0
    %8002 = vmatprep.subr.bf16.mxu0 0
    %8003 = vmatpush2.bf16.msra.mxu0 0
    %8004 = vmatprep.subr.bf16.mxu0 0
    %8005 = vmatpush2.bf16.msra.mxu0 0
    %8006 = vmatprep.subr.bf16.mxu0 0
    %8007 = vmatpush2.bf16.msra.mxu0 0
    %8008 = vmatprep.subr.bf16.mxu0 0
    %8009 = vmatpush2.bf16.msra.mxu0 0
    %8010 = vmatprep.subr.bf16.mxu0 0
    %8011 = vmatpush2.bf16.msra.mxu0 0
    %8012 = vmatprep.subr.bf16.mxu0 0
    %8013 = vmatpush2.bf16.msra.mxu0 0
    %8014 = vmatprep.subr.bf16.mxu0 0
    %8015 = vmatpush2.bf16.msra.mxu0 0
    %8016 = vmatprep.mubr.bf16.mxu0 0
    %8017 = vmatmul.mubr.bf16.gmra.mxu0 %v7717
    %v8018 = vpop.f32.mrf.mxu0
    %v8019 = vadd.f32 0.0, %v8018
    %v8020 = vpop.f32.mrf.mxu0
    %v8021 = vpop.f32.mrf.mxu0
    %v8022 = vadd.f32 0.0, %v8021
    %v8023 = vpop.f32.mrf.mxu0
    %8024 = vmatprep.mubr.bf16.mxu0 0
    %8025 = vmatmul.mubr.bf16.gmra.mxu0 %v7720
    %v8026 = vpop.f32.mrf.mxu0
    %v8027 = vadd.f32 0.0, %v8026
    %v8028 = vpop.f32.mrf.mxu0
    %v8029 = vpop.f32.mrf.mxu0
    %v8030 = vadd.f32 0.0, %v8029
    %v8031 = vpop.f32.mrf.mxu0
    %8032 = vmatprep.mubr.bf16.mxu0 0
    %8033 = vmatmul.mubr.bf16.gmra.mxu0 %v7723
    %v8034 = vpop.f32.mrf.mxu0
    %v8035 = vadd.f32 0.0, %v8034
    %v8036 = vpop.f32.mrf.mxu0
    %v8037 = vpop.f32.mrf.mxu0
    %v8038 = vadd.f32 0.0, %v8037
    %v8039 = vpop.f32.mrf.mxu0
    %8040 = vmatprep.mubr.bf16.mxu0 0
    %8041 = vmatmul.mubr.bf16.gmra.mxu0 %v7726
    %v8042 = vpop.f32.mrf.mxu0
    %v8043 = vadd.f32 0.0, %v8042
    %v8044 = vpop.f32.mrf.mxu0
    %v8045 = vpop.f32.mrf.mxu0
    %v8046 = vpop.f32.mrf.mxu0
    %8047 = vdwg.mxu0
    %8048 = vmatprep.subr.bf16.mxu0 0
    %8049 = vmatpush1.bf16.msra.mxu0 0
    %8050 = vmatprep.subr.bf16.mxu0 0
    %8051 = vmatpush1.bf16.msra.mxu0 0
    %8052 = vmatprep.subr.bf16.mxu0 0
    %8053 = vmatpush1.bf16.msra.mxu0 0
    %8054 = vmatprep.subr.bf16.mxu0 0
    %8055 = vmatpush1.bf16.msra.mxu0 0
    %8056 = vmatprep.subr.bf16.mxu0 0
    %8057 = vmatpush1.bf16.msra.mxu0 0
    %8058 = vmatprep.subr.bf16.mxu0 0
    %8059 = vmatpush1.bf16.msra.mxu0 %v6461
    %8060 = vmatprep.subr.bf16.mxu0 0
    %8061 = vmatpush1.bf16.msra.mxu0 %v6071
    %8062 = vmatprep.subr.bf16.mxu0 0
    %8063 = vmatpush1.bf16.msra.mxu0 %v6070
    %8064 = vmatprep.subr.bf16.mxu0 0
    %8065 = vmatpush2.bf16.msra.mxu0 0
    %8066 = vmatprep.subr.bf16.mxu0 0
    %8067 = vmatpush2.bf16.msra.mxu0 0
    %8068 = vmatprep.subr.bf16.mxu0 0
    %8069 = vmatpush2.bf16.msra.mxu0 0
    %8070 = vmatprep.subr.bf16.mxu0 0
    %8071 = vmatpush2.bf16.msra.mxu0 0
    %8072 = vmatprep.subr.bf16.mxu0 0
    %8073 = vmatpush2.bf16.msra.mxu0 0
    %8074 = vmatprep.subr.bf16.mxu0 0
    %8075 = vmatpush2.bf16.msra.mxu0 0
    %8076 = vmatprep.subr.bf16.mxu0 0
    %8077 = vmatpush2.bf16.msra.mxu0 0
    %8078 = vmatprep.subr.bf16.mxu0 0
    %8079 = vmatpush2.bf16.msra.mxu0 0
    %8080 = vmatprep.mubr.bf16.mxu0 0
    %8081 = vmatmul.mubr.bf16.gmra.mxu0 %v7717
    %v8082 = vpop.f32.mrf.mxu0
    %v8083 = vadd.f32 0.0, %v8082
    %v8084 = vpop.f32.mrf.mxu0
    %v8085 = vpop.f32.mrf.mxu0
    %v8086 = vadd.f32 0.0, %v8085
    %v8087 = vpop.f32.mrf.mxu0
    %8088 = vmatprep.mubr.bf16.mxu0 0
    %8089 = vmatmul.mubr.bf16.gmra.mxu0 %v7720
    %v8090 = vpop.f32.mrf.mxu0
    %v8091 = vadd.f32 0.0, %v8090
    %v8092 = vpop.f32.mrf.mxu0
    %v8093 = vpop.f32.mrf.mxu0
    %v8094 = vadd.f32 0.0, %v8093
    %v8095 = vpop.f32.mrf.mxu0
    %8096 = vmatprep.mubr.bf16.mxu0 0
    %8097 = vmatmul.mubr.bf16.gmra.mxu0 %v7723
    %v8098 = vpop.f32.mrf.mxu0
    %v8099 = vadd.f32 0.0, %v8098
    %v8100 = vpop.f32.mrf.mxu0
    %v8101 = vpop.f32.mrf.mxu0
    %v8102 = vadd.f32 0.0, %v8101
    %v8103 = vpop.f32.mrf.mxu0
    %8104 = vmatprep.mubr.bf16.mxu0 0
    %8105 = vmatmul.mubr.bf16.gmra.mxu0 %v7726
    %v8106 = vpop.f32.mrf.mxu0
    %v8107 = vadd.f32 0.0, %v8106
    %v8108 = vpop.f32.mrf.mxu0
    %v8109 = vpop.f32.mrf.mxu0
    %v8110 = vpop.f32.mrf.mxu0
    %8111 = vdwg.mxu0
    %8112 = vmatprep.subr.bf16.mxu0 0
    %8113 = vmatpush1.bf16.msra.mxu0 0
    %8114 = vmatprep.subr.bf16.mxu0 0
    %8115 = vmatpush1.bf16.msra.mxu0 0
    %8116 = vmatprep.subr.bf16.mxu0 0
    %8117 = vmatpush1.bf16.msra.mxu0 0
    %8118 = vmatprep.subr.bf16.mxu0 0
    %8119 = vmatpush1.bf16.msra.mxu0 0
    %8120 = vmatprep.subr.bf16.mxu0 0
    %8121 = vmatpush1.bf16.msra.mxu0 0
    %8122 = vmatprep.subr.bf16.mxu0 0
    %8123 = vmatpush1.bf16.msra.mxu0 %v6528
    %8124 = vmatprep.subr.bf16.mxu0 0
    %8125 = vmatpush1.bf16.msra.mxu0 %v6074
    %8126 = vmatprep.subr.bf16.mxu0 0
    %8127 = vmatpush1.bf16.msra.mxu0 %v6073
    %8128 = vmatprep.subr.bf16.mxu0 0
    %8129 = vmatpush2.bf16.msra.mxu0 0
    %8130 = vmatprep.subr.bf16.mxu0 0
    %8131 = vmatpush2.bf16.msra.mxu0 0
    %8132 = vmatprep.subr.bf16.mxu0 0
    %8133 = vmatpush2.bf16.msra.mxu0 0
    %8134 = vmatprep.subr.bf16.mxu0 0
    %8135 = vmatpush2.bf16.msra.mxu0 0
    %8136 = vmatprep.subr.bf16.mxu0 0
    %8137 = vmatpush2.bf16.msra.mxu0 0
    %8138 = vmatprep.subr.bf16.mxu0 0
    %8139 = vmatpush2.bf16.msra.mxu0 0
    %8140 = vmatprep.subr.bf16.mxu0 0
    %8141 = vmatpush2.bf16.msra.mxu0 0
    %8142 = vmatprep.subr.bf16.mxu0 0
    %8143 = vmatpush2.bf16.msra.mxu0 0
    %8144 = vmatprep.mubr.bf16.mxu0 0
    %8145 = vmatmul.mubr.bf16.gmra.mxu0 %v7717
    %v8146 = vpop.f32.mrf.mxu0
    %v8147 = vadd.f32 0.0, %v8146
    %v8148 = vpop.f32.mrf.mxu0
    %v8149 = vpop.f32.mrf.mxu0
    %v8150 = vadd.f32 0.0, %v8149
    %v8151 = vpop.f32.mrf.mxu0
    %8152 = vmatprep.mubr.bf16.mxu0 0
    %8153 = vmatmul.mubr.bf16.gmra.mxu0 %v7720
    %v8154 = vpop.f32.mrf.mxu0
    %v8155 = vadd.f32 0.0, %v8154
    %v8156 = vpop.f32.mrf.mxu0
    %v8157 = vpop.f32.mrf.mxu0
    %v8158 = vadd.f32 0.0, %v8157
    %v8159 = vpop.f32.mrf.mxu0
    %8160 = vmatprep.mubr.bf16.mxu0 0
    %8161 = vmatmul.mubr.bf16.gmra.mxu0 %v7723
    %v8162 = vpop.f32.mrf.mxu0
    %v8163 = vadd.f32 0.0, %v8162
    %v8164 = vpop.f32.mrf.mxu0
    %v8165 = vpop.f32.mrf.mxu0
    %v8166 = vadd.f32 0.0, %v8165
    %v8167 = vpop.f32.mrf.mxu0
    %8168 = vmatprep.mubr.bf16.mxu0 0
    %8169 = vmatmul.mubr.bf16.gmra.mxu0 %v7726
    %v8170 = vpop.f32.mrf.mxu0
    %v8171 = vadd.f32 0.0, %v8170
    %v8172 = vpop.f32.mrf.mxu0
    %v8173 = vpop.f32.mrf.mxu0
    %v8174 = vpop.f32.mrf.mxu0
    %8175 = vdwg.mxu0
    %8176 = vmatprep.subr.bf16.mxu0 0
    %8177 = vmatpush1.bf16.msra.mxu0 0
    %8178 = vmatprep.subr.bf16.mxu0 0
    %8179 = vmatpush1.bf16.msra.mxu0 0
    %8180 = vmatprep.subr.bf16.mxu0 0
    %8181 = vmatpush1.bf16.msra.mxu0 0
    %8182 = vmatprep.subr.bf16.mxu0 0
    %8183 = vmatpush1.bf16.msra.mxu0 0
    %8184 = vmatprep.subr.bf16.mxu0 0
    %8185 = vmatpush1.bf16.msra.mxu0 0
    %8186 = vmatprep.subr.bf16.mxu0 0
    %8187 = vmatpush1.bf16.msra.mxu0 %v6595
    %8188 = vmatprep.subr.bf16.mxu0 0
    %8189 = vmatpush1.bf16.msra.mxu0 %v6077
    %8190 = vmatprep.subr.bf16.mxu0 0
    %8191 = vmatpush1.bf16.msra.mxu0 %v6076
    %8192 = vmatprep.subr.bf16.mxu0 0
    %8193 = vmatpush2.bf16.msra.mxu0 0
    %8194 = vmatprep.subr.bf16.mxu0 0
    %8195 = vmatpush2.bf16.msra.mxu0 0
    %8196 = vmatprep.subr.bf16.mxu0 0
    %8197 = vmatpush2.bf16.msra.mxu0 0
    %8198 = vmatprep.subr.bf16.mxu0 0
    %8199 = vmatpush2.bf16.msra.mxu0 0
    %8200 = vmatprep.subr.bf16.mxu0 0
    %8201 = vmatpush2.bf16.msra.mxu0 0
    %8202 = vmatprep.subr.bf16.mxu0 0
    %8203 = vmatpush2.bf16.msra.mxu0 0
    %8204 = vmatprep.subr.bf16.mxu0 0
    %8205 = vmatpush2.bf16.msra.mxu0 0
    %8206 = vmatprep.subr.bf16.mxu0 0
    %8207 = vmatpush2.bf16.msra.mxu0 0
    %8208 = vmatprep.mubr.bf16.mxu0 0
    %8209 = vmatmul.mubr.bf16.gmra.mxu0 %v7717
    %v8210 = vpop.f32.mrf.mxu0
    %v8211 = vadd.f32 0.0, %v8210
    %v8212 = vpop.f32.mrf.mxu0
    %v8213 = vpop.f32.mrf.mxu0
    %v8214 = vadd.f32 0.0, %v8213
    %v8215 = vpop.f32.mrf.mxu0
    %8216 = vmatprep.mubr.bf16.mxu0 0
    %8217 = vmatmul.mubr.bf16.gmra.mxu0 %v7720
    %v8218 = vpop.f32.mrf.mxu0
    %v8219 = vadd.f32 0.0, %v8218
    %v8220 = vpop.f32.mrf.mxu0
    %v8221 = vpop.f32.mrf.mxu0
    %v8222 = vadd.f32 0.0, %v8221
    %v8223 = vpop.f32.mrf.mxu0
    %8224 = vmatprep.mubr.bf16.mxu0 0
    %8225 = vmatmul.mubr.bf16.gmra.mxu0 %v7723
    %v8226 = vpop.f32.mrf.mxu0
    %v8227 = vadd.f32 0.0, %v8226
    %v8228 = vpop.f32.mrf.mxu0
    %v8229 = vpop.f32.mrf.mxu0
    %v8230 = vadd.f32 0.0, %v8229
    %v8231 = vpop.f32.mrf.mxu0
    %8232 = vmatprep.mubr.bf16.mxu0 0
    %8233 = vmatmul.mubr.bf16.gmra.mxu0 %v7726
    %v8234 = vpop.f32.mrf.mxu0
    %v8235 = vadd.f32 0.0, %v8234
    %v8236 = vpop.f32.mrf.mxu0
    %v8237 = vpop.f32.mrf.mxu0
    %v8238 = vpop.f32.mrf.mxu0
    %8239 = vdwg.mxu0
    %s8240 = scalar_lea.vmem %s9, 8
    %v8241 = vld [vmem:[%s8240] sm:$0x7f]
    %v8243 = vsel %vm4925, %v7763, 0
    %v8246 = vsel %vm4925, %v7766, 0
    %v8249 = vsel %vm4925, %v7771, 0
    %v8252 = vsel %vm4925, %v7774, 0
    %v8255 = vsel %vm4925, %v7779, 0
    %v8258 = vsel %vm4925, %v7782, 0
    %v8261 = vsel %vm4925, %v7787, 0
    %v8264 = vsel %vm6683, %v8241, 0
    %8266 = vmatprep.subr.mxu0 0.0
    %8267 = vmatpush1.msra.mxu0 0.0
    %8268 = vmatprep.subr.mxu0 0.0
    %8269 = vmatpush1.msra.mxu0 0.0
    %8270 = vmatprep.subr.mxu0 0.0
    %8271 = vmatpush1.msra.mxu0 0.0
    %8272 = vmatprep.subr.mxu0 0.0
    %8273 = vmatpush1.msra.mxu0 0.0
    %8274 = vmatprep.subr.mxu0 0.0
    %8275 = vmatpush1.msra.mxu0 0.0
    %8276 = vmatprep.subr.mxu0 0.0
    %8277 = vmatpush1.msra.mxu0 0.0
    %8278 = vmatprep.subr.mxu0 0.0
    %8279 = vmatpush1.msra.mxu0 0.0
    %8280 = vmatprep.subr.mxu0 0.0
    %8281 = vmatpush1.msra.mxu0 0.0
    %8282 = vmatprep.subr.mxu0 0.0
    %8283 = vmatpush1.msra.mxu0 0.0
    %8284 = vmatprep.subr.mxu0 0.0
    %8285 = vmatpush1.msra.mxu0 0.0
    %8286 = vmatprep.subr.mxu0 0.0
    %8287 = vmatpush1.msra.mxu0 0.0
    %8288 = vmatprep.subr.mxu0 0.0
    %8289 = vmatpush1.msra.mxu0 0.0
    %8290 = vmatprep.subr.mxu0 0.0
    %8291 = vmatpush1.msra.mxu0 0.0
    %8292 = vmatprep.subr.mxu0 0.0
    %8293 = vmatpush1.msra.mxu0 0.0
    %8294 = vmatprep.subr.mxu0 0.0
    %8295 = vmatpush1.msra.mxu0 0.0
    %8296 = vmatprep.subr.mxu0 0.0
    %8297 = vmatpush1.msra.mxu0 %v8264
    %8298 = vmatprep.subr.mxu0 0.0
    %8299 = vmatpush2.msra.mxu0 0.0
    %8300 = vmatprep.subr.mxu0 0.0
    %8301 = vmatpush2.msra.mxu0 0.0
    %8302 = vmatprep.subr.mxu0 0.0
    %8303 = vmatpush2.msra.mxu0 0.0
    %8304 = vmatprep.subr.mxu0 0.0
    %8305 = vmatpush2.msra.mxu0 0.0
    %8306 = vmatprep.subr.mxu0 0.0
    %8307 = vmatpush2.msra.mxu0 0.0
    %8308 = vmatprep.subr.mxu0 0.0
    %8309 = vmatpush2.msra.mxu0 0.0
    %8310 = vmatprep.subr.mxu0 0.0
    %8311 = vmatpush2.msra.mxu0 0.0
    %8312 = vmatprep.subr.mxu0 0.0
    %8313 = vmatpush2.msra.mxu0 0.0
    %8314 = vmatprep.subr.mxu0 0.0
    %8315 = vmatpush2.msra.mxu0 0.0
    %8316 = vmatprep.subr.mxu0 0.0
    %8317 = vmatpush2.msra.mxu0 0.0
    %8318 = vmatprep.subr.mxu0 0.0
    %8319 = vmatpush2.msra.mxu0 0.0
    %8320 = vmatprep.subr.mxu0 0.0
    %8321 = vmatpush2.msra.mxu0 0.0
    %8322 = vmatprep.subr.mxu0 0.0
    %8323 = vmatpush2.msra.mxu0 0.0
    %8324 = vmatprep.subr.mxu0 0.0
    %8325 = vmatpush2.msra.mxu0 0.0
    %8326 = vmatprep.subr.mxu0 0.0
    %8327 = vmatpush2.msra.mxu0 0.0
    %8328 = vmatprep.subr.mxu0 0.0
    %8329 = vmatpush2.msra.mxu0 0.0
    %8330 = vmatprep.mubr.f32.mxu0 0.0
    %8331 = vmatmul.mubr.f32.gmra.mxu0 %v8243
    %v8332 = vpop.f32.mrf.mxu0
    %v8333 = vadd.f32 0.0, %v8332
    %v8334 = vpop.f32.mrf.mxu0
    %8335 = vmatprep.mubr.f32.mxu0 0.0
    %8336 = vmatmul.mubr.f32.gmra.mxu0 %v8246
    %v8337 = vpop.f32.mrf.mxu0
    %v8338 = vadd.f32 0.0, %v8337
    %v8339 = vpop.f32.mrf.mxu0
    %8340 = vmatprep.mubr.f32.mxu0 0.0
    %8341 = vmatmul.mubr.f32.gmra.mxu0 %v8249
    %v8342 = vpop.f32.mrf.mxu0
    %v8343 = vadd.f32 0.0, %v8342
    %v8344 = vpop.f32.mrf.mxu0
    %8345 = vmatprep.mubr.f32.mxu0 0.0
    %8346 = vmatmul.mubr.f32.gmra.mxu0 %v8252
    %v8347 = vpop.f32.mrf.mxu0
    %v8348 = vadd.f32 0.0, %v8347
    %v8349 = vpop.f32.mrf.mxu0
    %8350 = vmatprep.mubr.f32.mxu0 0.0
    %8351 = vmatmul.mubr.f32.gmra.mxu0 %v8255
    %v8352 = vpop.f32.mrf.mxu0
    %v8353 = vadd.f32 0.0, %v8352
    %v8354 = vpop.f32.mrf.mxu0
    %8355 = vmatprep.mubr.f32.mxu0 0.0
    %8356 = vmatmul.mubr.f32.gmra.mxu0 %v8258
    %v8357 = vpop.f32.mrf.mxu0
    %v8358 = vadd.f32 0.0, %v8357
    %v8359 = vpop.f32.mrf.mxu0
    %8360 = vmatprep.mubr.f32.mxu0 0.0
    %8361 = vmatmul.mubr.f32.gmra.mxu0 %v8261
    %v8362 = vpop.f32.mrf.mxu0
    %v8363 = vadd.f32 0.0, %v8362
    %v8364 = vpop.f32.mrf.mxu0
    %8365 = vdwg.mxu0
    %v8367 = vsel %vm4925, %v7827, 0
    %v8370 = vsel %vm4925, %v7830, 0
    %v8373 = vsel %vm4925, %v7835, 0
    %v8376 = vsel %vm4925, %v7838, 0
    %v8379 = vsel %vm4925, %v7843, 0
    %v8382 = vsel %vm4925, %v7846, 0
    %v8385 = vsel %vm4925, %v7851, 0
    %8387 = vmatprep.subr.mxu0 0.0
    %8388 = vmatpush1.msra.mxu0 0.0
    %8389 = vmatprep.subr.mxu0 0.0
    %8390 = vmatpush1.msra.mxu0 0.0
    %8391 = vmatprep.subr.mxu0 0.0
    %8392 = vmatpush1.msra.mxu0 0.0
    %8393 = vmatprep.subr.mxu0 0.0
    %8394 = vmatpush1.msra.mxu0 0.0
    %8395 = vmatprep.subr.mxu0 0.0
    %8396 = vmatpush1.msra.mxu0 0.0
    %8397 = vmatprep.subr.mxu0 0.0
    %8398 = vmatpush1.msra.mxu0 0.0
    %8399 = vmatprep.subr.mxu0 0.0
    %8400 = vmatpush1.msra.mxu0 0.0
    %8401 = vmatprep.subr.mxu0 0.0
    %8402 = vmatpush1.msra.mxu0 0.0
    %8403 = vmatprep.subr.mxu0 0.0
    %8404 = vmatpush1.msra.mxu0 0.0
    %8405 = vmatprep.subr.mxu0 0.0
    %8406 = vmatpush1.msra.mxu0 0.0
    %8407 = vmatprep.subr.mxu0 0.0
    %8408 = vmatpush1.msra.mxu0 0.0
    %8409 = vmatprep.subr.mxu0 0.0
    %8410 = vmatpush1.msra.mxu0 0.0
    %8411 = vmatprep.subr.mxu0 0.0
    %8412 = vmatpush1.msra.mxu0 0.0
    %8413 = vmatprep.subr.mxu0 0.0
    %8414 = vmatpush1.msra.mxu0 0.0
    %8415 = vmatprep.subr.mxu0 0.0
    %8416 = vmatpush1.msra.mxu0 0.0
    %8417 = vmatprep.subr.mxu0 0.0
    %8418 = vmatpush1.msra.mxu0 %v8264
    %8419 = vmatprep.subr.mxu0 0.0
    %8420 = vmatpush2.msra.mxu0 0.0
    %8421 = vmatprep.subr.mxu0 0.0
    %8422 = vmatpush2.msra.mxu0 0.0
    %8423 = vmatprep.subr.mxu0 0.0
    %8424 = vmatpush2.msra.mxu0 0.0
    %8425 = vmatprep.subr.mxu0 0.0
    %8426 = vmatpush2.msra.mxu0 0.0
    %8427 = vmatprep.subr.mxu0 0.0
    %8428 = vmatpush2.msra.mxu0 0.0
    %8429 = vmatprep.subr.mxu0 0.0
    %8430 = vmatpush2.msra.mxu0 0.0
    %8431 = vmatprep.subr.mxu0 0.0
    %8432 = vmatpush2.msra.mxu0 0.0
    %8433 = vmatprep.subr.mxu0 0.0
    %8434 = vmatpush2.msra.mxu0 0.0
    %8435 = vmatprep.subr.mxu0 0.0
    %8436 = vmatpush2.msra.mxu0 0.0
    %8437 = vmatprep.subr.mxu0 0.0
    %8438 = vmatpush2.msra.mxu0 0.0
    %8439 = vmatprep.subr.mxu0 0.0
    %8440 = vmatpush2.msra.mxu0 0.0
    %8441 = vmatprep.subr.mxu0 0.0
    %8442 = vmatpush2.msra.mxu0 0.0
    %8443 = vmatprep.subr.mxu0 0.0
    %8444 = vmatpush2.msra.mxu0 0.0
    %8445 = vmatprep.subr.mxu0 0.0
    %8446 = vmatpush2.msra.mxu0 0.0
    %8447 = vmatprep.subr.mxu0 0.0
    %8448 = vmatpush2.msra.mxu0 0.0
    %8449 = vmatprep.subr.mxu0 0.0
    %8450 = vmatpush2.msra.mxu0 0.0
    %8451 = vmatprep.mubr.f32.mxu0 0.0
    %8452 = vmatmul.mubr.f32.gmra.mxu0 %v8367
    %v8453 = vpop.f32.mrf.mxu0
    %v8454 = vadd.f32 0.0, %v8453
    %v8455 = vpop.f32.mrf.mxu0
    %8456 = vmatprep.mubr.f32.mxu0 0.0
    %8457 = vmatmul.mubr.f32.gmra.mxu0 %v8370
    %v8458 = vpop.f32.mrf.mxu0
    %v8459 = vadd.f32 0.0, %v8458
    %v8460 = vpop.f32.mrf.mxu0
    %8461 = vmatprep.mubr.f32.mxu0 0.0
    %8462 = vmatmul.mubr.f32.gmra.mxu0 %v8373
    %v8463 = vpop.f32.mrf.mxu0
    %v8464 = vadd.f32 0.0, %v8463
    %v8465 = vpop.f32.mrf.mxu0
    %8466 = vmatprep.mubr.f32.mxu0 0.0
    %8467 = vmatmul.mubr.f32.gmra.mxu0 %v8376
    %v8468 = vpop.f32.mrf.mxu0
    %v8469 = vadd.f32 0.0, %v8468
    %v8470 = vpop.f32.mrf.mxu0
    %8471 = vmatprep.mubr.f32.mxu0 0.0
    %8472 = vmatmul.mubr.f32.gmra.mxu0 %v8379
    %v8473 = vpop.f32.mrf.mxu0
    %v8474 = vadd.f32 0.0, %v8473
    %v8475 = vpop.f32.mrf.mxu0
    %8476 = vmatprep.mubr.f32.mxu0 0.0
    %8477 = vmatmul.mubr.f32.gmra.mxu0 %v8382
    %v8478 = vpop.f32.mrf.mxu0
    %v8479 = vadd.f32 0.0, %v8478
    %v8480 = vpop.f32.mrf.mxu0
    %8481 = vmatprep.mubr.f32.mxu0 0.0
    %8482 = vmatmul.mubr.f32.gmra.mxu0 %v8385
    %v8483 = vpop.f32.mrf.mxu0
    %v8484 = vadd.f32 0.0, %v8483
    %v8485 = vpop.f32.mrf.mxu0
    %8486 = vdwg.mxu0
    %v8488 = vsel %vm4925, %v7891, 0
    %v8491 = vsel %vm4925, %v7894, 0
    %v8494 = vsel %vm4925, %v7899, 0
    %v8497 = vsel %vm4925, %v7902, 0
    %v8500 = vsel %vm4925, %v7907, 0
    %v8503 = vsel %vm4925, %v7910, 0
    %v8506 = vsel %vm4925, %v7915, 0
    %8508 = vmatprep.subr.mxu0 0.0
    %8509 = vmatpush1.msra.mxu0 0.0
    %8510 = vmatprep.subr.mxu0 0.0
    %8511 = vmatpush1.msra.mxu0 0.0
    %8512 = vmatprep.subr.mxu0 0.0
    %8513 = vmatpush1.msra.mxu0 0.0
    %8514 = vmatprep.subr.mxu0 0.0
    %8515 = vmatpush1.msra.mxu0 0.0
    %8516 = vmatprep.subr.mxu0 0.0
    %8517 = vmatpush1.msra.mxu0 0.0
    %8518 = vmatprep.subr.mxu0 0.0
    %8519 = vmatpush1.msra.mxu0 0.0
    %8520 = vmatprep.subr.mxu0 0.0
    %8521 = vmatpush1.msra.mxu0 0.0
    %8522 = vmatprep.subr.mxu0 0.0
    %8523 = vmatpush1.msra.mxu0 0.0
    %8524 = vmatprep.subr.mxu0 0.0
    %8525 = vmatpush1.msra.mxu0 0.0
    %8526 = vmatprep.subr.mxu0 0.0
    %8527 = vmatpush1.msra.mxu0 0.0
    %8528 = vmatprep.subr.mxu0 0.0
    %8529 = vmatpush1.msra.mxu0 0.0
    %8530 = vmatprep.subr.mxu0 0.0
    %8531 = vmatpush1.msra.mxu0 0.0
    %8532 = vmatprep.subr.mxu0 0.0
    %8533 = vmatpush1.msra.mxu0 0.0
    %8534 = vmatprep.subr.mxu0 0.0
    %8535 = vmatpush1.msra.mxu0 0.0
    %8536 = vmatprep.subr.mxu0 0.0
    %8537 = vmatpush1.msra.mxu0 0.0
    %8538 = vmatprep.subr.mxu0 0.0
    %8539 = vmatpush1.msra.mxu0 %v8264
    %8540 = vmatprep.subr.mxu0 0.0
    %8541 = vmatpush2.msra.mxu0 0.0
    %8542 = vmatprep.subr.mxu0 0.0
    %8543 = vmatpush2.msra.mxu0 0.0
    %8544 = vmatprep.subr.mxu0 0.0
    %8545 = vmatpush2.msra.mxu0 0.0
    %8546 = vmatprep.subr.mxu0 0.0
    %8547 = vmatpush2.msra.mxu0 0.0
    %8548 = vmatprep.subr.mxu0 0.0
    %8549 = vmatpush2.msra.mxu0 0.0
    %8550 = vmatprep.subr.mxu0 0.0
    %8551 = vmatpush2.msra.mxu0 0.0
    %8552 = vmatprep.subr.mxu0 0.0
    %8553 = vmatpush2.msra.mxu0 0.0
    %8554 = vmatprep.subr.mxu0 0.0
    %8555 = vmatpush2.msra.mxu0 0.0
    %8556 = vmatprep.subr.mxu0 0.0
    %8557 = vmatpush2.msra.mxu0 0.0
    %8558 = vmatprep.subr.mxu0 0.0
    %8559 = vmatpush2.msra.mxu0 0.0
    %8560 = vmatprep.subr.mxu0 0.0
    %8561 = vmatpush2.msra.mxu0 0.0
    %8562 = vmatprep.subr.mxu0 0.0
    %8563 = vmatpush2.msra.mxu0 0.0
    %8564 = vmatprep.subr.mxu0 0.0
    %8565 = vmatpush2.msra.mxu0 0.0
    %8566 = vmatprep.subr.mxu0 0.0
    %8567 = vmatpush2.msra.mxu0 0.0
    %8568 = vmatprep.subr.mxu0 0.0
    %8569 = vmatpush2.msra.mxu0 0.0
    %8570 = vmatprep.subr.mxu0 0.0
    %8571 = vmatpush2.msra.mxu0 0.0
    %8572 = vmatprep.mubr.f32.mxu0 0.0
    %8573 = vmatmul.mubr.f32.gmra.mxu0 %v8488
    %v8574 = vpop.f32.mrf.mxu0
    %v8575 = vadd.f32 0.0, %v8574
    %v8576 = vpop.f32.mrf.mxu0
    %8577 = vmatprep.mubr.f32.mxu0 0.0
    %8578 = vmatmul.mubr.f32.gmra.mxu0 %v8491
    %v8579 = vpop.f32.mrf.mxu0
    %v8580 = vadd.f32 0.0, %v8579
    %v8581 = vpop.f32.mrf.mxu0
    %8582 = vmatprep.mubr.f32.mxu0 0.0
    %8583 = vmatmul.mubr.f32.gmra.mxu0 %v8494
    %v8584 = vpop.f32.mrf.mxu0
    %v8585 = vadd.f32 0.0, %v8584
    %v8586 = vpop.f32.mrf.mxu0
    %8587 = vmatprep.mubr.f32.mxu0 0.0
    %8588 = vmatmul.mubr.f32.gmra.mxu0 %v8497
    %v8589 = vpop.f32.mrf.mxu0
    %v8590 = vadd.f32 0.0, %v8589
    %v8591 = vpop.f32.mrf.mxu0
    %8592 = vmatprep.mubr.f32.mxu0 0.0
    %8593 = vmatmul.mubr.f32.gmra.mxu0 %v8500
    %v8594 = vpop.f32.mrf.mxu0
    %v8595 = vadd.f32 0.0, %v8594
    %v8596 = vpop.f32.mrf.mxu0
    %8597 = vmatprep.mubr.f32.mxu0 0.0
    %8598 = vmatmul.mubr.f32.gmra.mxu0 %v8503
    %v8599 = vpop.f32.mrf.mxu0
    %v8600 = vadd.f32 0.0, %v8599
    %v8601 = vpop.f32.mrf.mxu0
    %8602 = vmatprep.mubr.f32.mxu0 0.0
    %8603 = vmatmul.mubr.f32.gmra.mxu0 %v8506
    %v8604 = vpop.f32.mrf.mxu0
    %v8605 = vadd.f32 0.0, %v8604
    %v8606 = vpop.f32.mrf.mxu0
    %8607 = vdwg.mxu0
    %v8609 = vsel %vm4925, %v7955, 0
    %v8612 = vsel %vm4925, %v7958, 0
    %v8615 = vsel %vm4925, %v7963, 0
    %v8618 = vsel %vm4925, %v7966, 0
    %v8621 = vsel %vm4925, %v7971, 0
    %v8624 = vsel %vm4925, %v7974, 0
    %v8627 = vsel %vm4925, %v7979, 0
    %8629 = vmatprep.subr.mxu0 0.0
    %8630 = vmatpush1.msra.mxu0 0.0
    %8631 = vmatprep.subr.mxu0 0.0
    %8632 = vmatpush1.msra.mxu0 0.0
    %8633 = vmatprep.subr.mxu0 0.0
    %8634 = vmatpush1.msra.mxu0 0.0
    %8635 = vmatprep.subr.mxu0 0.0
    %8636 = vmatpush1.msra.mxu0 0.0
    %8637 = vmatprep.subr.mxu0 0.0
    %8638 = vmatpush1.msra.mxu0 0.0
    %8639 = vmatprep.subr.mxu0 0.0
    %8640 = vmatpush1.msra.mxu0 0.0
    %8641 = vmatprep.subr.mxu0 0.0
    %8642 = vmatpush1.msra.mxu0 0.0
    %8643 = vmatprep.subr.mxu0 0.0
    %8644 = vmatpush1.msra.mxu0 0.0
    %8645 = vmatprep.subr.mxu0 0.0
    %8646 = vmatpush1.msra.mxu0 0.0
    %8647 = vmatprep.subr.mxu0 0.0
    %8648 = vmatpush1.msra.mxu0 0.0
    %8649 = vmatprep.subr.mxu0 0.0
    %8650 = vmatpush1.msra.mxu0 0.0
    %8651 = vmatprep.subr.mxu0 0.0
    %8652 = vmatpush1.msra.mxu0 0.0
    %8653 = vmatprep.subr.mxu0 0.0
    %8654 = vmatpush1.msra.mxu0 0.0
    %8655 = vmatprep.subr.mxu0 0.0
    %8656 = vmatpush1.msra.mxu0 0.0
    %8657 = vmatprep.subr.mxu0 0.0
    %8658 = vmatpush1.msra.mxu0 0.0
    %8659 = vmatprep.subr.mxu0 0.0
    %8660 = vmatpush1.msra.mxu0 %v8264
    %8661 = vmatprep.subr.mxu0 0.0
    %8662 = vmatpush2.msra.mxu0 0.0
    %8663 = vmatprep.subr.mxu0 0.0
    %8664 = vmatpush2.msra.mxu0 0.0
    %8665 = vmatprep.subr.mxu0 0.0
    %8666 = vmatpush2.msra.mxu0 0.0
    %8667 = vmatprep.subr.mxu0 0.0
    %8668 = vmatpush2.msra.mxu0 0.0
    %8669 = vmatprep.subr.mxu0 0.0
    %8670 = vmatpush2.msra.mxu0 0.0
    %8671 = vmatprep.subr.mxu0 0.0
    %8672 = vmatpush2.msra.mxu0 0.0
    %8673 = vmatprep.subr.mxu0 0.0
    %8674 = vmatpush2.msra.mxu0 0.0
    %8675 = vmatprep.subr.mxu0 0.0
    %8676 = vmatpush2.msra.mxu0 0.0
    %8677 = vmatprep.subr.mxu0 0.0
    %8678 = vmatpush2.msra.mxu0 0.0
    %8679 = vmatprep.subr.mxu0 0.0
    %8680 = vmatpush2.msra.mxu0 0.0
    %8681 = vmatprep.subr.mxu0 0.0
    %8682 = vmatpush2.msra.mxu0 0.0
    %8683 = vmatprep.subr.mxu0 0.0
    %8684 = vmatpush2.msra.mxu0 0.0
    %8685 = vmatprep.subr.mxu0 0.0
    %8686 = vmatpush2.msra.mxu0 0.0
    %8687 = vmatprep.subr.mxu0 0.0
    %8688 = vmatpush2.msra.mxu0 0.0
    %8689 = vmatprep.subr.mxu0 0.0
    %8690 = vmatpush2.msra.mxu0 0.0
    %8691 = vmatprep.subr.mxu0 0.0
    %8692 = vmatpush2.msra.mxu0 0.0
    %8693 = vmatprep.mubr.f32.mxu0 0.0
    %8694 = vmatmul.mubr.f32.gmra.mxu0 %v8609
    %v8695 = vpop.f32.mrf.mxu0
    %v8696 = vadd.f32 0.0, %v8695
    %v8697 = vpop.f32.mrf.mxu0
    %8698 = vmatprep.mubr.f32.mxu0 0.0
    %8699 = vmatmul.mubr.f32.gmra.mxu0 %v8612
    %v8700 = vpop.f32.mrf.mxu0
    %v8701 = vadd.f32 0.0, %v8700
    %v8702 = vpop.f32.mrf.mxu0
    %8703 = vmatprep.mubr.f32.mxu0 0.0
    %8704 = vmatmul.mubr.f32.gmra.mxu0 %v8615
    %v8705 = vpop.f32.mrf.mxu0
    %v8706 = vadd.f32 0.0, %v8705
    %v8707 = vpop.f32.mrf.mxu0
    %8708 = vmatprep.mubr.f32.mxu0 0.0
    %8709 = vmatmul.mubr.f32.gmra.mxu0 %v8618
    %v8710 = vpop.f32.mrf.mxu0
    %v8711 = vadd.f32 0.0, %v8710
    %v8712 = vpop.f32.mrf.mxu0
    %8713 = vmatprep.mubr.f32.mxu0 0.0
    %8714 = vmatmul.mubr.f32.gmra.mxu0 %v8621
    %v8715 = vpop.f32.mrf.mxu0
    %v8716 = vadd.f32 0.0, %v8715
    %v8717 = vpop.f32.mrf.mxu0
    %8718 = vmatprep.mubr.f32.mxu0 0.0
    %8719 = vmatmul.mubr.f32.gmra.mxu0 %v8624
    %v8720 = vpop.f32.mrf.mxu0
    %v8721 = vadd.f32 0.0, %v8720
    %v8722 = vpop.f32.mrf.mxu0
    %8723 = vmatprep.mubr.f32.mxu0 0.0
    %8724 = vmatmul.mubr.f32.gmra.mxu0 %v8627
    %v8725 = vpop.f32.mrf.mxu0
    %v8726 = vadd.f32 0.0, %v8725
    %v8727 = vpop.f32.mrf.mxu0
    %8728 = vdwg.mxu0
    %v8730 = vsel %vm4925, %v8019, 0
    %v8733 = vsel %vm4925, %v8022, 0
    %v8736 = vsel %vm4925, %v8027, 0
    %v8739 = vsel %vm4925, %v8030, 0
    %v8742 = vsel %vm4925, %v8035, 0
    %v8745 = vsel %vm4925, %v8038, 0
    %v8748 = vsel %vm4925, %v8043, 0
    %8750 = vmatprep.subr.mxu0 0.0
    %8751 = vmatpush1.msra.mxu0 0.0
    %8752 = vmatprep.subr.mxu0 0.0
    %8753 = vmatpush1.msra.mxu0 0.0
    %8754 = vmatprep.subr.mxu0 0.0
    %8755 = vmatpush1.msra.mxu0 0.0
    %8756 = vmatprep.subr.mxu0 0.0
    %8757 = vmatpush1.msra.mxu0 0.0
    %8758 = vmatprep.subr.mxu0 0.0
    %8759 = vmatpush1.msra.mxu0 0.0
    %8760 = vmatprep.subr.mxu0 0.0
    %8761 = vmatpush1.msra.mxu0 0.0
    %8762 = vmatprep.subr.mxu0 0.0
    %8763 = vmatpush1.msra.mxu0 0.0
    %8764 = vmatprep.subr.mxu0 0.0
    %8765 = vmatpush1.msra.mxu0 0.0
    %8766 = vmatprep.subr.mxu0 0.0
    %8767 = vmatpush1.msra.mxu0 0.0
    %8768 = vmatprep.subr.mxu0 0.0
    %8769 = vmatpush1.msra.mxu0 0.0
    %8770 = vmatprep.subr.mxu0 0.0
    %8771 = vmatpush1.msra.mxu0 0.0
    %8772 = vmatprep.subr.mxu0 0.0
    %8773 = vmatpush1.msra.mxu0 0.0
    %8774 = vmatprep.subr.mxu0 0.0
    %8775 = vmatpush1.msra.mxu0 0.0
    %8776 = vmatprep.subr.mxu0 0.0
    %8777 = vmatpush1.msra.mxu0 0.0
    %8778 = vmatprep.subr.mxu0 0.0
    %8779 = vmatpush1.msra.mxu0 0.0
    %8780 = vmatprep.subr.mxu0 0.0
    %8781 = vmatpush1.msra.mxu0 %v8264
    %8782 = vmatprep.subr.mxu0 0.0
    %8783 = vmatpush2.msra.mxu0 0.0
    %8784 = vmatprep.subr.mxu0 0.0
    %8785 = vmatpush2.msra.mxu0 0.0
    %8786 = vmatprep.subr.mxu0 0.0
    %8787 = vmatpush2.msra.mxu0 0.0
    %8788 = vmatprep.subr.mxu0 0.0
    %8789 = vmatpush2.msra.mxu0 0.0
    %8790 = vmatprep.subr.mxu0 0.0
    %8791 = vmatpush2.msra.mxu0 0.0
    %8792 = vmatprep.subr.mxu0 0.0
    %8793 = vmatpush2.msra.mxu0 0.0
    %8794 = vmatprep.subr.mxu0 0.0
    %8795 = vmatpush2.msra.mxu0 0.0
    %8796 = vmatprep.subr.mxu0 0.0
    %8797 = vmatpush2.msra.mxu0 0.0
    %8798 = vmatprep.subr.mxu0 0.0
    %8799 = vmatpush2.msra.mxu0 0.0
    %8800 = vmatprep.subr.mxu0 0.0
    %8801 = vmatpush2.msra.mxu0 0.0
    %8802 = vmatprep.subr.mxu0 0.0
    %8803 = vmatpush2.msra.mxu0 0.0
    %8804 = vmatprep.subr.mxu0 0.0
    %8805 = vmatpush2.msra.mxu0 0.0
    %8806 = vmatprep.subr.mxu0 0.0
    %8807 = vmatpush2.msra.mxu0 0.0
    %8808 = vmatprep.subr.mxu0 0.0
    %8809 = vmatpush2.msra.mxu0 0.0
    %8810 = vmatprep.subr.mxu0 0.0
    %8811 = vmatpush2.msra.mxu0 0.0
    %8812 = vmatprep.subr.mxu0 0.0
    %8813 = vmatpush2.msra.mxu0 0.0
    %8814 = vmatprep.mubr.f32.mxu0 0.0
    %8815 = vmatmul.mubr.f32.gmra.mxu0 %v8730
    %v8816 = vpop.f32.mrf.mxu0
    %v8817 = vadd.f32 0.0, %v8816
    %v8818 = vpop.f32.mrf.mxu0
    %8819 = vmatprep.mubr.f32.mxu0 0.0
    %8820 = vmatmul.mubr.f32.gmra.mxu0 %v8733
    %v8821 = vpop.f32.mrf.mxu0
    %v8822 = vadd.f32 0.0, %v8821
    %v8823 = vpop.f32.mrf.mxu0
    %8824 = vmatprep.mubr.f32.mxu0 0.0
    %8825 = vmatmul.mubr.f32.gmra.mxu0 %v8736
    %v8826 = vpop.f32.mrf.mxu0
    %v8827 = vadd.f32 0.0, %v8826
    %v8828 = vpop.f32.mrf.mxu0
    %8829 = vmatprep.mubr.f32.mxu0 0.0
    %8830 = vmatmul.mubr.f32.gmra.mxu0 %v8739
    %v8831 = vpop.f32.mrf.mxu0
    %v8832 = vadd.f32 0.0, %v8831
    %v8833 = vpop.f32.mrf.mxu0
    %8834 = vmatprep.mubr.f32.mxu0 0.0
    %8835 = vmatmul.mubr.f32.gmra.mxu0 %v8742
    %v8836 = vpop.f32.mrf.mxu0
    %v8837 = vadd.f32 0.0, %v8836
    %v8838 = vpop.f32.mrf.mxu0
    %8839 = vmatprep.mubr.f32.mxu0 0.0
    %8840 = vmatmul.mubr.f32.gmra.mxu0 %v8745
    %v8841 = vpop.f32.mrf.mxu0
    %v8842 = vadd.f32 0.0, %v8841
    %v8843 = vpop.f32.mrf.mxu0
    %8844 = vmatprep.mubr.f32.mxu0 0.0
    %8845 = vmatmul.mubr.f32.gmra.mxu0 %v8748
    %v8846 = vpop.f32.mrf.mxu0
    %v8847 = vadd.f32 0.0, %v8846
    %v8848 = vpop.f32.mrf.mxu0
    %8849 = vdwg.mxu0
    %v8851 = vsel %vm4925, %v8083, 0
    %v8854 = vsel %vm4925, %v8086, 0
    %v8857 = vsel %vm4925, %v8091, 0
    %v8860 = vsel %vm4925, %v8094, 0
    %v8863 = vsel %vm4925, %v8099, 0
    %v8866 = vsel %vm4925, %v8102, 0
    %v8869 = vsel %vm4925, %v8107, 0
    %8871 = vmatprep.subr.mxu0 0.0
    %8872 = vmatpush1.msra.mxu0 0.0
    %8873 = vmatprep.subr.mxu0 0.0
    %8874 = vmatpush1.msra.mxu0 0.0
    %8875 = vmatprep.subr.mxu0 0.0
    %8876 = vmatpush1.msra.mxu0 0.0
    %8877 = vmatprep.subr.mxu0 0.0
    %8878 = vmatpush1.msra.mxu0 0.0
    %8879 = vmatprep.subr.mxu0 0.0
    %8880 = vmatpush1.msra.mxu0 0.0
    %8881 = vmatprep.subr.mxu0 0.0
    %8882 = vmatpush1.msra.mxu0 0.0
    %8883 = vmatprep.subr.mxu0 0.0
    %8884 = vmatpush1.msra.mxu0 0.0
    %8885 = vmatprep.subr.mxu0 0.0
    %8886 = vmatpush1.msra.mxu0 0.0
    %8887 = vmatprep.subr.mxu0 0.0
    %8888 = vmatpush1.msra.mxu0 0.0
    %8889 = vmatprep.subr.mxu0 0.0
    %8890 = vmatpush1.msra.mxu0 0.0
    %8891 = vmatprep.subr.mxu0 0.0
    %8892 = vmatpush1.msra.mxu0 0.0
    %8893 = vmatprep.subr.mxu0 0.0
    %8894 = vmatpush1.msra.mxu0 0.0
    %8895 = vmatprep.subr.mxu0 0.0
    %8896 = vmatpush1.msra.mxu0 0.0
    %8897 = vmatprep.subr.mxu0 0.0
    %8898 = vmatpush1.msra.mxu0 0.0
    %8899 = vmatprep.subr.mxu0 0.0
    %8900 = vmatpush1.msra.mxu0 0.0
    %8901 = vmatprep.subr.mxu0 0.0
    %8902 = vmatpush1.msra.mxu0 %v8264
    %8903 = vmatprep.subr.mxu0 0.0
    %8904 = vmatpush2.msra.mxu0 0.0
    %8905 = vmatprep.subr.mxu0 0.0
    %8906 = vmatpush2.msra.mxu0 0.0
    %8907 = vmatprep.subr.mxu0 0.0
    %8908 = vmatpush2.msra.mxu0 0.0
    %8909 = vmatprep.subr.mxu0 0.0
    %8910 = vmatpush2.msra.mxu0 0.0
    %8911 = vmatprep.subr.mxu0 0.0
    %8912 = vmatpush2.msra.mxu0 0.0
    %8913 = vmatprep.subr.mxu0 0.0
    %8914 = vmatpush2.msra.mxu0 0.0
    %8915 = vmatprep.subr.mxu0 0.0
    %8916 = vmatpush2.msra.mxu0 0.0
    %8917 = vmatprep.subr.mxu0 0.0
    %8918 = vmatpush2.msra.mxu0 0.0
    %8919 = vmatprep.subr.mxu0 0.0
    %8920 = vmatpush2.msra.mxu0 0.0
    %8921 = vmatprep.subr.mxu0 0.0
    %8922 = vmatpush2.msra.mxu0 0.0
    %8923 = vmatprep.subr.mxu0 0.0
    %8924 = vmatpush2.msra.mxu0 0.0
    %8925 = vmatprep.subr.mxu0 0.0
    %8926 = vmatpush2.msra.mxu0 0.0
    %8927 = vmatprep.subr.mxu0 0.0
    %8928 = vmatpush2.msra.mxu0 0.0
    %8929 = vmatprep.subr.mxu0 0.0
    %8930 = vmatpush2.msra.mxu0 0.0
    %8931 = vmatprep.subr.mxu0 0.0
    %8932 = vmatpush2.msra.mxu0 0.0
    %8933 = vmatprep.subr.mxu0 0.0
    %8934 = vmatpush2.msra.mxu0 0.0
    %8935 = vmatprep.mubr.f32.mxu0 0.0
    %8936 = vmatmul.mubr.f32.gmra.mxu0 %v8851
    %v8937 = vpop.f32.mrf.mxu0
    %v8938 = vadd.f32 0.0, %v8937
    %v8939 = vpop.f32.mrf.mxu0
    %8940 = vmatprep.mubr.f32.mxu0 0.0
    %8941 = vmatmul.mubr.f32.gmra.mxu0 %v8854
    %v8942 = vpop.f32.mrf.mxu0
    %v8943 = vadd.f32 0.0, %v8942
    %v8944 = vpop.f32.mrf.mxu0
    %8945 = vmatprep.mubr.f32.mxu0 0.0
    %8946 = vmatmul.mubr.f32.gmra.mxu0 %v8857
    %v8947 = vpop.f32.mrf.mxu0
    %v8948 = vadd.f32 0.0, %v8947
    %v8949 = vpop.f32.mrf.mxu0
    %8950 = vmatprep.mubr.f32.mxu0 0.0
    %8951 = vmatmul.mubr.f32.gmra.mxu0 %v8860
    %v8952 = vpop.f32.mrf.mxu0
    %v8953 = vadd.f32 0.0, %v8952
    %v8954 = vpop.f32.mrf.mxu0
    %8955 = vmatprep.mubr.f32.mxu0 0.0
    %8956 = vmatmul.mubr.f32.gmra.mxu0 %v8863
    %v8957 = vpop.f32.mrf.mxu0
    %v8958 = vadd.f32 0.0, %v8957
    %v8959 = vpop.f32.mrf.mxu0
    %8960 = vmatprep.mubr.f32.mxu0 0.0
    %8961 = vmatmul.mubr.f32.gmra.mxu0 %v8866
    %v8962 = vpop.f32.mrf.mxu0
    %v8963 = vadd.f32 0.0, %v8962
    %v8964 = vpop.f32.mrf.mxu0
    %8965 = vmatprep.mubr.f32.mxu0 0.0
    %8966 = vmatmul.mubr.f32.gmra.mxu0 %v8869
    %v8967 = vpop.f32.mrf.mxu0
    %v8968 = vadd.f32 0.0, %v8967
    %v8969 = vpop.f32.mrf.mxu0
    %8970 = vdwg.mxu0
    %v8972 = vsel %vm4925, %v8147, 0
    %v8975 = vsel %vm4925, %v8150, 0
    %v8978 = vsel %vm4925, %v8155, 0
    %v8981 = vsel %vm4925, %v8158, 0
    %v8984 = vsel %vm4925, %v8163, 0
    %v8987 = vsel %vm4925, %v8166, 0
    %v8990 = vsel %vm4925, %v8171, 0
    %8992 = vmatprep.subr.mxu0 0.0
    %8993 = vmatpush1.msra.mxu0 0.0
    %8994 = vmatprep.subr.mxu0 0.0
    %8995 = vmatpush1.msra.mxu0 0.0
    %8996 = vmatprep.subr.mxu0 0.0
    %8997 = vmatpush1.msra.mxu0 0.0
    %8998 = vmatprep.subr.mxu0 0.0
    %8999 = vmatpush1.msra.mxu0 0.0
    %9000 = vmatprep.subr.mxu0 0.0
    %9001 = vmatpush1.msra.mxu0 0.0
    %9002 = vmatprep.subr.mxu0 0.0
    %9003 = vmatpush1.msra.mxu0 0.0
    %9004 = vmatprep.subr.mxu0 0.0
    %9005 = vmatpush1.msra.mxu0 0.0
    %9006 = vmatprep.subr.mxu0 0.0
    %9007 = vmatpush1.msra.mxu0 0.0
    %9008 = vmatprep.subr.mxu0 0.0
    %9009 = vmatpush1.msra.mxu0 0.0
    %9010 = vmatprep.subr.mxu0 0.0
    %9011 = vmatpush1.msra.mxu0 0.0
    %9012 = vmatprep.subr.mxu0 0.0
    %9013 = vmatpush1.msra.mxu0 0.0
    %9014 = vmatprep.subr.mxu0 0.0
    %9015 = vmatpush1.msra.mxu0 0.0
    %9016 = vmatprep.subr.mxu0 0.0
    %9017 = vmatpush1.msra.mxu0 0.0
    %9018 = vmatprep.subr.mxu0 0.0
    %9019 = vmatpush1.msra.mxu0 0.0
    %9020 = vmatprep.subr.mxu0 0.0
    %9021 = vmatpush1.msra.mxu0 0.0
    %9022 = vmatprep.subr.mxu0 0.0
    %9023 = vmatpush1.msra.mxu0 %v8264
    %9024 = vmatprep.subr.mxu0 0.0
    %9025 = vmatpush2.msra.mxu0 0.0
    %9026 = vmatprep.subr.mxu0 0.0
    %9027 = vmatpush2.msra.mxu0 0.0
    %9028 = vmatprep.subr.mxu0 0.0
    %9029 = vmatpush2.msra.mxu0 0.0
    %9030 = vmatprep.subr.mxu0 0.0
    %9031 = vmatpush2.msra.mxu0 0.0
    %9032 = vmatprep.subr.mxu0 0.0
    %9033 = vmatpush2.msra.mxu0 0.0
    %9034 = vmatprep.subr.mxu0 0.0
    %9035 = vmatpush2.msra.mxu0 0.0
    %9036 = vmatprep.subr.mxu0 0.0
    %9037 = vmatpush2.msra.mxu0 0.0
    %9038 = vmatprep.subr.mxu0 0.0
    %9039 = vmatpush2.msra.mxu0 0.0
    %9040 = vmatprep.subr.mxu0 0.0
    %9041 = vmatpush2.msra.mxu0 0.0
    %9042 = vmatprep.subr.mxu0 0.0
    %9043 = vmatpush2.msra.mxu0 0.0
    %9044 = vmatprep.subr.mxu0 0.0
    %9045 = vmatpush2.msra.mxu0 0.0
    %9046 = vmatprep.subr.mxu0 0.0
    %9047 = vmatpush2.msra.mxu0 0.0
    %9048 = vmatprep.subr.mxu0 0.0
    %9049 = vmatpush2.msra.mxu0 0.0
    %9050 = vmatprep.subr.mxu0 0.0
    %9051 = vmatpush2.msra.mxu0 0.0
    %9052 = vmatprep.subr.mxu0 0.0
    %9053 = vmatpush2.msra.mxu0 0.0
    %9054 = vmatprep.subr.mxu0 0.0
    %9055 = vmatpush2.msra.mxu0 0.0
    %9056 = vmatprep.mubr.f32.mxu0 0.0
    %9057 = vmatmul.mubr.f32.gmra.mxu0 %v8972
    %v9058 = vpop.f32.mrf.mxu0
    %v9059 = vadd.f32 0.0, %v9058
    %v9060 = vpop.f32.mrf.mxu0
    %9061 = vmatprep.mubr.f32.mxu0 0.0
    %9062 = vmatmul.mubr.f32.gmra.mxu0 %v8975
    %v9063 = vpop.f32.mrf.mxu0
    %v9064 = vadd.f32 0.0, %v9063
    %v9065 = vpop.f32.mrf.mxu0
    %9066 = vmatprep.mubr.f32.mxu0 0.0
    %9067 = vmatmul.mubr.f32.gmra.mxu0 %v8978
    %v9068 = vpop.f32.mrf.mxu0
    %v9069 = vadd.f32 0.0, %v9068
    %v9070 = vpop.f32.mrf.mxu0
    %9071 = vmatprep.mubr.f32.mxu0 0.0
    %9072 = vmatmul.mubr.f32.gmra.mxu0 %v8981
    %v9073 = vpop.f32.mrf.mxu0
    %v9074 = vadd.f32 0.0, %v9073
    %v9075 = vpop.f32.mrf.mxu0
    %9076 = vmatprep.mubr.f32.mxu0 0.0
    %9077 = vmatmul.mubr.f32.gmra.mxu0 %v8984
    %v9078 = vpop.f32.mrf.mxu0
    %v9079 = vadd.f32 0.0, %v9078
    %v9080 = vpop.f32.mrf.mxu0
    %9081 = vmatprep.mubr.f32.mxu0 0.0
    %9082 = vmatmul.mubr.f32.gmra.mxu0 %v8987
    %v9083 = vpop.f32.mrf.mxu0
    %v9084 = vadd.f32 0.0, %v9083
    %v9085 = vpop.f32.mrf.mxu0
    %9086 = vmatprep.mubr.f32.mxu0 0.0
    %9087 = vmatmul.mubr.f32.gmra.mxu0 %v8990
    %v9088 = vpop.f32.mrf.mxu0
    %v9089 = vadd.f32 0.0, %v9088
    %v9090 = vpop.f32.mrf.mxu0
    %9091 = vdwg.mxu0
    %v9093 = vsel %vm4925, %v8211, 0
    %v9096 = vsel %vm4925, %v8214, 0
    %v9099 = vsel %vm4925, %v8219, 0
    %v9102 = vsel %vm4925, %v8222, 0
    %v9105 = vsel %vm4925, %v8227, 0
    %v9108 = vsel %vm4925, %v8230, 0
    %v9111 = vsel %vm4925, %v8235, 0
    %9113 = vmatprep.subr.mxu0 0.0
    %9114 = vmatpush1.msra.mxu0 0.0
    %9115 = vmatprep.subr.mxu0 0.0
    %9116 = vmatpush1.msra.mxu0 0.0
    %9117 = vmatprep.subr.mxu0 0.0
    %9118 = vmatpush1.msra.mxu0 0.0
    %9119 = vmatprep.subr.mxu0 0.0
    %9120 = vmatpush1.msra.mxu0 0.0
    %9121 = vmatprep.subr.mxu0 0.0
    %9122 = vmatpush1.msra.mxu0 0.0
    %9123 = vmatprep.subr.mxu0 0.0
    %9124 = vmatpush1.msra.mxu0 0.0
    %9125 = vmatprep.subr.mxu0 0.0
    %9126 = vmatpush1.msra.mxu0 0.0
    %9127 = vmatprep.subr.mxu0 0.0
    %9128 = vmatpush1.msra.mxu0 0.0
    %9129 = vmatprep.subr.mxu0 0.0
    %9130 = vmatpush1.msra.mxu0 0.0
    %9131 = vmatprep.subr.mxu0 0.0
    %9132 = vmatpush1.msra.mxu0 0.0
    %9133 = vmatprep.subr.mxu0 0.0
    %9134 = vmatpush1.msra.mxu0 0.0
    %9135 = vmatprep.subr.mxu0 0.0
    %9136 = vmatpush1.msra.mxu0 0.0
    %9137 = vmatprep.subr.mxu0 0.0
    %9138 = vmatpush1.msra.mxu0 0.0
    %9139 = vmatprep.subr.mxu0 0.0
    %9140 = vmatpush1.msra.mxu0 0.0
    %9141 = vmatprep.subr.mxu0 0.0
    %9142 = vmatpush1.msra.mxu0 0.0
    %9143 = vmatprep.subr.mxu0 0.0
    %9144 = vmatpush1.msra.mxu0 %v8264
    %9145 = vmatprep.subr.mxu0 0.0
    %9146 = vmatpush2.msra.mxu0 0.0
    %9147 = vmatprep.subr.mxu0 0.0
    %9148 = vmatpush2.msra.mxu0 0.0
    %9149 = vmatprep.subr.mxu0 0.0
    %9150 = vmatpush2.msra.mxu0 0.0
    %9151 = vmatprep.subr.mxu0 0.0
    %9152 = vmatpush2.msra.mxu0 0.0
    %9153 = vmatprep.subr.mxu0 0.0
    %9154 = vmatpush2.msra.mxu0 0.0
    %9155 = vmatprep.subr.mxu0 0.0
    %9156 = vmatpush2.msra.mxu0 0.0
    %9157 = vmatprep.subr.mxu0 0.0
    %9158 = vmatpush2.msra.mxu0 0.0
    %9159 = vmatprep.subr.mxu0 0.0
    %9160 = vmatpush2.msra.mxu0 0.0
    %9161 = vmatprep.subr.mxu0 0.0
    %9162 = vmatpush2.msra.mxu0 0.0
    %9163 = vmatprep.subr.mxu0 0.0
    %9164 = vmatpush2.msra.mxu0 0.0
    %9165 = vmatprep.subr.mxu0 0.0
    %9166 = vmatpush2.msra.mxu0 0.0
    %9167 = vmatprep.subr.mxu0 0.0
    %9168 = vmatpush2.msra.mxu0 0.0
    %9169 = vmatprep.subr.mxu0 0.0
    %9170 = vmatpush2.msra.mxu0 0.0
    %9171 = vmatprep.subr.mxu0 0.0
    %9172 = vmatpush2.msra.mxu0 0.0
    %9173 = vmatprep.subr.mxu0 0.0
    %9174 = vmatpush2.msra.mxu0 0.0
    %9175 = vmatprep.subr.mxu0 0.0
    %9176 = vmatpush2.msra.mxu0 0.0
    %9177 = vmatprep.mubr.f32.mxu0 0.0
    %9178 = vmatmul.mubr.f32.gmra.mxu0 %v9093
    %v9179 = vpop.f32.mrf.mxu0
    %v9180 = vadd.f32 0.0, %v9179
    %v9181 = vpop.f32.mrf.mxu0
    %9182 = vmatprep.mubr.f32.mxu0 0.0
    %9183 = vmatmul.mubr.f32.gmra.mxu0 %v9096
    %v9184 = vpop.f32.mrf.mxu0
    %v9185 = vadd.f32 0.0, %v9184
    %v9186 = vpop.f32.mrf.mxu0
    %9187 = vmatprep.mubr.f32.mxu0 0.0
    %9188 = vmatmul.mubr.f32.gmra.mxu0 %v9099
    %v9189 = vpop.f32.mrf.mxu0
    %v9190 = vadd.f32 0.0, %v9189
    %v9191 = vpop.f32.mrf.mxu0
    %9192 = vmatprep.mubr.f32.mxu0 0.0
    %9193 = vmatmul.mubr.f32.gmra.mxu0 %v9102
    %v9194 = vpop.f32.mrf.mxu0
    %v9195 = vadd.f32 0.0, %v9194
    %v9196 = vpop.f32.mrf.mxu0
    %9197 = vmatprep.mubr.f32.mxu0 0.0
    %9198 = vmatmul.mubr.f32.gmra.mxu0 %v9105
    %v9199 = vpop.f32.mrf.mxu0
    %v9200 = vadd.f32 0.0, %v9199
    %v9201 = vpop.f32.mrf.mxu0
    %9202 = vmatprep.mubr.f32.mxu0 0.0
    %9203 = vmatmul.mubr.f32.gmra.mxu0 %v9108
    %v9204 = vpop.f32.mrf.mxu0
    %v9205 = vadd.f32 0.0, %v9204
    %v9206 = vpop.f32.mrf.mxu0
    %9207 = vmatprep.mubr.f32.mxu0 0.0
    %9208 = vmatmul.mubr.f32.gmra.mxu0 %v9111
    %v9209 = vpop.f32.mrf.mxu0
    %v9210 = vadd.f32 0.0, %v9209
    %v9211 = vpop.f32.mrf.mxu0
    %9212 = vdwg.mxu0
    %v9213 = vadd.f32 %v7634, %v8333
    %v9214 = vadd.f32 %v7635, %v8338
    %v9215 = vadd.f32 %v7636, %v8343
    %v9216 = vadd.f32 %v7637, %v8348
    %v9217 = vadd.f32 %v7638, %v8353
    %v9218 = vadd.f32 %v7639, %v8358
    %v9219 = vadd.f32 %v7640, %v8363
    %v9220 = vadd.f32 %v7641, %v8454
    %v9221 = vadd.f32 %v7642, %v8459
    %v9222 = vadd.f32 %v7643, %v8464
    %v9223 = vadd.f32 %v7644, %v8469
    %v9224 = vadd.f32 %v7645, %v8474
    %v9225 = vadd.f32 %v7646, %v8479
    %v9226 = vadd.f32 %v7647, %v8484
    %v9227 = vadd.f32 %v7648, %v8575
    %v9228 = vadd.f32 %v7649, %v8580
    %v9229 = vadd.f32 %v7650, %v8585
    %v9230 = vadd.f32 %v7651, %v8590
    %v9231 = vadd.f32 %v7652, %v8595
    %v9232 = vadd.f32 %v7653, %v8600
    %v9233 = vadd.f32 %v7654, %v8605
    %v9234 = vadd.f32 %v7655, %v8696
    %v9235 = vadd.f32 %v7656, %v8701
    %v9236 = vadd.f32 %v7657, %v8706
    %v9237 = vadd.f32 %v7658, %v8711
    %v9238 = vadd.f32 %v7659, %v8716
    %v9239 = vadd.f32 %v7660, %v8721
    %v9240 = vadd.f32 %v7661, %v8726
    %v9241 = vadd.f32 %v7662, %v8817
    %v9242 = vadd.f32 %v7663, %v8822
    %v9243 = vadd.f32 %v7664, %v8827
    %v9244 = vadd.f32 %v7665, %v8832
    %v9245 = vadd.f32 %v7666, %v8837
    %v9246 = vadd.f32 %v7667, %v8842
    %v9247 = vadd.f32 %v7668, %v8847
    %v9248 = vadd.f32 %v7669, %v8938
    %v9249 = vadd.f32 %v7670, %v8943
    %v9250 = vadd.f32 %v7671, %v8948
    %v9251 = vadd.f32 %v7672, %v8953
    %v9252 = vadd.f32 %v7673, %v8958
    %v9253 = vadd.f32 %v7674, %v8963
    %v9254 = vadd.f32 %v7675, %v8968
    %v9255 = vadd.f32 %v7676, %v9059
    %v9256 = vadd.f32 %v7677, %v9064
    %v9257 = vadd.f32 %v7678, %v9069
    %v9258 = vadd.f32 %v7679, %v9074
    %v9259 = vadd.f32 %v7680, %v9079
    %v9260 = vadd.f32 %v7681, %v9084
    %v9261 = vadd.f32 %v7682, %v9089
    %v9262 = vadd.f32 %v7683, %v9180
    %v9263 = vadd.f32 %v7684, %v9185
    %v9264 = vadd.f32 %v7685, %v9190
    %v9265 = vadd.f32 %v7686, %v9195
    %v9266 = vadd.f32 %v7687, %v9200
    %v9267 = vadd.f32 %v7688, %v9205
    %v9268 = vadd.f32 %v7689, %v9210
    %s9269 = scalar_lea.vmem %s8, 56
    %v9270 = vld [vmem:[%s9269] sm:$0xf]
    %v9271 = vld [vmem:[%s9269 + $0x4] sm:$0xf]
    %v9272 = vld [vmem:[%s9269 + $0x8] sm:$0xf]
    %v9273 = vld [vmem:[%s9269 + $0xc] sm:$0xf]
    %v9274 = vld [vmem:[%s9269 + $0x10] sm:$0xf]
    %v9275 = vld [vmem:[%s9269 + $0x14] sm:$0xf]
    %v9276 = vld [vmem:[%s9269 + $0x18] sm:$0x7]
    %v9284 = vunpack.c.l.b16 %v9270
    %v9285 = vunpack.c.l.b16 %v9271
    %v9286 = vunpack.c.l.b16 %v9272
    %v9287 = vunpack.c.l.b16 %v9273
    %v9288 = vunpack.c.l.b16 %v9274
    %v9289 = vunpack.c.l.b16 %v9275
    %v9290 = vunpack.c.l.b16 %v9276
    %v9291 = vpack.c.b16 %v9285, %v9284
    %v9292 = vpack.c.b16 %v9287, %v9286
    %v9293 = vpack.c.b16 %v9289, %v9288
    %v9294 = vpack.c.b16 %v9290, %v9290
    %v9296 = vsel %vm6111, %v9291, 0
    %v9299 = vsel %vm6111, %v9292, 0
    %v9302 = vsel %vm6111, %v9293, 0
    %v9305 = vsel %vm6111, %v9294, 0
    %9307 = vmatprep.subr.bf16.mxu0 0
    %9308 = vmatpush1.bf16.msra.mxu0 0
    %9309 = vmatprep.subr.bf16.mxu0 0
    %9310 = vmatpush1.bf16.msra.mxu0 0
    %9311 = vmatprep.subr.bf16.mxu0 0
    %9312 = vmatpush1.bf16.msra.mxu0 0
    %9313 = vmatprep.subr.bf16.mxu0 0
    %9314 = vmatpush1.bf16.msra.mxu0 0
    %9315 = vmatprep.subr.bf16.mxu0 0
    %9316 = vmatpush1.bf16.msra.mxu0 0
    %9317 = vmatprep.subr.bf16.mxu0 0
    %9318 = vmatpush1.bf16.msra.mxu0 %v6126
    %9319 = vmatprep.subr.bf16.mxu0 0
    %9320 = vmatpush1.bf16.msra.mxu0 %v6056
    %9321 = vmatprep.subr.bf16.mxu0 0
    %9322 = vmatpush1.bf16.msra.mxu0 %v6055
    %9323 = vmatprep.subr.bf16.mxu0 0
    %9324 = vmatpush2.bf16.msra.mxu0 0
    %9325 = vmatprep.subr.bf16.mxu0 0
    %9326 = vmatpush2.bf16.msra.mxu0 0
    %9327 = vmatprep.subr.bf16.mxu0 0
    %9328 = vmatpush2.bf16.msra.mxu0 0
    %9329 = vmatprep.subr.bf16.mxu0 0
    %9330 = vmatpush2.bf16.msra.mxu0 0
    %9331 = vmatprep.subr.bf16.mxu0 0
    %9332 = vmatpush2.bf16.msra.mxu0 0
    %9333 = vmatprep.subr.bf16.mxu0 0
    %9334 = vmatpush2.bf16.msra.mxu0 0
    %9335 = vmatprep.subr.bf16.mxu0 0
    %9336 = vmatpush2.bf16.msra.mxu0 0
    %9337 = vmatprep.subr.bf16.mxu0 0
    %9338 = vmatpush2.bf16.msra.mxu0 0
    %9339 = vmatprep.mubr.bf16.mxu0 0
    %9340 = vmatmul.mubr.bf16.gmra.mxu0 %v9296
    %v9341 = vpop.f32.mrf.mxu0
    %v9342 = vadd.f32 0.0, %v9341
    %v9343 = vpop.f32.mrf.mxu0
    %v9344 = vpop.f32.mrf.mxu0
    %v9345 = vadd.f32 0.0, %v9344
    %v9346 = vpop.f32.mrf.mxu0
    %9347 = vmatprep.mubr.bf16.mxu0 0
    %9348 = vmatmul.mubr.bf16.gmra.mxu0 %v9299
    %v9349 = vpop.f32.mrf.mxu0
    %v9350 = vadd.f32 0.0, %v9349
    %v9351 = vpop.f32.mrf.mxu0
    %v9352 = vpop.f32.mrf.mxu0
    %v9353 = vadd.f32 0.0, %v9352
    %v9354 = vpop.f32.mrf.mxu0
    %9355 = vmatprep.mubr.bf16.mxu0 0
    %9356 = vmatmul.mubr.bf16.gmra.mxu0 %v9302
    %v9357 = vpop.f32.mrf.mxu0
    %v9358 = vadd.f32 0.0, %v9357
    %v9359 = vpop.f32.mrf.mxu0
    %v9360 = vpop.f32.mrf.mxu0
    %v9361 = vadd.f32 0.0, %v9360
    %v9362 = vpop.f32.mrf.mxu0
    %9363 = vmatprep.mubr.bf16.mxu0 0
    %9364 = vmatmul.mubr.bf16.gmra.mxu0 %v9305
    %v9365 = vpop.f32.mrf.mxu0
    %v9366 = vadd.f32 0.0, %v9365
    %v9367 = vpop.f32.mrf.mxu0
    %v9368 = vpop.f32.mrf.mxu0
    %v9369 = vpop.f32.mrf.mxu0
    %9370 = vdwg.mxu0
    %9371 = vmatprep.subr.bf16.mxu0 0
    %9372 = vmatpush1.bf16.msra.mxu0 0
    %9373 = vmatprep.subr.bf16.mxu0 0
    %9374 = vmatpush1.bf16.msra.mxu0 0
    %9375 = vmatprep.subr.bf16.mxu0 0
    %9376 = vmatpush1.bf16.msra.mxu0 0
    %9377 = vmatprep.subr.bf16.mxu0 0
    %9378 = vmatpush1.bf16.msra.mxu0 0
    %9379 = vmatprep.subr.bf16.mxu0 0
    %9380 = vmatpush1.bf16.msra.mxu0 0
    %9381 = vmatprep.subr.bf16.mxu0 0
    %9382 = vmatpush1.bf16.msra.mxu0 %v6193
    %9383 = vmatprep.subr.bf16.mxu0 0
    %9384 = vmatpush1.bf16.msra.mxu0 %v6059
    %9385 = vmatprep.subr.bf16.mxu0 0
    %9386 = vmatpush1.bf16.msra.mxu0 %v6058
    %9387 = vmatprep.subr.bf16.mxu0 0
    %9388 = vmatpush2.bf16.msra.mxu0 0
    %9389 = vmatprep.subr.bf16.mxu0 0
    %9390 = vmatpush2.bf16.msra.mxu0 0
    %9391 = vmatprep.subr.bf16.mxu0 0
    %9392 = vmatpush2.bf16.msra.mxu0 0
    %9393 = vmatprep.subr.bf16.mxu0 0
    %9394 = vmatpush2.bf16.msra.mxu0 0
    %9395 = vmatprep.subr.bf16.mxu0 0
    %9396 = vmatpush2.bf16.msra.mxu0 0
    %9397 = vmatprep.subr.bf16.mxu0 0
    %9398 = vmatpush2.bf16.msra.mxu0 0
    %9399 = vmatprep.subr.bf16.mxu0 0
    %9400 = vmatpush2.bf16.msra.mxu0 0
    %9401 = vmatprep.subr.bf16.mxu0 0
    %9402 = vmatpush2.bf16.msra.mxu0 0
    %9403 = vmatprep.mubr.bf16.mxu0 0
    %9404 = vmatmul.mubr.bf16.gmra.mxu0 %v9296
    %v9405 = vpop.f32.mrf.mxu0
    %v9406 = vadd.f32 0.0, %v9405
    %v9407 = vpop.f32.mrf.mxu0
    %v9408 = vpop.f32.mrf.mxu0
    %v9409 = vadd.f32 0.0, %v9408
    %v9410 = vpop.f32.mrf.mxu0
    %9411 = vmatprep.mubr.bf16.mxu0 0
    %9412 = vmatmul.mubr.bf16.gmra.mxu0 %v9299
    %v9413 = vpop.f32.mrf.mxu0
    %v9414 = vadd.f32 0.0, %v9413
    %v9415 = vpop.f32.mrf.mxu0
    %v9416 = vpop.f32.mrf.mxu0
    %v9417 = vadd.f32 0.0, %v9416
    %v9418 = vpop.f32.mrf.mxu0
    %9419 = vmatprep.mubr.bf16.mxu0 0
    %9420 = vmatmul.mubr.bf16.gmra.mxu0 %v9302
    %v9421 = vpop.f32.mrf.mxu0
    %v9422 = vadd.f32 0.0, %v9421
    %v9423 = vpop.f32.mrf.mxu0
    %v9424 = vpop.f32.mrf.mxu0
    %v9425 = vadd.f32 0.0, %v9424
    %v9426 = vpop.f32.mrf.mxu0
    %9427 = vmatprep.mubr.bf16.mxu0 0
    %9428 = vmatmul.mubr.bf16.gmra.mxu0 %v9305
    %v9429 = vpop.f32.mrf.mxu0
    %v9430 = vadd.f32 0.0, %v9429
    %v9431 = vpop.f32.mrf.mxu0
    %v9432 = vpop.f32.mrf.mxu0
    %v9433 = vpop.f32.mrf.mxu0
    %9434 = vdwg.mxu0
    %9435 = vmatprep.subr.bf16.mxu0 0
    %9436 = vmatpush1.bf16.msra.mxu0 0
    %9437 = vmatprep.subr.bf16.mxu0 0
    %9438 = vmatpush1.bf16.msra.mxu0 0
    %9439 = vmatprep.subr.bf16.mxu0 0
    %9440 = vmatpush1.bf16.msra.mxu0 0
    %9441 = vmatprep.subr.bf16.mxu0 0
    %9442 = vmatpush1.bf16.msra.mxu0 0
    %9443 = vmatprep.subr.bf16.mxu0 0
    %9444 = vmatpush1.bf16.msra.mxu0 0
    %9445 = vmatprep.subr.bf16.mxu0 0
    %9446 = vmatpush1.bf16.msra.mxu0 %v6260
    %9447 = vmatprep.subr.bf16.mxu0 0
    %9448 = vmatpush1.bf16.msra.mxu0 %v6062
    %9449 = vmatprep.subr.bf16.mxu0 0
    %9450 = vmatpush1.bf16.msra.mxu0 %v6061
    %9451 = vmatprep.subr.bf16.mxu0 0
    %9452 = vmatpush2.bf16.msra.mxu0 0
    %9453 = vmatprep.subr.bf16.mxu0 0
    %9454 = vmatpush2.bf16.msra.mxu0 0
    %9455 = vmatprep.subr.bf16.mxu0 0
    %9456 = vmatpush2.bf16.msra.mxu0 0
    %9457 = vmatprep.subr.bf16.mxu0 0
    %9458 = vmatpush2.bf16.msra.mxu0 0
    %9459 = vmatprep.subr.bf16.mxu0 0
    %9460 = vmatpush2.bf16.msra.mxu0 0
    %9461 = vmatprep.subr.bf16.mxu0 0
    %9462 = vmatpush2.bf16.msra.mxu0 0
    %9463 = vmatprep.subr.bf16.mxu0 0
    %9464 = vmatpush2.bf16.msra.mxu0 0
    %9465 = vmatprep.subr.bf16.mxu0 0
    %9466 = vmatpush2.bf16.msra.mxu0 0
    %9467 = vmatprep.mubr.bf16.mxu0 0
    %9468 = vmatmul.mubr.bf16.gmra.mxu0 %v9296
    %v9469 = vpop.f32.mrf.mxu0
    %v9470 = vadd.f32 0.0, %v9469
    %v9471 = vpop.f32.mrf.mxu0
    %v9472 = vpop.f32.mrf.mxu0
    %v9473 = vadd.f32 0.0, %v9472
    %v9474 = vpop.f32.mrf.mxu0
    %9475 = vmatprep.mubr.bf16.mxu0 0
    %9476 = vmatmul.mubr.bf16.gmra.mxu0 %v9299
    %v9477 = vpop.f32.mrf.mxu0
    %v9478 = vadd.f32 0.0, %v9477
    %v9479 = vpop.f32.mrf.mxu0
    %v9480 = vpop.f32.mrf.mxu0
    %v9481 = vadd.f32 0.0, %v9480
    %v9482 = vpop.f32.mrf.mxu0
    %9483 = vmatprep.mubr.bf16.mxu0 0
    %9484 = vmatmul.mubr.bf16.gmra.mxu0 %v9302
    %v9485 = vpop.f32.mrf.mxu0
    %v9486 = vadd.f32 0.0, %v9485
    %v9487 = vpop.f32.mrf.mxu0
    %v9488 = vpop.f32.mrf.mxu0
    %v9489 = vadd.f32 0.0, %v9488
    %v9490 = vpop.f32.mrf.mxu0
    %9491 = vmatprep.mubr.bf16.mxu0 0
    %9492 = vmatmul.mubr.bf16.gmra.mxu0 %v9305
    %v9493 = vpop.f32.mrf.mxu0
    %v9494 = vadd.f32 0.0, %v9493
    %v9495 = vpop.f32.mrf.mxu0
    %v9496 = vpop.f32.mrf.mxu0
    %v9497 = vpop.f32.mrf.mxu0
    %9498 = vdwg.mxu0
    %9499 = vmatprep.subr.bf16.mxu0 0
    %9500 = vmatpush1.bf16.msra.mxu0 0
    %9501 = vmatprep.subr.bf16.mxu0 0
    %9502 = vmatpush1.bf16.msra.mxu0 0
    %9503 = vmatprep.subr.bf16.mxu0 0
    %9504 = vmatpush1.bf16.msra.mxu0 0
    %9505 = vmatprep.subr.bf16.mxu0 0
    %9506 = vmatpush1.bf16.msra.mxu0 0
    %9507 = vmatprep.subr.bf16.mxu0 0
    %9508 = vmatpush1.bf16.msra.mxu0 0
    %9509 = vmatprep.subr.bf16.mxu0 0
    %9510 = vmatpush1.bf16.msra.mxu0 %v6327
    %9511 = vmatprep.subr.bf16.mxu0 0
    %9512 = vmatpush1.bf16.msra.mxu0 %v6065
    %9513 = vmatprep.subr.bf16.mxu0 0
    %9514 = vmatpush1.bf16.msra.mxu0 %v6064
    %9515 = vmatprep.subr.bf16.mxu0 0
    %9516 = vmatpush2.bf16.msra.mxu0 0
    %9517 = vmatprep.subr.bf16.mxu0 0
    %9518 = vmatpush2.bf16.msra.mxu0 0
    %9519 = vmatprep.subr.bf16.mxu0 0
    %9520 = vmatpush2.bf16.msra.mxu0 0
    %9521 = vmatprep.subr.bf16.mxu0 0
    %9522 = vmatpush2.bf16.msra.mxu0 0
    %9523 = vmatprep.subr.bf16.mxu0 0
    %9524 = vmatpush2.bf16.msra.mxu0 0
    %9525 = vmatprep.subr.bf16.mxu0 0
    %9526 = vmatpush2.bf16.msra.mxu0 0
    %9527 = vmatprep.subr.bf16.mxu0 0
    %9528 = vmatpush2.bf16.msra.mxu0 0
    %9529 = vmatprep.subr.bf16.mxu0 0
    %9530 = vmatpush2.bf16.msra.mxu0 0
    %9531 = vmatprep.mubr.bf16.mxu0 0
    %9532 = vmatmul.mubr.bf16.gmra.mxu0 %v9296
    %v9533 = vpop.f32.mrf.mxu0
    %v9534 = vadd.f32 0.0, %v9533
    %v9535 = vpop.f32.mrf.mxu0
    %v9536 = vpop.f32.mrf.mxu0
    %v9537 = vadd.f32 0.0, %v9536
    %v9538 = vpop.f32.mrf.mxu0
    %9539 = vmatprep.mubr.bf16.mxu0 0
    %9540 = vmatmul.mubr.bf16.gmra.mxu0 %v9299
    %v9541 = vpop.f32.mrf.mxu0
    %v9542 = vadd.f32 0.0, %v9541
    %v9543 = vpop.f32.mrf.mxu0
    %v9544 = vpop.f32.mrf.mxu0
    %v9545 = vadd.f32 0.0, %v9544
    %v9546 = vpop.f32.mrf.mxu0
    %9547 = vmatprep.mubr.bf16.mxu0 0
    %9548 = vmatmul.mubr.bf16.gmra.mxu0 %v9302
    %v9549 = vpop.f32.mrf.mxu0
    %v9550 = vadd.f32 0.0, %v9549
    %v9551 = vpop.f32.mrf.mxu0
    %v9552 = vpop.f32.mrf.mxu0
    %v9553 = vadd.f32 0.0, %v9552
    %v9554 = vpop.f32.mrf.mxu0
    %9555 = vmatprep.mubr.bf16.mxu0 0
    %9556 = vmatmul.mubr.bf16.gmra.mxu0 %v9305
    %v9557 = vpop.f32.mrf.mxu0
    %v9558 = vadd.f32 0.0, %v9557
    %v9559 = vpop.f32.mrf.mxu0
    %v9560 = vpop.f32.mrf.mxu0
    %v9561 = vpop.f32.mrf.mxu0
    %9562 = vdwg.mxu0
    %9563 = vmatprep.subr.bf16.mxu0 0
    %9564 = vmatpush1.bf16.msra.mxu0 0
    %9565 = vmatprep.subr.bf16.mxu0 0
    %9566 = vmatpush1.bf16.msra.mxu0 0
    %9567 = vmatprep.subr.bf16.mxu0 0
    %9568 = vmatpush1.bf16.msra.mxu0 0
    %9569 = vmatprep.subr.bf16.mxu0 0
    %9570 = vmatpush1.bf16.msra.mxu0 0
    %9571 = vmatprep.subr.bf16.mxu0 0
    %9572 = vmatpush1.bf16.msra.mxu0 0
    %9573 = vmatprep.subr.bf16.mxu0 0
    %9574 = vmatpush1.bf16.msra.mxu0 %v6394
    %9575 = vmatprep.subr.bf16.mxu0 0
    %9576 = vmatpush1.bf16.msra.mxu0 %v6068
    %9577 = vmatprep.subr.bf16.mxu0 0
    %9578 = vmatpush1.bf16.msra.mxu0 %v6067
    %9579 = vmatprep.subr.bf16.mxu0 0
    %9580 = vmatpush2.bf16.msra.mxu0 0
    %9581 = vmatprep.subr.bf16.mxu0 0
    %9582 = vmatpush2.bf16.msra.mxu0 0
    %9583 = vmatprep.subr.bf16.mxu0 0
    %9584 = vmatpush2.bf16.msra.mxu0 0
    %9585 = vmatprep.subr.bf16.mxu0 0
    %9586 = vmatpush2.bf16.msra.mxu0 0
    %9587 = vmatprep.subr.bf16.mxu0 0
    %9588 = vmatpush2.bf16.msra.mxu0 0
    %9589 = vmatprep.subr.bf16.mxu0 0
    %9590 = vmatpush2.bf16.msra.mxu0 0
    %9591 = vmatprep.subr.bf16.mxu0 0
    %9592 = vmatpush2.bf16.msra.mxu0 0
    %9593 = vmatprep.subr.bf16.mxu0 0
    %9594 = vmatpush2.bf16.msra.mxu0 0
    %9595 = vmatprep.mubr.bf16.mxu0 0
    %9596 = vmatmul.mubr.bf16.gmra.mxu0 %v9296
    %v9597 = vpop.f32.mrf.mxu0
    %v9598 = vadd.f32 0.0, %v9597
    %v9599 = vpop.f32.mrf.mxu0
    %v9600 = vpop.f32.mrf.mxu0
    %v9601 = vadd.f32 0.0, %v9600
    %v9602 = vpop.f32.mrf.mxu0
    %9603 = vmatprep.mubr.bf16.mxu0 0
    %9604 = vmatmul.mubr.bf16.gmra.mxu0 %v9299
    %v9605 = vpop.f32.mrf.mxu0
    %v9606 = vadd.f32 0.0, %v9605
    %v9607 = vpop.f32.mrf.mxu0
    %v9608 = vpop.f32.mrf.mxu0
    %v9609 = vadd.f32 0.0, %v9608
    %v9610 = vpop.f32.mrf.mxu0
    %9611 = vmatprep.mubr.bf16.mxu0 0
    %9612 = vmatmul.mubr.bf16.gmra.mxu0 %v9302
    %v9613 = vpop.f32.mrf.mxu0
    %v9614 = vadd.f32 0.0, %v9613
    %v9615 = vpop.f32.mrf.mxu0
    %v9616 = vpop.f32.mrf.mxu0
    %v9617 = vadd.f32 0.0, %v9616
    %v9618 = vpop.f32.mrf.mxu0
    %9619 = vmatprep.mubr.bf16.mxu0 0
    %9620 = vmatmul.mubr.bf16.gmra.mxu0 %v9305
    %v9621 = vpop.f32.mrf.mxu0
    %v9622 = vadd.f32 0.0, %v9621
    %v9623 = vpop.f32.mrf.mxu0
    %v9624 = vpop.f32.mrf.mxu0
    %v9625 = vpop.f32.mrf.mxu0
    %9626 = vdwg.mxu0
    %9627 = vmatprep.subr.bf16.mxu0 0
    %9628 = vmatpush1.bf16.msra.mxu0 0
    %9629 = vmatprep.subr.bf16.mxu0 0
    %9630 = vmatpush1.bf16.msra.mxu0 0
    %9631 = vmatprep.subr.bf16.mxu0 0
    %9632 = vmatpush1.bf16.msra.mxu0 0
    %9633 = vmatprep.subr.bf16.mxu0 0
    %9634 = vmatpush1.bf16.msra.mxu0 0
    %9635 = vmatprep.subr.bf16.mxu0 0
    %9636 = vmatpush1.bf16.msra.mxu0 0
    %9637 = vmatprep.subr.bf16.mxu0 0
    %9638 = vmatpush1.bf16.msra.mxu0 %v6461
    %9639 = vmatprep.subr.bf16.mxu0 0
    %9640 = vmatpush1.bf16.msra.mxu0 %v6071
    %9641 = vmatprep.subr.bf16.mxu0 0
    %9642 = vmatpush1.bf16.msra.mxu0 %v6070
    %9643 = vmatprep.subr.bf16.mxu0 0
    %9644 = vmatpush2.bf16.msra.mxu0 0
    %9645 = vmatprep.subr.bf16.mxu0 0
    %9646 = vmatpush2.bf16.msra.mxu0 0
    %9647 = vmatprep.subr.bf16.mxu0 0
    %9648 = vmatpush2.bf16.msra.mxu0 0
    %9649 = vmatprep.subr.bf16.mxu0 0
    %9650 = vmatpush2.bf16.msra.mxu0 0
    %9651 = vmatprep.subr.bf16.mxu0 0
    %9652 = vmatpush2.bf16.msra.mxu0 0
    %9653 = vmatprep.subr.bf16.mxu0 0
    %9654 = vmatpush2.bf16.msra.mxu0 0
    %9655 = vmatprep.subr.bf16.mxu0 0
    %9656 = vmatpush2.bf16.msra.mxu0 0
    %9657 = vmatprep.subr.bf16.mxu0 0
    %9658 = vmatpush2.bf16.msra.mxu0 0
    %9659 = vmatprep.mubr.bf16.mxu0 0
    %9660 = vmatmul.mubr.bf16.gmra.mxu0 %v9296
    %v9661 = vpop.f32.mrf.mxu0
    %v9662 = vadd.f32 0.0, %v9661
    %v9663 = vpop.f32.mrf.mxu0
    %v9664 = vpop.f32.mrf.mxu0
    %v9665 = vadd.f32 0.0, %v9664
    %v9666 = vpop.f32.mrf.mxu0
    %9667 = vmatprep.mubr.bf16.mxu0 0
    %9668 = vmatmul.mubr.bf16.gmra.mxu0 %v9299
    %v9669 = vpop.f32.mrf.mxu0
    %v9670 = vadd.f32 0.0, %v9669
    %v9671 = vpop.f32.mrf.mxu0
    %v9672 = vpop.f32.mrf.mxu0
    %v9673 = vadd.f32 0.0, %v9672
    %v9674 = vpop.f32.mrf.mxu0
    %9675 = vmatprep.mubr.bf16.mxu0 0
    %9676 = vmatmul.mubr.bf16.gmra.mxu0 %v9302
    %v9677 = vpop.f32.mrf.mxu0
    %v9678 = vadd.f32 0.0, %v9677
    %v9679 = vpop.f32.mrf.mxu0
    %v9680 = vpop.f32.mrf.mxu0
    %v9681 = vadd.f32 0.0, %v9680
    %v9682 = vpop.f32.mrf.mxu0
    %9683 = vmatprep.mubr.bf16.mxu0 0
    %9684 = vmatmul.mubr.bf16.gmra.mxu0 %v9305
    %v9685 = vpop.f32.mrf.mxu0
    %v9686 = vadd.f32 0.0, %v9685
    %v9687 = vpop.f32.mrf.mxu0
    %v9688 = vpop.f32.mrf.mxu0
    %v9689 = vpop.f32.mrf.mxu0
    %9690 = vdwg.mxu0
    %9691 = vmatprep.subr.bf16.mxu0 0
    %9692 = vmatpush1.bf16.msra.mxu0 0
    %9693 = vmatprep.subr.bf16.mxu0 0
    %9694 = vmatpush1.bf16.msra.mxu0 0
    %9695 = vmatprep.subr.bf16.mxu0 0
    %9696 = vmatpush1.bf16.msra.mxu0 0
    %9697 = vmatprep.subr.bf16.mxu0 0
    %9698 = vmatpush1.bf16.msra.mxu0 0
    %9699 = vmatprep.subr.bf16.mxu0 0
    %9700 = vmatpush1.bf16.msra.mxu0 0
    %9701 = vmatprep.subr.bf16.mxu0 0
    %9702 = vmatpush1.bf16.msra.mxu0 %v6528
    %9703 = vmatprep.subr.bf16.mxu0 0
    %9704 = vmatpush1.bf16.msra.mxu0 %v6074
    %9705 = vmatprep.subr.bf16.mxu0 0
    %9706 = vmatpush1.bf16.msra.mxu0 %v6073
    %9707 = vmatprep.subr.bf16.mxu0 0
    %9708 = vmatpush2.bf16.msra.mxu0 0
    %9709 = vmatprep.subr.bf16.mxu0 0
    %9710 = vmatpush2.bf16.msra.mxu0 0
    %9711 = vmatprep.subr.bf16.mxu0 0
    %9712 = vmatpush2.bf16.msra.mxu0 0
    %9713 = vmatprep.subr.bf16.mxu0 0
    %9714 = vmatpush2.bf16.msra.mxu0 0
    %9715 = vmatprep.subr.bf16.mxu0 0
    %9716 = vmatpush2.bf16.msra.mxu0 0
    %9717 = vmatprep.subr.bf16.mxu0 0
    %9718 = vmatpush2.bf16.msra.mxu0 0
    %9719 = vmatprep.subr.bf16.mxu0 0
    %9720 = vmatpush2.bf16.msra.mxu0 0
    %9721 = vmatprep.subr.bf16.mxu0 0
    %9722 = vmatpush2.bf16.msra.mxu0 0
    %9723 = vmatprep.mubr.bf16.mxu0 0
    %9724 = vmatmul.mubr.bf16.gmra.mxu0 %v9296
    %v9725 = vpop.f32.mrf.mxu0
    %v9726 = vadd.f32 0.0, %v9725
    %v9727 = vpop.f32.mrf.mxu0
    %v9728 = vpop.f32.mrf.mxu0
    %v9729 = vadd.f32 0.0, %v9728
    %v9730 = vpop.f32.mrf.mxu0
    %9731 = vmatprep.mubr.bf16.mxu0 0
    %9732 = vmatmul.mubr.bf16.gmra.mxu0 %v9299
    %v9733 = vpop.f32.mrf.mxu0
    %v9734 = vadd.f32 0.0, %v9733
    %v9735 = vpop.f32.mrf.mxu0
    %v9736 = vpop.f32.mrf.mxu0
    %v9737 = vadd.f32 0.0, %v9736
    %v9738 = vpop.f32.mrf.mxu0
    %9739 = vmatprep.mubr.bf16.mxu0 0
    %9740 = vmatmul.mubr.bf16.gmra.mxu0 %v9302
    %v9741 = vpop.f32.mrf.mxu0
    %v9742 = vadd.f32 0.0, %v9741
    %v9743 = vpop.f32.mrf.mxu0
    %v9744 = vpop.f32.mrf.mxu0
    %v9745 = vadd.f32 0.0, %v9744
    %v9746 = vpop.f32.mrf.mxu0
    %9747 = vmatprep.mubr.bf16.mxu0 0
    %9748 = vmatmul.mubr.bf16.gmra.mxu0 %v9305
    %v9749 = vpop.f32.mrf.mxu0
    %v9750 = vadd.f32 0.0, %v9749
    %v9751 = vpop.f32.mrf.mxu0
    %v9752 = vpop.f32.mrf.mxu0
    %v9753 = vpop.f32.mrf.mxu0
    %9754 = vdwg.mxu0
    %9755 = vmatprep.subr.bf16.mxu0 0
    %9756 = vmatpush1.bf16.msra.mxu0 0
    %9757 = vmatprep.subr.bf16.mxu0 0
    %9758 = vmatpush1.bf16.msra.mxu0 0
    %9759 = vmatprep.subr.bf16.mxu0 0
    %9760 = vmatpush1.bf16.msra.mxu0 0
    %9761 = vmatprep.subr.bf16.mxu0 0
    %9762 = vmatpush1.bf16.msra.mxu0 0
    %9763 = vmatprep.subr.bf16.mxu0 0
    %9764 = vmatpush1.bf16.msra.mxu0 0
    %9765 = vmatprep.subr.bf16.mxu0 0
    %9766 = vmatpush1.bf16.msra.mxu0 %v6595
    %9767 = vmatprep.subr.bf16.mxu0 0
    %9768 = vmatpush1.bf16.msra.mxu0 %v6077
    %9769 = vmatprep.subr.bf16.mxu0 0
    %9770 = vmatpush1.bf16.msra.mxu0 %v6076
    %9771 = vmatprep.subr.bf16.mxu0 0
    %9772 = vmatpush2.bf16.msra.mxu0 0
    %9773 = vmatprep.subr.bf16.mxu0 0
    %9774 = vmatpush2.bf16.msra.mxu0 0
    %9775 = vmatprep.subr.bf16.mxu0 0
    %9776 = vmatpush2.bf16.msra.mxu0 0
    %9777 = vmatprep.subr.bf16.mxu0 0
    %9778 = vmatpush2.bf16.msra.mxu0 0
    %9779 = vmatprep.subr.bf16.mxu0 0
    %9780 = vmatpush2.bf16.msra.mxu0 0
    %9781 = vmatprep.subr.bf16.mxu0 0
    %9782 = vmatpush2.bf16.msra.mxu0 0
    %9783 = vmatprep.subr.bf16.mxu0 0
    %9784 = vmatpush2.bf16.msra.mxu0 0
    %9785 = vmatprep.subr.bf16.mxu0 0
    %9786 = vmatpush2.bf16.msra.mxu0 0
    %9787 = vmatprep.mubr.bf16.mxu0 0
    %9788 = vmatmul.mubr.bf16.gmra.mxu0 %v9296
    %v9789 = vpop.f32.mrf.mxu0
    %v9790 = vadd.f32 0.0, %v9789
    %v9791 = vpop.f32.mrf.mxu0
    %v9792 = vpop.f32.mrf.mxu0
    %v9793 = vadd.f32 0.0, %v9792
    %v9794 = vpop.f32.mrf.mxu0
    %9795 = vmatprep.mubr.bf16.mxu0 0
    %9796 = vmatmul.mubr.bf16.gmra.mxu0 %v9299
    %v9797 = vpop.f32.mrf.mxu0
    %v9798 = vadd.f32 0.0, %v9797
    %v9799 = vpop.f32.mrf.mxu0
    %v9800 = vpop.f32.mrf.mxu0
    %v9801 = vadd.f32 0.0, %v9800
    %v9802 = vpop.f32.mrf.mxu0
    %9803 = vmatprep.mubr.bf16.mxu0 0
    %9804 = vmatmul.mubr.bf16.gmra.mxu0 %v9302
    %v9805 = vpop.f32.mrf.mxu0
    %v9806 = vadd.f32 0.0, %v9805
    %v9807 = vpop.f32.mrf.mxu0
    %v9808 = vpop.f32.mrf.mxu0
    %v9809 = vadd.f32 0.0, %v9808
    %v9810 = vpop.f32.mrf.mxu0
    %9811 = vmatprep.mubr.bf16.mxu0 0
    %9812 = vmatmul.mubr.bf16.gmra.mxu0 %v9305
    %v9813 = vpop.f32.mrf.mxu0
    %v9814 = vadd.f32 0.0, %v9813
    %v9815 = vpop.f32.mrf.mxu0
    %v9816 = vpop.f32.mrf.mxu0
    %v9817 = vpop.f32.mrf.mxu0
    %9818 = vdwg.mxu0
    %s9819 = scalar_lea.vmem %s9, 16
    %v9820 = vld [vmem:[%s9819] sm:$0x7f]
    %v9822 = vsel %vm4925, %v9342, 0
    %v9825 = vsel %vm4925, %v9345, 0
    %v9828 = vsel %vm4925, %v9350, 0
    %v9831 = vsel %vm4925, %v9353, 0
    %v9834 = vsel %vm4925, %v9358, 0
    %v9837 = vsel %vm4925, %v9361, 0
    %v9840 = vsel %vm4925, %v9366, 0
    %v9843 = vsel %vm6683, %v9820, 0
    %9845 = vmatprep.subr.mxu0 0.0
    %9846 = vmatpush1.msra.mxu0 0.0
    %9847 = vmatprep.subr.mxu0 0.0
    %9848 = vmatpush1.msra.mxu0 0.0
    %9849 = vmatprep.subr.mxu0 0.0
    %9850 = vmatpush1.msra.mxu0 0.0
    %9851 = vmatprep.subr.mxu0 0.0
    %9852 = vmatpush1.msra.mxu0 0.0
    %9853 = vmatprep.subr.mxu0 0.0
    %9854 = vmatpush1.msra.mxu0 0.0
    %9855 = vmatprep.subr.mxu0 0.0
    %9856 = vmatpush1.msra.mxu0 0.0
    %9857 = vmatprep.subr.mxu0 0.0
    %9858 = vmatpush1.msra.mxu0 0.0
    %9859 = vmatprep.subr.mxu0 0.0
    %9860 = vmatpush1.msra.mxu0 0.0
    %9861 = vmatprep.subr.mxu0 0.0
    %9862 = vmatpush1.msra.mxu0 0.0
    %9863 = vmatprep.subr.mxu0 0.0
    %9864 = vmatpush1.msra.mxu0 0.0
    %9865 = vmatprep.subr.mxu0 0.0
    %9866 = vmatpush1.msra.mxu0 0.0
    %9867 = vmatprep.subr.mxu0 0.0
    %9868 = vmatpush1.msra.mxu0 0.0
    %9869 = vmatprep.subr.mxu0 0.0
    %9870 = vmatpush1.msra.mxu0 0.0
    %9871 = vmatprep.subr.mxu0 0.0
    %9872 = vmatpush1.msra.mxu0 0.0
    %9873 = vmatprep.subr.mxu0 0.0
    %9874 = vmatpush1.msra.mxu0 0.0
    %9875 = vmatprep.subr.mxu0 0.0
    %9876 = vmatpush1.msra.mxu0 %v9843
    %9877 = vmatprep.subr.mxu0 0.0
    %9878 = vmatpush2.msra.mxu0 0.0
    %9879 = vmatprep.subr.mxu0 0.0
    %9880 = vmatpush2.msra.mxu0 0.0
    %9881 = vmatprep.subr.mxu0 0.0
    %9882 = vmatpush2.msra.mxu0 0.0
    %9883 = vmatprep.subr.mxu0 0.0
    %9884 = vmatpush2.msra.mxu0 0.0
    %9885 = vmatprep.subr.mxu0 0.0
    %9886 = vmatpush2.msra.mxu0 0.0
    %9887 = vmatprep.subr.mxu0 0.0
    %9888 = vmatpush2.msra.mxu0 0.0
    %9889 = vmatprep.subr.mxu0 0.0
    %9890 = vmatpush2.msra.mxu0 0.0
    %9891 = vmatprep.subr.mxu0 0.0
    %9892 = vmatpush2.msra.mxu0 0.0
    %9893 = vmatprep.subr.mxu0 0.0
    %9894 = vmatpush2.msra.mxu0 0.0
    %9895 = vmatprep.subr.mxu0 0.0
    %9896 = vmatpush2.msra.mxu0 0.0
    %9897 = vmatprep.subr.mxu0 0.0
    %9898 = vmatpush2.msra.mxu0 0.0
    %9899 = vmatprep.subr.mxu0 0.0
    %9900 = vmatpush2.msra.mxu0 0.0
    %9901 = vmatprep.subr.mxu0 0.0
    %9902 = vmatpush2.msra.mxu0 0.0
    %9903 = vmatprep.subr.mxu0 0.0
    %9904 = vmatpush2.msra.mxu0 0.0
    %9905 = vmatprep.subr.mxu0 0.0
    %9906 = vmatpush2.msra.mxu0 0.0
    %9907 = vmatprep.subr.mxu0 0.0
    %9908 = vmatpush2.msra.mxu0 0.0
    %9909 = vmatprep.mubr.f32.mxu0 0.0
    %9910 = vmatmul.mubr.f32.gmra.mxu0 %v9822
    %v9911 = vpop.f32.mrf.mxu0
    %v9912 = vadd.f32 0.0, %v9911
    %v9913 = vpop.f32.mrf.mxu0
    %9914 = vmatprep.mubr.f32.mxu0 0.0
    %9915 = vmatmul.mubr.f32.gmra.mxu0 %v9825
    %v9916 = vpop.f32.mrf.mxu0
    %v9917 = vadd.f32 0.0, %v9916
    %v9918 = vpop.f32.mrf.mxu0
    %9919 = vmatprep.mubr.f32.mxu0 0.0
    %9920 = vmatmul.mubr.f32.gmra.mxu0 %v9828
    %v9921 = vpop.f32.mrf.mxu0
    %v9922 = vadd.f32 0.0, %v9921
    %v9923 = vpop.f32.mrf.mxu0
    %9924 = vmatprep.mubr.f32.mxu0 0.0
    %9925 = vmatmul.mubr.f32.gmra.mxu0 %v9831
    %v9926 = vpop.f32.mrf.mxu0
    %v9927 = vadd.f32 0.0, %v9926
    %v9928 = vpop.f32.mrf.mxu0
    %9929 = vmatprep.mubr.f32.mxu0 0.0
    %9930 = vmatmul.mubr.f32.gmra.mxu0 %v9834
    %v9931 = vpop.f32.mrf.mxu0
    %v9932 = vadd.f32 0.0, %v9931
    %v9933 = vpop.f32.mrf.mxu0
    %9934 = vmatprep.mubr.f32.mxu0 0.0
    %9935 = vmatmul.mubr.f32.gmra.mxu0 %v9837
    %v9936 = vpop.f32.mrf.mxu0
    %v9937 = vadd.f32 0.0, %v9936
    %v9938 = vpop.f32.mrf.mxu0
    %9939 = vmatprep.mubr.f32.mxu0 0.0
    %9940 = vmatmul.mubr.f32.gmra.mxu0 %v9840
    %v9941 = vpop.f32.mrf.mxu0
    %v9942 = vadd.f32 0.0, %v9941
    %v9943 = vpop.f32.mrf.mxu0
    %9944 = vdwg.mxu0
    %v9946 = vsel %vm4925, %v9406, 0
    %v9949 = vsel %vm4925, %v9409, 0
    %v9952 = vsel %vm4925, %v9414, 0
    %v9955 = vsel %vm4925, %v9417, 0
    %v9958 = vsel %vm4925, %v9422, 0
    %v9961 = vsel %vm4925, %v9425, 0
    %v9964 = vsel %vm4925, %v9430, 0
    %9966 = vmatprep.subr.mxu0 0.0
    %9967 = vmatpush1.msra.mxu0 0.0
    %9968 = vmatprep.subr.mxu0 0.0
    %9969 = vmatpush1.msra.mxu0 0.0
    %9970 = vmatprep.subr.mxu0 0.0
    %9971 = vmatpush1.msra.mxu0 0.0
    %9972 = vmatprep.subr.mxu0 0.0
    %9973 = vmatpush1.msra.mxu0 0.0
    %9974 = vmatprep.subr.mxu0 0.0
    %9975 = vmatpush1.msra.mxu0 0.0
    %9976 = vmatprep.subr.mxu0 0.0
    %9977 = vmatpush1.msra.mxu0 0.0
    %9978 = vmatprep.subr.mxu0 0.0
    %9979 = vmatpush1.msra.mxu0 0.0
    %9980 = vmatprep.subr.mxu0 0.0
    %9981 = vmatpush1.msra.mxu0 0.0
    %9982 = vmatprep.subr.mxu0 0.0
    %9983 = vmatpush1.msra.mxu0 0.0
    %9984 = vmatprep.subr.mxu0 0.0
    %9985 = vmatpush1.msra.mxu0 0.0
    %9986 = vmatprep.subr.mxu0 0.0
    %9987 = vmatpush1.msra.mxu0 0.0
    %9988 = vmatprep.subr.mxu0 0.0
    %9989 = vmatpush1.msra.mxu0 0.0
    %9990 = vmatprep.subr.mxu0 0.0
    %9991 = vmatpush1.msra.mxu0 0.0
    %9992 = vmatprep.subr.mxu0 0.0
    %9993 = vmatpush1.msra.mxu0 0.0
    %9994 = vmatprep.subr.mxu0 0.0
    %9995 = vmatpush1.msra.mxu0 0.0
    %9996 = vmatprep.subr.mxu0 0.0
    %9997 = vmatpush1.msra.mxu0 %v9843
    %9998 = vmatprep.subr.mxu0 0.0
    %9999 = vmatpush2.msra.mxu0 0.0
    %10000 = vmatprep.subr.mxu0 0.0
    %10001 = vmatpush2.msra.mxu0 0.0
    %10002 = vmatprep.subr.mxu0 0.0
    %10003 = vmatpush2.msra.mxu0 0.0
    %10004 = vmatprep.subr.mxu0 0.0
    %10005 = vmatpush2.msra.mxu0 0.0
    %10006 = vmatprep.subr.mxu0 0.0
    %10007 = vmatpush2.msra.mxu0 0.0
    %10008 = vmatprep.subr.mxu0 0.0
    %10009 = vmatpush2.msra.mxu0 0.0
    %10010 = vmatprep.subr.mxu0 0.0
    %10011 = vmatpush2.msra.mxu0 0.0
    %10012 = vmatprep.subr.mxu0 0.0
    %10013 = vmatpush2.msra.mxu0 0.0
    %10014 = vmatprep.subr.mxu0 0.0
    %10015 = vmatpush2.msra.mxu0 0.0
    %10016 = vmatprep.subr.mxu0 0.0
    %10017 = vmatpush2.msra.mxu0 0.0
    %10018 = vmatprep.subr.mxu0 0.0
    %10019 = vmatpush2.msra.mxu0 0.0
    %10020 = vmatprep.subr.mxu0 0.0
    %10021 = vmatpush2.msra.mxu0 0.0
    %10022 = vmatprep.subr.mxu0 0.0
    %10023 = vmatpush2.msra.mxu0 0.0
    %10024 = vmatprep.subr.mxu0 0.0
    %10025 = vmatpush2.msra.mxu0 0.0
    %10026 = vmatprep.subr.mxu0 0.0
    %10027 = vmatpush2.msra.mxu0 0.0
    %10028 = vmatprep.subr.mxu0 0.0
    %10029 = vmatpush2.msra.mxu0 0.0
    %10030 = vmatprep.mubr.f32.mxu0 0.0
    %10031 = vmatmul.mubr.f32.gmra.mxu0 %v9946
    %v10032 = vpop.f32.mrf.mxu0
    %v10033 = vadd.f32 0.0, %v10032
    %v10034 = vpop.f32.mrf.mxu0
    %10035 = vmatprep.mubr.f32.mxu0 0.0
    %10036 = vmatmul.mubr.f32.gmra.mxu0 %v9949
    %v10037 = vpop.f32.mrf.mxu0
    %v10038 = vadd.f32 0.0, %v10037
    %v10039 = vpop.f32.mrf.mxu0
    %10040 = vmatprep.mubr.f32.mxu0 0.0
    %10041 = vmatmul.mubr.f32.gmra.mxu0 %v9952
    %v10042 = vpop.f32.mrf.mxu0
    %v10043 = vadd.f32 0.0, %v10042
    %v10044 = vpop.f32.mrf.mxu0
    %10045 = vmatprep.mubr.f32.mxu0 0.0
    %10046 = vmatmul.mubr.f32.gmra.mxu0 %v9955
    %v10047 = vpop.f32.mrf.mxu0
    %v10048 = vadd.f32 0.0, %v10047
    %v10049 = vpop.f32.mrf.mxu0
    %10050 = vmatprep.mubr.f32.mxu0 0.0
    %10051 = vmatmul.mubr.f32.gmra.mxu0 %v9958
    %v10052 = vpop.f32.mrf.mxu0
    %v10053 = vadd.f32 0.0, %v10052
    %v10054 = vpop.f32.mrf.mxu0
    %10055 = vmatprep.mubr.f32.mxu0 0.0
    %10056 = vmatmul.mubr.f32.gmra.mxu0 %v9961
    %v10057 = vpop.f32.mrf.mxu0
    %v10058 = vadd.f32 0.0, %v10057
    %v10059 = vpop.f32.mrf.mxu0
    %10060 = vmatprep.mubr.f32.mxu0 0.0
    %10061 = vmatmul.mubr.f32.gmra.mxu0 %v9964
    %v10062 = vpop.f32.mrf.mxu0
    %v10063 = vadd.f32 0.0, %v10062
    %v10064 = vpop.f32.mrf.mxu0
    %10065 = vdwg.mxu0
    %v10067 = vsel %vm4925, %v9470, 0
    %v10070 = vsel %vm4925, %v9473, 0
    %v10073 = vsel %vm4925, %v9478, 0
    %v10076 = vsel %vm4925, %v9481, 0
    %v10079 = vsel %vm4925, %v9486, 0
    %v10082 = vsel %vm4925, %v9489, 0
    %v10085 = vsel %vm4925, %v9494, 0
    %10087 = vmatprep.subr.mxu0 0.0
    %10088 = vmatpush1.msra.mxu0 0.0
    %10089 = vmatprep.subr.mxu0 0.0
    %10090 = vmatpush1.msra.mxu0 0.0
    %10091 = vmatprep.subr.mxu0 0.0
    %10092 = vmatpush1.msra.mxu0 0.0
    %10093 = vmatprep.subr.mxu0 0.0
    %10094 = vmatpush1.msra.mxu0 0.0
    %10095 = vmatprep.subr.mxu0 0.0
    %10096 = vmatpush1.msra.mxu0 0.0
    %10097 = vmatprep.subr.mxu0 0.0
    %10098 = vmatpush1.msra.mxu0 0.0
    %10099 = vmatprep.subr.mxu0 0.0
    %10100 = vmatpush1.msra.mxu0 0.0
    %10101 = vmatprep.subr.mxu0 0.0
    %10102 = vmatpush1.msra.mxu0 0.0
    %10103 = vmatprep.subr.mxu0 0.0
    %10104 = vmatpush1.msra.mxu0 0.0
    %10105 = vmatprep.subr.mxu0 0.0
    %10106 = vmatpush1.msra.mxu0 0.0
    %10107 = vmatprep.subr.mxu0 0.0
    %10108 = vmatpush1.msra.mxu0 0.0
    %10109 = vmatprep.subr.mxu0 0.0
    %10110 = vmatpush1.msra.mxu0 0.0
    %10111 = vmatprep.subr.mxu0 0.0
    %10112 = vmatpush1.msra.mxu0 0.0
    %10113 = vmatprep.subr.mxu0 0.0
    %10114 = vmatpush1.msra.mxu0 0.0
    %10115 = vmatprep.subr.mxu0 0.0
    %10116 = vmatpush1.msra.mxu0 0.0
    %10117 = vmatprep.subr.mxu0 0.0
    %10118 = vmatpush1.msra.mxu0 %v9843
    %10119 = vmatprep.subr.mxu0 0.0
    %10120 = vmatpush2.msra.mxu0 0.0
    %10121 = vmatprep.subr.mxu0 0.0
    %10122 = vmatpush2.msra.mxu0 0.0
    %10123 = vmatprep.subr.mxu0 0.0
    %10124 = vmatpush2.msra.mxu0 0.0
    %10125 = vmatprep.subr.mxu0 0.0
    %10126 = vmatpush2.msra.mxu0 0.0
    %10127 = vmatprep.subr.mxu0 0.0
    %10128 = vmatpush2.msra.mxu0 0.0
    %10129 = vmatprep.subr.mxu0 0.0
    %10130 = vmatpush2.msra.mxu0 0.0
    %10131 = vmatprep.subr.mxu0 0.0
    %10132 = vmatpush2.msra.mxu0 0.0
    %10133 = vmatprep.subr.mxu0 0.0
    %10134 = vmatpush2.msra.mxu0 0.0
    %10135 = vmatprep.subr.mxu0 0.0
    %10136 = vmatpush2.msra.mxu0 0.0
    %10137 = vmatprep.subr.mxu0 0.0
    %10138 = vmatpush2.msra.mxu0 0.0
    %10139 = vmatprep.subr.mxu0 0.0
    %10140 = vmatpush2.msra.mxu0 0.0
    %10141 = vmatprep.subr.mxu0 0.0
    %10142 = vmatpush2.msra.mxu0 0.0
    %10143 = vmatprep.subr.mxu0 0.0
    %10144 = vmatpush2.msra.mxu0 0.0
    %10145 = vmatprep.subr.mxu0 0.0
    %10146 = vmatpush2.msra.mxu0 0.0
    %10147 = vmatprep.subr.mxu0 0.0
    %10148 = vmatpush2.msra.mxu0 0.0
    %10149 = vmatprep.subr.mxu0 0.0
    %10150 = vmatpush2.msra.mxu0 0.0
    %10151 = vmatprep.mubr.f32.mxu0 0.0
    %10152 = vmatmul.mubr.f32.gmra.mxu0 %v10067
    %v10153 = vpop.f32.mrf.mxu0
    %v10154 = vadd.f32 0.0, %v10153
    %v10155 = vpop.f32.mrf.mxu0
    %10156 = vmatprep.mubr.f32.mxu0 0.0
    %10157 = vmatmul.mubr.f32.gmra.mxu0 %v10070
    %v10158 = vpop.f32.mrf.mxu0
    %v10159 = vadd.f32 0.0, %v10158
    %v10160 = vpop.f32.mrf.mxu0
    %10161 = vmatprep.mubr.f32.mxu0 0.0
    %10162 = vmatmul.mubr.f32.gmra.mxu0 %v10073
    %v10163 = vpop.f32.mrf.mxu0
    %v10164 = vadd.f32 0.0, %v10163
    %v10165 = vpop.f32.mrf.mxu0
    %10166 = vmatprep.mubr.f32.mxu0 0.0
    %10167 = vmatmul.mubr.f32.gmra.mxu0 %v10076
    %v10168 = vpop.f32.mrf.mxu0
    %v10169 = vadd.f32 0.0, %v10168
    %v10170 = vpop.f32.mrf.mxu0
    %10171 = vmatprep.mubr.f32.mxu0 0.0
    %10172 = vmatmul.mubr.f32.gmra.mxu0 %v10079
    %v10173 = vpop.f32.mrf.mxu0
    %v10174 = vadd.f32 0.0, %v10173
    %v10175 = vpop.f32.mrf.mxu0
    %10176 = vmatprep.mubr.f32.mxu0 0.0
    %10177 = vmatmul.mubr.f32.gmra.mxu0 %v10082
    %v10178 = vpop.f32.mrf.mxu0
    %v10179 = vadd.f32 0.0, %v10178
    %v10180 = vpop.f32.mrf.mxu0
    %10181 = vmatprep.mubr.f32.mxu0 0.0
    %10182 = vmatmul.mubr.f32.gmra.mxu0 %v10085
    %v10183 = vpop.f32.mrf.mxu0
    %v10184 = vadd.f32 0.0, %v10183
    %v10185 = vpop.f32.mrf.mxu0
    %10186 = vdwg.mxu0
    %v10188 = vsel %vm4925, %v9534, 0
    %v10191 = vsel %vm4925, %v9537, 0
    %v10194 = vsel %vm4925, %v9542, 0
    %v10197 = vsel %vm4925, %v9545, 0
    %v10200 = vsel %vm4925, %v9550, 0
    %v10203 = vsel %vm4925, %v9553, 0
    %v10206 = vsel %vm4925, %v9558, 0
    %10208 = vmatprep.subr.mxu0 0.0
    %10209 = vmatpush1.msra.mxu0 0.0
    %10210 = vmatprep.subr.mxu0 0.0
    %10211 = vmatpush1.msra.mxu0 0.0
    %10212 = vmatprep.subr.mxu0 0.0
    %10213 = vmatpush1.msra.mxu0 0.0
    %10214 = vmatprep.subr.mxu0 0.0
    %10215 = vmatpush1.msra.mxu0 0.0
    %10216 = vmatprep.subr.mxu0 0.0
    %10217 = vmatpush1.msra.mxu0 0.0
    %10218 = vmatprep.subr.mxu0 0.0
    %10219 = vmatpush1.msra.mxu0 0.0
    %10220 = vmatprep.subr.mxu0 0.0
    %10221 = vmatpush1.msra.mxu0 0.0
    %10222 = vmatprep.subr.mxu0 0.0
    %10223 = vmatpush1.msra.mxu0 0.0
    %10224 = vmatprep.subr.mxu0 0.0
    %10225 = vmatpush1.msra.mxu0 0.0
    %10226 = vmatprep.subr.mxu0 0.0
    %10227 = vmatpush1.msra.mxu0 0.0
    %10228 = vmatprep.subr.mxu0 0.0
    %10229 = vmatpush1.msra.mxu0 0.0
    %10230 = vmatprep.subr.mxu0 0.0
    %10231 = vmatpush1.msra.mxu0 0.0
    %10232 = vmatprep.subr.mxu0 0.0
    %10233 = vmatpush1.msra.mxu0 0.0
    %10234 = vmatprep.subr.mxu0 0.0
    %10235 = vmatpush1.msra.mxu0 0.0
    %10236 = vmatprep.subr.mxu0 0.0
    %10237 = vmatpush1.msra.mxu0 0.0
    %10238 = vmatprep.subr.mxu0 0.0
    %10239 = vmatpush1.msra.mxu0 %v9843
    %10240 = vmatprep.subr.mxu0 0.0
    %10241 = vmatpush2.msra.mxu0 0.0
    %10242 = vmatprep.subr.mxu0 0.0
    %10243 = vmatpush2.msra.mxu0 0.0
    %10244 = vmatprep.subr.mxu0 0.0
    %10245 = vmatpush2.msra.mxu0 0.0
    %10246 = vmatprep.subr.mxu0 0.0
    %10247 = vmatpush2.msra.mxu0 0.0
    %10248 = vmatprep.subr.mxu0 0.0
    %10249 = vmatpush2.msra.mxu0 0.0
    %10250 = vmatprep.subr.mxu0 0.0
    %10251 = vmatpush2.msra.mxu0 0.0
    %10252 = vmatprep.subr.mxu0 0.0
    %10253 = vmatpush2.msra.mxu0 0.0
    %10254 = vmatprep.subr.mxu0 0.0
    %10255 = vmatpush2.msra.mxu0 0.0
    %10256 = vmatprep.subr.mxu0 0.0
    %10257 = vmatpush2.msra.mxu0 0.0
    %10258 = vmatprep.subr.mxu0 0.0
    %10259 = vmatpush2.msra.mxu0 0.0
    %10260 = vmatprep.subr.mxu0 0.0
    %10261 = vmatpush2.msra.mxu0 0.0
    %10262 = vmatprep.subr.mxu0 0.0
    %10263 = vmatpush2.msra.mxu0 0.0
    %10264 = vmatprep.subr.mxu0 0.0
    %10265 = vmatpush2.msra.mxu0 0.0
    %10266 = vmatprep.subr.mxu0 0.0
    %10267 = vmatpush2.msra.mxu0 0.0
    %10268 = vmatprep.subr.mxu0 0.0
    %10269 = vmatpush2.msra.mxu0 0.0
    %10270 = vmatprep.subr.mxu0 0.0
    %10271 = vmatpush2.msra.mxu0 0.0
    %10272 = vmatprep.mubr.f32.mxu0 0.0
    %10273 = vmatmul.mubr.f32.gmra.mxu0 %v10188
    %v10274 = vpop.f32.mrf.mxu0
    %v10275 = vadd.f32 0.0, %v10274
    %v10276 = vpop.f32.mrf.mxu0
    %10277 = vmatprep.mubr.f32.mxu0 0.0
    %10278 = vmatmul.mubr.f32.gmra.mxu0 %v10191
    %v10279 = vpop.f32.mrf.mxu0
    %v10280 = vadd.f32 0.0, %v10279
    %v10281 = vpop.f32.mrf.mxu0
    %10282 = vmatprep.mubr.f32.mxu0 0.0
    %10283 = vmatmul.mubr.f32.gmra.mxu0 %v10194
    %v10284 = vpop.f32.mrf.mxu0
    %v10285 = vadd.f32 0.0, %v10284
    %v10286 = vpop.f32.mrf.mxu0
    %10287 = vmatprep.mubr.f32.mxu0 0.0
    %10288 = vmatmul.mubr.f32.gmra.mxu0 %v10197
    %v10289 = vpop.f32.mrf.mxu0
    %v10290 = vadd.f32 0.0, %v10289
    %v10291 = vpop.f32.mrf.mxu0
    %10292 = vmatprep.mubr.f32.mxu0 0.0
    %10293 = vmatmul.mubr.f32.gmra.mxu0 %v10200
    %v10294 = vpop.f32.mrf.mxu0
    %v10295 = vadd.f32 0.0, %v10294
    %v10296 = vpop.f32.mrf.mxu0
    %10297 = vmatprep.mubr.f32.mxu0 0.0
    %10298 = vmatmul.mubr.f32.gmra.mxu0 %v10203
    %v10299 = vpop.f32.mrf.mxu0
    %v10300 = vadd.f32 0.0, %v10299
    %v10301 = vpop.f32.mrf.mxu0
    %10302 = vmatprep.mubr.f32.mxu0 0.0
    %10303 = vmatmul.mubr.f32.gmra.mxu0 %v10206
    %v10304 = vpop.f32.mrf.mxu0
    %v10305 = vadd.f32 0.0, %v10304
    %v10306 = vpop.f32.mrf.mxu0
    %10307 = vdwg.mxu0
    %v10309 = vsel %vm4925, %v9598, 0
    %v10312 = vsel %vm4925, %v9601, 0
    %v10315 = vsel %vm4925, %v9606, 0
    %v10318 = vsel %vm4925, %v9609, 0
    %v10321 = vsel %vm4925, %v9614, 0
    %v10324 = vsel %vm4925, %v9617, 0
    %v10327 = vsel %vm4925, %v9622, 0
    %10329 = vmatprep.subr.mxu0 0.0
    %10330 = vmatpush1.msra.mxu0 0.0
    %10331 = vmatprep.subr.mxu0 0.0
    %10332 = vmatpush1.msra.mxu0 0.0
    %10333 = vmatprep.subr.mxu0 0.0
    %10334 = vmatpush1.msra.mxu0 0.0
    %10335 = vmatprep.subr.mxu0 0.0
    %10336 = vmatpush1.msra.mxu0 0.0
    %10337 = vmatprep.subr.mxu0 0.0
    %10338 = vmatpush1.msra.mxu0 0.0
    %10339 = vmatprep.subr.mxu0 0.0
    %10340 = vmatpush1.msra.mxu0 0.0
    %10341 = vmatprep.subr.mxu0 0.0
    %10342 = vmatpush1.msra.mxu0 0.0
    %10343 = vmatprep.subr.mxu0 0.0
    %10344 = vmatpush1.msra.mxu0 0.0
    %10345 = vmatprep.subr.mxu0 0.0
    %10346 = vmatpush1.msra.mxu0 0.0
    %10347 = vmatprep.subr.mxu0 0.0
    %10348 = vmatpush1.msra.mxu0 0.0
    %10349 = vmatprep.subr.mxu0 0.0
    %10350 = vmatpush1.msra.mxu0 0.0
    %10351 = vmatprep.subr.mxu0 0.0
    %10352 = vmatpush1.msra.mxu0 0.0
    %10353 = vmatprep.subr.mxu0 0.0
    %10354 = vmatpush1.msra.mxu0 0.0
    %10355 = vmatprep.subr.mxu0 0.0
    %10356 = vmatpush1.msra.mxu0 0.0
    %10357 = vmatprep.subr.mxu0 0.0
    %10358 = vmatpush1.msra.mxu0 0.0
    %10359 = vmatprep.subr.mxu0 0.0
    %10360 = vmatpush1.msra.mxu0 %v9843
    %10361 = vmatprep.subr.mxu0 0.0
    %10362 = vmatpush2.msra.mxu0 0.0
    %10363 = vmatprep.subr.mxu0 0.0
    %10364 = vmatpush2.msra.mxu0 0.0
    %10365 = vmatprep.subr.mxu0 0.0
    %10366 = vmatpush2.msra.mxu0 0.0
    %10367 = vmatprep.subr.mxu0 0.0
    %10368 = vmatpush2.msra.mxu0 0.0
    %10369 = vmatprep.subr.mxu0 0.0
    %10370 = vmatpush2.msra.mxu0 0.0
    %10371 = vmatprep.subr.mxu0 0.0
    %10372 = vmatpush2.msra.mxu0 0.0
    %10373 = vmatprep.subr.mxu0 0.0
    %10374 = vmatpush2.msra.mxu0 0.0
    %10375 = vmatprep.subr.mxu0 0.0
    %10376 = vmatpush2.msra.mxu0 0.0
    %10377 = vmatprep.subr.mxu0 0.0
    %10378 = vmatpush2.msra.mxu0 0.0
    %10379 = vmatprep.subr.mxu0 0.0
    %10380 = vmatpush2.msra.mxu0 0.0
    %10381 = vmatprep.subr.mxu0 0.0
    %10382 = vmatpush2.msra.mxu0 0.0
    %10383 = vmatprep.subr.mxu0 0.0
    %10384 = vmatpush2.msra.mxu0 0.0
    %10385 = vmatprep.subr.mxu0 0.0
    %10386 = vmatpush2.msra.mxu0 0.0
    %10387 = vmatprep.subr.mxu0 0.0
    %10388 = vmatpush2.msra.mxu0 0.0
    %10389 = vmatprep.subr.mxu0 0.0
    %10390 = vmatpush2.msra.mxu0 0.0
    %10391 = vmatprep.subr.mxu0 0.0
    %10392 = vmatpush2.msra.mxu0 0.0
    %10393 = vmatprep.mubr.f32.mxu0 0.0
    %10394 = vmatmul.mubr.f32.gmra.mxu0 %v10309
    %v10395 = vpop.f32.mrf.mxu0
    %v10396 = vadd.f32 0.0, %v10395
    %v10397 = vpop.f32.mrf.mxu0
    %10398 = vmatprep.mubr.f32.mxu0 0.0
    %10399 = vmatmul.mubr.f32.gmra.mxu0 %v10312
    %v10400 = vpop.f32.mrf.mxu0
    %v10401 = vadd.f32 0.0, %v10400
    %v10402 = vpop.f32.mrf.mxu0
    %10403 = vmatprep.mubr.f32.mxu0 0.0
    %10404 = vmatmul.mubr.f32.gmra.mxu0 %v10315
    %v10405 = vpop.f32.mrf.mxu0
    %v10406 = vadd.f32 0.0, %v10405
    %v10407 = vpop.f32.mrf.mxu0
    %10408 = vmatprep.mubr.f32.mxu0 0.0
    %10409 = vmatmul.mubr.f32.gmra.mxu0 %v10318
    %v10410 = vpop.f32.mrf.mxu0
    %v10411 = vadd.f32 0.0, %v10410
    %v10412 = vpop.f32.mrf.mxu0
    %10413 = vmatprep.mubr.f32.mxu0 0.0
    %10414 = vmatmul.mubr.f32.gmra.mxu0 %v10321
    %v10415 = vpop.f32.mrf.mxu0
    %v10416 = vadd.f32 0.0, %v10415
    %v10417 = vpop.f32.mrf.mxu0
    %10418 = vmatprep.mubr.f32.mxu0 0.0
    %10419 = vmatmul.mubr.f32.gmra.mxu0 %v10324
    %v10420 = vpop.f32.mrf.mxu0
    %v10421 = vadd.f32 0.0, %v10420
    %v10422 = vpop.f32.mrf.mxu0
    %10423 = vmatprep.mubr.f32.mxu0 0.0
    %10424 = vmatmul.mubr.f32.gmra.mxu0 %v10327
    %v10425 = vpop.f32.mrf.mxu0
    %v10426 = vadd.f32 0.0, %v10425
    %v10427 = vpop.f32.mrf.mxu0
    %10428 = vdwg.mxu0
    %v10430 = vsel %vm4925, %v9662, 0
    %v10433 = vsel %vm4925, %v9665, 0
    %v10436 = vsel %vm4925, %v9670, 0
    %v10439 = vsel %vm4925, %v9673, 0
    %v10442 = vsel %vm4925, %v9678, 0
    %v10445 = vsel %vm4925, %v9681, 0
    %v10448 = vsel %vm4925, %v9686, 0
    %10450 = vmatprep.subr.mxu0 0.0
    %10451 = vmatpush1.msra.mxu0 0.0
    %10452 = vmatprep.subr.mxu0 0.0
    %10453 = vmatpush1.msra.mxu0 0.0
    %10454 = vmatprep.subr.mxu0 0.0
    %10455 = vmatpush1.msra.mxu0 0.0
    %10456 = vmatprep.subr.mxu0 0.0
    %10457 = vmatpush1.msra.mxu0 0.0
    %10458 = vmatprep.subr.mxu0 0.0
    %10459 = vmatpush1.msra.mxu0 0.0
    %10460 = vmatprep.subr.mxu0 0.0
    %10461 = vmatpush1.msra.mxu0 0.0
    %10462 = vmatprep.subr.mxu0 0.0
    %10463 = vmatpush1.msra.mxu0 0.0
    %10464 = vmatprep.subr.mxu0 0.0
    %10465 = vmatpush1.msra.mxu0 0.0
    %10466 = vmatprep.subr.mxu0 0.0
    %10467 = vmatpush1.msra.mxu0 0.0
    %10468 = vmatprep.subr.mxu0 0.0
    %10469 = vmatpush1.msra.mxu0 0.0
    %10470 = vmatprep.subr.mxu0 0.0
    %10471 = vmatpush1.msra.mxu0 0.0
    %10472 = vmatprep.subr.mxu0 0.0
    %10473 = vmatpush1.msra.mxu0 0.0
    %10474 = vmatprep.subr.mxu0 0.0
    %10475 = vmatpush1.msra.mxu0 0.0
    %10476 = vmatprep.subr.mxu0 0.0
    %10477 = vmatpush1.msra.mxu0 0.0
    %10478 = vmatprep.subr.mxu0 0.0
    %10479 = vmatpush1.msra.mxu0 0.0
    %10480 = vmatprep.subr.mxu0 0.0
    %10481 = vmatpush1.msra.mxu0 %v9843
    %10482 = vmatprep.subr.mxu0 0.0
    %10483 = vmatpush2.msra.mxu0 0.0
    %10484 = vmatprep.subr.mxu0 0.0
    %10485 = vmatpush2.msra.mxu0 0.0
    %10486 = vmatprep.subr.mxu0 0.0
    %10487 = vmatpush2.msra.mxu0 0.0
    %10488 = vmatprep.subr.mxu0 0.0
    %10489 = vmatpush2.msra.mxu0 0.0
    %10490 = vmatprep.subr.mxu0 0.0
    %10491 = vmatpush2.msra.mxu0 0.0
    %10492 = vmatprep.subr.mxu0 0.0
    %10493 = vmatpush2.msra.mxu0 0.0
    %10494 = vmatprep.subr.mxu0 0.0
    %10495 = vmatpush2.msra.mxu0 0.0
    %10496 = vmatprep.subr.mxu0 0.0
    %10497 = vmatpush2.msra.mxu0 0.0
    %10498 = vmatprep.subr.mxu0 0.0
    %10499 = vmatpush2.msra.mxu0 0.0
    %10500 = vmatprep.subr.mxu0 0.0
    %10501 = vmatpush2.msra.mxu0 0.0
    %10502 = vmatprep.subr.mxu0 0.0
    %10503 = vmatpush2.msra.mxu0 0.0
    %10504 = vmatprep.subr.mxu0 0.0
    %10505 = vmatpush2.msra.mxu0 0.0
    %10506 = vmatprep.subr.mxu0 0.0
    %10507 = vmatpush2.msra.mxu0 0.0
    %10508 = vmatprep.subr.mxu0 0.0
    %10509 = vmatpush2.msra.mxu0 0.0
    %10510 = vmatprep.subr.mxu0 0.0
    %10511 = vmatpush2.msra.mxu0 0.0
    %10512 = vmatprep.subr.mxu0 0.0
    %10513 = vmatpush2.msra.mxu0 0.0
    %10514 = vmatprep.mubr.f32.mxu0 0.0
    %10515 = vmatmul.mubr.f32.gmra.mxu0 %v10430
    %v10516 = vpop.f32.mrf.mxu0
    %v10517 = vadd.f32 0.0, %v10516
    %v10518 = vpop.f32.mrf.mxu0
    %10519 = vmatprep.mubr.f32.mxu0 0.0
    %10520 = vmatmul.mubr.f32.gmra.mxu0 %v10433
    %v10521 = vpop.f32.mrf.mxu0
    %v10522 = vadd.f32 0.0, %v10521
    %v10523 = vpop.f32.mrf.mxu0
    %10524 = vmatprep.mubr.f32.mxu0 0.0
    %10525 = vmatmul.mubr.f32.gmra.mxu0 %v10436
    %v10526 = vpop.f32.mrf.mxu0
    %v10527 = vadd.f32 0.0, %v10526
    %v10528 = vpop.f32.mrf.mxu0
    %10529 = vmatprep.mubr.f32.mxu0 0.0
    %10530 = vmatmul.mubr.f32.gmra.mxu0 %v10439
    %v10531 = vpop.f32.mrf.mxu0
    %v10532 = vadd.f32 0.0, %v10531
    %v10533 = vpop.f32.mrf.mxu0
    %10534 = vmatprep.mubr.f32.mxu0 0.0
    %10535 = vmatmul.mubr.f32.gmra.mxu0 %v10442
    %v10536 = vpop.f32.mrf.mxu0
    %v10537 = vadd.f32 0.0, %v10536
    %v10538 = vpop.f32.mrf.mxu0
    %10539 = vmatprep.mubr.f32.mxu0 0.0
    %10540 = vmatmul.mubr.f32.gmra.mxu0 %v10445
    %v10541 = vpop.f32.mrf.mxu0
    %v10542 = vadd.f32 0.0, %v10541
    %v10543 = vpop.f32.mrf.mxu0
    %10544 = vmatprep.mubr.f32.mxu0 0.0
    %10545 = vmatmul.mubr.f32.gmra.mxu0 %v10448
    %v10546 = vpop.f32.mrf.mxu0
    %v10547 = vadd.f32 0.0, %v10546
    %v10548 = vpop.f32.mrf.mxu0
    %10549 = vdwg.mxu0
    %v10551 = vsel %vm4925, %v9726, 0
    %v10554 = vsel %vm4925, %v9729, 0
    %v10557 = vsel %vm4925, %v9734, 0
    %v10560 = vsel %vm4925, %v9737, 0
    %v10563 = vsel %vm4925, %v9742, 0
    %v10566 = vsel %vm4925, %v9745, 0
    %v10569 = vsel %vm4925, %v9750, 0
    %10571 = vmatprep.subr.mxu0 0.0
    %10572 = vmatpush1.msra.mxu0 0.0
    %10573 = vmatprep.subr.mxu0 0.0
    %10574 = vmatpush1.msra.mxu0 0.0
    %10575 = vmatprep.subr.mxu0 0.0
    %10576 = vmatpush1.msra.mxu0 0.0
    %10577 = vmatprep.subr.mxu0 0.0
    %10578 = vmatpush1.msra.mxu0 0.0
    %10579 = vmatprep.subr.mxu0 0.0
    %10580 = vmatpush1.msra.mxu0 0.0
    %10581 = vmatprep.subr.mxu0 0.0
    %10582 = vmatpush1.msra.mxu0 0.0
    %10583 = vmatprep.subr.mxu0 0.0
    %10584 = vmatpush1.msra.mxu0 0.0
    %10585 = vmatprep.subr.mxu0 0.0
    %10586 = vmatpush1.msra.mxu0 0.0
    %10587 = vmatprep.subr.mxu0 0.0
    %10588 = vmatpush1.msra.mxu0 0.0
    %10589 = vmatprep.subr.mxu0 0.0
    %10590 = vmatpush1.msra.mxu0 0.0
    %10591 = vmatprep.subr.mxu0 0.0
    %10592 = vmatpush1.msra.mxu0 0.0
    %10593 = vmatprep.subr.mxu0 0.0
    %10594 = vmatpush1.msra.mxu0 0.0
    %10595 = vmatprep.subr.mxu0 0.0
    %10596 = vmatpush1.msra.mxu0 0.0
    %10597 = vmatprep.subr.mxu0 0.0
    %10598 = vmatpush1.msra.mxu0 0.0
    %10599 = vmatprep.subr.mxu0 0.0
    %10600 = vmatpush1.msra.mxu0 0.0
    %10601 = vmatprep.subr.mxu0 0.0
    %10602 = vmatpush1.msra.mxu0 %v9843
    %10603 = vmatprep.subr.mxu0 0.0
    %10604 = vmatpush2.msra.mxu0 0.0
    %10605 = vmatprep.subr.mxu0 0.0
    %10606 = vmatpush2.msra.mxu0 0.0
    %10607 = vmatprep.subr.mxu0 0.0
    %10608 = vmatpush2.msra.mxu0 0.0
    %10609 = vmatprep.subr.mxu0 0.0
    %10610 = vmatpush2.msra.mxu0 0.0
    %10611 = vmatprep.subr.mxu0 0.0
    %10612 = vmatpush2.msra.mxu0 0.0
    %10613 = vmatprep.subr.mxu0 0.0
    %10614 = vmatpush2.msra.mxu0 0.0
    %10615 = vmatprep.subr.mxu0 0.0
    %10616 = vmatpush2.msra.mxu0 0.0
    %10617 = vmatprep.subr.mxu0 0.0
    %10618 = vmatpush2.msra.mxu0 0.0
    %10619 = vmatprep.subr.mxu0 0.0
    %10620 = vmatpush2.msra.mxu0 0.0
    %10621 = vmatprep.subr.mxu0 0.0
    %10622 = vmatpush2.msra.mxu0 0.0
    %10623 = vmatprep.subr.mxu0 0.0
    %10624 = vmatpush2.msra.mxu0 0.0
    %10625 = vmatprep.subr.mxu0 0.0
    %10626 = vmatpush2.msra.mxu0 0.0
    %10627 = vmatprep.subr.mxu0 0.0
    %10628 = vmatpush2.msra.mxu0 0.0
    %10629 = vmatprep.subr.mxu0 0.0
    %10630 = vmatpush2.msra.mxu0 0.0
    %10631 = vmatprep.subr.mxu0 0.0
    %10632 = vmatpush2.msra.mxu0 0.0
    %10633 = vmatprep.subr.mxu0 0.0
    %10634 = vmatpush2.msra.mxu0 0.0
    %10635 = vmatprep.mubr.f32.mxu0 0.0
    %10636 = vmatmul.mubr.f32.gmra.mxu0 %v10551
    %v10637 = vpop.f32.mrf.mxu0
    %v10638 = vadd.f32 0.0, %v10637
    %v10639 = vpop.f32.mrf.mxu0
    %10640 = vmatprep.mubr.f32.mxu0 0.0
    %10641 = vmatmul.mubr.f32.gmra.mxu0 %v10554
    %v10642 = vpop.f32.mrf.mxu0
    %v10643 = vadd.f32 0.0, %v10642
    %v10644 = vpop.f32.mrf.mxu0
    %10645 = vmatprep.mubr.f32.mxu0 0.0
    %10646 = vmatmul.mubr.f32.gmra.mxu0 %v10557
    %v10647 = vpop.f32.mrf.mxu0
    %v10648 = vadd.f32 0.0, %v10647
    %v10649 = vpop.f32.mrf.mxu0
    %10650 = vmatprep.mubr.f32.mxu0 0.0
    %10651 = vmatmul.mubr.f32.gmra.mxu0 %v10560
    %v10652 = vpop.f32.mrf.mxu0
    %v10653 = vadd.f32 0.0, %v10652
    %v10654 = vpop.f32.mrf.mxu0
    %10655 = vmatprep.mubr.f32.mxu0 0.0
    %10656 = vmatmul.mubr.f32.gmra.mxu0 %v10563
    %v10657 = vpop.f32.mrf.mxu0
    %v10658 = vadd.f32 0.0, %v10657
    %v10659 = vpop.f32.mrf.mxu0
    %10660 = vmatprep.mubr.f32.mxu0 0.0
    %10661 = vmatmul.mubr.f32.gmra.mxu0 %v10566
    %v10662 = vpop.f32.mrf.mxu0
    %v10663 = vadd.f32 0.0, %v10662
    %v10664 = vpop.f32.mrf.mxu0
    %10665 = vmatprep.mubr.f32.mxu0 0.0
    %10666 = vmatmul.mubr.f32.gmra.mxu0 %v10569
    %v10667 = vpop.f32.mrf.mxu0
    %v10668 = vadd.f32 0.0, %v10667
    %v10669 = vpop.f32.mrf.mxu0
    %10670 = vdwg.mxu0
    %v10672 = vsel %vm4925, %v9790, 0
    %v10675 = vsel %vm4925, %v9793, 0
    %v10678 = vsel %vm4925, %v9798, 0
    %v10681 = vsel %vm4925, %v9801, 0
    %v10684 = vsel %vm4925, %v9806, 0
    %v10687 = vsel %vm4925, %v9809, 0
    %v10690 = vsel %vm4925, %v9814, 0
    %10692 = vmatprep.subr.mxu0 0.0
    %10693 = vmatpush1.msra.mxu0 0.0
    %10694 = vmatprep.subr.mxu0 0.0
    %10695 = vmatpush1.msra.mxu0 0.0
    %10696 = vmatprep.subr.mxu0 0.0
    %10697 = vmatpush1.msra.mxu0 0.0
    %10698 = vmatprep.subr.mxu0 0.0
    %10699 = vmatpush1.msra.mxu0 0.0
    %10700 = vmatprep.subr.mxu0 0.0
    %10701 = vmatpush1.msra.mxu0 0.0
    %10702 = vmatprep.subr.mxu0 0.0
    %10703 = vmatpush1.msra.mxu0 0.0
    %10704 = vmatprep.subr.mxu0 0.0
    %10705 = vmatpush1.msra.mxu0 0.0
    %10706 = vmatprep.subr.mxu0 0.0
    %10707 = vmatpush1.msra.mxu0 0.0
    %10708 = vmatprep.subr.mxu0 0.0
    %10709 = vmatpush1.msra.mxu0 0.0
    %10710 = vmatprep.subr.mxu0 0.0
    %10711 = vmatpush1.msra.mxu0 0.0
    %10712 = vmatprep.subr.mxu0 0.0
    %10713 = vmatpush1.msra.mxu0 0.0
    %10714 = vmatprep.subr.mxu0 0.0
    %10715 = vmatpush1.msra.mxu0 0.0
    %10716 = vmatprep.subr.mxu0 0.0
    %10717 = vmatpush1.msra.mxu0 0.0
    %10718 = vmatprep.subr.mxu0 0.0
    %10719 = vmatpush1.msra.mxu0 0.0
    %10720 = vmatprep.subr.mxu0 0.0
    %10721 = vmatpush1.msra.mxu0 0.0
    %10722 = vmatprep.subr.mxu0 0.0
    %10723 = vmatpush1.msra.mxu0 %v9843
    %10724 = vmatprep.subr.mxu0 0.0
    %10725 = vmatpush2.msra.mxu0 0.0
    %10726 = vmatprep.subr.mxu0 0.0
    %10727 = vmatpush2.msra.mxu0 0.0
    %10728 = vmatprep.subr.mxu0 0.0
    %10729 = vmatpush2.msra.mxu0 0.0
    %10730 = vmatprep.subr.mxu0 0.0
    %10731 = vmatpush2.msra.mxu0 0.0
    %10732 = vmatprep.subr.mxu0 0.0
    %10733 = vmatpush2.msra.mxu0 0.0
    %10734 = vmatprep.subr.mxu0 0.0
    %10735 = vmatpush2.msra.mxu0 0.0
    %10736 = vmatprep.subr.mxu0 0.0
    %10737 = vmatpush2.msra.mxu0 0.0
    %10738 = vmatprep.subr.mxu0 0.0
    %10739 = vmatpush2.msra.mxu0 0.0
    %10740 = vmatprep.subr.mxu0 0.0
    %10741 = vmatpush2.msra.mxu0 0.0
    %10742 = vmatprep.subr.mxu0 0.0
    %10743 = vmatpush2.msra.mxu0 0.0
    %10744 = vmatprep.subr.mxu0 0.0
    %10745 = vmatpush2.msra.mxu0 0.0
    %10746 = vmatprep.subr.mxu0 0.0
    %10747 = vmatpush2.msra.mxu0 0.0
    %10748 = vmatprep.subr.mxu0 0.0
    %10749 = vmatpush2.msra.mxu0 0.0
    %10750 = vmatprep.subr.mxu0 0.0
    %10751 = vmatpush2.msra.mxu0 0.0
    %10752 = vmatprep.subr.mxu0 0.0
    %10753 = vmatpush2.msra.mxu0 0.0
    %10754 = vmatprep.subr.mxu0 0.0
    %10755 = vmatpush2.msra.mxu0 0.0
    %10756 = vmatprep.mubr.f32.mxu0 0.0
    %10757 = vmatmul.mubr.f32.gmra.mxu0 %v10672
    %v10758 = vpop.f32.mrf.mxu0
    %v10759 = vadd.f32 0.0, %v10758
    %v10760 = vpop.f32.mrf.mxu0
    %10761 = vmatprep.mubr.f32.mxu0 0.0
    %10762 = vmatmul.mubr.f32.gmra.mxu0 %v10675
    %v10763 = vpop.f32.mrf.mxu0
    %v10764 = vadd.f32 0.0, %v10763
    %v10765 = vpop.f32.mrf.mxu0
    %10766 = vmatprep.mubr.f32.mxu0 0.0
    %10767 = vmatmul.mubr.f32.gmra.mxu0 %v10678
    %v10768 = vpop.f32.mrf.mxu0
    %v10769 = vadd.f32 0.0, %v10768
    %v10770 = vpop.f32.mrf.mxu0
    %10771 = vmatprep.mubr.f32.mxu0 0.0
    %10772 = vmatmul.mubr.f32.gmra.mxu0 %v10681
    %v10773 = vpop.f32.mrf.mxu0
    %v10774 = vadd.f32 0.0, %v10773
    %v10775 = vpop.f32.mrf.mxu0
    %10776 = vmatprep.mubr.f32.mxu0 0.0
    %10777 = vmatmul.mubr.f32.gmra.mxu0 %v10684
    %v10778 = vpop.f32.mrf.mxu0
    %v10779 = vadd.f32 0.0, %v10778
    %v10780 = vpop.f32.mrf.mxu0
    %10781 = vmatprep.mubr.f32.mxu0 0.0
    %10782 = vmatmul.mubr.f32.gmra.mxu0 %v10687
    %v10783 = vpop.f32.mrf.mxu0
    %v10784 = vadd.f32 0.0, %v10783
    %v10785 = vpop.f32.mrf.mxu0
    %10786 = vmatprep.mubr.f32.mxu0 0.0
    %10787 = vmatmul.mubr.f32.gmra.mxu0 %v10690
    %v10788 = vpop.f32.mrf.mxu0
    %v10789 = vadd.f32 0.0, %v10788
    %v10790 = vpop.f32.mrf.mxu0
    %10791 = vdwg.mxu0
    %v10792 = vadd.f32 %v9213, %v9912
    %v10793 = vadd.f32 %v9214, %v9917
    %v10794 = vadd.f32 %v9215, %v9922
    %v10795 = vadd.f32 %v9216, %v9927
    %v10796 = vadd.f32 %v9217, %v9932
    %v10797 = vadd.f32 %v9218, %v9937
    %v10798 = vadd.f32 %v9219, %v9942
    %v10799 = vadd.f32 %v9220, %v10033
    %v10800 = vadd.f32 %v9221, %v10038
    %v10801 = vadd.f32 %v9222, %v10043
    %v10802 = vadd.f32 %v9223, %v10048
    %v10803 = vadd.f32 %v9224, %v10053
    %v10804 = vadd.f32 %v9225, %v10058
    %v10805 = vadd.f32 %v9226, %v10063
    %v10806 = vadd.f32 %v9227, %v10154
    %v10807 = vadd.f32 %v9228, %v10159
    %v10808 = vadd.f32 %v9229, %v10164
    %v10809 = vadd.f32 %v9230, %v10169
    %v10810 = vadd.f32 %v9231, %v10174
    %v10811 = vadd.f32 %v9232, %v10179
    %v10812 = vadd.f32 %v9233, %v10184
    %v10813 = vadd.f32 %v9234, %v10275
    %v10814 = vadd.f32 %v9235, %v10280
    %v10815 = vadd.f32 %v9236, %v10285
    %v10816 = vadd.f32 %v9237, %v10290
    %v10817 = vadd.f32 %v9238, %v10295
    %v10818 = vadd.f32 %v9239, %v10300
    %v10819 = vadd.f32 %v9240, %v10305
    %v10820 = vadd.f32 %v9241, %v10396
    %v10821 = vadd.f32 %v9242, %v10401
    %v10822 = vadd.f32 %v9243, %v10406
    %v10823 = vadd.f32 %v9244, %v10411
    %v10824 = vadd.f32 %v9245, %v10416
    %v10825 = vadd.f32 %v9246, %v10421
    %v10826 = vadd.f32 %v9247, %v10426
    %v10827 = vadd.f32 %v9248, %v10517
    %v10828 = vadd.f32 %v9249, %v10522
    %v10829 = vadd.f32 %v9250, %v10527
    %v10830 = vadd.f32 %v9251, %v10532
    %v10831 = vadd.f32 %v9252, %v10537
    %v10832 = vadd.f32 %v9253, %v10542
    %v10833 = vadd.f32 %v9254, %v10547
    %v10834 = vadd.f32 %v9255, %v10638
    %v10835 = vadd.f32 %v9256, %v10643
    %v10836 = vadd.f32 %v9257, %v10648
    %v10837 = vadd.f32 %v9258, %v10653
    %v10838 = vadd.f32 %v9259, %v10658
    %v10839 = vadd.f32 %v9260, %v10663
    %v10840 = vadd.f32 %v9261, %v10668
    %v10841 = vadd.f32 %v9262, %v10759
    %v10842 = vadd.f32 %v9263, %v10764
    %v10843 = vadd.f32 %v9264, %v10769
    %v10844 = vadd.f32 %v9265, %v10774
    %v10845 = vadd.f32 %v9266, %v10779
    %v10846 = vadd.f32 %v9267, %v10784
    %v10847 = vadd.f32 %v9268, %v10789
    %vm10848 = vcmask 121856
    %10849 = vst.msk [vmem:[%s11] sm:$0xff] %vm10848, %v10792
    %10850 = vst.msk [vmem:[%s11 + $0x8] sm:$0xff] %vm10848, %v10793
    %10851 = vst.msk [vmem:[%s11 + $0x10] sm:$0xff] %vm10848, %v10794
    %10852 = vst.msk [vmem:[%s11 + $0x18] sm:$0xff] %vm10848, %v10795
    %10853 = vst.msk [vmem:[%s11 + $0x20] sm:$0xff] %vm10848, %v10796
    %10854 = vst.msk [vmem:[%s11 + $0x28] sm:$0xff] %vm10848, %v10797
    %vm10855 = vcmask 119808
    %10856 = vst.msk [vmem:[%s11 + $0x30] sm:$0x3f] %vm10855, %v10798
    %10857 = vst.msk [vmem:[%s11 + $0x38] sm:$0xff] %vm10848, %v10799
    %10858 = vst.msk [vmem:[%s11 + $0x40] sm:$0xff] %vm10848, %v10800
    %10859 = vst.msk [vmem:[%s11 + $0x48] sm:$0xff] %vm10848, %v10801
    %10860 = vst.msk [vmem:[%s11 + $0x50] sm:$0xff] %vm10848, %v10802
    %10861 = vst.msk [vmem:[%s11 + $0x58] sm:$0xff] %vm10848, %v10803
    %10862 = vst.msk [vmem:[%s11 + $0x60] sm:$0xff] %vm10848, %v10804
    %10863 = vst.msk [vmem:[%s11 + $0x68] sm:$0x3f] %vm10855, %v10805
    %10864 = vst.msk [vmem:[%s11 + $0x70] sm:$0xff] %vm10848, %v10806
    %10865 = vst.msk [vmem:[%s11 + $0x78] sm:$0xff] %vm10848, %v10807
    %10866 = vst.msk [vmem:[%s11 + $0x80] sm:$0xff] %vm10848, %v10808
    %10867 = vst.msk [vmem:[%s11 + $0x88] sm:$0xff] %vm10848, %v10809
    %10868 = vst.msk [vmem:[%s11 + $0x90] sm:$0xff] %vm10848, %v10810
    %10869 = vst.msk [vmem:[%s11 + $0x98] sm:$0xff] %vm10848, %v10811
    %10870 = vst.msk [vmem:[%s11 + $0xa0] sm:$0x3f] %vm10855, %v10812
    %10871 = vst.msk [vmem:[%s11 + $0xa8] sm:$0xff] %vm10848, %v10813
    %10872 = vst.msk [vmem:[%s11 + $0xb0] sm:$0xff] %vm10848, %v10814
    %10873 = vst.msk [vmem:[%s11 + $0xb8] sm:$0xff] %vm10848, %v10815
    %10874 = vst.msk [vmem:[%s11 + $0xc0] sm:$0xff] %vm10848, %v10816
    %10875 = vst.msk [vmem:[%s11 + $0xc8] sm:$0xff] %vm10848, %v10817
    %10876 = vst.msk [vmem:[%s11 + $0xd0] sm:$0xff] %vm10848, %v10818
    %10877 = vst.msk [vmem:[%s11 + $0xd8] sm:$0x3f] %vm10855, %v10819
    %10878 = vst.msk [vmem:[%s11 + $0xe0] sm:$0xff] %vm10848, %v10820
    %10879 = vst.msk [vmem:[%s11 + $0xe8] sm:$0xff] %vm10848, %v10821
    %10880 = vst.msk [vmem:[%s11 + $0xf0] sm:$0xff] %vm10848, %v10822
    %10881 = vst.msk [vmem:[%s11 + $0xf8] sm:$0xff] %vm10848, %v10823
    %10882 = vst.msk [vmem:[%s11 + $0x100] sm:$0xff] %vm10848, %v10824
    %10883 = vst.msk [vmem:[%s11 + $0x108] sm:$0xff] %vm10848, %v10825
    %10884 = vst.msk [vmem:[%s11 + $0x110] sm:$0x3f] %vm10855, %v10826
    %10885 = vst.msk [vmem:[%s11 + $0x118] sm:$0xff] %vm10848, %v10827
    %10886 = vst.msk [vmem:[%s11 + $0x120] sm:$0xff] %vm10848, %v10828
    %10887 = vst.msk [vmem:[%s11 + $0x128] sm:$0xff] %vm10848, %v10829
    %10888 = vst.msk [vmem:[%s11 + $0x130] sm:$0xff] %vm10848, %v10830
    %10889 = vst.msk [vmem:[%s11 + $0x138] sm:$0xff] %vm10848, %v10831
    %10890 = vst.msk [vmem:[%s11 + $0x140] sm:$0xff] %vm10848, %v10832
    %10891 = vst.msk [vmem:[%s11 + $0x148] sm:$0x3f] %vm10855, %v10833
    %10892 = vst.msk [vmem:[%s11 + $0x150] sm:$0xff] %vm10848, %v10834
    %10893 = vst.msk [vmem:[%s11 + $0x158] sm:$0xff] %vm10848, %v10835
    %10894 = vst.msk [vmem:[%s11 + $0x160] sm:$0xff] %vm10848, %v10836
    %10895 = vst.msk [vmem:[%s11 + $0x168] sm:$0xff] %vm10848, %v10837
    %10896 = vst.msk [vmem:[%s11 + $0x170] sm:$0xff] %vm10848, %v10838
    %10897 = vst.msk [vmem:[%s11 + $0x178] sm:$0xff] %vm10848, %v10839
    %10898 = vst.msk [vmem:[%s11 + $0x180] sm:$0x3f] %vm10855, %v10840
    %10899 = vst.msk [vmem:[%s11 + $0x188] sm:$0xff] %vm10848, %v10841
    %10900 = vst.msk [vmem:[%s11 + $0x190] sm:$0xff] %vm10848, %v10842
    %10901 = vst.msk [vmem:[%s11 + $0x198] sm:$0xff] %vm10848, %v10843
    %10902 = vst.msk [vmem:[%s11 + $0x1a0] sm:$0xff] %vm10848, %v10844
    %10903 = vst.msk [vmem:[%s11 + $0x1a8] sm:$0xff] %vm10848, %v10845
    %10904 = vst.msk [vmem:[%s11 + $0x1b0] sm:$0xff] %vm10848, %v10846
    %10905 = vst.msk [vmem:[%s11 + $0x1b8] sm:$0x3f] %vm10855, %v10847
    // Predicated region
    $region54: #{forward.1} parent=1 // pred_check
      _
    $region55: #{forward.1} parent=1 // pred_check_branch
      %10907 = sbr.rel (0) target = $region57
    $region56: #{forward.1} parent=1 // pred_region
      _
    $region57: #{forward.1} parent=1 // pred_fallthru
      _
    // Predicated region
    $region58: #{forward.1} parent=1 // pred_check
      _
    $region59: #{forward.1} parent=1 // pred_check_branch
      %10909 = sbr.rel (0) target = $region61
    $region60: #{forward.1} parent=1 // pred_region
      _
    $region61: #{forward.1} parent=1 // pred_fallthru
      _
    %10910 = vsyncpa [#allocation3], 1
    %10911 = vsyncpa [#allocation5], 1

// kernel: forward.1
$region0: #{forward.1}
  #allocation0 [shape = 'u32[]', space=smem, size = 0x4, offset = 0x4, fixed_abs, tag = 'smem constant byte address 0x4 - core index']
  #allocation1 [shape = 'u32[144,128]{1,0:T(1,128)}', space=vmem, size = 0x12000, scoped, tag = 'internal scratch']
  %s0 = inlined_call_operand.vmem [shape: f32[8,768], index: 0, kind: input, shape index: {}]
  %s1 = inlined_call_operand.hbm [shape: bf16[768,256], index: 1, kind: input, shape index: {}]
  %s2 = inlined_call_operand.vmem [shape: f32[1,256], index: 2, kind: input, shape index: {}]
  %s3 = inlined_call_operand.vmem [shape: bf16[256,128], index: 3, kind: input, shape index: {}]
  %s4 = inlined_call_operand.vmem [shape: f32[1,128], index: 4, kind: input, shape index: {}]
  %s5 = inlined_call_operand.vmem [shape: bf16[128,256], index: 5, kind: input, shape index: {}]
  %s6 = inlined_call_operand.vmem [shape: f32[1,256], index: 6, kind: input, shape index: {}]
  %s7 = inlined_call_operand.hbm [shape: bf16[256,896], index: 7, kind: input, shape index: {}]
  %s8 = inlined_call_operand.vmem [shape: f32[1,896], index: 8, kind: input, shape index: {}]
  %s9 = inlined_call_operand.vmem [shape: f32[8,896], index: 9, kind: output, shape index: {}]
  %s10 = sld [smem:[#allocation0]]
  $region54: #{forward.1} parent=0
    _
  %s12 = ssub.s32 1, %s10
  %s13 = scalar_select 0, %s12, %s10
  $region1: #{forward.1} parent=0
    #allocation2 [shape = 'u8[393216]{0}', space=vmem, size = 0x60000, scoped, tag = 'input window, operand 1, single buffered']
    #allocation3 [shape = 's32[1]{0}', space=sflag, size = 0x4, scoped, tag = 'scoped memory for forward.1']
    #allocation4 [shape = 'u8[458752]{0}', space=vmem, size = 0x70000, scoped, tag = 'input window, operand 7, single buffered']
    #allocation5 [shape = 's32[1]{0}', space=sflag, size = 0x4, scoped, tag = 'scoped memory for forward.1']
    %14 = vsyncpa [#allocation3], 0
    %15 = vsyncpa [#allocation5], 0
    // Predicated region
    $region2: #{forward.1} parent=1 // pred_check
      _
    $region3: #{forward.1} parent=1 // pred_check_branch
      %17 = sbr.rel (0) target = $region5
    $region4: #{forward.1} parent=1 // pred_region
      _
    $region5: #{forward.1} parent=1 // pred_fallthru
      _
    // Predicated region
    $region6: #{forward.1} parent=1 // pred_check
      _
    $region7: #{forward.1} parent=1 // pred_check_branch
      %19 = sbr.rel (0) target = $region9
    $region8: #{forward.1} parent=1 // pred_region
      %s21 = ssub.s32 12288, 12288
      %22 = vsyncadd [#allocation3], %s21
      %s23 = sshll.u32 [#allocation2], 4
      %s24 = int_to_ptr.vmem [resolvable:$true] %s23
      %29 = dma.hbm_to_vmem [thread:$0]  %s1, 12288, %s24, [#allocation3], 128, 128, 8
    $region9: #{forward.1} parent=1 // pred_fallthru
      _
    // Predicated region
    $region10: #{forward.1} parent=1 // pred_check
      _
    $region11: #{forward.1} parent=1 // pred_check_branch
      %31 = sbr.rel (0) target = $region13
    $region12: #{forward.1} parent=1 // pred_region
      _
    $region13: #{forward.1} parent=1 // pred_fallthru
      _
    // Predicated region
    $region14: #{forward.1} parent=1 // pred_check
      _
    $region15: #{forward.1} parent=1 // pred_check_branch
      %33 = sbr.rel (0) target = $region17
    $region16: #{forward.1} parent=1 // pred_region
      _
    $region17: #{forward.1} parent=1 // pred_fallthru
      _
    // Predicated region
    $region18: #{forward.1} parent=1 // pred_check
      _
    $region19: #{forward.1} parent=1 // pred_check_branch
      %35 = sbr.rel (0) target = $region21
    $region20: #{forward.1} parent=1 // pred_region
      _
    $region21: #{forward.1} parent=1 // pred_fallthru
      _
    // Predicated region
    $region22: #{forward.1} parent=1 // pred_check
      _
    $region23: #{forward.1} parent=1 // pred_check_branch
      %37 = sbr.rel (0) target = $region25
    $region24: #{forward.1} parent=1 // pred_region
      _
    $region25: #{forward.1} parent=1 // pred_fallthru
      _
    // Predicated region
    $region26: #{forward.1} parent=1 // pred_check
      _
    $region27: #{forward.1} parent=1 // pred_check_branch
      %39 = sbr.rel (0) target = $region29
    $region28: #{forward.1} parent=1 // pred_region
      _
    $region29: #{forward.1} parent=1 // pred_fallthru
      _
    // Predicated region
    $region30: #{forward.1} parent=1 // pred_check
      _
    $region31: #{forward.1} parent=1 // pred_check_branch
      %41 = sbr.rel (0) target = $region33
    $region32: #{forward.1} parent=1 // pred_region
      %s43 = ssub.s32 14336, 14336
      %44 = vsyncadd [#allocation5], %s43
      %s45 = sshll.u32 [#allocation4], 4
      %s46 = int_to_ptr.vmem [resolvable:$true] %s45
      %51 = dma.hbm_to_vmem [thread:$0]  %s7, 14336, %s46, [#allocation5], 448, 448, 28
    $region33: #{forward.1} parent=1 // pred_fallthru
      _
    // Predicated region
    $region34: #{forward.1} parent=1 // pred_check
      _
    $region35: #{forward.1} parent=1 // pred_check_branch
      %53 = sbr.rel (0) target = $region37
    $region36: #{forward.1} parent=1 // pred_region
      _
    $region37: #{forward.1} parent=1 // pred_fallthru
      _
    // Predicated region
    $region38: #{forward.1} parent=1 // pred_check
      _
    $region39: #{forward.1} parent=1 // pred_check_branch
      %55 = sbr.rel (0) target = $region41
    $region40: #{forward.1} parent=1 // pred_region
      %56 = dma.done [#allocation3], 12288
    $region41: #{forward.1} parent=1 // pred_fallthru
      _
    // Predicated region
    $region42: #{forward.1} parent=1 // pred_check
      _
    $region43: #{forward.1} parent=1 // pred_check_branch
      %58 = sbr.rel (0) target = $region45
    $region44: #{forward.1} parent=1 // pred_region
      %59 = dma.done [#allocation5], 14336
    $region45: #{forward.1} parent=1 // pred_fallthru
      _
    %v61 = vld [vmem:[%s0] sm:$0xff]
    %v62 = vld [vmem:[%s0 + $0x8] sm:$0xff]
    %v63 = vld [vmem:[%s0 + $0x10] sm:$0xff]
    %v64 = vld [vmem:[%s0 + $0x18] sm:$0xff]
    %v65 = vld [vmem:[%s0 + $0x20] sm:$0xff]
    %v66 = vld [vmem:[%s0 + $0x28] sm:$0xff]
    %v67 = vpack.c.bf16 %v61, %v61
    %v68 = vpack.c.bf16 %v62, %v62
    %v69 = vpack.c.bf16 %v63, %v63
    %v70 = vpack.c.bf16 %v64, %v64
    %v71 = vpack.c.bf16 %v65, %v65
    %v72 = vpack.c.bf16 %v66, %v66
    %v73 = vld [vmem:[#allocation2] sm:$0xff]
    %v74 = vld [vmem:[#allocation2 + $0x8] sm:$0xff]
    %v75 = vld [vmem:[#allocation2 + $0x10] sm:$0xff]
    %v76 = vld [vmem:[#allocation2 + $0x18] sm:$0xff]
    %v77 = vld [vmem:[#allocation2 + $0x20] sm:$0xff]
    %v78 = vld [vmem:[#allocation2 + $0x28] sm:$0xff]
    %v79 = vld [vmem:[#allocation2 + $0x30] sm:$0xff]
    %v80 = vld [vmem:[#allocation2 + $0x38] sm:$0xff]
    %v81 = vld [vmem:[#allocation2 + $0x40] sm:$0xff]
    %v82 = vld [vmem:[#allocation2 + $0x48] sm:$0xff]
    %v83 = vld [vmem:[#allocation2 + $0x50] sm:$0xff]
    %v84 = vld [vmem:[#allocation2 + $0x58] sm:$0xff]
    %v85 = vld [vmem:[#allocation2 + $0x60] sm:$0xff]
    %v86 = vld [vmem:[#allocation2 + $0x68] sm:$0xff]
    %v87 = vld [vmem:[#allocation2 + $0x70] sm:$0xff]
    %v88 = vld [vmem:[#allocation2 + $0x78] sm:$0xff]
    %v89 = vld [vmem:[#allocation2 + $0x80] sm:$0xff]
    %v90 = vld [vmem:[#allocation2 + $0x88] sm:$0xff]
    %v91 = vld [vmem:[#allocation2 + $0x90] sm:$0xff]
    %v92 = vld [vmem:[#allocation2 + $0x98] sm:$0xff]
    %v93 = vld [vmem:[#allocation2 + $0xa0] sm:$0xff]
    %v94 = vld [vmem:[#allocation2 + $0xa8] sm:$0xff]
    %v95 = vld [vmem:[#allocation2 + $0xb0] sm:$0xff]
    %v96 = vld [vmem:[#allocation2 + $0xb8] sm:$0xff]
    %v97 = vld [vmem:[#allocation2 + $0xc0] sm:$0xff]
    %v98 = vld [vmem:[#allocation2 + $0xc8] sm:$0xff]
    %v99 = vld [vmem:[#allocation2 + $0xd0] sm:$0xff]
    %v100 = vld [vmem:[#allocation2 + $0xd8] sm:$0xff]
    %v101 = vld [vmem:[#allocation2 + $0xe0] sm:$0xff]
    %v102 = vld [vmem:[#allocation2 + $0xe8] sm:$0xff]
    %v103 = vld [vmem:[#allocation2 + $0xf0] sm:$0xff]
    %v104 = vld [vmem:[#allocation2 + $0xf8] sm:$0xff]
    %v105 = vld [vmem:[#allocation2 + $0x100] sm:$0xff]
    %v106 = vld [vmem:[#allocation2 + $0x108] sm:$0xff]
    %v107 = vld [vmem:[#allocation2 + $0x110] sm:$0xff]
    %v108 = vld [vmem:[#allocation2 + $0x118] sm:$0xff]
    %v109 = vld [vmem:[#allocation2 + $0x120] sm:$0xff]
    %v110 = vld [vmem:[#allocation2 + $0x128] sm:$0xff]
    %v111 = vld [vmem:[#allocation2 + $0x130] sm:$0xff]
    %v112 = vld [vmem:[#allocation2 + $0x138] sm:$0xff]
    %v113 = vld [vmem:[#allocation2 + $0x140] sm:$0xff]
    %v114 = vld [vmem:[#allocation2 + $0x148] sm:$0xff]
    %v115 = vld [vmem:[#allocation2 + $0x150] sm:$0xff]
    %v116 = vld [vmem:[#allocation2 + $0x158] sm:$0xff]
    %v117 = vld [vmem:[#allocation2 + $0x160] sm:$0xff]
    %v118 = vld [vmem:[#allocation2 + $0x168] sm:$0xff]
    %v119 = vld [vmem:[#allocation2 + $0x170] sm:$0xff]
    %v120 = vld [vmem:[#allocation2 + $0x178] sm:$0xff]
    %v121 = vld [vmem:[#allocation2 + $0x180] sm:$0xff]
    %v122 = vld [vmem:[#allocation2 + $0x188] sm:$0xff]
    %v123 = vld [vmem:[#allocation2 + $0x190] sm:$0xff]
    %v124 = vld [vmem:[#allocation2 + $0x198] sm:$0xff]
    %v125 = vld [vmem:[#allocation2 + $0x1a0] sm:$0xff]
    %v126 = vld [vmem:[#allocation2 + $0x1a8] sm:$0xff]
    %v127 = vld [vmem:[#allocation2 + $0x1b0] sm:$0xff]
    %v128 = vld [vmem:[#allocation2 + $0x1b8] sm:$0xff]
    %v129 = vld [vmem:[#allocation2 + $0x1c0] sm:$0xff]
    %v130 = vld [vmem:[#allocation2 + $0x1c8] sm:$0xff]
    %v131 = vld [vmem:[#allocation2 + $0x1d0] sm:$0xff]
    %v132 = vld [vmem:[#allocation2 + $0x1d8] sm:$0xff]
    %v133 = vld [vmem:[#allocation2 + $0x1e0] sm:$0xff]
    %v134 = vld [vmem:[#allocation2 + $0x1e8] sm:$0xff]
    %v135 = vld [vmem:[#allocation2 + $0x1f0] sm:$0xff]
    %v136 = vld [vmem:[#allocation2 + $0x1f8] sm:$0xff]
    %v137 = vld [vmem:[#allocation2 + $0x200] sm:$0xff]
    %v138 = vld [vmem:[#allocation2 + $0x208] sm:$0xff]
    %v139 = vld [vmem:[#allocation2 + $0x210] sm:$0xff]
    %v140 = vld [vmem:[#allocation2 + $0x218] sm:$0xff]
    %v141 = vld [vmem:[#allocation2 + $0x220] sm:$0xff]
    %v142 = vld [vmem:[#allocation2 + $0x228] sm:$0xff]
    %v143 = vld [vmem:[#allocation2 + $0x230] sm:$0xff]
    %v144 = vld [vmem:[#allocation2 + $0x238] sm:$0xff]
    %v145 = vld [vmem:[#allocation2 + $0x240] sm:$0xff]
    %v146 = vld [vmem:[#allocation2 + $0x248] sm:$0xff]
    %v147 = vld [vmem:[#allocation2 + $0x250] sm:$0xff]
    %v148 = vld [vmem:[#allocation2 + $0x258] sm:$0xff]
    %v149 = vld [vmem:[#allocation2 + $0x260] sm:$0xff]
    %v150 = vld [vmem:[#allocation2 + $0x268] sm:$0xff]
    %v151 = vld [vmem:[#allocation2 + $0x270] sm:$0xff]
    %v152 = vld [vmem:[#allocation2 + $0x278] sm:$0xff]
    %v153 = vld [vmem:[#allocation2 + $0x280] sm:$0xff]
    %v154 = vld [vmem:[#allocation2 + $0x288] sm:$0xff]
    %v155 = vld [vmem:[#allocation2 + $0x290] sm:$0xff]
    %v156 = vld [vmem:[#allocation2 + $0x298] sm:$0xff]
    %v157 = vld [vmem:[#allocation2 + $0x2a0] sm:$0xff]
    %v158 = vld [vmem:[#allocation2 + $0x2a8] sm:$0xff]
    %v159 = vld [vmem:[#allocation2 + $0x2b0] sm:$0xff]
    %v160 = vld [vmem:[#allocation2 + $0x2b8] sm:$0xff]
    %v161 = vld [vmem:[#allocation2 + $0x2c0] sm:$0xff]
    %v162 = vld [vmem:[#allocation2 + $0x2c8] sm:$0xff]
    %v163 = vld [vmem:[#allocation2 + $0x2d0] sm:$0xff]
    %v164 = vld [vmem:[#allocation2 + $0x2d8] sm:$0xff]
    %v165 = vld [vmem:[#allocation2 + $0x2e0] sm:$0xff]
    %v166 = vld [vmem:[#allocation2 + $0x2e8] sm:$0xff]
    %v167 = vld [vmem:[#allocation2 + $0x2f0] sm:$0xff]
    %v168 = vld [vmem:[#allocation2 + $0x2f8] sm:$0xff]
    %v169 = vld [vmem:[%s2] sm:$0x3]
    %v171 = vlaneseq
    %v172 = vshrl.u32 %v171, 7
    %v173 = vsub.s32 0, %v172
    %v174 = vrot.slane %v169, %v173
    %v175 = vlaneseq
    %v176 = vshrl.u32 %v175, 7
    %v177 = vsub.s32 1, %v176
    %v178 = vrot.slane %v169, %v177
    %v277 = vunpack.c.l.b16 %v73
    %v278 = vunpack.c.h.b16 %v73
    %v279 = vunpack.c.l.b16 %v74
    %v280 = vunpack.c.h.b16 %v74
    %v281 = vunpack.c.l.b16 %v75
    %v282 = vunpack.c.h.b16 %v75
    %v283 = vunpack.c.l.b16 %v76
    %v284 = vunpack.c.h.b16 %v76
    %v285 = vunpack.c.l.b16 %v77
    %v286 = vunpack.c.h.b16 %v77
    %v287 = vunpack.c.l.b16 %v78
    %v288 = vunpack.c.h.b16 %v78
    %v289 = vunpack.c.l.b16 %v79
    %v290 = vunpack.c.h.b16 %v79
    %v291 = vunpack.c.l.b16 %v80
    %v292 = vunpack.c.h.b16 %v80
    %v293 = vunpack.c.l.b16 %v81
    %v294 = vunpack.c.h.b16 %v81
    %v295 = vunpack.c.l.b16 %v82
    %v296 = vunpack.c.h.b16 %v82
    %v297 = vunpack.c.l.b16 %v83
    %v298 = vunpack.c.h.b16 %v83
    %v299 = vunpack.c.l.b16 %v84
    %v300 = vunpack.c.h.b16 %v84
    %v301 = vunpack.c.l.b16 %v85
    %v302 = vunpack.c.h.b16 %v85
    %v303 = vunpack.c.l.b16 %v86
    %v304 = vunpack.c.h.b16 %v86
    %v305 = vunpack.c.l.b16 %v87
    %v306 = vunpack.c.h.b16 %v87
    %v307 = vunpack.c.l.b16 %v88
    %v308 = vunpack.c.h.b16 %v88
    %v309 = vunpack.c.l.b16 %v89
    %v310 = vunpack.c.h.b16 %v89
    %v311 = vunpack.c.l.b16 %v90
    %v312 = vunpack.c.h.b16 %v90
    %v313 = vunpack.c.l.b16 %v91
    %v314 = vunpack.c.h.b16 %v91
    %v315 = vunpack.c.l.b16 %v92
    %v316 = vunpack.c.h.b16 %v92
    %v317 = vunpack.c.l.b16 %v93
    %v318 = vunpack.c.h.b16 %v93
    %v319 = vunpack.c.l.b16 %v94
    %v320 = vunpack.c.h.b16 %v94
    %v321 = vunpack.c.l.b16 %v95
    %v322 = vunpack.c.h.b16 %v95
    %v323 = vunpack.c.l.b16 %v96
    %v324 = vunpack.c.h.b16 %v96
    %v325 = vunpack.c.l.b16 %v97
    %v326 = vunpack.c.h.b16 %v97
    %v327 = vunpack.c.l.b16 %v98
    %v328 = vunpack.c.h.b16 %v98
    %v329 = vunpack.c.l.b16 %v99
    %v330 = vunpack.c.h.b16 %v99
    %v331 = vunpack.c.l.b16 %v100
    %v332 = vunpack.c.h.b16 %v100
    %v333 = vunpack.c.l.b16 %v101
    %v334 = vunpack.c.h.b16 %v101
    %v335 = vunpack.c.l.b16 %v102
    %v336 = vunpack.c.h.b16 %v102
    %v337 = vunpack.c.l.b16 %v103
    %v338 = vunpack.c.h.b16 %v103
    %v339 = vunpack.c.l.b16 %v104
    %v340 = vunpack.c.h.b16 %v104
    %v341 = vunpack.c.l.b16 %v105
    %v342 = vunpack.c.h.b16 %v105
    %v343 = vunpack.c.l.b16 %v106
    %v344 = vunpack.c.h.b16 %v106
    %v345 = vunpack.c.l.b16 %v107
    %v346 = vunpack.c.h.b16 %v107
    %v347 = vunpack.c.l.b16 %v108
    %v348 = vunpack.c.h.b16 %v108
    %v349 = vunpack.c.l.b16 %v109
    %v350 = vunpack.c.h.b16 %v109
    %v351 = vunpack.c.l.b16 %v110
    %v352 = vunpack.c.h.b16 %v110
    %v353 = vunpack.c.l.b16 %v111
    %v354 = vunpack.c.h.b16 %v111
    %v355 = vunpack.c.l.b16 %v112
    %v356 = vunpack.c.h.b16 %v112
    %v357 = vunpack.c.l.b16 %v113
    %v358 = vunpack.c.h.b16 %v113
    %v359 = vunpack.c.l.b16 %v114
    %v360 = vunpack.c.h.b16 %v114
    %v361 = vunpack.c.l.b16 %v115
    %v362 = vunpack.c.h.b16 %v115
    %v363 = vunpack.c.l.b16 %v116
    %v364 = vunpack.c.h.b16 %v116
    %v365 = vunpack.c.l.b16 %v117
    %v366 = vunpack.c.h.b16 %v117
    %v367 = vunpack.c.l.b16 %v118
    %v368 = vunpack.c.h.b16 %v118
    %v369 = vunpack.c.l.b16 %v119
    %v370 = vunpack.c.h.b16 %v119
    %v371 = vunpack.c.l.b16 %v120
    %v372 = vunpack.c.h.b16 %v120
    %v373 = vunpack.c.l.b16 %v121
    %v374 = vunpack.c.h.b16 %v121
    %v375 = vunpack.c.l.b16 %v122
    %v376 = vunpack.c.h.b16 %v122
    %v377 = vunpack.c.l.b16 %v123
    %v378 = vunpack.c.h.b16 %v123
    %v379 = vunpack.c.l.b16 %v124
    %v380 = vunpack.c.h.b16 %v124
    %v381 = vunpack.c.l.b16 %v125
    %v382 = vunpack.c.h.b16 %v125
    %v383 = vunpack.c.l.b16 %v126
    %v384 = vunpack.c.h.b16 %v126
    %v385 = vunpack.c.l.b16 %v127
    %v386 = vunpack.c.h.b16 %v127
    %v387 = vunpack.c.l.b16 %v128
    %v388 = vunpack.c.h.b16 %v128
    %v389 = vunpack.c.l.b16 %v129
    %v390 = vunpack.c.h.b16 %v129
    %v391 = vunpack.c.l.b16 %v130
    %v392 = vunpack.c.h.b16 %v130
    %v393 = vunpack.c.l.b16 %v131
    %v394 = vunpack.c.h.b16 %v131
    %v395 = vunpack.c.l.b16 %v132
    %v396 = vunpack.c.h.b16 %v132
    %v397 = vunpack.c.l.b16 %v133
    %v398 = vunpack.c.h.b16 %v133
    %v399 = vunpack.c.l.b16 %v134
    %v400 = vunpack.c.h.b16 %v134
    %v401 = vunpack.c.l.b16 %v135
    %v402 = vunpack.c.h.b16 %v135
    %v403 = vunpack.c.l.b16 %v136
    %v404 = vunpack.c.h.b16 %v136
    %v405 = vunpack.c.l.b16 %v137
    %v406 = vunpack.c.h.b16 %v137
    %v407 = vunpack.c.l.b16 %v138
    %v408 = vunpack.c.h.b16 %v138
    %v409 = vunpack.c.l.b16 %v139
    %v410 = vunpack.c.h.b16 %v139
    %v411 = vunpack.c.l.b16 %v140
    %v412 = vunpack.c.h.b16 %v140
    %v413 = vunpack.c.l.b16 %v141
    %v414 = vunpack.c.h.b16 %v141
    %v415 = vunpack.c.l.b16 %v142
    %v416 = vunpack.c.h.b16 %v142
    %v417 = vunpack.c.l.b16 %v143
    %v418 = vunpack.c.h.b16 %v143
    %v419 = vunpack.c.l.b16 %v144
    %v420 = vunpack.c.h.b16 %v144
    %v421 = vunpack.c.l.b16 %v145
    %v422 = vunpack.c.h.b16 %v145
    %v423 = vunpack.c.l.b16 %v146
    %v424 = vunpack.c.h.b16 %v146
    %v425 = vunpack.c.l.b16 %v147
    %v426 = vunpack.c.h.b16 %v147
    %v427 = vunpack.c.l.b16 %v148
    %v428 = vunpack.c.h.b16 %v148
    %v429 = vunpack.c.l.b16 %v149
    %v430 = vunpack.c.h.b16 %v149
    %v431 = vunpack.c.l.b16 %v150
    %v432 = vunpack.c.h.b16 %v150
    %v433 = vunpack.c.l.b16 %v151
    %v434 = vunpack.c.h.b16 %v151
    %v435 = vunpack.c.l.b16 %v152
    %v436 = vunpack.c.h.b16 %v152
    %v437 = vunpack.c.l.b16 %v153
    %v438 = vunpack.c.h.b16 %v153
    %v439 = vunpack.c.l.b16 %v154
    %v440 = vunpack.c.h.b16 %v154
    %v441 = vunpack.c.l.b16 %v155
    %v442 = vunpack.c.h.b16 %v155
    %v443 = vunpack.c.l.b16 %v156
    %v444 = vunpack.c.h.b16 %v156
    %v445 = vunpack.c.l.b16 %v157
    %v446 = vunpack.c.h.b16 %v157
    %v447 = vunpack.c.l.b16 %v158
    %v448 = vunpack.c.h.b16 %v158
    %v449 = vunpack.c.l.b16 %v159
    %v450 = vunpack.c.h.b16 %v159
    %v451 = vunpack.c.l.b16 %v160
    %v452 = vunpack.c.h.b16 %v160
    %v453 = vunpack.c.l.b16 %v161
    %v454 = vunpack.c.h.b16 %v161
    %v455 = vunpack.c.l.b16 %v162
    %v456 = vunpack.c.h.b16 %v162
    %v457 = vunpack.c.l.b16 %v163
    %v458 = vunpack.c.h.b16 %v163
    %v459 = vunpack.c.l.b16 %v164
    %v460 = vunpack.c.h.b16 %v164
    %v461 = vunpack.c.l.b16 %v165
    %v462 = vunpack.c.h.b16 %v165
    %v463 = vunpack.c.l.b16 %v166
    %v464 = vunpack.c.h.b16 %v166
    %v465 = vunpack.c.l.b16 %v167
    %v466 = vunpack.c.h.b16 %v167
    %v467 = vunpack.c.l.b16 %v168
    %v468 = vunpack.c.h.b16 %v168
    %v469 = vpack.c.b16 %v279, %v277
    %v470 = vpack.c.b16 %v280, %v278
    %v471 = vpack.c.b16 %v283, %v281
    %v472 = vpack.c.b16 %v284, %v282
    %v473 = vpack.c.b16 %v287, %v285
    %v474 = vpack.c.b16 %v288, %v286
    %v475 = vpack.c.b16 %v291, %v289
    %v476 = vpack.c.b16 %v292, %v290
    %v477 = vpack.c.b16 %v295, %v293
    %v478 = vpack.c.b16 %v296, %v294
    %v479 = vpack.c.b16 %v299, %v297
    %v480 = vpack.c.b16 %v300, %v298
    %v481 = vpack.c.b16 %v303, %v301
    %v482 = vpack.c.b16 %v304, %v302
    %v483 = vpack.c.b16 %v307, %v305
    %v484 = vpack.c.b16 %v308, %v306
    %v485 = vpack.c.b16 %v311, %v309
    %v486 = vpack.c.b16 %v312, %v310
    %v487 = vpack.c.b16 %v315, %v313
    %v488 = vpack.c.b16 %v316, %v314
    %v489 = vpack.c.b16 %v319, %v317
    %v490 = vpack.c.b16 %v320, %v318
    %v491 = vpack.c.b16 %v323, %v321
    %v492 = vpack.c.b16 %v324, %v322
    %v493 = vpack.c.b16 %v327, %v325
    %v494 = vpack.c.b16 %v328, %v326
    %v495 = vpack.c.b16 %v331, %v329
    %v496 = vpack.c.b16 %v332, %v330
    %v497 = vpack.c.b16 %v335, %v333
    %v498 = vpack.c.b16 %v336, %v334
    %v499 = vpack.c.b16 %v339, %v337
    %v500 = vpack.c.b16 %v340, %v338
    %v501 = vpack.c.b16 %v343, %v341
    %v502 = vpack.c.b16 %v344, %v342
    %v503 = vpack.c.b16 %v347, %v345
    %v504 = vpack.c.b16 %v348, %v346
    %v505 = vpack.c.b16 %v351, %v349
    %v506 = vpack.c.b16 %v352, %v350
    %v507 = vpack.c.b16 %v355, %v353
    %v508 = vpack.c.b16 %v356, %v354
    %v509 = vpack.c.b16 %v359, %v357
    %v510 = vpack.c.b16 %v360, %v358
    %v511 = vpack.c.b16 %v363, %v361
    %v512 = vpack.c.b16 %v364, %v362
    %v513 = vpack.c.b16 %v367, %v365
    %v514 = vpack.c.b16 %v368, %v366
    %v515 = vpack.c.b16 %v371, %v369
    %v516 = vpack.c.b16 %v372, %v370
    %v517 = vpack.c.b16 %v375, %v373
    %v518 = vpack.c.b16 %v376, %v374
    %v519 = vpack.c.b16 %v379, %v377
    %v520 = vpack.c.b16 %v380, %v378
    %v521 = vpack.c.b16 %v383, %v381
    %v522 = vpack.c.b16 %v384, %v382
    %v523 = vpack.c.b16 %v387, %v385
    %v524 = vpack.c.b16 %v388, %v386
    %v525 = vpack.c.b16 %v391, %v389
    %v526 = vpack.c.b16 %v392, %v390
    %v527 = vpack.c.b16 %v395, %v393
    %v528 = vpack.c.b16 %v396, %v394
    %v529 = vpack.c.b16 %v399, %v397
    %v530 = vpack.c.b16 %v400, %v398
    %v531 = vpack.c.b16 %v403, %v401
    %v532 = vpack.c.b16 %v404, %v402
    %v533 = vpack.c.b16 %v407, %v405
    %v534 = vpack.c.b16 %v408, %v406
    %v535 = vpack.c.b16 %v411, %v409
    %v536 = vpack.c.b16 %v412, %v410
    %v537 = vpack.c.b16 %v415, %v413
    %v538 = vpack.c.b16 %v416, %v414
    %v539 = vpack.c.b16 %v419, %v417
    %v540 = vpack.c.b16 %v420, %v418
    %v541 = vpack.c.b16 %v423, %v421
    %v542 = vpack.c.b16 %v424, %v422
    %v543 = vpack.c.b16 %v427, %v425
    %v544 = vpack.c.b16 %v428, %v426
    %v545 = vpack.c.b16 %v431, %v429
    %v546 = vpack.c.b16 %v432, %v430
    %v547 = vpack.c.b16 %v435, %v433
    %v548 = vpack.c.b16 %v436, %v434
    %v549 = vpack.c.b16 %v439, %v437
    %v550 = vpack.c.b16 %v440, %v438
    %v551 = vpack.c.b16 %v443, %v441
    %v552 = vpack.c.b16 %v444, %v442
    %v553 = vpack.c.b16 %v447, %v445
    %v554 = vpack.c.b16 %v448, %v446
    %v555 = vpack.c.b16 %v451, %v449
    %v556 = vpack.c.b16 %v452, %v450
    %v557 = vpack.c.b16 %v455, %v453
    %v558 = vpack.c.b16 %v456, %v454
    %v559 = vpack.c.b16 %v459, %v457
    %v560 = vpack.c.b16 %v460, %v458
    %v561 = vpack.c.b16 %v463, %v461
    %v562 = vpack.c.b16 %v464, %v462
    %v563 = vpack.c.b16 %v467, %v465
    %v564 = vpack.c.b16 %v468, %v466
    %661 = vmatprep.subr.bf16.mxu0 %v484
    %662 = vmatpush1.bf16.msra.mxu0 %v483
    %663 = vmatprep.subr.bf16.mxu0 %v482
    %664 = vmatpush1.bf16.msra.mxu0 %v481
    %665 = vmatprep.subr.bf16.mxu0 %v480
    %666 = vmatpush1.bf16.msra.mxu0 %v479
    %667 = vmatprep.subr.bf16.mxu0 %v478
    %668 = vmatpush1.bf16.msra.mxu0 %v477
    %669 = vmatprep.subr.bf16.mxu0 %v476
    %670 = vmatpush1.bf16.msra.mxu0 %v475
    %671 = vmatprep.subr.bf16.mxu0 %v474
    %672 = vmatpush1.bf16.msra.mxu0 %v473
    %673 = vmatprep.subr.bf16.mxu0 %v472
    %674 = vmatpush1.bf16.msra.mxu0 %v471
    %675 = vmatprep.subr.bf16.mxu0 %v470
    %676 = vmatpush1.bf16.msra.mxu0 %v469
    %677 = vmatprep.subr.bf16.mxu0 %v500
    %678 = vmatpush2.bf16.msra.mxu0 %v499
    %679 = vmatprep.subr.bf16.mxu0 %v498
    %680 = vmatpush2.bf16.msra.mxu0 %v497
    %681 = vmatprep.subr.bf16.mxu0 %v496
    %682 = vmatpush2.bf16.msra.mxu0 %v495
    %683 = vmatprep.subr.bf16.mxu0 %v494
    %684 = vmatpush2.bf16.msra.mxu0 %v493
    %685 = vmatprep.subr.bf16.mxu0 %v492
    %686 = vmatpush2.bf16.msra.mxu0 %v491
    %687 = vmatprep.subr.bf16.mxu0 %v490
    %688 = vmatpush2.bf16.msra.mxu0 %v489
    %689 = vmatprep.subr.bf16.mxu0 %v488
    %690 = vmatpush2.bf16.msra.mxu0 %v487
    %691 = vmatprep.subr.bf16.mxu0 %v486
    %692 = vmatpush2.bf16.msra.mxu0 %v485
    %693 = vmatprep.mubr.bf16.mxu0 %v68
    %694 = vmatmul.mubr.bf16.gmra.mxu0 %v67
    %v695 = vpop.f32.mrf.mxu0
    %v696 = vadd.f32 %v174, %v695
    %v697 = vpop.f32.mrf.mxu0
    %v698 = vadd.f32 %v178, %v697
    %v699 = vpop.f32.mrf.mxu0
    %v700 = vpop.f32.mrf.mxu0
    %701 = vdwg.mxu0
    %702 = vmatprep.subr.bf16.mxu0 %v516
    %703 = vmatpush1.bf16.msra.mxu0 %v515
    %704 = vmatprep.subr.bf16.mxu0 %v514
    %705 = vmatpush1.bf16.msra.mxu0 %v513
    %706 = vmatprep.subr.bf16.mxu0 %v512
    %707 = vmatpush1.bf16.msra.mxu0 %v511
    %708 = vmatprep.subr.bf16.mxu0 %v510
    %709 = vmatpush1.bf16.msra.mxu0 %v509
    %710 = vmatprep.subr.bf16.mxu0 %v508
    %711 = vmatpush1.bf16.msra.mxu0 %v507
    %712 = vmatprep.subr.bf16.mxu0 %v506
    %713 = vmatpush1.bf16.msra.mxu0 %v505
    %714 = vmatprep.subr.bf16.mxu0 %v504
    %715 = vmatpush1.bf16.msra.mxu0 %v503
    %716 = vmatprep.subr.bf16.mxu0 %v502
    %717 = vmatpush1.bf16.msra.mxu0 %v501
    %718 = vmatprep.subr.bf16.mxu0 %v532
    %719 = vmatpush2.bf16.msra.mxu0 %v531
    %720 = vmatprep.subr.bf16.mxu0 %v530
    %721 = vmatpush2.bf16.msra.mxu0 %v529
    %722 = vmatprep.subr.bf16.mxu0 %v528
    %723 = vmatpush2.bf16.msra.mxu0 %v527
    %724 = vmatprep.subr.bf16.mxu0 %v526
    %725 = vmatpush2.bf16.msra.mxu0 %v525
    %726 = vmatprep.subr.bf16.mxu0 %v524
    %727 = vmatpush2.bf16.msra.mxu0 %v523
    %728 = vmatprep.subr.bf16.mxu0 %v522
    %729 = vmatpush2.bf16.msra.mxu0 %v521
    %730 = vmatprep.subr.bf16.mxu0 %v520
    %731 = vmatpush2.bf16.msra.mxu0 %v519
    %732 = vmatprep.subr.bf16.mxu0 %v518
    %733 = vmatpush2.bf16.msra.mxu0 %v517
    %734 = vmatprep.mubr.bf16.mxu0 %v70
    %735 = vmatmul.mubr.bf16.gmra.mxu0 %v69
    %v736 = vpop.f32.mrf.mxu0
    %v737 = vadd.f32 %v696, %v736
    %v738 = vpop.f32.mrf.mxu0
    %v739 = vadd.f32 %v698, %v738
    %v740 = vpop.f32.mrf.mxu0
    %v741 = vpop.f32.mrf.mxu0
    %742 = vdwg.mxu0
    %743 = vmatprep.subr.bf16.mxu0 %v548
    %744 = vmatpush1.bf16.msra.mxu0 %v547
    %745 = vmatprep.subr.bf16.mxu0 %v546
    %746 = vmatpush1.bf16.msra.mxu0 %v545
    %747 = vmatprep.subr.bf16.mxu0 %v544
    %748 = vmatpush1.bf16.msra.mxu0 %v543
    %749 = vmatprep.subr.bf16.mxu0 %v542
    %750 = vmatpush1.bf16.msra.mxu0 %v541
    %751 = vmatprep.subr.bf16.mxu0 %v540
    %752 = vmatpush1.bf16.msra.mxu0 %v539
    %753 = vmatprep.subr.bf16.mxu0 %v538
    %754 = vmatpush1.bf16.msra.mxu0 %v537
    %755 = vmatprep.subr.bf16.mxu0 %v536
    %756 = vmatpush1.bf16.msra.mxu0 %v535
    %757 = vmatprep.subr.bf16.mxu0 %v534
    %758 = vmatpush1.bf16.msra.mxu0 %v533
    %759 = vmatprep.subr.bf16.mxu0 %v564
    %760 = vmatpush2.bf16.msra.mxu0 %v563
    %761 = vmatprep.subr.bf16.mxu0 %v562
    %762 = vmatpush2.bf16.msra.mxu0 %v561
    %763 = vmatprep.subr.bf16.mxu0 %v560
    %764 = vmatpush2.bf16.msra.mxu0 %v559
    %765 = vmatprep.subr.bf16.mxu0 %v558
    %766 = vmatpush2.bf16.msra.mxu0 %v557
    %767 = vmatprep.subr.bf16.mxu0 %v556
    %768 = vmatpush2.bf16.msra.mxu0 %v555
    %769 = vmatprep.subr.bf16.mxu0 %v554
    %770 = vmatpush2.bf16.msra.mxu0 %v553
    %771 = vmatprep.subr.bf16.mxu0 %v552
    %772 = vmatpush2.bf16.msra.mxu0 %v551
    %773 = vmatprep.subr.bf16.mxu0 %v550
    %774 = vmatpush2.bf16.msra.mxu0 %v549
    %775 = vmatprep.mubr.bf16.mxu0 %v72
    %776 = vmatmul.mubr.bf16.gmra.mxu0 %v71
    %v777 = vpop.f32.mrf.mxu0
    %v778 = vadd.f32 %v737, %v777
    %v779 = vpop.f32.mrf.mxu0
    %v780 = vadd.f32 %v739, %v779
    %v781 = vpop.f32.mrf.mxu0
    %v782 = vpop.f32.mrf.mxu0
    %783 = vdwg.mxu0
    %v784 = vmax.f32 %v778, 0.0
    %v785 = vmax.f32 %v780, 0.0
    %v786 = vpack.c.bf16 %v784, %v784
    %v787 = vpack.c.bf16 %v785, %v785
    %v788 = vld [vmem:[%s3] sm:$0xf]
    %v789 = vld [vmem:[%s3 + $0x4] sm:$0xf]
    %v790 = vld [vmem:[%s3 + $0x8] sm:$0xf]
    %v791 = vld [vmem:[%s3 + $0xc] sm:$0xf]
    %v792 = vld [vmem:[%s3 + $0x10] sm:$0xf]
    %v793 = vld [vmem:[%s3 + $0x14] sm:$0xf]
    %v794 = vld [vmem:[%s3 + $0x18] sm:$0xf]
    %v795 = vld [vmem:[%s3 + $0x1c] sm:$0xf]
    %v796 = vld [vmem:[%s3 + $0x20] sm:$0xf]
    %v797 = vld [vmem:[%s3 + $0x24] sm:$0xf]
    %v798 = vld [vmem:[%s3 + $0x28] sm:$0xf]
    %v799 = vld [vmem:[%s3 + $0x2c] sm:$0xf]
    %v800 = vld [vmem:[%s3 + $0x30] sm:$0xf]
    %v801 = vld [vmem:[%s3 + $0x34] sm:$0xf]
    %v802 = vld [vmem:[%s3 + $0x38] sm:$0xf]
    %v803 = vld [vmem:[%s3 + $0x3c] sm:$0xf]
    %v804 = vld [vmem:[%s3 + $0x40] sm:$0xf]
    %v805 = vld [vmem:[%s3 + $0x44] sm:$0xf]
    %v806 = vld [vmem:[%s3 + $0x48] sm:$0xf]
    %v807 = vld [vmem:[%s3 + $0x4c] sm:$0xf]
    %v808 = vld [vmem:[%s3 + $0x50] sm:$0xf]
    %v809 = vld [vmem:[%s3 + $0x54] sm:$0xf]
    %v810 = vld [vmem:[%s3 + $0x58] sm:$0xf]
    %v811 = vld [vmem:[%s3 + $0x5c] sm:$0xf]
    %v812 = vld [vmem:[%s3 + $0x60] sm:$0xf]
    %v813 = vld [vmem:[%s3 + $0x64] sm:$0xf]
    %v814 = vld [vmem:[%s3 + $0x68] sm:$0xf]
    %v815 = vld [vmem:[%s3 + $0x6c] sm:$0xf]
    %v816 = vld [vmem:[%s3 + $0x70] sm:$0xf]
    %v817 = vld [vmem:[%s3 + $0x74] sm:$0xf]
    %v818 = vld [vmem:[%s3 + $0x78] sm:$0xf]
    %v819 = vld [vmem:[%s3 + $0x7c] sm:$0xf]
    %v820 = vld [vmem:[%s4] sm:$0x1]
    %v822 = vlaneseq
    %v823 = vshrl.u32 %v822, 7
    %v824 = vsub.s32 0, %v823
    %v825 = vrot.slane %v820, %v824
    %v859 = vunpack.c.l.b16 %v788
    %v860 = vunpack.c.l.b16 %v789
    %v861 = vunpack.c.l.b16 %v790
    %v862 = vunpack.c.l.b16 %v791
    %v863 = vunpack.c.l.b16 %v792
    %v864 = vunpack.c.l.b16 %v793
    %v865 = vunpack.c.l.b16 %v794
    %v866 = vunpack.c.l.b16 %v795
    %v867 = vunpack.c.l.b16 %v796
    %v868 = vunpack.c.l.b16 %v797
    %v869 = vunpack.c.l.b16 %v798
    %v870 = vunpack.c.l.b16 %v799
    %v871 = vunpack.c.l.b16 %v800
    %v872 = vunpack.c.l.b16 %v801
    %v873 = vunpack.c.l.b16 %v802
    %v874 = vunpack.c.l.b16 %v803
    %v875 = vunpack.c.l.b16 %v804
    %v876 = vunpack.c.l.b16 %v805
    %v877 = vunpack.c.l.b16 %v806
    %v878 = vunpack.c.l.b16 %v807
    %v879 = vunpack.c.l.b16 %v808
    %v880 = vunpack.c.l.b16 %v809
    %v881 = vunpack.c.l.b16 %v810
    %v882 = vunpack.c.l.b16 %v811
    %v883 = vunpack.c.l.b16 %v812
    %v884 = vunpack.c.l.b16 %v813
    %v885 = vunpack.c.l.b16 %v814
    %v886 = vunpack.c.l.b16 %v815
    %v887 = vunpack.c.l.b16 %v816
    %v888 = vunpack.c.l.b16 %v817
    %v889 = vunpack.c.l.b16 %v818
    %v890 = vunpack.c.l.b16 %v819
    %v891 = vpack.c.b16 %v860, %v859
    %v892 = vpack.c.b16 %v862, %v861
    %v893 = vpack.c.b16 %v864, %v863
    %v894 = vpack.c.b16 %v866, %v865
    %v895 = vpack.c.b16 %v868, %v867
    %v896 = vpack.c.b16 %v870, %v869
    %v897 = vpack.c.b16 %v872, %v871
    %v898 = vpack.c.b16 %v874, %v873
    %v899 = vpack.c.b16 %v876, %v875
    %v900 = vpack.c.b16 %v878, %v877
    %v901 = vpack.c.b16 %v880, %v879
    %v902 = vpack.c.b16 %v882, %v881
    %v903 = vpack.c.b16 %v884, %v883
    %v904 = vpack.c.b16 %v886, %v885
    %v905 = vpack.c.b16 %v888, %v887
    %v906 = vpack.c.b16 %v890, %v889
    %923 = vmatprep.subr.bf16.mxu0 0
    %924 = vmatpush1.bf16.msra.mxu0 %v898
    %925 = vmatprep.subr.bf16.mxu0 0
    %926 = vmatpush1.bf16.msra.mxu0 %v897
    %927 = vmatprep.subr.bf16.mxu0 0
    %928 = vmatpush1.bf16.msra.mxu0 %v896
    %929 = vmatprep.subr.bf16.mxu0 0
    %930 = vmatpush1.bf16.msra.mxu0 %v895
    %931 = vmatprep.subr.bf16.mxu0 0
    %932 = vmatpush1.bf16.msra.mxu0 %v894
    %933 = vmatprep.subr.bf16.mxu0 0
    %934 = vmatpush1.bf16.msra.mxu0 %v893
    %935 = vmatprep.subr.bf16.mxu0 0
    %936 = vmatpush1.bf16.msra.mxu0 %v892
    %937 = vmatprep.subr.bf16.mxu0 0
    %938 = vmatpush1.bf16.msra.mxu0 %v891
    %939 = vmatprep.subr.bf16.mxu0 0
    %940 = vmatpush2.bf16.msra.mxu0 %v906
    %941 = vmatprep.subr.bf16.mxu0 0
    %942 = vmatpush2.bf16.msra.mxu0 %v905
    %943 = vmatprep.subr.bf16.mxu0 0
    %944 = vmatpush2.bf16.msra.mxu0 %v904
    %945 = vmatprep.subr.bf16.mxu0 0
    %946 = vmatpush2.bf16.msra.mxu0 %v903
    %947 = vmatprep.subr.bf16.mxu0 0
    %948 = vmatpush2.bf16.msra.mxu0 %v902
    %949 = vmatprep.subr.bf16.mxu0 0
    %950 = vmatpush2.bf16.msra.mxu0 %v901
    %951 = vmatprep.subr.bf16.mxu0 0
    %952 = vmatpush2.bf16.msra.mxu0 %v900
    %953 = vmatprep.subr.bf16.mxu0 0
    %954 = vmatpush2.bf16.msra.mxu0 %v899
    %955 = vmatprep.mubr.bf16.mxu0 %v787
    %956 = vmatmul.mubr.bf16.gmra.mxu0 %v786
    %v957 = vpop.f32.mrf.mxu0
    %v958 = vadd.f32 %v825, %v957
    %v959 = vpop.f32.mrf.mxu0
    %v960 = vpop.f32.mrf.mxu0
    %v961 = vpop.f32.mrf.mxu0
    %962 = vdwg.mxu0
    %v963 = vmax.f32 %v958, 0.0
    %v964 = vpack.c.bf16 %v963, %v963
    %v965 = vld [vmem:[%s5] sm:$0xff]
    %v966 = vld [vmem:[%s5 + $0x8] sm:$0xff]
    %v967 = vld [vmem:[%s5 + $0x10] sm:$0xff]
    %v968 = vld [vmem:[%s5 + $0x18] sm:$0xff]
    %v969 = vld [vmem:[%s5 + $0x20] sm:$0xff]
    %v970 = vld [vmem:[%s5 + $0x28] sm:$0xff]
    %v971 = vld [vmem:[%s5 + $0x30] sm:$0xff]
    %v972 = vld [vmem:[%s5 + $0x38] sm:$0xff]
    %v973 = vld [vmem:[%s5 + $0x40] sm:$0xff]
    %v974 = vld [vmem:[%s5 + $0x48] sm:$0xff]
    %v975 = vld [vmem:[%s5 + $0x50] sm:$0xff]
    %v976 = vld [vmem:[%s5 + $0x58] sm:$0xff]
    %v977 = vld [vmem:[%s5 + $0x60] sm:$0xff]
    %v978 = vld [vmem:[%s5 + $0x68] sm:$0xff]
    %v979 = vld [vmem:[%s5 + $0x70] sm:$0xff]
    %v980 = vld [vmem:[%s5 + $0x78] sm:$0xff]
    %v981 = vld [vmem:[%s6] sm:$0x3]
    %v983 = vlaneseq
    %v984 = vshrl.u32 %v983, 7
    %v985 = vsub.s32 0, %v984
    %v986 = vrot.slane %v981, %v985
    %v987 = vlaneseq
    %v988 = vshrl.u32 %v987, 7
    %v989 = vsub.s32 1, %v988
    %v990 = vrot.slane %v981, %v989
    %v1009 = vunpack.c.l.b16 %v965
    %v1010 = vunpack.c.h.b16 %v965
    %v1011 = vunpack.c.l.b16 %v966
    %v1012 = vunpack.c.h.b16 %v966
    %v1013 = vunpack.c.l.b16 %v967
    %v1014 = vunpack.c.h.b16 %v967
    %v1015 = vunpack.c.l.b16 %v968
    %v1016 = vunpack.c.h.b16 %v968
    %v1017 = vunpack.c.l.b16 %v969
    %v1018 = vunpack.c.h.b16 %v969
    %v1019 = vunpack.c.l.b16 %v970
    %v1020 = vunpack.c.h.b16 %v970
    %v1021 = vunpack.c.l.b16 %v971
    %v1022 = vunpack.c.h.b16 %v971
    %v1023 = vunpack.c.l.b16 %v972
    %v1024 = vunpack.c.h.b16 %v972
    %v1025 = vunpack.c.l.b16 %v973
    %v1026 = vunpack.c.h.b16 %v973
    %v1027 = vunpack.c.l.b16 %v974
    %v1028 = vunpack.c.h.b16 %v974
    %v1029 = vunpack.c.l.b16 %v975
    %v1030 = vunpack.c.h.b16 %v975
    %v1031 = vunpack.c.l.b16 %v976
    %v1032 = vunpack.c.h.b16 %v976
    %v1033 = vunpack.c.l.b16 %v977
    %v1034 = vunpack.c.h.b16 %v977
    %v1035 = vunpack.c.l.b16 %v978
    %v1036 = vunpack.c.h.b16 %v978
    %v1037 = vunpack.c.l.b16 %v979
    %v1038 = vunpack.c.h.b16 %v979
    %v1039 = vunpack.c.l.b16 %v980
    %v1040 = vunpack.c.h.b16 %v980
    %v1041 = vpack.c.b16 %v1011, %v1009
    %v1042 = vpack.c.b16 %v1012, %v1010
    %v1043 = vpack.c.b16 %v1015, %v1013
    %v1044 = vpack.c.b16 %v1016, %v1014
    %v1045 = vpack.c.b16 %v1019, %v1017
    %v1046 = vpack.c.b16 %v1020, %v1018
    %v1047 = vpack.c.b16 %v1023, %v1021
    %v1048 = vpack.c.b16 %v1024, %v1022
    %v1049 = vpack.c.b16 %v1027, %v1025
    %v1050 = vpack.c.b16 %v1028, %v1026
    %v1051 = vpack.c.b16 %v1031, %v1029
    %v1052 = vpack.c.b16 %v1032, %v1030
    %v1053 = vpack.c.b16 %v1035, %v1033
    %v1054 = vpack.c.b16 %v1036, %v1034
    %v1055 = vpack.c.b16 %v1039, %v1037
    %v1056 = vpack.c.b16 %v1040, %v1038
    %1073 = vmatprep.subr.bf16.mxu0 %v1056
    %1074 = vmatpush1.bf16.msra.mxu0 %v1055
    %1075 = vmatprep.subr.bf16.mxu0 %v1054
    %1076 = vmatpush1.bf16.msra.mxu0 %v1053
    %1077 = vmatprep.subr.bf16.mxu0 %v1052
    %1078 = vmatpush1.bf16.msra.mxu0 %v1051
    %1079 = vmatprep.subr.bf16.mxu0 %v1050
    %1080 = vmatpush1.bf16.msra.mxu0 %v1049
    %1081 = vmatprep.subr.bf16.mxu0 %v1048
    %1082 = vmatpush1.bf16.msra.mxu0 %v1047
    %1083 = vmatprep.subr.bf16.mxu0 %v1046
    %1084 = vmatpush1.bf16.msra.mxu0 %v1045
    %1085 = vmatprep.subr.bf16.mxu0 %v1044
    %1086 = vmatpush1.bf16.msra.mxu0 %v1043
    %1087 = vmatprep.subr.bf16.mxu0 %v1042
    %1088 = vmatpush1.bf16.msra.mxu0 %v1041
    %1089 = vmatprep.subr.bf16.mxu0 0
    %1090 = vmatpush2.bf16.msra.mxu0 0
    %1091 = vmatprep.subr.bf16.mxu0 0
    %1092 = vmatpush2.bf16.msra.mxu0 0
    %1093 = vmatprep.subr.bf16.mxu0 0
    %1094 = vmatpush2.bf16.msra.mxu0 0
    %1095 = vmatprep.subr.bf16.mxu0 0
    %1096 = vmatpush2.bf16.msra.mxu0 0
    %1097 = vmatprep.subr.bf16.mxu0 0
    %1098 = vmatpush2.bf16.msra.mxu0 0
    %1099 = vmatprep.subr.bf16.mxu0 0
    %1100 = vmatpush2.bf16.msra.mxu0 0
    %1101 = vmatprep.subr.bf16.mxu0 0
    %1102 = vmatpush2.bf16.msra.mxu0 0
    %1103 = vmatprep.subr.bf16.mxu0 0
    %1104 = vmatpush2.bf16.msra.mxu0 0
    %1105 = vmatprep.mubr.bf16.mxu0 0
    %1106 = vmatmul.mubr.bf16.gmra.mxu0 %v964
    %v1107 = vpop.f32.mrf.mxu0
    %v1108 = vadd.f32 %v986, %v1107
    %v1109 = vpop.f32.mrf.mxu0
    %v1110 = vadd.f32 %v990, %v1109
    %v1111 = vpop.f32.mrf.mxu0
    %v1112 = vpop.f32.mrf.mxu0
    %1113 = vdwg.mxu0
    %v1114 = vmax.f32 %v1108, 0.0
    %v1115 = vmax.f32 %v1110, 0.0
    %v1116 = vpack.c.bf16 %v1114, %v1114
    %v1117 = vpack.c.bf16 %v1115, %v1115
    %v1118 = vld [vmem:[#allocation4] sm:$0xff]
    %v1119 = vld [vmem:[#allocation4 + $0x8] sm:$0xff]
    %v1120 = vld [vmem:[#allocation4 + $0x10] sm:$0xff]
    %v1121 = vld [vmem:[#allocation4 + $0x18] sm:$0xf]
    %v1122 = vld [vmem:[#allocation4 + $0x1c] sm:$0xff]
    %v1123 = vld [vmem:[#allocation4 + $0x24] sm:$0xff]
    %v1124 = vld [vmem:[#allocation4 + $0x2c] sm:$0xff]
    %v1125 = vld [vmem:[#allocation4 + $0x34] sm:$0xf]
    %v1126 = vld [vmem:[#allocation4 + $0x38] sm:$0xff]
    %v1127 = vld [vmem:[#allocation4 + $0x40] sm:$0xff]
    %v1128 = vld [vmem:[#allocation4 + $0x48] sm:$0xff]
    %v1129 = vld [vmem:[#allocation4 + $0x50] sm:$0xf]
    %v1130 = vld [vmem:[#allocation4 + $0x54] sm:$0xff]
    %v1131 = vld [vmem:[#allocation4 + $0x5c] sm:$0xff]
    %v1132 = vld [vmem:[#allocation4 + $0x64] sm:$0xff]
    %v1133 = vld [vmem:[#allocation4 + $0x6c] sm:$0xf]
    %v1134 = vld [vmem:[#allocation4 + $0x70] sm:$0xff]
    %v1135 = vld [vmem:[#allocation4 + $0x78] sm:$0xff]
    %v1136 = vld [vmem:[#allocation4 + $0x80] sm:$0xff]
    %v1137 = vld [vmem:[#allocation4 + $0x88] sm:$0xf]
    %v1138 = vld [vmem:[#allocation4 + $0x8c] sm:$0xff]
    %v1139 = vld [vmem:[#allocation4 + $0x94] sm:$0xff]
    %v1140 = vld [vmem:[#allocation4 + $0x9c] sm:$0xff]
    %v1141 = vld [vmem:[#allocation4 + $0xa4] sm:$0xf]
    %v1142 = vld [vmem:[#allocation4 + $0xa8] sm:$0xff]
    %v1143 = vld [vmem:[#allocation4 + $0xb0] sm:$0xff]
    %v1144 = vld [vmem:[#allocation4 + $0xb8] sm:$0xff]
    %v1145 = vld [vmem:[#allocation4 + $0xc0] sm:$0xf]
    %v1146 = vld [vmem:[#allocation4 + $0xc4] sm:$0xff]
    %v1147 = vld [vmem:[#allocation4 + $0xcc] sm:$0xff]
    %v1148 = vld [vmem:[#allocation4 + $0xd4] sm:$0xff]
    %v1149 = vld [vmem:[#allocation4 + $0xdc] sm:$0xf]
    %v1150 = vld [vmem:[#allocation4 + $0xe0] sm:$0xff]
    %v1151 = vld [vmem:[#allocation4 + $0xe8] sm:$0xff]
    %v1152 = vld [vmem:[#allocation4 + $0xf0] sm:$0xff]
    %v1153 = vld [vmem:[#allocation4 + $0xf8] sm:$0xf]
    %v1154 = vld [vmem:[#allocation4 + $0xfc] sm:$0xff]
    %v1155 = vld [vmem:[#allocation4 + $0x104] sm:$0xff]
    %v1156 = vld [vmem:[#allocation4 + $0x10c] sm:$0xff]
    %v1157 = vld [vmem:[#allocation4 + $0x114] sm:$0xf]
    %v1158 = vld [vmem:[#allocation4 + $0x118] sm:$0xff]
    %v1159 = vld [vmem:[#allocation4 + $0x120] sm:$0xff]
    %v1160 = vld [vmem:[#allocation4 + $0x128] sm:$0xff]
    %v1161 = vld [vmem:[#allocation4 + $0x130] sm:$0xf]
    %v1162 = vld [vmem:[#allocation4 + $0x134] sm:$0xff]
    %v1163 = vld [vmem:[#allocation4 + $0x13c] sm:$0xff]
    %v1164 = vld [vmem:[#allocation4 + $0x144] sm:$0xff]
    %v1165 = vld [vmem:[#allocation4 + $0x14c] sm:$0xf]
    %v1166 = vld [vmem:[#allocation4 + $0x150] sm:$0xff]
    %v1167 = vld [vmem:[#allocation4 + $0x158] sm:$0xff]
    %v1168 = vld [vmem:[#allocation4 + $0x160] sm:$0xff]
    %v1169 = vld [vmem:[#allocation4 + $0x168] sm:$0xf]
    %v1170 = vld [vmem:[#allocation4 + $0x16c] sm:$0xff]
    %v1171 = vld [vmem:[#allocation4 + $0x174] sm:$0xff]
    %v1172 = vld [vmem:[#allocation4 + $0x17c] sm:$0xff]
    %v1173 = vld [vmem:[#allocation4 + $0x184] sm:$0xf]
    %v1174 = vld [vmem:[#allocation4 + $0x188] sm:$0xff]
    %v1175 = vld [vmem:[#allocation4 + $0x190] sm:$0xff]
    %v1176 = vld [vmem:[#allocation4 + $0x198] sm:$0xff]
    %v1177 = vld [vmem:[#allocation4 + $0x1a0] sm:$0xf]
    %v1178 = vld [vmem:[#allocation4 + $0x1a4] sm:$0xff]
    %v1179 = vld [vmem:[#allocation4 + $0x1ac] sm:$0xff]
    %v1180 = vld [vmem:[#allocation4 + $0x1b4] sm:$0xff]
    %v1181 = vld [vmem:[#allocation4 + $0x1bc] sm:$0xf]
    %v1182 = vld [vmem:[#allocation4 + $0x1c0] sm:$0xff]
    %v1183 = vld [vmem:[#allocation4 + $0x1c8] sm:$0xff]
    %v1184 = vld [vmem:[#allocation4 + $0x1d0] sm:$0xff]
    %v1185 = vld [vmem:[#allocation4 + $0x1d8] sm:$0xf]
    %v1186 = vld [vmem:[#allocation4 + $0x1dc] sm:$0xff]
    %v1187 = vld [vmem:[#allocation4 + $0x1e4] sm:$0xff]
    %v1188 = vld [vmem:[#allocation4 + $0x1ec] sm:$0xff]
    %v1189 = vld [vmem:[#allocation4 + $0x1f4] sm:$0xf]
    %v1190 = vld [vmem:[#allocation4 + $0x1f8] sm:$0xff]
    %v1191 = vld [vmem:[#allocation4 + $0x200] sm:$0xff]
    %v1192 = vld [vmem:[#allocation4 + $0x208] sm:$0xff]
    %v1193 = vld [vmem:[#allocation4 + $0x210] sm:$0xf]
    %v1194 = vld [vmem:[#allocation4 + $0x214] sm:$0xff]
    %v1195 = vld [vmem:[#allocation4 + $0x21c] sm:$0xff]
    %v1196 = vld [vmem:[#allocation4 + $0x224] sm:$0xff]
    %v1197 = vld [vmem:[#allocation4 + $0x22c] sm:$0xf]
    %v1198 = vld [vmem:[#allocation4 + $0x230] sm:$0xff]
    %v1199 = vld [vmem:[#allocation4 + $0x238] sm:$0xff]
    %v1200 = vld [vmem:[#allocation4 + $0x240] sm:$0xff]
    %v1201 = vld [vmem:[#allocation4 + $0x248] sm:$0xf]
    %v1202 = vld [vmem:[#allocation4 + $0x24c] sm:$0xff]
    %v1203 = vld [vmem:[#allocation4 + $0x254] sm:$0xff]
    %v1204 = vld [vmem:[#allocation4 + $0x25c] sm:$0xff]
    %v1205 = vld [vmem:[#allocation4 + $0x264] sm:$0xf]
    %v1206 = vld [vmem:[#allocation4 + $0x268] sm:$0xff]
    %v1207 = vld [vmem:[#allocation4 + $0x270] sm:$0xff]
    %v1208 = vld [vmem:[#allocation4 + $0x278] sm:$0xff]
    %v1209 = vld [vmem:[#allocation4 + $0x280] sm:$0xf]
    %v1210 = vld [vmem:[#allocation4 + $0x284] sm:$0xff]
    %v1211 = vld [vmem:[#allocation4 + $0x28c] sm:$0xff]
    %v1212 = vld [vmem:[#allocation4 + $0x294] sm:$0xff]
    %v1213 = vld [vmem:[#allocation4 + $0x29c] sm:$0xf]
    %v1214 = vld [vmem:[#allocation4 + $0x2a0] sm:$0xff]
    %v1215 = vld [vmem:[#allocation4 + $0x2a8] sm:$0xff]
    %v1216 = vld [vmem:[#allocation4 + $0x2b0] sm:$0xff]
    %v1217 = vld [vmem:[#allocation4 + $0x2b8] sm:$0xf]
    %v1218 = vld [vmem:[#allocation4 + $0x2bc] sm:$0xff]
    %v1219 = vld [vmem:[#allocation4 + $0x2c4] sm:$0xff]
    %v1220 = vld [vmem:[#allocation4 + $0x2cc] sm:$0xff]
    %v1221 = vld [vmem:[#allocation4 + $0x2d4] sm:$0xf]
    %v1222 = vld [vmem:[#allocation4 + $0x2d8] sm:$0xff]
    %v1223 = vld [vmem:[#allocation4 + $0x2e0] sm:$0xff]
    %v1224 = vld [vmem:[#allocation4 + $0x2e8] sm:$0xff]
    %v1225 = vld [vmem:[#allocation4 + $0x2f0] sm:$0xf]
    %v1226 = vld [vmem:[#allocation4 + $0x2f4] sm:$0xff]
    %v1227 = vld [vmem:[#allocation4 + $0x2fc] sm:$0xff]
    %v1228 = vld [vmem:[#allocation4 + $0x304] sm:$0xff]
    %v1229 = vld [vmem:[#allocation4 + $0x30c] sm:$0xf]
    %v1230 = vld [vmem:[#allocation4 + $0x310] sm:$0xff]
    %v1231 = vld [vmem:[#allocation4 + $0x318] sm:$0xff]
    %v1232 = vld [vmem:[#allocation4 + $0x320] sm:$0xff]
    %v1233 = vld [vmem:[#allocation4 + $0x328] sm:$0xf]
    %v1234 = vld [vmem:[#allocation4 + $0x32c] sm:$0xff]
    %v1235 = vld [vmem:[#allocation4 + $0x334] sm:$0xff]
    %v1236 = vld [vmem:[#allocation4 + $0x33c] sm:$0xff]
    %v1237 = vld [vmem:[#allocation4 + $0x344] sm:$0xf]
    %v1238 = vld [vmem:[#allocation4 + $0x348] sm:$0xff]
    %v1239 = vld [vmem:[#allocation4 + $0x350] sm:$0xff]
    %v1240 = vld [vmem:[#allocation4 + $0x358] sm:$0xff]
    %v1241 = vld [vmem:[#allocation4 + $0x360] sm:$0xf]
    %v1242 = vld [vmem:[#allocation4 + $0x364] sm:$0xff]
    %v1243 = vld [vmem:[#allocation4 + $0x36c] sm:$0xff]
    %v1244 = vld [vmem:[#allocation4 + $0x374] sm:$0xff]
    %v1245 = vld [vmem:[#allocation4 + $0x37c] sm:$0xf]
    %v1246 = vld [vmem:[%s8] sm:$0xff]
    %v1248 = vlaneseq
    %v1249 = vshrl.u32 %v1248, 7
    %v1250 = vsub.s32 0, %v1249
    %v1251 = vrot.slane %v1246, %v1250
    %v1252 = vlaneseq
    %v1253 = vshrl.u32 %v1252, 7
    %v1254 = vsub.s32 1, %v1253
    %v1255 = vrot.slane %v1246, %v1254
    %v1256 = vlaneseq
    %v1257 = vshrl.u32 %v1256, 7
    %v1258 = vsub.s32 2, %v1257
    %v1259 = vrot.slane %v1246, %v1258
    %v1260 = vlaneseq
    %v1261 = vshrl.u32 %v1260, 7
    %v1262 = vsub.s32 3, %v1261
    %v1263 = vrot.slane %v1246, %v1262
    %v1264 = vlaneseq
    %v1265 = vshrl.u32 %v1264, 7
    %v1266 = vsub.s32 4, %v1265
    %v1267 = vrot.slane %v1246, %v1266
    %v1268 = vlaneseq
    %v1269 = vshrl.u32 %v1268, 7
    %v1270 = vsub.s32 5, %v1269
    %v1271 = vrot.slane %v1246, %v1270
    %v1272 = vlaneseq
    %v1273 = vshrl.u32 %v1272, 7
    %v1274 = vsub.s32 6, %v1273
    %v1275 = vrot.slane %v1246, %v1274
    %v1411 = vunpack.c.l.b16 %v1118
    %v1412 = vunpack.c.h.b16 %v1118
    %v1413 = vunpack.c.l.b16 %v1119
    %v1414 = vunpack.c.h.b16 %v1119
    %v1415 = vunpack.c.l.b16 %v1120
    %v1416 = vunpack.c.h.b16 %v1120
    %v1417 = vunpack.c.l.b16 %v1121
    %v1418 = vunpack.c.l.b16 %v1122
    %v1419 = vunpack.c.h.b16 %v1122
    %v1420 = vunpack.c.l.b16 %v1123
    %v1421 = vunpack.c.h.b16 %v1123
    %v1422 = vunpack.c.l.b16 %v1124
    %v1423 = vunpack.c.h.b16 %v1124
    %v1424 = vunpack.c.l.b16 %v1125
    %v1425 = vunpack.c.l.b16 %v1126
    %v1426 = vunpack.c.h.b16 %v1126
    %v1427 = vunpack.c.l.b16 %v1127
    %v1428 = vunpack.c.h.b16 %v1127
    %v1429 = vunpack.c.l.b16 %v1128
    %v1430 = vunpack.c.h.b16 %v1128
    %v1431 = vunpack.c.l.b16 %v1129
    %v1432 = vunpack.c.l.b16 %v1130
    %v1433 = vunpack.c.h.b16 %v1130
    %v1434 = vunpack.c.l.b16 %v1131
    %v1435 = vunpack.c.h.b16 %v1131
    %v1436 = vunpack.c.l.b16 %v1132
    %v1437 = vunpack.c.h.b16 %v1132
    %v1438 = vunpack.c.l.b16 %v1133
    %v1439 = vunpack.c.l.b16 %v1134
    %v1440 = vunpack.c.h.b16 %v1134
    %v1441 = vunpack.c.l.b16 %v1135
    %v1442 = vunpack.c.h.b16 %v1135
    %v1443 = vunpack.c.l.b16 %v1136
    %v1444 = vunpack.c.h.b16 %v1136
    %v1445 = vunpack.c.l.b16 %v1137
    %v1446 = vunpack.c.l.b16 %v1138
    %v1447 = vunpack.c.h.b16 %v1138
    %v1448 = vunpack.c.l.b16 %v1139
    %v1449 = vunpack.c.h.b16 %v1139
    %v1450 = vunpack.c.l.b16 %v1140
    %v1451 = vunpack.c.h.b16 %v1140
    %v1452 = vunpack.c.l.b16 %v1141
    %v1453 = vunpack.c.l.b16 %v1142
    %v1454 = vunpack.c.h.b16 %v1142
    %v1455 = vunpack.c.l.b16 %v1143
    %v1456 = vunpack.c.h.b16 %v1143
    %v1457 = vunpack.c.l.b16 %v1144
    %v1458 = vunpack.c.h.b16 %v1144
    %v1459 = vunpack.c.l.b16 %v1145
    %v1460 = vunpack.c.l.b16 %v1146
    %v1461 = vunpack.c.h.b16 %v1146
    %v1462 = vunpack.c.l.b16 %v1147
    %v1463 = vunpack.c.h.b16 %v1147
    %v1464 = vunpack.c.l.b16 %v1148
    %v1465 = vunpack.c.h.b16 %v1148
    %v1466 = vunpack.c.l.b16 %v1149
    %v1467 = vunpack.c.l.b16 %v1150
    %v1468 = vunpack.c.h.b16 %v1150
    %v1469 = vunpack.c.l.b16 %v1151
    %v1470 = vunpack.c.h.b16 %v1151
    %v1471 = vunpack.c.l.b16 %v1152
    %v1472 = vunpack.c.h.b16 %v1152
    %v1473 = vunpack.c.l.b16 %v1153
    %v1474 = vunpack.c.l.b16 %v1154
    %v1475 = vunpack.c.h.b16 %v1154
    %v1476 = vunpack.c.l.b16 %v1155
    %v1477 = vunpack.c.h.b16 %v1155
    %v1478 = vunpack.c.l.b16 %v1156
    %v1479 = vunpack.c.h.b16 %v1156
    %v1480 = vunpack.c.l.b16 %v1157
    %v1481 = vunpack.c.l.b16 %v1158
    %v1482 = vunpack.c.h.b16 %v1158
    %v1483 = vunpack.c.l.b16 %v1159
    %v1484 = vunpack.c.h.b16 %v1159
    %v1485 = vunpack.c.l.b16 %v1160
    %v1486 = vunpack.c.h.b16 %v1160
    %v1487 = vunpack.c.l.b16 %v1161
    %v1488 = vunpack.c.l.b16 %v1162
    %v1489 = vunpack.c.h.b16 %v1162
    %v1490 = vunpack.c.l.b16 %v1163
    %v1491 = vunpack.c.h.b16 %v1163
    %v1492 = vunpack.c.l.b16 %v1164
    %v1493 = vunpack.c.h.b16 %v1164
    %v1494 = vunpack.c.l.b16 %v1165
    %v1495 = vunpack.c.l.b16 %v1166
    %v1496 = vunpack.c.h.b16 %v1166
    %v1497 = vunpack.c.l.b16 %v1167
    %v1498 = vunpack.c.h.b16 %v1167
    %v1499 = vunpack.c.l.b16 %v1168
    %v1500 = vunpack.c.h.b16 %v1168
    %v1501 = vunpack.c.l.b16 %v1169
    %v1502 = vunpack.c.l.b16 %v1170
    %v1503 = vunpack.c.h.b16 %v1170
    %v1504 = vunpack.c.l.b16 %v1171
    %v1505 = vunpack.c.h.b16 %v1171
    %v1506 = vunpack.c.l.b16 %v1172
    %v1507 = vunpack.c.h.b16 %v1172
    %v1508 = vunpack.c.l.b16 %v1173
    %v1509 = vunpack.c.l.b16 %v1174
    %v1510 = vunpack.c.h.b16 %v1174
    %v1511 = vunpack.c.l.b16 %v1175
    %v1512 = vunpack.c.h.b16 %v1175
    %v1513 = vunpack.c.l.b16 %v1176
    %v1514 = vunpack.c.h.b16 %v1176
    %v1515 = vunpack.c.l.b16 %v1177
    %v1516 = vunpack.c.l.b16 %v1178
    %v1517 = vunpack.c.h.b16 %v1178
    %v1518 = vunpack.c.l.b16 %v1179
    %v1519 = vunpack.c.h.b16 %v1179
    %v1520 = vunpack.c.l.b16 %v1180
    %v1521 = vunpack.c.h.b16 %v1180
    %v1522 = vunpack.c.l.b16 %v1181
    %v1523 = vunpack.c.l.b16 %v1182
    %v1524 = vunpack.c.h.b16 %v1182
    %v1525 = vunpack.c.l.b16 %v1183
    %v1526 = vunpack.c.h.b16 %v1183
    %v1527 = vunpack.c.l.b16 %v1184
    %v1528 = vunpack.c.h.b16 %v1184
    %v1529 = vunpack.c.l.b16 %v1185
    %v1530 = vunpack.c.l.b16 %v1186
    %v1531 = vunpack.c.h.b16 %v1186
    %v1532 = vunpack.c.l.b16 %v1187
    %v1533 = vunpack.c.h.b16 %v1187
    %v1534 = vunpack.c.l.b16 %v1188
    %v1535 = vunpack.c.h.b16 %v1188
    %v1536 = vunpack.c.l.b16 %v1189
    %v1537 = vunpack.c.l.b16 %v1190
    %v1538 = vunpack.c.h.b16 %v1190
    %v1539 = vunpack.c.l.b16 %v1191
    %v1540 = vunpack.c.h.b16 %v1191
    %v1541 = vunpack.c.l.b16 %v1192
    %v1542 = vunpack.c.h.b16 %v1192
    %v1543 = vunpack.c.l.b16 %v1193
    %v1544 = vunpack.c.l.b16 %v1194
    %v1545 = vunpack.c.h.b16 %v1194
    %v1546 = vunpack.c.l.b16 %v1195
    %v1547 = vunpack.c.h.b16 %v1195
    %v1548 = vunpack.c.l.b16 %v1196
    %v1549 = vunpack.c.h.b16 %v1196
    %v1550 = vunpack.c.l.b16 %v1197
    %v1551 = vunpack.c.l.b16 %v1198
    %v1552 = vunpack.c.h.b16 %v1198
    %v1553 = vunpack.c.l.b16 %v1199
    %v1554 = vunpack.c.h.b16 %v1199
    %v1555 = vunpack.c.l.b16 %v1200
    %v1556 = vunpack.c.h.b16 %v1200
    %v1557 = vunpack.c.l.b16 %v1201
    %v1558 = vunpack.c.l.b16 %v1202
    %v1559 = vunpack.c.h.b16 %v1202
    %v1560 = vunpack.c.l.b16 %v1203
    %v1561 = vunpack.c.h.b16 %v1203
    %v1562 = vunpack.c.l.b16 %v1204
    %v1563 = vunpack.c.h.b16 %v1204
    %v1564 = vunpack.c.l.b16 %v1205
    %v1565 = vunpack.c.l.b16 %v1206
    %v1566 = vunpack.c.h.b16 %v1206
    %v1567 = vunpack.c.l.b16 %v1207
    %v1568 = vunpack.c.h.b16 %v1207
    %v1569 = vunpack.c.l.b16 %v1208
    %v1570 = vunpack.c.h.b16 %v1208
    %v1571 = vunpack.c.l.b16 %v1209
    %v1572 = vunpack.c.l.b16 %v1210
    %v1573 = vunpack.c.h.b16 %v1210
    %v1574 = vunpack.c.l.b16 %v1211
    %v1575 = vunpack.c.h.b16 %v1211
    %v1576 = vunpack.c.l.b16 %v1212
    %v1577 = vunpack.c.h.b16 %v1212
    %v1578 = vunpack.c.l.b16 %v1213
    %v1579 = vunpack.c.l.b16 %v1214
    %v1580 = vunpack.c.h.b16 %v1214
    %v1581 = vunpack.c.l.b16 %v1215
    %v1582 = vunpack.c.h.b16 %v1215
    %v1583 = vunpack.c.l.b16 %v1216
    %v1584 = vunpack.c.h.b16 %v1216
    %v1585 = vunpack.c.l.b16 %v1217
    %v1586 = vunpack.c.l.b16 %v1218
    %v1587 = vunpack.c.h.b16 %v1218
    %v1588 = vunpack.c.l.b16 %v1219
    %v1589 = vunpack.c.h.b16 %v1219
    %v1590 = vunpack.c.l.b16 %v1220
    %v1591 = vunpack.c.h.b16 %v1220
    %v1592 = vunpack.c.l.b16 %v1221
    %v1593 = vunpack.c.l.b16 %v1222
    %v1594 = vunpack.c.h.b16 %v1222
    %v1595 = vunpack.c.l.b16 %v1223
    %v1596 = vunpack.c.h.b16 %v1223
    %v1597 = vunpack.c.l.b16 %v1224
    %v1598 = vunpack.c.h.b16 %v1224
    %v1599 = vunpack.c.l.b16 %v1225
    %v1600 = vunpack.c.l.b16 %v1226
    %v1601 = vunpack.c.h.b16 %v1226
    %v1602 = vunpack.c.l.b16 %v1227
    %v1603 = vunpack.c.h.b16 %v1227
    %v1604 = vunpack.c.l.b16 %v1228
    %v1605 = vunpack.c.h.b16 %v1228
    %v1606 = vunpack.c.l.b16 %v1229
    %v1607 = vunpack.c.l.b16 %v1230
    %v1608 = vunpack.c.h.b16 %v1230
    %v1609 = vunpack.c.l.b16 %v1231
    %v1610 = vunpack.c.h.b16 %v1231
    %v1611 = vunpack.c.l.b16 %v1232
    %v1612 = vunpack.c.h.b16 %v1232
    %v1613 = vunpack.c.l.b16 %v1233
    %v1614 = vunpack.c.l.b16 %v1234
    %v1615 = vunpack.c.h.b16 %v1234
    %v1616 = vunpack.c.l.b16 %v1235
    %v1617 = vunpack.c.h.b16 %v1235
    %v1618 = vunpack.c.l.b16 %v1236
    %v1619 = vunpack.c.h.b16 %v1236
    %v1620 = vunpack.c.l.b16 %v1237
    %v1621 = vunpack.c.l.b16 %v1238
    %v1622 = vunpack.c.h.b16 %v1238
    %v1623 = vunpack.c.l.b16 %v1239
    %v1624 = vunpack.c.h.b16 %v1239
    %v1625 = vunpack.c.l.b16 %v1240
    %v1626 = vunpack.c.h.b16 %v1240
    %v1627 = vunpack.c.l.b16 %v1241
    %v1628 = vunpack.c.l.b16 %v1242
    %v1629 = vunpack.c.h.b16 %v1242
    %v1630 = vunpack.c.l.b16 %v1243
    %v1631 = vunpack.c.h.b16 %v1243
    %v1632 = vunpack.c.l.b16 %v1244
    %v1633 = vunpack.c.h.b16 %v1244
    %v1634 = vunpack.c.l.b16 %v1245
    %v1635 = vpack.c.b16 %v1418, %v1411
    %v1636 = vpack.c.b16 %v1419, %v1412
    %v1637 = vpack.c.b16 %v1420, %v1413
    %v1638 = vpack.c.b16 %v1421, %v1414
    %v1639 = vpack.c.b16 %v1422, %v1415
    %v1640 = vpack.c.b16 %v1423, %v1416
    %v1641 = vpack.c.b16 %v1424, %v1417
    %v1642 = vpack.c.b16 %v1432, %v1425
    %v1643 = vpack.c.b16 %v1433, %v1426
    %v1644 = vpack.c.b16 %v1434, %v1427
    %v1645 = vpack.c.b16 %v1435, %v1428
    %v1646 = vpack.c.b16 %v1436, %v1429
    %v1647 = vpack.c.b16 %v1437, %v1430
    %v1648 = vpack.c.b16 %v1438, %v1431
    %v1649 = vpack.c.b16 %v1446, %v1439
    %v1650 = vpack.c.b16 %v1447, %v1440
    %v1651 = vpack.c.b16 %v1448, %v1441
    %v1652 = vpack.c.b16 %v1449, %v1442
    %v1653 = vpack.c.b16 %v1450, %v1443
    %v1654 = vpack.c.b16 %v1451, %v1444
    %v1655 = vpack.c.b16 %v1452, %v1445
    %v1656 = vpack.c.b16 %v1460, %v1453
    %v1657 = vpack.c.b16 %v1461, %v1454
    %v1658 = vpack.c.b16 %v1462, %v1455
    %v1659 = vpack.c.b16 %v1463, %v1456
    %v1660 = vpack.c.b16 %v1464, %v1457
    %v1661 = vpack.c.b16 %v1465, %v1458
    %v1662 = vpack.c.b16 %v1466, %v1459
    %v1663 = vpack.c.b16 %v1474, %v1467
    %v1664 = vpack.c.b16 %v1475, %v1468
    %v1665 = vpack.c.b16 %v1476, %v1469
    %v1666 = vpack.c.b16 %v1477, %v1470
    %v1667 = vpack.c.b16 %v1478, %v1471
    %v1668 = vpack.c.b16 %v1479, %v1472
    %v1669 = vpack.c.b16 %v1480, %v1473
    %v1670 = vpack.c.b16 %v1488, %v1481
    %v1671 = vpack.c.b16 %v1489, %v1482
    %v1672 = vpack.c.b16 %v1490, %v1483
    %v1673 = vpack.c.b16 %v1491, %v1484
    %v1674 = vpack.c.b16 %v1492, %v1485
    %v1675 = vpack.c.b16 %v1493, %v1486
    %v1676 = vpack.c.b16 %v1494, %v1487
    %v1677 = vpack.c.b16 %v1502, %v1495
    %v1678 = vpack.c.b16 %v1503, %v1496
    %v1679 = vpack.c.b16 %v1504, %v1497
    %v1680 = vpack.c.b16 %v1505, %v1498
    %v1681 = vpack.c.b16 %v1506, %v1499
    %v1682 = vpack.c.b16 %v1507, %v1500
    %v1683 = vpack.c.b16 %v1508, %v1501
    %v1684 = vpack.c.b16 %v1516, %v1509
    %v1685 = vpack.c.b16 %v1517, %v1510
    %v1686 = vpack.c.b16 %v1518, %v1511
    %v1687 = vpack.c.b16 %v1519, %v1512
    %v1688 = vpack.c.b16 %v1520, %v1513
    %v1689 = vpack.c.b16 %v1521, %v1514
    %v1690 = vpack.c.b16 %v1522, %v1515
    %v1691 = vpack.c.b16 %v1530, %v1523
    %v1692 = vpack.c.b16 %v1531, %v1524
    %v1693 = vpack.c.b16 %v1532, %v1525
    %v1694 = vpack.c.b16 %v1533, %v1526
    %v1695 = vpack.c.b16 %v1534, %v1527
    %v1696 = vpack.c.b16 %v1535, %v1528
    %v1697 = vpack.c.b16 %v1536, %v1529
    %v1698 = vpack.c.b16 %v1544, %v1537
    %v1699 = vpack.c.b16 %v1545, %v1538
    %v1700 = vpack.c.b16 %v1546, %v1539
    %v1701 = vpack.c.b16 %v1547, %v1540
    %v1702 = vpack.c.b16 %v1548, %v1541
    %v1703 = vpack.c.b16 %v1549, %v1542
    %v1704 = vpack.c.b16 %v1550, %v1543
    %v1705 = vpack.c.b16 %v1558, %v1551
    %v1706 = vpack.c.b16 %v1559, %v1552
    %v1707 = vpack.c.b16 %v1560, %v1553
    %v1708 = vpack.c.b16 %v1561, %v1554
    %v1709 = vpack.c.b16 %v1562, %v1555
    %v1710 = vpack.c.b16 %v1563, %v1556
    %v1711 = vpack.c.b16 %v1564, %v1557
    %v1712 = vpack.c.b16 %v1572, %v1565
    %v1713 = vpack.c.b16 %v1573, %v1566
    %v1714 = vpack.c.b16 %v1574, %v1567
    %v1715 = vpack.c.b16 %v1575, %v1568
    %v1716 = vpack.c.b16 %v1576, %v1569
    %v1717 = vpack.c.b16 %v1577, %v1570
    %v1718 = vpack.c.b16 %v1578, %v1571
    %v1719 = vpack.c.b16 %v1586, %v1579
    %v1720 = vpack.c.b16 %v1587, %v1580
    %v1721 = vpack.c.b16 %v1588, %v1581
    %v1722 = vpack.c.b16 %v1589, %v1582
    %v1723 = vpack.c.b16 %v1590, %v1583
    %v1724 = vpack.c.b16 %v1591, %v1584
    %v1725 = vpack.c.b16 %v1592, %v1585
    %v1726 = vpack.c.b16 %v1600, %v1593
    %v1727 = vpack.c.b16 %v1601, %v1594
    %v1728 = vpack.c.b16 %v1602, %v1595
    %v1729 = vpack.c.b16 %v1603, %v1596
    %v1730 = vpack.c.b16 %v1604, %v1597
    %v1731 = vpack.c.b16 %v1605, %v1598
    %v1732 = vpack.c.b16 %v1606, %v1599
    %v1733 = vpack.c.b16 %v1614, %v1607
    %v1734 = vpack.c.b16 %v1615, %v1608
    %v1735 = vpack.c.b16 %v1616, %v1609
    %v1736 = vpack.c.b16 %v1617, %v1610
    %v1737 = vpack.c.b16 %v1618, %v1611
    %v1738 = vpack.c.b16 %v1619, %v1612
    %v1739 = vpack.c.b16 %v1620, %v1613
    %v1740 = vpack.c.b16 %v1628, %v1621
    %v1741 = vpack.c.b16 %v1629, %v1622
    %v1742 = vpack.c.b16 %v1630, %v1623
    %v1743 = vpack.c.b16 %v1631, %v1624
    %v1744 = vpack.c.b16 %v1632, %v1625
    %v1745 = vpack.c.b16 %v1633, %v1626
    %v1746 = vpack.c.b16 %v1634, %v1627
    %1859 = vmatprep.subr.bf16.mxu0 %v1685
    %1860 = vmatpush1.bf16.msra.mxu0 %v1684
    %1861 = vmatprep.subr.bf16.mxu0 %v1678
    %1862 = vmatpush1.bf16.msra.mxu0 %v1677
    %1863 = vmatprep.subr.bf16.mxu0 %v1671
    %1864 = vmatpush1.bf16.msra.mxu0 %v1670
    %1865 = vmatprep.subr.bf16.mxu0 %v1664
    %1866 = vmatpush1.bf16.msra.mxu0 %v1663
    %1867 = vmatprep.subr.bf16.mxu0 %v1657
    %1868 = vmatpush1.bf16.msra.mxu0 %v1656
    %1869 = vmatprep.subr.bf16.mxu0 %v1650
    %1870 = vmatpush1.bf16.msra.mxu0 %v1649
    %1871 = vmatprep.subr.bf16.mxu0 %v1643
    %1872 = vmatpush1.bf16.msra.mxu0 %v1642
    %1873 = vmatprep.subr.bf16.mxu0 %v1636
    %1874 = vmatpush1.bf16.msra.mxu0 %v1635
    %1875 = vmatprep.subr.bf16.mxu0 %v1741
    %1876 = vmatpush2.bf16.msra.mxu0 %v1740
    %1877 = vmatprep.subr.bf16.mxu0 %v1734
    %1878 = vmatpush2.bf16.msra.mxu0 %v1733
    %1879 = vmatprep.subr.bf16.mxu0 %v1727
    %1880 = vmatpush2.bf16.msra.mxu0 %v1726
    %1881 = vmatprep.subr.bf16.mxu0 %v1720
    %1882 = vmatpush2.bf16.msra.mxu0 %v1719
    %1883 = vmatprep.subr.bf16.mxu0 %v1713
    %1884 = vmatpush2.bf16.msra.mxu0 %v1712
    %1885 = vmatprep.subr.bf16.mxu0 %v1706
    %1886 = vmatpush2.bf16.msra.mxu0 %v1705
    %1887 = vmatprep.subr.bf16.mxu0 %v1699
    %1888 = vmatpush2.bf16.msra.mxu0 %v1698
    %1889 = vmatprep.subr.bf16.mxu0 %v1692
    %1890 = vmatpush2.bf16.msra.mxu0 %v1691
    %1891 = vmatprep.mubr.bf16.mxu0 %v1117
    %1892 = vmatmul.mubr.bf16.gmra.mxu0 %v1116
    %v1893 = vpop.f32.mrf.mxu0
    %v1894 = vadd.f32 %v1251, %v1893
    %v1895 = vpop.f32.mrf.mxu0
    %v1896 = vadd.f32 %v1255, %v1895
    %v1897 = vpop.f32.mrf.mxu0
    %v1898 = vpop.f32.mrf.mxu0
    %1899 = vdwg.mxu0
    %1900 = vmatprep.subr.bf16.mxu0 %v1687
    %1901 = vmatpush1.bf16.msra.mxu0 %v1686
    %1902 = vmatprep.subr.bf16.mxu0 %v1680
    %1903 = vmatpush1.bf16.msra.mxu0 %v1679
    %1904 = vmatprep.subr.bf16.mxu0 %v1673
    %1905 = vmatpush1.bf16.msra.mxu0 %v1672
    %1906 = vmatprep.subr.bf16.mxu0 %v1666
    %1907 = vmatpush1.bf16.msra.mxu0 %v1665
    %1908 = vmatprep.subr.bf16.mxu0 %v1659
    %1909 = vmatpush1.bf16.msra.mxu0 %v1658
    %1910 = vmatprep.subr.bf16.mxu0 %v1652
    %1911 = vmatpush1.bf16.msra.mxu0 %v1651
    %1912 = vmatprep.subr.bf16.mxu0 %v1645
    %1913 = vmatpush1.bf16.msra.mxu0 %v1644
    %1914 = vmatprep.subr.bf16.mxu0 %v1638
    %1915 = vmatpush1.bf16.msra.mxu0 %v1637
    %1916 = vmatprep.subr.bf16.mxu0 %v1743
    %1917 = vmatpush2.bf16.msra.mxu0 %v1742
    %1918 = vmatprep.subr.bf16.mxu0 %v1736
    %1919 = vmatpush2.bf16.msra.mxu0 %v1735
    %1920 = vmatprep.subr.bf16.mxu0 %v1729
    %1921 = vmatpush2.bf16.msra.mxu0 %v1728
    %1922 = vmatprep.subr.bf16.mxu0 %v1722
    %1923 = vmatpush2.bf16.msra.mxu0 %v1721
    %1924 = vmatprep.subr.bf16.mxu0 %v1715
    %1925 = vmatpush2.bf16.msra.mxu0 %v1714
    %1926 = vmatprep.subr.bf16.mxu0 %v1708
    %1927 = vmatpush2.bf16.msra.mxu0 %v1707
    %1928 = vmatprep.subr.bf16.mxu0 %v1701
    %1929 = vmatpush2.bf16.msra.mxu0 %v1700
    %1930 = vmatprep.subr.bf16.mxu0 %v1694
    %1931 = vmatpush2.bf16.msra.mxu0 %v1693
    %1932 = vmatprep.mubr.bf16.mxu0 %v1117
    %1933 = vmatmul.mubr.bf16.gmra.mxu0 %v1116
    %v1934 = vpop.f32.mrf.mxu0
    %v1935 = vadd.f32 %v1259, %v1934
    %v1936 = vpop.f32.mrf.mxu0
    %v1937 = vadd.f32 %v1263, %v1936
    %v1938 = vpop.f32.mrf.mxu0
    %v1939 = vpop.f32.mrf.mxu0
    %1940 = vdwg.mxu0
    %1941 = vmatprep.subr.bf16.mxu0 %v1689
    %1942 = vmatpush1.bf16.msra.mxu0 %v1688
    %1943 = vmatprep.subr.bf16.mxu0 %v1682
    %1944 = vmatpush1.bf16.msra.mxu0 %v1681
    %1945 = vmatprep.subr.bf16.mxu0 %v1675
    %1946 = vmatpush1.bf16.msra.mxu0 %v1674
    %1947 = vmatprep.subr.bf16.mxu0 %v1668
    %1948 = vmatpush1.bf16.msra.mxu0 %v1667
    %1949 = vmatprep.subr.bf16.mxu0 %v1661
    %1950 = vmatpush1.bf16.msra.mxu0 %v1660
    %1951 = vmatprep.subr.bf16.mxu0 %v1654
    %1952 = vmatpush1.bf16.msra.mxu0 %v1653
    %1953 = vmatprep.subr.bf16.mxu0 %v1647
    %1954 = vmatpush1.bf16.msra.mxu0 %v1646
    %1955 = vmatprep.subr.bf16.mxu0 %v1640
    %1956 = vmatpush1.bf16.msra.mxu0 %v1639
    %1957 = vmatprep.subr.bf16.mxu0 %v1745
    %1958 = vmatpush2.bf16.msra.mxu0 %v1744
    %1959 = vmatprep.subr.bf16.mxu0 %v1738
    %1960 = vmatpush2.bf16.msra.mxu0 %v1737
    %1961 = vmatprep.subr.bf16.mxu0 %v1731
    %1962 = vmatpush2.bf16.msra.mxu0 %v1730
    %1963 = vmatprep.subr.bf16.mxu0 %v1724
    %1964 = vmatpush2.bf16.msra.mxu0 %v1723
    %1965 = vmatprep.subr.bf16.mxu0 %v1717
    %1966 = vmatpush2.bf16.msra.mxu0 %v1716
    %1967 = vmatprep.subr.bf16.mxu0 %v1710
    %1968 = vmatpush2.bf16.msra.mxu0 %v1709
    %1969 = vmatprep.subr.bf16.mxu0 %v1703
    %1970 = vmatpush2.bf16.msra.mxu0 %v1702
    %1971 = vmatprep.subr.bf16.mxu0 %v1696
    %1972 = vmatpush2.bf16.msra.mxu0 %v1695
    %1973 = vmatprep.mubr.bf16.mxu0 %v1117
    %1974 = vmatmul.mubr.bf16.gmra.mxu0 %v1116
    %v1975 = vpop.f32.mrf.mxu0
    %v1976 = vadd.f32 %v1267, %v1975
    %v1977 = vpop.f32.mrf.mxu0
    %v1978 = vadd.f32 %v1271, %v1977
    %v1979 = vpop.f32.mrf.mxu0
    %v1980 = vpop.f32.mrf.mxu0
    %1981 = vdwg.mxu0
    %1982 = vmatprep.subr.bf16.mxu0 0
    %1983 = vmatpush1.bf16.msra.mxu0 %v1690
    %1984 = vmatprep.subr.bf16.mxu0 0
    %1985 = vmatpush1.bf16.msra.mxu0 %v1683
    %1986 = vmatprep.subr.bf16.mxu0 0
    %1987 = vmatpush1.bf16.msra.mxu0 %v1676
    %1988 = vmatprep.subr.bf16.mxu0 0
    %1989 = vmatpush1.bf16.msra.mxu0 %v1669
    %1990 = vmatprep.subr.bf16.mxu0 0
    %1991 = vmatpush1.bf16.msra.mxu0 %v1662
    %1992 = vmatprep.subr.bf16.mxu0 0
    %1993 = vmatpush1.bf16.msra.mxu0 %v1655
    %1994 = vmatprep.subr.bf16.mxu0 0
    %1995 = vmatpush1.bf16.msra.mxu0 %v1648
    %1996 = vmatprep.subr.bf16.mxu0 0
    %1997 = vmatpush1.bf16.msra.mxu0 %v1641
    %1998 = vmatprep.subr.bf16.mxu0 0
    %1999 = vmatpush2.bf16.msra.mxu0 %v1746
    %2000 = vmatprep.subr.bf16.mxu0 0
    %2001 = vmatpush2.bf16.msra.mxu0 %v1739
    %2002 = vmatprep.subr.bf16.mxu0 0
    %2003 = vmatpush2.bf16.msra.mxu0 %v1732
    %2004 = vmatprep.subr.bf16.mxu0 0
    %2005 = vmatpush2.bf16.msra.mxu0 %v1725
    %2006 = vmatprep.subr.bf16.mxu0 0
    %2007 = vmatpush2.bf16.msra.mxu0 %v1718
    %2008 = vmatprep.subr.bf16.mxu0 0
    %2009 = vmatpush2.bf16.msra.mxu0 %v1711
    %2010 = vmatprep.subr.bf16.mxu0 0
    %2011 = vmatpush2.bf16.msra.mxu0 %v1704
    %2012 = vmatprep.subr.bf16.mxu0 0
    %2013 = vmatpush2.bf16.msra.mxu0 %v1697
    %2014 = vmatprep.mubr.bf16.mxu0 %v1117
    %2015 = vmatmul.mubr.bf16.gmra.mxu0 %v1116
    %v2016 = vpop.f32.mrf.mxu0
    %v2017 = vadd.f32 %v1275, %v2016
    %v2018 = vpop.f32.mrf.mxu0
    %v2019 = vpop.f32.mrf.mxu0
    %v2020 = vpop.f32.mrf.mxu0
    %2021 = vdwg.mxu0
    %2022 = vst [vmem:[%s9] sm:$0xff] %v1894
    %2023 = vst [vmem:[%s9 + $0x8] sm:$0xff] %v1896
    %2024 = vst [vmem:[%s9 + $0x10] sm:$0xff] %v1935
    %2025 = vst [vmem:[%s9 + $0x18] sm:$0xff] %v1937
    %2026 = vst [vmem:[%s9 + $0x20] sm:$0xff] %v1976
    %2027 = vst [vmem:[%s9 + $0x28] sm:$0xff] %v1978
    %2028 = vst [vmem:[%s9 + $0x30] sm:$0xff] %v2017
    // Predicated region
    $region46: #{forward.1} parent=1 // pred_check
      _
    $region47: #{forward.1} parent=1 // pred_check_branch
      %2030 = sbr.rel (0) target = $region49
    $region48: #{forward.1} parent=1 // pred_region
      _
    $region49: #{forward.1} parent=1 // pred_fallthru
      _
    // Predicated region
    $region50: #{forward.1} parent=1 // pred_check
      _
    $region51: #{forward.1} parent=1 // pred_check_branch
      %2032 = sbr.rel (0) target = $region53
    $region52: #{forward.1} parent=1 // pred_region
      _
    $region53: #{forward.1} parent=1 // pred_fallthru
      _
    %2033 = vsyncpa [#allocation3], 1
    %2034 = vsyncpa [#allocation5], 1

</llo_original>
